<compile_context>
chip_gen: v7x
topology: tpu7x:2x2x1
jax: 0.10.0
libtpu: 0.0.40
codegen_flags: <defaults>
</compile_context>

<pallas_src>
import functools

import jax
import jax.numpy as jnp
from jax import lax
from jax.experimental import pallas as pl
from jax.experimental.pallas import tpu as pltpu

EPS = 1e-5
LANE = 128


# ------------------------------- small helpers -------------------------------
def _round_up(x, m):
    return (x + m - 1) // m * m


def _pad2(a, rows, cols):
    return jnp.pad(a, ((0, rows - a.shape[0]), (0, cols - a.shape[1])))


def _vmem_capacity_bytes():
    """Per-core VMEM capacity; conservative 64 MiB (v7x) if the query fails."""
    try:
        cap = getattr(pltpu.get_tpu_info(), "vmem_capacity_bytes", None)
        if cap:
            return int(cap)
    except Exception:
        pass
    return 64 * 1024 * 1024


def _pick_row_tile(rows, cap=1024, min_steps=8):
    """Largest multiple-of-8 divisor of `rows` <= cap, keeping >= min_steps
    grid steps when possible (v7x megacore + pipelining)."""
    cap = min(cap, max(8, rows // min_steps))
    if rows <= cap:
        return rows
    t = cap - (cap % 8)
    while t >= 8:
        if rows % t == 0:
            return t
        t -= 8
    return rows


def _tile_stats(y):
    """(rows, C) -> (1, 2, C): [sum, sum_of_squares] over rows (one-pass BN)."""
    s = jnp.sum(y, axis=0, keepdims=True)
    ss = jnp.sum(y * y, axis=0, keepdims=True)
    return jnp.concatenate([s, ss], axis=0)[None]


def _bn_affine(stats, count, gamma_row, beta_row):
    """Reduce per-tile [sum, sumsq] partials to per-channel (scale, shift)."""
    s = jnp.sum(stats, axis=0)                                  # (2, C)
    mean = (s[0] / count).reshape(1, -1)
    var = jnp.maximum((s[1] / count).reshape(1, -1) - mean * mean, 0.0)
    scale = gamma_row * lax.rsqrt(var + EPS)
    shift = beta_row - mean * scale
    return scale, shift


# ------------------------------ fused kernel ---------------------------------
def _fused_kernel(x_ref, w1aug_ref, bres_ref, w2_ref, w3_ref,
                  g1_ref, be1_ref, g2_ref, be2_ref, g3_ref, be3_ref,
                  out_ref, *, n, lo, cm, cout, r):
    """Whole bottleneck in one launch; everything VMEM-resident.

    x_ref:     (R, Ci)           channels-last, stride already applied, padded
    w1aug_ref: (Ci, Cm + Co)     [conv1 | residual] fused 1x1 weights
    w2_ref:    (3, Cm, Cm)       k=3 conv taps (tap k maps h1[l+k-1])
    w3_ref:    (Cm, Co)
    out_ref:   (N, Cout, Lo)     final NCL output (lane-dense: Lo on lanes)
    """
    x = x_ref[...]
    t = jnp.dot(x, w1aug_ref[...], preferred_element_type=jnp.float32)
    y1 = t[:, :cm]                                   # conv1 output (R, Cm)
    res = t[:, cm:] + bres_ref[...]                  # residual branch (R, Co)

    inv_r = 1.0 / r

    def bn_relu(y, g_ref, b_ref):
        # training-mode BN with batch stats over all R = N*Lo rows, in f32
        mean = jnp.sum(y, axis=0, keepdims=True) * inv_r
        var = jnp.maximum(jnp.sum(y * y, axis=0, keepdims=True) * inv_r
                          - mean * mean, 0.0)
        scale = g_ref[...] * lax.rsqrt(var + EPS)
        shift = b_ref[...] - mean * scale
        return jnp.maximum(y * scale + shift, 0.0)

    h1 = bn_relu(y1, g1_ref, be1_ref)                # (R, Cm)

    # k=3, padding=1 conv: y2[l] = h1[l-1]@W0 + h1[l]@W1 + h1[l+1]@W2.
    # Batches are stacked along rows, so mask the wrap-around at l==0 / l==Lo-1
    # (which also kills any cross-batch leakage).
    pos = lax.broadcasted_iota(jnp.int32, (r, cm), 0) % lo
    h1_m1 = jnp.where(pos == 0, 0.0, pltpu.roll(h1, shift=1, axis=0))       # h1[l-1]
    h1_p1 = jnp.where(pos == lo - 1, 0.0, pltpu.roll(h1, shift=r - 1, axis=0))  # h1[l+1]
    y2 = (jnp.dot(h1_m1, w2_ref[0], preferred_element_type=jnp.float32)
          + jnp.dot(h1, w2_ref[1], preferred_element_type=jnp.float32)
          + jnp.dot(h1_p1, w2_ref[2], preferred_element_type=jnp.float32))

    h2 = bn_relu(y2, g2_ref, be2_ref)                # (R, Cm)
    y3 = jnp.dot(h2, w3_ref[...], preferred_element_type=jnp.float32)       # (R, Co)
    h3 = bn_relu(y3, g3_ref, be3_ref)
    out = h3 + res                                   # (R, Co)

    # Emit NCL directly: (R, Co) -> (N, Lo, Co) -> (N, Co, Lo) -> slice channels.
    out3 = out.reshape(n, lo, out.shape[1])
    out_ref[...] = jnp.transpose(out3, (0, 2, 1))[:, :cout, :]


# -------------------------- multi-pass fallback kernels -----------------------
def _pass_a_kernel(x_ref, w1_ref, y1_ref, st_ref):
    y1 = jnp.dot(x_ref[...], w1_ref[...], preferred_element_type=jnp.float32)
    y1_ref[...] = y1
    st_ref[...] = _tile_stats(y1)                     # partial BN1 stats


def _pass_b_kernel(y1_ref, w2_ref, sc_ref, sh_ref, y2_ref, st_ref, *, lo):
    # BN1 (precomputed affine) + ReLU, then the k=3 conv as three accumulating
    # dots on shifted/masked inputs (small live working set).
    h1 = jnp.maximum(y1_ref[0] * sc_ref[...] + sh_ref[...], 0.0)            # (Lo, Cm)
    cm = h1.shape[1]
    row = lax.broadcasted_iota(jnp.int32, (lo, cm), 0)
    h1_m1 = jnp.where(row == 0, 0.0, pltpu.roll(h1, shift=1, axis=0))
    h1_p1 = jnp.where(row == lo - 1, 0.0, pltpu.roll(h1, shift=lo - 1, axis=0))
    y2 = (jnp.dot(h1_m1, w2_ref[0], preferred_element_type=jnp.float32)
          + jnp.dot(h1, w2_ref[1], preferred_element_type=jnp.float32)
          + jnp.dot(h1_p1, w2_ref[2], preferred_element_type=jnp.float32))
    y2_ref[0] = y2
    st_ref[...] = _tile_stats(y2)                     # partial BN2 stats


def _pass_c_kernel(y2_ref, w3_ref, sc_ref, sh_ref, y3_ref, st_ref):
    h2 = jnp.maximum(y2_ref[...] * sc_ref[...] + sh_ref[...], 0.0)
    y3 = jnp.dot(h2, w3_ref[...], preferred_element_type=jnp.float32)
    y3_ref[...] = y3
    st_ref[...] = _tile_stats(y3)                     # partial BN3 stats


def _pass_d_kernel(y3_ref, x_ref, wres_ref, bres_ref, sc_ref, sh_ref, o_ref):
    # BN3 + ReLU + residual add; the residual is recomputed here from x (pure
    # bandwidth win: no (R, Co) HBM round trip for `res`).
    res = jnp.dot(x_ref[...], wres_ref[...],
                  preferred_element_type=jnp.float32) + bres_ref[...]
    o_ref[...] = jnp.maximum(y3_ref[...] * sc_ref[...] + sh_ref[...], 0.0) + res


def _bottleneck_multipass(x2d, w1, w2s, w3, wres, bres,
                          g1, be1, g2, be2, g3, be3,
                          N, Lo, Cm, Co, Cout, vmem_limit):
    R, Ci = x2d.shape
    TR = _pick_row_tile(R)
    T = R // TR
    cparams = pltpu.CompilerParams(dimension_semantics=("parallel",),
                                   vmem_limit_bytes=vmem_limit)
    row_spec = lambda c: pl.BlockSpec((TR, c), lambda i: (i, 0))
    full2 = lambda s: pl.BlockSpec(s, lambda i: (0, 0))
    full3 = lambda s: pl.BlockSpec(s, lambda i: (0, 0, 0))
    st_spec = lambda c: pl.BlockSpec((1, 2, c), lambda i: (i, 0, 0))

    # ---- pass A: conv1 matmul + BN1 partial stats ----
    y1, st1 = pl.pallas_call(
        _pass_a_kernel, grid=(T,),
        in_specs=[row_spec(Ci), full2((Ci, Cm))],
        out_specs=(row_spec(Cm), st_spec(Cm)),
        out_shape=(jax.ShapeDtypeStruct((R, Cm), jnp.float32),
                   jax.ShapeDtypeStruct((T, 2, Cm), jnp.float32)),
        compiler_params=cparams)(x2d, w1)
    sc1, sh1 = _bn_affine(st1, R, g1, be1)

    # ---- pass B: BN1+ReLU, 3-tap k=3 conv (full L per batch in VMEM), BN2 stats
    # TODO(synk): tile the Lo axis with a +/-1 halo for very long sequences.
    y1r = y1.reshape(N, Lo, Cm)
    y2r, st2 = pl.pallas_call(
        functools.partial(_pass_b_kernel, lo=Lo), grid=(N,),
        in_specs=[pl.BlockSpec((1, Lo, Cm), lambda n: (n, 0, 0)),
                  full3((3, Cm, Cm)), full2((1, Cm)), full2((1, Cm))],
        out_specs=(pl.BlockSpec((1, Lo, Cm), lambda n: (n, 0, 0)),
                   pl.BlockSpec((1, 2, Cm), lambda n: (n, 0, 0))),
        out_shape=(jax.ShapeDtypeStruct((N, Lo, Cm), jnp.float32),
                   jax.ShapeDtypeStruct((N, 2, Cm), jnp.float32)),
        compiler_params=cparams)(y1r, w2s, sc1, sh1)
    sc2, sh2 = _bn_affine(st2, R, g2, be2)

    # ---- pass C: BN2+ReLU, conv3 matmul, BN3 partial stats ----
    y2 = y2r.reshape(R, Cm)
    y3, st3 = pl.pallas_call(
        _pass_c_kernel, grid=(T,),
        in_specs=[row_spec(Cm), full2((Cm, Co)), full2((1, Cm)), full2((1, Cm))],
        out_specs=(row_spec(Co), st_spec(Co)),
        out_shape=(jax.ShapeDtypeStruct((R, Co), jnp.float32),
                   jax.ShapeDtypeStruct((T, 2, Co), jnp.float32)),
        compiler_params=cparams)(y2, w3, sc2, sh2)
    sc3, sh3 = _bn_affine(st3, R, g3, be3)

    # ---- pass D: BN3+ReLU + recomputed residual ----
    out2d = pl.pallas_call(
        _pass_d_kernel, grid=(T,),
        in_specs=[row_spec(Co), row_spec(Ci), full2((Ci, Co)), full2((1, Co)),
                  full2((1, Co)), full2((1, Co))],
        out_specs=row_spec(Co),
        out_shape=jax.ShapeDtypeStruct((R, Co), jnp.float32),
        compiler_params=cparams)(y3, x2d, wres, bres, sc3, sh3)

    out = out2d[:, :Cout].reshape(N, Lo, Cout)
    return jnp.transpose(out, (0, 2, 1))               # back to NCL


# --------------------------------- wrapper ------------------------------------
def bottleneck_forward(x_ncl, params, stride, force_multipass=False):
    """x_ncl: (N, Cin, L) float32 (PyTorch NCL layout). Returns (N, Cout, Lo)."""
    N, Cin, L = x_ncl.shape
    Cmed = params["w1"].shape[0]
    Cout = params["w3"].shape[0]

    # Lane-dense (128-multiple) padded channel sizes.
    Ci = _round_up(Cin, LANE)
    Cm = _round_up(Cmed, LANE)
    Co = _round_up(Cout, LANE)

    # Cheap XLA glue on the (tiny) input: NCL -> NLC, apply the k=1 stride by
    # subsampling L, flatten rows, zero-pad channels.  Padded channels stay
    # exactly zero through every stage.
    x_nlc = jnp.transpose(x_ncl, (0, 2, 1))[:, ::stride, :]
    Lo = x_nlc.shape[1]
    R = N * Lo
    x2d = _pad2(x_nlc.reshape(R, Cin), R, Ci)

    # Weights in channels-last matmul form, zero-padded.  Pre-BN conv biases
    # b1/b2/b3 are dropped: they cancel against the batch-stat mean subtraction.
    w1 = _pad2(params["w1"][:, :, 0].T, Ci, Cm)                      # (Ci, Cm)
    if "wres" in params:                                             # Cin != Cout
        wres = _pad2(params["wres"][:, :, 0].T, Ci, Co)              # (Ci, Co)
        bres_v = params["bres"]
    else:                                                            # identity residual
        wres = _pad2(jnp.eye(Cin, dtype=jnp.float32), Ci, Co)
        bres_v = jnp.zeros((Cout,), jnp.float32)
    w2s = jnp.stack([_pad2(params["w2"][:, :, k].T, Cm, Cm) for k in range(3)], 0)
    w3 = _pad2(params["w3"][:, :, 0].T, Cm, Co)                      # (Cm, Co)

    def vec(v, c):
        return jnp.pad(v, (0, c - v.shape[0])).reshape(1, c)

    bres = vec(bres_v, Co)
    g1, be1 = vec(params["g1"], Cm), vec(params["be1"], Cm)
    g2, be2 = vec(params["g2"], Cm), vec(params["be2"], Cm)
    g3, be3 = vec(params["g3"], Co), vec(params["be3"], Co)

    # Per-generation VMEM budget (v7x: 64 MiB/core, v5e/v6e: 128 MiB).
    cap = _vmem_capacity_bytes()
    vmem_limit = max(32 * 1024 * 1024, int(cap * 0.75))

    # Generous estimate of the fused kernel's peak VMEM-resident footprint.
    weight_bytes = 4 * (Ci * (Cm + Co) + 3 * Cm * Cm + Cm * Co)
    footprint = 4 * R * (Ci + 7 * Cm + 6 * Co) + weight_bytes + (2 << 20)
    use_fused = (not force_multipass) and footprint <= int(0.5 * cap)

    if not use_fused:
        return _bottleneck_multipass(x2d, w1, w2s, w3, wres, bres,
                                     g1, be1, g2, be2, g3, be3,
                                     N, Lo, Cm, Co, Cout, vmem_limit)

    # ---- fully fused single launch: everything VMEM-resident ----
    w1aug = jnp.concatenate([w1, wres], axis=1)                      # (Ci, Cm+Co)
    kernel = functools.partial(_fused_kernel, n=N, lo=Lo, cm=Cm, cout=Cout, r=R)

    def full(shape):
        nd = len(shape)
        return pl.BlockSpec(shape, lambda i, _nd=nd: (0,) * _nd)

    out = pl.pallas_call(
        kernel,
        grid=(1,),
        in_specs=[full(x2d.shape), full(w1aug.shape), full(bres.shape),
                  full(w2s.shape), full(w3.shape),
                  full(g1.shape), full(be1.shape),
                  full(g2.shape), full(be2.shape),
                  full(g3.shape), full(be3.shape)],
        out_specs=full((N, Cout, Lo)),
        out_shape=jax.ShapeDtypeStruct((N, Cout, Lo), jnp.float32),
        compiler_params=pltpu.CompilerParams(
            dimension_semantics=("arbitrary",),
            vmem_limit_bytes=vmem_limit),
    )(x2d, w1aug, bres, w2s, w3, g1, be1, g2, be2, g3, be3)
    return out


# ----------------------------- reference (pure JAX) -----------------------------
def _conv1d_ref(x, w, b, stride=1, padding=0):
    y = lax.conv_general_dilated(
        x, w, window_strides=(stride,), padding=[(padding, padding)],
        dimension_numbers=("NCH", "OIH", "NCH"))
    return y + b[None, :, None]


def _bn_relu_ref(y, gamma, beta):
    mean = y.mean(axis=(0, 2), keepdims=True)
    var = ((y - mean) ** 2).mean(axis=(0, 2), keepdims=True)
    yhat = (y - mean) / jnp.sqrt(var + EPS)
    yhat = yhat * gamma[None, :, None] + beta[None, :, None]
    return jnp.maximum(yhat, 0.0)


def bottleneck_reference(x, p, stride):
    h = _conv1d_ref(x, p["w1"], p["b1"], stride=stride)
    h = _bn_relu_ref(h, p["g1"], p["be1"])
    h = _conv1d_ref(h, p["w2"], p["b2"], padding=1)
    h = _bn_relu_ref(h, p["g2"], p["be2"])
    h = _conv1d_ref(h, p["w3"], p["b3"])
    h = _bn_relu_ref(h, p["g3"], p["be3"])
    res = _conv1d_ref(x, p["wres"], p["bres"], stride=stride)
    return h + res


# ----------------------------------- main ---------------------------------------
if __name__ == "__main__":
    def make_params(key, Cin, Cmed, Cout):
        ks = jax.random.split(key, 8)
        return {
            # PyTorch Conv1d weight layout: (out_channels, in_channels, kernel_size)
            "w1": 0.3 * jax.random.normal(ks[0], (Cmed, Cin, 1), jnp.float32),
            "b1": 0.1 * jax.random.normal(ks[1], (Cmed,), jnp.float32),
            "g1": jnp.ones((Cmed,), jnp.float32),
            "be1": jnp.zeros((Cmed,), jnp.float32),
            "w2": 0.3 * jax.random.normal(ks[2], (Cmed, Cmed, 3), jnp.float32),
            "b2": 0.1 * jax.random.normal(ks[3], (Cmed,), jnp.float32),
            "g2": jnp.ones((Cmed,), jnp.float32),
            "be2": jnp.zeros((Cmed,), jnp.float32),
            "w3": 0.3 * jax.random.normal(ks[4], (Cout, Cmed, 1), jnp.float32),
            "b3": 0.1 * jax.random.normal(ks[5], (Cout,), jnp.float32),
            "g3": jnp.ones((Cout,), jnp.float32),
            "be3": jnp.zeros((Cout,), jnp.float32),
            "wres": 0.3 * jax.random.normal(ks[6], (Cout, Cin, 1), jnp.float32),
            "bres": 0.1 * jax.random.normal(ks[7], (Cout,), jnp.float32),
        }

    N, Cin, Cmed, Cout, L = 4, 4, 8, 16, 256
    key = jax.random.PRNGKey(0)
    kp, kx = jax.random.split(key)
    params = make_params(kp, Cin, Cmed, Cout)
    x = jax.random.normal(kx, (N, Cin, L), jnp.float32)   # NCL, PyTorch layout

    fwd = jax.jit(bottleneck_forward, static_argnums=(2, 3))

    for downsample in (False, True):
        stride = 2 if downsample else 1
        ref = jax.block_until_ready(bottleneck_reference(x, params, stride))
        for force_mp in (False, True):          # fused path and tiled fallback
            out = jax.block_until_ready(fwd(x, params, stride, force_mp))
            assert out.shape == ref.shape, (out.shape, ref.shape)
            err = float(jnp.max(jnp.abs(out - ref)))
            assert err < 2e-4, (stride, force_mp, err)

    print("KERNEL_OK")
</pallas_src>

<mosaic_0001>
module attributes {stable_mosaic.version = 11 : i64} {
  func.func @_fused_kernel(%arg0: i32, %arg1: memref<1024x128xf32, #tpu.memory_space<vmem>>, %arg2: memref<128x256xf32, #tpu.memory_space<vmem>>, %arg3: memref<1x128xf32, #tpu.memory_space<vmem>>, %arg4: memref<3x128x128xf32, #tpu.memory_space<vmem>>, %arg5: memref<128x128xf32, #tpu.memory_space<vmem>>, %arg6: memref<1x128xf32, #tpu.memory_space<vmem>>, %arg7: memref<1x128xf32, #tpu.memory_space<vmem>>, %arg8: memref<1x128xf32, #tpu.memory_space<vmem>>, %arg9: memref<1x128xf32, #tpu.memory_space<vmem>>, %arg10: memref<1x128xf32, #tpu.memory_space<vmem>>, %arg11: memref<1x128xf32, #tpu.memory_space<vmem>>, %arg12: memref<4x16x256xf32, #tpu.memory_space<vmem>>) attributes {dimension_semantics = [#tpu.dimension_semantics<arbitrary>], iteration_bounds = array<i64: 1>, scalar_prefetch = 0 : i64, scratch_operands = 0 : i64, tpu.core_type = #tpu.core_type<tc>, window_params = [{pipeline_mode = #tpu.pipeline_mode<synchronous>, transform_indices = @transform_0, window_bounds = array<i64: 1024, 128>}, {pipeline_mode = #tpu.pipeline_mode<synchronous>, transform_indices = @transform_1, window_bounds = array<i64: 128, 256>}, {pipeline_mode = #tpu.pipeline_mode<synchronous>, transform_indices = @transform_2, window_bounds = array<i64: 1, 128>}, {pipeline_mode = #tpu.pipeline_mode<synchronous>, transform_indices = @transform_3, window_bounds = array<i64: 3, 128, 128>}, {pipeline_mode = #tpu.pipeline_mode<synchronous>, transform_indices = @transform_4, window_bounds = array<i64: 128, 128>}, {pipeline_mode = #tpu.pipeline_mode<synchronous>, transform_indices = @transform_5, window_bounds = array<i64: 1, 128>}, {pipeline_mode = #tpu.pipeline_mode<synchronous>, transform_indices = @transform_6, window_bounds = array<i64: 1, 128>}, {pipeline_mode = #tpu.pipeline_mode<synchronous>, transform_indices = @transform_7, window_bounds = array<i64: 1, 128>}, {pipeline_mode = #tpu.pipeline_mode<synchronous>, transform_indices = @transform_8, window_bounds = array<i64: 1, 128>}, {pipeline_mode = #tpu.pipeline_mode<synchronous>, transform_indices = @transform_9, window_bounds = array<i64: 1, 128>}, {pipeline_mode = #tpu.pipeline_mode<synchronous>, transform_indices = @transform_10, window_bounds = array<i64: 1, 128>}, {pipeline_mode = #tpu.pipeline_mode<synchronous>, transform_indices = @transform_11, window_bounds = array<i64: 4, 16, 256>}]} {
    %c0 = arith.constant 0 : index
    %c0_0 = arith.constant 0 : index
    %0 = vector.load %arg1[%c0, %c0_0] : memref<1024x128xf32, #tpu.memory_space<vmem>>, vector<1024x128xf32>
    %c0_1 = arith.constant 0 : index
    %c0_2 = arith.constant 0 : index
    %1 = vector.load %arg2[%c0_1, %c0_2] : memref<128x256xf32, #tpu.memory_space<vmem>>, vector<128x256xf32>
    %cst = arith.constant dense<0.000000e+00> : vector<1024x256xf32>
    %2 = tpu.matmul %0, %1, %cst {dimension_numbers = #tpu.dot_dimension_numbers<[1], [0], [0], [1], [0, 0, 1, 1], [], []>} : vector<1024x128xf32>, vector<128x256xf32>, vector<1024x256xf32> -> vector<1024x256xf32>
    %3 = vector.extract_strided_slice %2 {offsets = [0, 0], sizes = [1024, 128], strides = [1, 1]} : vector<1024x256xf32> to vector<1024x128xf32>
    %4 = vector.extract_strided_slice %2 {offsets = [0, 128], sizes = [1024, 128], strides = [1, 1]} : vector<1024x256xf32> to vector<1024x128xf32>
    %c0_3 = arith.constant 0 : index
    %c0_4 = arith.constant 0 : index
    %5 = vector.load %arg3[%c0_3, %c0_4] : memref<1x128xf32, #tpu.memory_space<vmem>>, vector<1x128xf32>
    %6 = vector.broadcast %5 : vector<1x128xf32> to vector<1024x128xf32>
    %7 = arith.addf %4, %6 : vector<1024x128xf32>
    %cst_5 = arith.constant dense<0.000000e+00> : vector<128xf32>
    %8 = vector.multi_reduction <add>, %3, %cst_5 [0] : vector<1024x128xf32> to vector<128xf32>
    %9 = vector.shape_cast %8 : vector<128xf32> to vector<1x128xf32>
    %cst_6 = arith.constant 9.765625E-4 : f32
    %10 = vector.broadcast %cst_6 : f32 to vector<1x128xf32>
    %11 = arith.mulf %9, %10 : vector<1x128xf32>
    %12 = arith.mulf %3, %3 : vector<1024x128xf32>
    %cst_7 = arith.constant dense<0.000000e+00> : vector<128xf32>
    %13 = vector.multi_reduction <add>, %12, %cst_7 [0] : vector<1024x128xf32> to vector<128xf32>
    %14 = vector.shape_cast %13 : vector<128xf32> to vector<1x128xf32>
    %cst_8 = arith.constant 9.765625E-4 : f32
    %15 = vector.broadcast %cst_8 : f32 to vector<1x128xf32>
    %16 = arith.mulf %14, %15 : vector<1x128xf32>
    %17 = arith.mulf %11, %11 : vector<1x128xf32>
    %18 = arith.subf %16, %17 : vector<1x128xf32>
    %cst_9 = arith.constant 0.000000e+00 : f32
    %19 = vector.broadcast %cst_9 : f32 to vector<1x128xf32>
    %20 = arith.maximumf %18, %19 : vector<1x128xf32>
    %c0_10 = arith.constant 0 : index
    %c0_11 = arith.constant 0 : index
    %21 = vector.load %arg6[%c0_10, %c0_11] : memref<1x128xf32, #tpu.memory_space<vmem>>, vector<1x128xf32>
    %cst_12 = arith.constant 9.99999974E-6 : f32
    %22 = vector.broadcast %cst_12 : f32 to vector<1x128xf32>
    %23 = arith.addf %20, %22 : vector<1x128xf32>
    %24 = math.rsqrt %23 : vector<1x128xf32>
    %25 = arith.mulf %21, %24 : vector<1x128xf32>
    %c0_13 = arith.constant 0 : index
    %c0_14 = arith.constant 0 : index
    %26 = vector.load %arg7[%c0_13, %c0_14] : memref<1x128xf32, #tpu.memory_space<vmem>>, vector<1x128xf32>
    %27 = arith.mulf %11, %25 : vector<1x128xf32>
    %28 = arith.subf %26, %27 : vector<1x128xf32>
    %29 = vector.broadcast %25 : vector<1x128xf32> to vector<1024x128xf32>
    %30 = arith.mulf %3, %29 : vector<1024x128xf32>
    %31 = vector.broadcast %28 : vector<1x128xf32> to vector<1024x128xf32>
    %32 = arith.addf %30, %31 : vector<1024x128xf32>
    %cst_15 = arith.constant 0.000000e+00 : f32
    %33 = vector.broadcast %cst_15 : f32 to vector<1024x128xf32>
    %34 = arith.maximumf %32, %33 : vector<1024x128xf32>
    %35 = tpu.iota {dimensions = array<i32: 0>} : vector<1024x128xi32>
    %c256_i32 = arith.constant 256 : i32
    %c0_i32 = arith.constant 0 : i32
    %36 = arith.cmpi eq, %c256_i32, %c0_i32 : i32
    %c1_i32 = arith.constant 1 : i32
    %37 = arith.select %36, %c1_i32, %c256_i32 : i32
    %38 = vector.broadcast %37 : i32 to vector<1024x128xi32>
    %39 = arith.remsi %35, %38 : vector<1024x128xi32>
    %c0_i32_16 = arith.constant 0 : i32
    %40 = vector.broadcast %c0_i32_16 : i32 to vector<1024x128xi32>
    %41 = arith.cmpi ne, %39, %40 : vector<1024x128xi32>
    %c0_i32_17 = arith.constant 0 : i32
    %42 = vector.broadcast %c0_i32_17 : i32 to vector<1024x128xi32>
    %43 = arith.cmpi slt, %39, %42 : vector<1024x128xi32>
    %c0_i32_18 = arith.constant 0 : i32
    %44 = arith.cmpi slt, %37, %c0_i32_18 : i32
    %45 = vector.broadcast %44 : i1 to vector<1024x128xi1>
    %46 = vector.broadcast %45 : vector<1024x128xi1> to vector<1024x128xi1>
    %47 = arith.xori %43, %46 : vector<1024x128xi1>
    %48 = arith.andi %47, %41 : vector<1024x128xi1>
    %49 = vector.broadcast %37 : i32 to vector<1024x128xi32>
    %50 = arith.addi %39, %49 : vector<1024x128xi32>
    %51 = arith.select %48, %50, %39 : vector<1024x128xi1>, vector<1024x128xi32>
    %c0_i32_19 = arith.constant 0 : i32
    %52 = vector.broadcast %c0_i32_19 : i32 to vector<1024x128xi32>
    %53 = arith.cmpi eq, %51, %52 : vector<1024x128xi32>
    %c1_i32_20 = arith.constant 1 : i32
    %54 = tpu.dynamic_rotate %34 by %c1_i32_20 dim 0 : vector<1024x128xf32>, i32 -> vector<1024x128xf32>
    %cst_21 = arith.constant 0.000000e+00 : f32
    %55 = vector.broadcast %cst_21 : f32 to vector<1024x128xf32>
    %56 = arith.select %53, %55, %54 : vector<1024x128xi1>, vector<1024x128xf32>
    %c255_i32 = arith.constant 255 : i32
    %57 = vector.broadcast %c255_i32 : i32 to vector<1024x128xi32>
    %58 = arith.cmpi eq, %51, %57 : vector<1024x128xi32>
    %c1023_i32 = arith.constant 1023 : i32
    %59 = tpu.dynamic_rotate %34 by %c1023_i32 dim 0 : vector<1024x128xf32>, i32 -> vector<1024x128xf32>
    %cst_22 = arith.constant 0.000000e+00 : f32
    %60 = vector.broadcast %cst_22 : f32 to vector<1024x128xf32>
    %61 = arith.select %58, %60, %59 : vector<1024x128xi1>, vector<1024x128xf32>
    %c0_23 = arith.constant 0 : index
    %c0_24 = arith.constant 0 : index
    %c0_25 = arith.constant 0 : index
    %62 = vector.load %arg4[%c0_23, %c0_24, %c0_25] : memref<3x128x128xf32, #tpu.memory_space<vmem>>, vector<1x128x128xf32>
    %63 = vector.shape_cast %62 : vector<1x128x128xf32> to vector<128x128xf32>
    %cst_26 = arith.constant dense<0.000000e+00> : vector<1024x128xf32>
    %64 = tpu.matmul %56, %63, %cst_26 {dimension_numbers = #tpu.dot_dimension_numbers<[1], [0], [0], [1], [0, 0, 1, 1], [], []>} : vector<1024x128xf32>, vector<128x128xf32>, vector<1024x128xf32> -> vector<1024x128xf32>
    %c1 = arith.constant 1 : index
    %c0_27 = arith.constant 0 : index
    %c0_28 = arith.constant 0 : index
    %65 = vector.load %arg4[%c1, %c0_27, %c0_28] : memref<3x128x128xf32, #tpu.memory_space<vmem>>, vector<1x128x128xf32>
    %66 = vector.shape_cast %65 : vector<1x128x128xf32> to vector<128x128xf32>
    %cst_29 = arith.constant dense<0.000000e+00> : vector<1024x128xf32>
    %67 = tpu.matmul %34, %66, %cst_29 {dimension_numbers = #tpu.dot_dimension_numbers<[1], [0], [0], [1], [0, 0, 1, 1], [], []>} : vector<1024x128xf32>, vector<128x128xf32>, vector<1024x128xf32> -> vector<1024x128xf32>
    %68 = arith.addf %64, %67 : vector<1024x128xf32>
    %c2 = arith.constant 2 : index
    %c0_30 = arith.constant 0 : index
    %c0_31 = arith.constant 0 : index
    %69 = vector.load %arg4[%c2, %c0_30, %c0_31] : memref<3x128x128xf32, #tpu.memory_space<vmem>>, vector<1x128x128xf32>
    %70 = vector.shape_cast %69 : vector<1x128x128xf32> to vector<128x128xf32>
    %cst_32 = arith.constant dense<0.000000e+00> : vector<1024x128xf32>
    %71 = tpu.matmul %61, %70, %cst_32 {dimension_numbers = #tpu.dot_dimension_numbers<[1], [0], [0], [1], [0, 0, 1, 1], [], []>} : vector<1024x128xf32>, vector<128x128xf32>, vector<1024x128xf32> -> vector<1024x128xf32>
    %72 = arith.addf %68, %71 : vector<1024x128xf32>
    %cst_33 = arith.constant dense<0.000000e+00> : vector<128xf32>
    %73 = vector.multi_reduction <add>, %72, %cst_33 [0] : vector<1024x128xf32> to vector<128xf32>
    %74 = vector.shape_cast %73 : vector<128xf32> to vector<1x128xf32>
    %cst_34 = arith.constant 9.765625E-4 : f32
    %75 = vector.broadcast %cst_34 : f32 to vector<1x128xf32>
    %76 = arith.mulf %74, %75 : vector<1x128xf32>
    %77 = arith.mulf %72, %72 : vector<1024x128xf32>
    %cst_35 = arith.constant dense<0.000000e+00> : vector<128xf32>
    %78 = vector.multi_reduction <add>, %77, %cst_35 [0] : vector<1024x128xf32> to vector<128xf32>
    %79 = vector.shape_cast %78 : vector<128xf32> to vector<1x128xf32>
    %cst_36 = arith.constant 9.765625E-4 : f32
    %80 = vector.broadcast %cst_36 : f32 to vector<1x128xf32>
    %81 = arith.mulf %79, %80 : vector<1x128xf32>
    %82 = arith.mulf %76, %76 : vector<1x128xf32>
    %83 = arith.subf %81, %82 : vector<1x128xf32>
    %cst_37 = arith.constant 0.000000e+00 : f32
    %84 = vector.broadcast %cst_37 : f32 to vector<1x128xf32>
    %85 = arith.maximumf %83, %84 : vector<1x128xf32>
    %c0_38 = arith.constant 0 : index
    %c0_39 = arith.constant 0 : index
    %86 = vector.load %arg8[%c0_38, %c0_39] : memref<1x128xf32, #tpu.memory_space<vmem>>, vector<1x128xf32>
    %cst_40 = arith.constant 9.99999974E-6 : f32
    %87 = vector.broadcast %cst_40 : f32 to vector<1x128xf32>
    %88 = arith.addf %85, %87 : vector<1x128xf32>
    %89 = math.rsqrt %88 : vector<1x128xf32>
    %90 = arith.mulf %86, %89 : vector<1x128xf32>
    %c0_41 = arith.constant 0 : index
    %c0_42 = arith.constant 0 : index
    %91 = vector.load %arg9[%c0_41, %c0_42] : memref<1x128xf32, #tpu.memory_space<vmem>>, vector<1x128xf32>
    %92 = arith.mulf %76, %90 : vector<1x128xf32>
    %93 = arith.subf %91, %92 : vector<1x128xf32>
    %94 = vector.broadcast %90 : vector<1x128xf32> to vector<1024x128xf32>
    %95 = arith.mulf %72, %94 : vector<1024x128xf32>
    %96 = vector.broadcast %93 : vector<1x128xf32> to vector<1024x128xf32>
    %97 = arith.addf %95, %96 : vector<1024x128xf32>
    %cst_43 = arith.constant 0.000000e+00 : f32
    %98 = vector.broadcast %cst_43 : f32 to vector<1024x128xf32>
    %99 = arith.maximumf %97, %98 : vector<1024x128xf32>
    %c0_44 = arith.constant 0 : index
    %c0_45 = arith.constant 0 : index
    %100 = vector.load %arg5[%c0_44, %c0_45] : memref<128x128xf32, #tpu.memory_space<vmem>>, vector<128x128xf32>
    %cst_46 = arith.constant dense<0.000000e+00> : vector<1024x128xf32>
    %101 = tpu.matmul %99, %100, %cst_46 {dimension_numbers = #tpu.dot_dimension_numbers<[1], [0], [0], [1], [0, 0, 1, 1], [], []>} : vector<1024x128xf32>, vector<128x128xf32>, vector<1024x128xf32> -> vector<1024x128xf32>
    %cst_47 = arith.constant dense<0.000000e+00> : vector<128xf32>
    %102 = vector.multi_reduction <add>, %101, %cst_47 [0] : vector<1024x128xf32> to vector<128xf32>
    %103 = vector.shape_cast %102 : vector<128xf32> to vector<1x128xf32>
    %cst_48 = arith.constant 9.765625E-4 : f32
    %104 = vector.broadcast %cst_48 : f32 to vector<1x128xf32>
    %105 = arith.mulf %103, %104 : vector<1x128xf32>
    %106 = arith.mulf %101, %101 : vector<1024x128xf32>
    %cst_49 = arith.constant dense<0.000000e+00> : vector<128xf32>
    %107 = vector.multi_reduction <add>, %106, %cst_49 [0] : vector<1024x128xf32> to vector<128xf32>
    %108 = vector.shape_cast %107 : vector<128xf32> to vector<1x128xf32>
    %cst_50 = arith.constant 9.765625E-4 : f32
    %109 = vector.broadcast %cst_50 : f32 to vector<1x128xf32>
    %110 = arith.mulf %108, %109 : vector<1x128xf32>
    %111 = arith.mulf %105, %105 : vector<1x128xf32>
    %112 = arith.subf %110, %111 : vector<1x128xf32>
    %cst_51 = arith.constant 0.000000e+00 : f32
    %113 = vector.broadcast %cst_51 : f32 to vector<1x128xf32>
    %114 = arith.maximumf %112, %113 : vector<1x128xf32>
    %c0_52 = arith.constant 0 : index
    %c0_53 = arith.constant 0 : index
    %115 = vector.load %arg10[%c0_52, %c0_53] : memref<1x128xf32, #tpu.memory_space<vmem>>, vector<1x128xf32>
    %cst_54 = arith.constant 9.99999974E-6 : f32
    %116 = vector.broadcast %cst_54 : f32 to vector<1x128xf32>
    %117 = arith.addf %114, %116 : vector<1x128xf32>
    %118 = math.rsqrt %117 : vector<1x128xf32>
    %119 = arith.mulf %115, %118 : vector<1x128xf32>
    %c0_55 = arith.constant 0 : index
    %c0_56 = arith.constant 0 : index
    %120 = vector.load %arg11[%c0_55, %c0_56] : memref<1x128xf32, #tpu.memory_space<vmem>>, vector<1x128xf32>
    %121 = arith.mulf %105, %119 : vector<1x128xf32>
    %122 = arith.subf %120, %121 : vector<1x128xf32>
    %123 = vector.broadcast %119 : vector<1x128xf32> to vector<1024x128xf32>
    %124 = arith.mulf %101, %123 : vector<1024x128xf32>
    %125 = vector.broadcast %122 : vector<1x128xf32> to vector<1024x128xf32>
    %126 = arith.addf %124, %125 : vector<1024x128xf32>
    %cst_57 = arith.constant 0.000000e+00 : f32
    %127 = vector.broadcast %cst_57 : f32 to vector<1024x128xf32>
    %128 = arith.maximumf %126, %127 : vector<1024x128xf32>
    %129 = arith.addf %128, %7 : vector<1024x128xf32>
    %130 = vector.shape_cast %129 : vector<1024x128xf32> to vector<4x256x128xf32>
    %131 = tpu.transpose %130, [0, 2, 1] : vector<4x256x128xf32> -> vector<4x128x256xf32>
    %132 = vector.extract_strided_slice %131 {offsets = [0, 0, 0], sizes = [4, 16, 256], strides = [1, 1, 1]} : vector<4x128x256xf32> to vector<4x16x256xf32>
    %c0_58 = arith.constant 0 : index
    %c0_59 = arith.constant 0 : index
    %c0_60 = arith.constant 0 : index
    %133 = vector.load %arg12[%c0_58, %c0_59, %c0_60] : memref<4x16x256xf32, #tpu.memory_space<vmem>>, vector<4x16x256xf32>
    tpu.vector_store %arg12[%c0_58, %c0_59, %c0_60], %132 {strides = array<i32>} : memref<4x16x256xf32, #tpu.memory_space<vmem>>, vector<4x16x256xf32>,
    return
  }
  func.func @transform_0(%arg0: i32) -> (i32, i32) {
    %c0_i32 = arith.constant 0 : i32
    %c0_i32_0 = arith.constant 0 : i32
    %c0_i32_1 = arith.constant 0 : i32
    return %c0_i32, %c0_i32_0 : i32, i32
  }
  func.func @transform_1(%arg0: i32) -> (i32, i32) {
    %c0_i32 = arith.constant 0 : i32
    %c0_i32_0 = arith.constant 0 : i32
    %c0_i32_1 = arith.constant 0 : i32
    return %c0_i32, %c0_i32_0 : i32, i32
  }
  func.func @transform_2(%arg0: i32) -> (i32, i32) {
    %c0_i32 = arith.constant 0 : i32
    %c0_i32_0 = arith.constant 0 : i32
    %c0_i32_1 = arith.constant 0 : i32
    return %c0_i32, %c0_i32_0 : i32, i32
  }
  func.func @transform_3(%arg0: i32) -> (i32, i32, i32) {
    %c0_i32 = arith.constant 0 : i32
    %c0_i32_0 = arith.constant 0 : i32
    %c0_i32_1 = arith.constant 0 : i32
    %c0_i32_2 = arith.constant 0 : i32
    return %c0_i32, %c0_i32_0, %c0_i32_1 : i32, i32, i32
  }
  func.func @transform_4(%arg0: i32) -> (i32, i32) {
    %c0_i32 = arith.constant 0 : i32
    %c0_i32_0 = arith.constant 0 : i32
    %c0_i32_1 = arith.constant 0 : i32
    return %c0_i32, %c0_i32_0 : i32, i32
  }
  func.func @transform_5(%arg0: i32) -> (i32, i32) {
    %c0_i32 = arith.constant 0 : i32
    %c0_i32_0 = arith.constant 0 : i32
    %c0_i32_1 = arith.constant 0 : i32
    return %c0_i32, %c0_i32_0 : i32, i32
  }
  func.func @transform_6(%arg0: i32) -> (i32, i32) {
    %c0_i32 = arith.constant 0 : i32
    %c0_i32_0 = arith.constant 0 : i32
    %c0_i32_1 = arith.constant 0 : i32
    return %c0_i32, %c0_i32_0 : i32, i32
  }
  func.func @transform_7(%arg0: i32) -> (i32, i32) {
    %c0_i32 = arith.constant 0 : i32
    %c0_i32_0 = arith.constant 0 : i32
    %c0_i32_1 = arith.constant 0 : i32
    return %c0_i32, %c0_i32_0 : i32, i32
  }
  func.func @transform_8(%arg0: i32) -> (i32, i32) {
    %c0_i32 = arith.constant 0 : i32
    %c0_i32_0 = arith.constant 0 : i32
    %c0_i32_1 = arith.constant 0 : i32
    return %c0_i32, %c0_i32_0 : i32, i32
  }
  func.func @transform_9(%arg0: i32) -> (i32, i32) {
    %c0_i32 = arith.constant 0 : i32
    %c0_i32_0 = arith.constant 0 : i32
    %c0_i32_1 = arith.constant 0 : i32
    return %c0_i32, %c0_i32_0 : i32, i32
  }
  func.func @transform_10(%arg0: i32) -> (i32, i32) {
    %c0_i32 = arith.constant 0 : i32
    %c0_i32_0 = arith.constant 0 : i32
    %c0_i32_1 = arith.constant 0 : i32
    return %c0_i32, %c0_i32_0 : i32, i32
  }
  func.func @transform_11(%arg0: i32) -> (i32, i32, i32) {
    %c0_i32 = arith.constant 0 : i32
    %c0_i32_0 = arith.constant 0 : i32
    %c0_i32_1 = arith.constant 0 : i32
    %c0_i32_2 = arith.constant 0 : i32
    return %c0_i32, %c0_i32_0, %c0_i32_1 : i32, i32, i32
  }
}

</mosaic_0001>

<llo_original>
// kernel: bottleneck_forward.1
$region0: #{bottleneck_forward.1}
  #allocation0 [shape = 'u32[]', space=smem, size = 0x4, offset = 0x4, fixed_abs, tag = 'smem constant byte address 0x4 - core index']
  #allocation1 [shape = 'u32[144,128]{1,0:T(1,128)}', space=vmem, size = 0x12000, scoped, tag = 'internal scratch']
  %s0 = inlined_call_operand.vmem [shape: f32[1024,128], index: 0, kind: input, shape index: {}]
  %s1 = inlined_call_operand.vmem [shape: f32[128,256], index: 1, kind: input, shape index: {}]
  %s2 = inlined_call_operand.vmem [shape: f32[1,128], index: 2, kind: input, shape index: {}]
  %s3 = inlined_call_operand.vmem [shape: f32[3,128,128], index: 3, kind: input, shape index: {}]
  %s4 = inlined_call_operand.vmem [shape: f32[128,128], index: 4, kind: input, shape index: {}]
  %s5 = inlined_call_operand.vmem [shape: f32[1,128], index: 5, kind: input, shape index: {}]
  %s6 = inlined_call_operand.vmem [shape: f32[1,128], index: 6, kind: input, shape index: {}]
  %s7 = inlined_call_operand.vmem [shape: f32[1,128], index: 7, kind: input, shape index: {}]
  %s8 = inlined_call_operand.vmem [shape: f32[1,128], index: 8, kind: input, shape index: {}]
  %s9 = inlined_call_operand.vmem [shape: f32[1,128], index: 9, kind: input, shape index: {}]
  %s10 = inlined_call_operand.vmem [shape: f32[1,128], index: 10, kind: input, shape index: {}]
  %s11 = inlined_call_operand.hbm [shape: f32[4,16,256], index: 11, kind: output, shape index: {}]
  %s12 = sld [smem:[#allocation0]]
  $region54: #{bottleneck_forward.1} parent=0
    _
  %s14 = ssub.s32 1, %s12
  %s15 = scalar_select 0, %s14, %s12
  $region1: #{bottleneck_forward.1} parent=0
    #allocation2 [shape = 'u8[65536]{0}', space=vmem, size = 0x10000, scoped, tag = 'output window, operand 0, single buffered']
    #allocation3 [shape = 's32[1]{0}', space=sflag, size = 0x4, scoped, tag = 'scoped memory for bottleneck_forward.1']
    %16 = vsyncpa [#allocation3], 0
    // Predicated region
    $region2: #{bottleneck_forward.1} parent=1 // pred_check
      _
    $region3: #{bottleneck_forward.1} parent=1 // pred_check_branch
      %18 = sbr.rel (0) target = $region5
    $region4: #{bottleneck_forward.1} parent=1 // pred_region
      _
    $region5: #{bottleneck_forward.1} parent=1 // pred_fallthru
      _
    // Predicated region
    $region6: #{bottleneck_forward.1} parent=1 // pred_check
      _
    $region7: #{bottleneck_forward.1} parent=1 // pred_check_branch
      %20 = sbr.rel (0) target = $region9
    $region8: #{bottleneck_forward.1} parent=1 // pred_region
      _
    $region9: #{bottleneck_forward.1} parent=1 // pred_fallthru
      _
    // Predicated region
    $region10: #{bottleneck_forward.1} parent=1 // pred_check
      _
    $region11: #{bottleneck_forward.1} parent=1 // pred_check_branch
      %22 = sbr.rel (0) target = $region13
    $region12: #{bottleneck_forward.1} parent=1 // pred_region
      _
    $region13: #{bottleneck_forward.1} parent=1 // pred_fallthru
      _
    // Predicated region
    $region14: #{bottleneck_forward.1} parent=1 // pred_check
      _
    $region15: #{bottleneck_forward.1} parent=1 // pred_check_branch
      %24 = sbr.rel (0) target = $region17
    $region16: #{bottleneck_forward.1} parent=1 // pred_region
      _
    $region17: #{bottleneck_forward.1} parent=1 // pred_fallthru
      _
    // Predicated region
    $region18: #{bottleneck_forward.1} parent=1 // pred_check
      _
    $region19: #{bottleneck_forward.1} parent=1 // pred_check_branch
      %26 = sbr.rel (0) target = $region21
    $region20: #{bottleneck_forward.1} parent=1 // pred_region
      _
    $region21: #{bottleneck_forward.1} parent=1 // pred_fallthru
      _
    // Predicated region
    $region22: #{bottleneck_forward.1} parent=1 // pred_check
      _
    $region23: #{bottleneck_forward.1} parent=1 // pred_check_branch
      %28 = sbr.rel (0) target = $region25
    $region24: #{bottleneck_forward.1} parent=1 // pred_region
      _
    $region25: #{bottleneck_forward.1} parent=1 // pred_fallthru
      _
    // Predicated region
    $region26: #{bottleneck_forward.1} parent=1 // pred_check
      _
    $region27: #{bottleneck_forward.1} parent=1 // pred_check_branch
      %30 = sbr.rel (0) target = $region29
    $region28: #{bottleneck_forward.1} parent=1 // pred_region
      _
    $region29: #{bottleneck_forward.1} parent=1 // pred_fallthru
      _
    // Predicated region
    $region30: #{bottleneck_forward.1} parent=1 // pred_check
      _
    $region31: #{bottleneck_forward.1} parent=1 // pred_check_branch
      %32 = sbr.rel (0) target = $region33
    $region32: #{bottleneck_forward.1} parent=1 // pred_region
      _
    $region33: #{bottleneck_forward.1} parent=1 // pred_fallthru
      _
    // Predicated region
    $region34: #{bottleneck_forward.1} parent=1 // pred_check
      _
    $region35: #{bottleneck_forward.1} parent=1 // pred_check_branch
      %34 = sbr.rel (0) target = $region37
    $region36: #{bottleneck_forward.1} parent=1 // pred_region
      _
    $region37: #{bottleneck_forward.1} parent=1 // pred_fallthru
      _
    // Predicated region
    $region38: #{bottleneck_forward.1} parent=1 // pred_check
      _
    $region39: #{bottleneck_forward.1} parent=1 // pred_check_branch
      %36 = sbr.rel (0) target = $region41
    $region40: #{bottleneck_forward.1} parent=1 // pred_region
      _
    $region41: #{bottleneck_forward.1} parent=1 // pred_fallthru
      _
    // Predicated region
    $region42: #{bottleneck_forward.1} parent=1 // pred_check
      _
    $region43: #{bottleneck_forward.1} parent=1 // pred_check_branch
      %38 = sbr.rel (0) target = $region45
    $region44: #{bottleneck_forward.1} parent=1 // pred_region
      _
    $region45: #{bottleneck_forward.1} parent=1 // pred_fallthru
      _
    %v39 = vld [vmem:[%s0] sm:$0xff]
    %v40 = vld [vmem:[%s0 + $0x8] sm:$0xff]
    %v41 = vld [vmem:[%s0 + $0x10] sm:$0xff]
    %v42 = vld [vmem:[%s0 + $0x18] sm:$0xff]
    %v43 = vld [vmem:[%s0 + $0x20] sm:$0xff]
    %v44 = vld [vmem:[%s0 + $0x28] sm:$0xff]
    %v45 = vld [vmem:[%s0 + $0x30] sm:$0xff]
    %v46 = vld [vmem:[%s0 + $0x38] sm:$0xff]
    %v47 = vld [vmem:[%s0 + $0x40] sm:$0xff]
    %v48 = vld [vmem:[%s0 + $0x48] sm:$0xff]
    %v49 = vld [vmem:[%s0 + $0x50] sm:$0xff]
    %v50 = vld [vmem:[%s0 + $0x58] sm:$0xff]
    %v51 = vld [vmem:[%s0 + $0x60] sm:$0xff]
    %v52 = vld [vmem:[%s0 + $0x68] sm:$0xff]
    %v53 = vld [vmem:[%s0 + $0x70] sm:$0xff]
    %v54 = vld [vmem:[%s0 + $0x78] sm:$0xff]
    %v55 = vld [vmem:[%s0 + $0x80] sm:$0xff]
    %v56 = vld [vmem:[%s0 + $0x88] sm:$0xff]
    %v57 = vld [vmem:[%s0 + $0x90] sm:$0xff]
    %v58 = vld [vmem:[%s0 + $0x98] sm:$0xff]
    %v59 = vld [vmem:[%s0 + $0xa0] sm:$0xff]
    %v60 = vld [vmem:[%s0 + $0xa8] sm:$0xff]
    %v61 = vld [vmem:[%s0 + $0xb0] sm:$0xff]
    %v62 = vld [vmem:[%s0 + $0xb8] sm:$0xff]
    %v63 = vld [vmem:[%s0 + $0xc0] sm:$0xff]
    %v64 = vld [vmem:[%s0 + $0xc8] sm:$0xff]
    %v65 = vld [vmem:[%s0 + $0xd0] sm:$0xff]
    %v66 = vld [vmem:[%s0 + $0xd8] sm:$0xff]
    %v67 = vld [vmem:[%s0 + $0xe0] sm:$0xff]
    %v68 = vld [vmem:[%s0 + $0xe8] sm:$0xff]
    %v69 = vld [vmem:[%s0 + $0xf0] sm:$0xff]
    %v70 = vld [vmem:[%s0 + $0xf8] sm:$0xff]
    %v71 = vld [vmem:[%s0 + $0x100] sm:$0xff]
    %v72 = vld [vmem:[%s0 + $0x108] sm:$0xff]
    %v73 = vld [vmem:[%s0 + $0x110] sm:$0xff]
    %v74 = vld [vmem:[%s0 + $0x118] sm:$0xff]
    %v75 = vld [vmem:[%s0 + $0x120] sm:$0xff]
    %v76 = vld [vmem:[%s0 + $0x128] sm:$0xff]
    %v77 = vld [vmem:[%s0 + $0x130] sm:$0xff]
    %v78 = vld [vmem:[%s0 + $0x138] sm:$0xff]
    %v79 = vld [vmem:[%s0 + $0x140] sm:$0xff]
    %v80 = vld [vmem:[%s0 + $0x148] sm:$0xff]
    %v81 = vld [vmem:[%s0 + $0x150] sm:$0xff]
    %v82 = vld [vmem:[%s0 + $0x158] sm:$0xff]
    %v83 = vld [vmem:[%s0 + $0x160] sm:$0xff]
    %v84 = vld [vmem:[%s0 + $0x168] sm:$0xff]
    %v85 = vld [vmem:[%s0 + $0x170] sm:$0xff]
    %v86 = vld [vmem:[%s0 + $0x178] sm:$0xff]
    %v87 = vld [vmem:[%s0 + $0x180] sm:$0xff]
    %v88 = vld [vmem:[%s0 + $0x188] sm:$0xff]
    %v89 = vld [vmem:[%s0 + $0x190] sm:$0xff]
    %v90 = vld [vmem:[%s0 + $0x198] sm:$0xff]
    %v91 = vld [vmem:[%s0 + $0x1a0] sm:$0xff]
    %v92 = vld [vmem:[%s0 + $0x1a8] sm:$0xff]
    %v93 = vld [vmem:[%s0 + $0x1b0] sm:$0xff]
    %v94 = vld [vmem:[%s0 + $0x1b8] sm:$0xff]
    %v95 = vld [vmem:[%s0 + $0x1c0] sm:$0xff]
    %v96 = vld [vmem:[%s0 + $0x1c8] sm:$0xff]
    %v97 = vld [vmem:[%s0 + $0x1d0] sm:$0xff]
    %v98 = vld [vmem:[%s0 + $0x1d8] sm:$0xff]
    %v99 = vld [vmem:[%s0 + $0x1e0] sm:$0xff]
    %v100 = vld [vmem:[%s0 + $0x1e8] sm:$0xff]
    %v101 = vld [vmem:[%s0 + $0x1f0] sm:$0xff]
    %v102 = vld [vmem:[%s0 + $0x1f8] sm:$0xff]
    %v103 = vld [vmem:[%s0 + $0x200] sm:$0xff]
    %v104 = vld [vmem:[%s0 + $0x208] sm:$0xff]
    %v105 = vld [vmem:[%s0 + $0x210] sm:$0xff]
    %v106 = vld [vmem:[%s0 + $0x218] sm:$0xff]
    %v107 = vld [vmem:[%s0 + $0x220] sm:$0xff]
    %v108 = vld [vmem:[%s0 + $0x228] sm:$0xff]
    %v109 = vld [vmem:[%s0 + $0x230] sm:$0xff]
    %v110 = vld [vmem:[%s0 + $0x238] sm:$0xff]
    %v111 = vld [vmem:[%s0 + $0x240] sm:$0xff]
    %v112 = vld [vmem:[%s0 + $0x248] sm:$0xff]
    %v113 = vld [vmem:[%s0 + $0x250] sm:$0xff]
    %v114 = vld [vmem:[%s0 + $0x258] sm:$0xff]
    %v115 = vld [vmem:[%s0 + $0x260] sm:$0xff]
    %v116 = vld [vmem:[%s0 + $0x268] sm:$0xff]
    %v117 = vld [vmem:[%s0 + $0x270] sm:$0xff]
    %v118 = vld [vmem:[%s0 + $0x278] sm:$0xff]
    %v119 = vld [vmem:[%s0 + $0x280] sm:$0xff]
    %v120 = vld [vmem:[%s0 + $0x288] sm:$0xff]
    %v121 = vld [vmem:[%s0 + $0x290] sm:$0xff]
    %v122 = vld [vmem:[%s0 + $0x298] sm:$0xff]
    %v123 = vld [vmem:[%s0 + $0x2a0] sm:$0xff]
    %v124 = vld [vmem:[%s0 + $0x2a8] sm:$0xff]
    %v125 = vld [vmem:[%s0 + $0x2b0] sm:$0xff]
    %v126 = vld [vmem:[%s0 + $0x2b8] sm:$0xff]
    %v127 = vld [vmem:[%s0 + $0x2c0] sm:$0xff]
    %v128 = vld [vmem:[%s0 + $0x2c8] sm:$0xff]
    %v129 = vld [vmem:[%s0 + $0x2d0] sm:$0xff]
    %v130 = vld [vmem:[%s0 + $0x2d8] sm:$0xff]
    %v131 = vld [vmem:[%s0 + $0x2e0] sm:$0xff]
    %v132 = vld [vmem:[%s0 + $0x2e8] sm:$0xff]
    %v133 = vld [vmem:[%s0 + $0x2f0] sm:$0xff]
    %v134 = vld [vmem:[%s0 + $0x2f8] sm:$0xff]
    %v135 = vld [vmem:[%s0 + $0x300] sm:$0xff]
    %v136 = vld [vmem:[%s0 + $0x308] sm:$0xff]
    %v137 = vld [vmem:[%s0 + $0x310] sm:$0xff]
    %v138 = vld [vmem:[%s0 + $0x318] sm:$0xff]
    %v139 = vld [vmem:[%s0 + $0x320] sm:$0xff]
    %v140 = vld [vmem:[%s0 + $0x328] sm:$0xff]
    %v141 = vld [vmem:[%s0 + $0x330] sm:$0xff]
    %v142 = vld [vmem:[%s0 + $0x338] sm:$0xff]
    %v143 = vld [vmem:[%s0 + $0x340] sm:$0xff]
    %v144 = vld [vmem:[%s0 + $0x348] sm:$0xff]
    %v145 = vld [vmem:[%s0 + $0x350] sm:$0xff]
    %v146 = vld [vmem:[%s0 + $0x358] sm:$0xff]
    %v147 = vld [vmem:[%s0 + $0x360] sm:$0xff]
    %v148 = vld [vmem:[%s0 + $0x368] sm:$0xff]
    %v149 = vld [vmem:[%s0 + $0x370] sm:$0xff]
    %v150 = vld [vmem:[%s0 + $0x378] sm:$0xff]
    %v151 = vld [vmem:[%s0 + $0x380] sm:$0xff]
    %v152 = vld [vmem:[%s0 + $0x388] sm:$0xff]
    %v153 = vld [vmem:[%s0 + $0x390] sm:$0xff]
    %v154 = vld [vmem:[%s0 + $0x398] sm:$0xff]
    %v155 = vld [vmem:[%s0 + $0x3a0] sm:$0xff]
    %v156 = vld [vmem:[%s0 + $0x3a8] sm:$0xff]
    %v157 = vld [vmem:[%s0 + $0x3b0] sm:$0xff]
    %v158 = vld [vmem:[%s0 + $0x3b8] sm:$0xff]
    %v159 = vld [vmem:[%s0 + $0x3c0] sm:$0xff]
    %v160 = vld [vmem:[%s0 + $0x3c8] sm:$0xff]
    %v161 = vld [vmem:[%s0 + $0x3d0] sm:$0xff]
    %v162 = vld [vmem:[%s0 + $0x3d8] sm:$0xff]
    %v163 = vld [vmem:[%s0 + $0x3e0] sm:$0xff]
    %v164 = vld [vmem:[%s0 + $0x3e8] sm:$0xff]
    %v165 = vld [vmem:[%s0 + $0x3f0] sm:$0xff]
    %v166 = vld [vmem:[%s0 + $0x3f8] sm:$0xff]
    %v167 = vld [vmem:[%s1] sm:$0xff]
    %v168 = vld [vmem:[%s1 + $0x8] sm:$0xff]
    %v169 = vld [vmem:[%s1 + $0x10] sm:$0xff]
    %v170 = vld [vmem:[%s1 + $0x18] sm:$0xff]
    %v171 = vld [vmem:[%s1 + $0x20] sm:$0xff]
    %v172 = vld [vmem:[%s1 + $0x28] sm:$0xff]
    %v173 = vld [vmem:[%s1 + $0x30] sm:$0xff]
    %v174 = vld [vmem:[%s1 + $0x38] sm:$0xff]
    %v175 = vld [vmem:[%s1 + $0x40] sm:$0xff]
    %v176 = vld [vmem:[%s1 + $0x48] sm:$0xff]
    %v177 = vld [vmem:[%s1 + $0x50] sm:$0xff]
    %v178 = vld [vmem:[%s1 + $0x58] sm:$0xff]
    %v179 = vld [vmem:[%s1 + $0x60] sm:$0xff]
    %v180 = vld [vmem:[%s1 + $0x68] sm:$0xff]
    %v181 = vld [vmem:[%s1 + $0x70] sm:$0xff]
    %v182 = vld [vmem:[%s1 + $0x78] sm:$0xff]
    %v183 = vld [vmem:[%s1 + $0x80] sm:$0xff]
    %v184 = vld [vmem:[%s1 + $0x88] sm:$0xff]
    %v185 = vld [vmem:[%s1 + $0x90] sm:$0xff]
    %v186 = vld [vmem:[%s1 + $0x98] sm:$0xff]
    %v187 = vld [vmem:[%s1 + $0xa0] sm:$0xff]
    %v188 = vld [vmem:[%s1 + $0xa8] sm:$0xff]
    %v189 = vld [vmem:[%s1 + $0xb0] sm:$0xff]
    %v190 = vld [vmem:[%s1 + $0xb8] sm:$0xff]
    %v191 = vld [vmem:[%s1 + $0xc0] sm:$0xff]
    %v192 = vld [vmem:[%s1 + $0xc8] sm:$0xff]
    %v193 = vld [vmem:[%s1 + $0xd0] sm:$0xff]
    %v194 = vld [vmem:[%s1 + $0xd8] sm:$0xff]
    %v195 = vld [vmem:[%s1 + $0xe0] sm:$0xff]
    %v196 = vld [vmem:[%s1 + $0xe8] sm:$0xff]
    %v197 = vld [vmem:[%s1 + $0xf0] sm:$0xff]
    %v198 = vld [vmem:[%s1 + $0xf8] sm:$0xff]
    %199 = vmatprep.subr.mxu0 %v168
    %200 = vmatpush1.msra.mxu0 %v167
    %201 = vmatprep.subr.mxu0 %v170
    %202 = vmatpush1.msra.mxu0 %v169
    %203 = vmatprep.subr.mxu0 %v172
    %204 = vmatpush1.msra.mxu0 %v171
    %205 = vmatprep.subr.mxu0 %v174
    %206 = vmatpush1.msra.mxu0 %v173
    %207 = vmatprep.subr.mxu0 %v176
    %208 = vmatpush1.msra.mxu0 %v175
    %209 = vmatprep.subr.mxu0 %v178
    %210 = vmatpush1.msra.mxu0 %v177
    %211 = vmatprep.subr.mxu0 %v180
    %212 = vmatpush1.msra.mxu0 %v179
    %213 = vmatprep.subr.mxu0 %v182
    %214 = vmatpush1.msra.mxu0 %v181
    %215 = vmatprep.subr.mxu0 %v184
    %216 = vmatpush1.msra.mxu0 %v183
    %217 = vmatprep.subr.mxu0 %v186
    %218 = vmatpush1.msra.mxu0 %v185
    %219 = vmatprep.subr.mxu0 %v188
    %220 = vmatpush1.msra.mxu0 %v187
    %221 = vmatprep.subr.mxu0 %v190
    %222 = vmatpush1.msra.mxu0 %v189
    %223 = vmatprep.subr.mxu0 %v192
    %224 = vmatpush1.msra.mxu0 %v191
    %225 = vmatprep.subr.mxu0 %v194
    %226 = vmatpush1.msra.mxu0 %v193
    %227 = vmatprep.subr.mxu0 %v196
    %228 = vmatpush1.msra.mxu0 %v195
    %229 = vmatprep.subr.mxu0 %v198
    %230 = vmatpush1.msra.mxu0 %v197
    %231 = vmatprep.subr.mxu0 0.0
    %232 = vmatpush1.msra.mxu0 0.0
    %233 = vmatprep.subr.mxu0 0.0
    %234 = vmatpush1.msra.mxu0 0.0
    %235 = vmatprep.subr.mxu0 0.0
    %236 = vmatpush1.msra.mxu0 0.0
    %237 = vmatprep.subr.mxu0 0.0
    %238 = vmatpush1.msra.mxu0 0.0
    %239 = vmatprep.subr.mxu0 0.0
    %240 = vmatpush1.msra.mxu0 0.0
    %241 = vmatprep.subr.mxu0 0.0
    %242 = vmatpush1.msra.mxu0 0.0
    %243 = vmatprep.subr.mxu0 0.0
    %244 = vmatpush1.msra.mxu0 0.0
    %245 = vmatprep.subr.mxu0 0.0
    %246 = vmatpush1.msra.mxu0 0.0
    %247 = vmatprep.subr.mxu0 0.0
    %248 = vmatpush1.msra.mxu0 0.0
    %249 = vmatprep.subr.mxu0 0.0
    %250 = vmatpush1.msra.mxu0 0.0
    %251 = vmatprep.subr.mxu0 0.0
    %252 = vmatpush1.msra.mxu0 0.0
    %253 = vmatprep.subr.mxu0 0.0
    %254 = vmatpush1.msra.mxu0 0.0
    %255 = vmatprep.subr.mxu0 0.0
    %256 = vmatpush1.msra.mxu0 0.0
    %257 = vmatprep.subr.mxu0 0.0
    %258 = vmatpush1.msra.mxu0 0.0
    %259 = vmatprep.subr.mxu0 0.0
    %260 = vmatpush1.msra.mxu0 0.0
    %261 = vmatprep.subr.mxu0 0.0
    %262 = vmatpush1.msra.mxu0 0.0
    %263 = vmatprep.mubr.f32.mxu0 0.0
    %264 = vmatmul.mubr.f32.gmra.mrb[0].mxu0 %v39
    %v265 = vpop.f32.mrb[0].mxu0
    %v266 = vadd.f32 0.0, %v265
    %v267 = vpop.f32.mrb[0].mxu0
    %v268 = vadd.f32 0.0, %v267
    %269 = vmatprep.mubr.f32.mxu0 0.0
    %270 = vmatmul.mubr.f32.gmra.mrb[0].mxu0 %v40
    %v271 = vpop.f32.mrb[0].mxu0
    %v272 = vadd.f32 0.0, %v271
    %v273 = vpop.f32.mrb[0].mxu0
    %v274 = vadd.f32 0.0, %v273
    %275 = vmatprep.mubr.f32.mxu0 0.0
    %276 = vmatmul.mubr.f32.gmra.mrb[0].mxu0 %v41
    %v277 = vpop.f32.mrb[0].mxu0
    %v278 = vadd.f32 0.0, %v277
    %v279 = vpop.f32.mrb[0].mxu0
    %v280 = vadd.f32 0.0, %v279
    %281 = vmatprep.mubr.f32.mxu0 0.0
    %282 = vmatmul.mubr.f32.gmra.mrb[0].mxu0 %v42
    %v283 = vpop.f32.mrb[0].mxu0
    %v284 = vadd.f32 0.0, %v283
    %v285 = vpop.f32.mrb[0].mxu0
    %v286 = vadd.f32 0.0, %v285
    %287 = vmatprep.mubr.f32.mxu0 0.0
    %288 = vmatmul.mubr.f32.gmra.mrb[0].mxu0 %v43
    %v289 = vpop.f32.mrb[0].mxu0
    %v290 = vadd.f32 0.0, %v289
    %v291 = vpop.f32.mrb[0].mxu0
    %v292 = vadd.f32 0.0, %v291
    %293 = vmatprep.mubr.f32.mxu0 0.0
    %294 = vmatmul.mubr.f32.gmra.mrb[0].mxu0 %v44
    %v295 = vpop.f32.mrb[0].mxu0
    %v296 = vadd.f32 0.0, %v295
    %v297 = vpop.f32.mrb[0].mxu0
    %v298 = vadd.f32 0.0, %v297
    %299 = vmatprep.mubr.f32.mxu0 0.0
    %300 = vmatmul.mubr.f32.gmra.mrb[0].mxu0 %v45
    %v301 = vpop.f32.mrb[0].mxu0
    %v302 = vadd.f32 0.0, %v301
    %v303 = vpop.f32.mrb[0].mxu0
    %v304 = vadd.f32 0.0, %v303
    %305 = vmatprep.mubr.f32.mxu0 0.0
    %306 = vmatmul.mubr.f32.gmra.mrb[0].mxu0 %v46
    %v307 = vpop.f32.mrb[0].mxu0
    %v308 = vadd.f32 0.0, %v307
    %v309 = vpop.f32.mrb[0].mxu0
    %v310 = vadd.f32 0.0, %v309
    %311 = vmatprep.mubr.f32.mxu0 0.0
    %312 = vmatmul.mubr.f32.gmra.mrb[0].mxu0 %v47
    %v313 = vpop.f32.mrb[0].mxu0
    %v314 = vadd.f32 0.0, %v313
    %v315 = vpop.f32.mrb[0].mxu0
    %v316 = vadd.f32 0.0, %v315
    %317 = vmatprep.mubr.f32.mxu0 0.0
    %318 = vmatmul.mubr.f32.gmra.mrb[0].mxu0 %v48
    %v319 = vpop.f32.mrb[0].mxu0
    %v320 = vadd.f32 0.0, %v319
    %v321 = vpop.f32.mrb[0].mxu0
    %v322 = vadd.f32 0.0, %v321
    %323 = vmatprep.mubr.f32.mxu0 0.0
    %324 = vmatmul.mubr.f32.gmra.mrb[0].mxu0 %v49
    %v325 = vpop.f32.mrb[0].mxu0
    %v326 = vadd.f32 0.0, %v325
    %v327 = vpop.f32.mrb[0].mxu0
    %v328 = vadd.f32 0.0, %v327
    %329 = vmatprep.mubr.f32.mxu0 0.0
    %330 = vmatmul.mubr.f32.gmra.mrb[0].mxu0 %v50
    %v331 = vpop.f32.mrb[0].mxu0
    %v332 = vadd.f32 0.0, %v331
    %v333 = vpop.f32.mrb[0].mxu0
    %v334 = vadd.f32 0.0, %v333
    %335 = vmatprep.mubr.f32.mxu0 0.0
    %336 = vmatmul.mubr.f32.gmra.mrb[0].mxu0 %v51
    %v337 = vpop.f32.mrb[0].mxu0
    %v338 = vadd.f32 0.0, %v337
    %v339 = vpop.f32.mrb[0].mxu0
    %v340 = vadd.f32 0.0, %v339
    %341 = vmatprep.mubr.f32.mxu0 0.0
    %342 = vmatmul.mubr.f32.gmra.mrb[0].mxu0 %v52
    %v343 = vpop.f32.mrb[0].mxu0
    %v344 = vadd.f32 0.0, %v343
    %v345 = vpop.f32.mrb[0].mxu0
    %v346 = vadd.f32 0.0, %v345
    %347 = vmatprep.mubr.f32.mxu0 0.0
    %348 = vmatmul.mubr.f32.gmra.mrb[0].mxu0 %v53
    %v349 = vpop.f32.mrb[0].mxu0
    %v350 = vadd.f32 0.0, %v349
    %v351 = vpop.f32.mrb[0].mxu0
    %v352 = vadd.f32 0.0, %v351
    %353 = vmatprep.mubr.f32.mxu0 0.0
    %354 = vmatmul.mubr.f32.gmra.mrb[0].mxu0 %v54
    %v355 = vpop.f32.mrb[0].mxu0
    %v356 = vadd.f32 0.0, %v355
    %v357 = vpop.f32.mrb[0].mxu0
    %v358 = vadd.f32 0.0, %v357
    %359 = vmatprep.mubr.f32.mxu0 0.0
    %360 = vmatmul.mubr.f32.gmra.mrb[0].mxu0 %v55
    %v361 = vpop.f32.mrb[0].mxu0
    %v362 = vadd.f32 0.0, %v361
    %v363 = vpop.f32.mrb[0].mxu0
    %v364 = vadd.f32 0.0, %v363
    %365 = vmatprep.mubr.f32.mxu0 0.0
    %366 = vmatmul.mubr.f32.gmra.mrb[0].mxu0 %v56
    %v367 = vpop.f32.mrb[0].mxu0
    %v368 = vadd.f32 0.0, %v367
    %v369 = vpop.f32.mrb[0].mxu0
    %v370 = vadd.f32 0.0, %v369
    %371 = vmatprep.mubr.f32.mxu0 0.0
    %372 = vmatmul.mubr.f32.gmra.mrb[0].mxu0 %v57
    %v373 = vpop.f32.mrb[0].mxu0
    %v374 = vadd.f32 0.0, %v373
    %v375 = vpop.f32.mrb[0].mxu0
    %v376 = vadd.f32 0.0, %v375
    %377 = vmatprep.mubr.f32.mxu0 0.0
    %378 = vmatmul.mubr.f32.gmra.mrb[0].mxu0 %v58
    %v379 = vpop.f32.mrb[0].mxu0
    %v380 = vadd.f32 0.0, %v379
    %v381 = vpop.f32.mrb[0].mxu0
    %v382 = vadd.f32 0.0, %v381
    %383 = vmatprep.mubr.f32.mxu0 0.0
    %384 = vmatmul.mubr.f32.gmra.mrb[0].mxu0 %v59
    %v385 = vpop.f32.mrb[0].mxu0
    %v386 = vadd.f32 0.0, %v385
    %v387 = vpop.f32.mrb[0].mxu0
    %v388 = vadd.f32 0.0, %v387
    %389 = vmatprep.mubr.f32.mxu0 0.0
    %390 = vmatmul.mubr.f32.gmra.mrb[0].mxu0 %v60
    %v391 = vpop.f32.mrb[0].mxu0
    %v392 = vadd.f32 0.0, %v391
    %v393 = vpop.f32.mrb[0].mxu0
    %v394 = vadd.f32 0.0, %v393
    %395 = vmatprep.mubr.f32.mxu0 0.0
    %396 = vmatmul.mubr.f32.gmra.mrb[0].mxu0 %v61
    %v397 = vpop.f32.mrb[0].mxu0
    %v398 = vadd.f32 0.0, %v397
    %v399 = vpop.f32.mrb[0].mxu0
    %v400 = vadd.f32 0.0, %v399
    %401 = vmatprep.mubr.f32.mxu0 0.0
    %402 = vmatmul.mubr.f32.gmra.mrb[0].mxu0 %v62
    %v403 = vpop.f32.mrb[0].mxu0
    %v404 = vadd.f32 0.0, %v403
    %v405 = vpop.f32.mrb[0].mxu0
    %v406 = vadd.f32 0.0, %v405
    %407 = vmatprep.mubr.f32.mxu0 0.0
    %408 = vmatmul.mubr.f32.gmra.mrb[0].mxu0 %v63
    %v409 = vpop.f32.mrb[0].mxu0
    %v410 = vadd.f32 0.0, %v409
    %v411 = vpop.f32.mrb[0].mxu0
    %v412 = vadd.f32 0.0, %v411
    %413 = vmatprep.mubr.f32.mxu0 0.0
    %414 = vmatmul.mubr.f32.gmra.mrb[0].mxu0 %v64
    %v415 = vpop.f32.mrb[0].mxu0
    %v416 = vadd.f32 0.0, %v415
    %v417 = vpop.f32.mrb[0].mxu0
    %v418 = vadd.f32 0.0, %v417
    %419 = vmatprep.mubr.f32.mxu0 0.0
    %420 = vmatmul.mubr.f32.gmra.mrb[0].mxu0 %v65
    %v421 = vpop.f32.mrb[0].mxu0
    %v422 = vadd.f32 0.0, %v421
    %v423 = vpop.f32.mrb[0].mxu0
    %v424 = vadd.f32 0.0, %v423
    %425 = vmatprep.mubr.f32.mxu0 0.0
    %426 = vmatmul.mubr.f32.gmra.mrb[0].mxu0 %v66
    %v427 = vpop.f32.mrb[0].mxu0
    %v428 = vadd.f32 0.0, %v427
    %v429 = vpop.f32.mrb[0].mxu0
    %v430 = vadd.f32 0.0, %v429
    %431 = vmatprep.mubr.f32.mxu0 0.0
    %432 = vmatmul.mubr.f32.gmra.mrb[0].mxu0 %v67
    %v433 = vpop.f32.mrb[0].mxu0
    %v434 = vadd.f32 0.0, %v433
    %v435 = vpop.f32.mrb[0].mxu0
    %v436 = vadd.f32 0.0, %v435
    %437 = vmatprep.mubr.f32.mxu0 0.0
    %438 = vmatmul.mubr.f32.gmra.mrb[0].mxu0 %v68
    %v439 = vpop.f32.mrb[0].mxu0
    %v440 = vadd.f32 0.0, %v439
    %v441 = vpop.f32.mrb[0].mxu0
    %v442 = vadd.f32 0.0, %v441
    %443 = vmatprep.mubr.f32.mxu0 0.0
    %444 = vmatmul.mubr.f32.gmra.mrb[0].mxu0 %v69
    %v445 = vpop.f32.mrb[0].mxu0
    %v446 = vadd.f32 0.0, %v445
    %v447 = vpop.f32.mrb[0].mxu0
    %v448 = vadd.f32 0.0, %v447
    %449 = vmatprep.mubr.f32.mxu0 0.0
    %450 = vmatmul.mubr.f32.gmra.mrb[0].mxu0 %v70
    %v451 = vpop.f32.mrb[0].mxu0
    %v452 = vadd.f32 0.0, %v451
    %v453 = vpop.f32.mrb[0].mxu0
    %v454 = vadd.f32 0.0, %v453
    %455 = vmatprep.mubr.f32.mxu0 0.0
    %456 = vmatmul.mubr.f32.gmra.mrb[0].mxu0 %v71
    %v457 = vpop.f32.mrb[0].mxu0
    %v458 = vadd.f32 0.0, %v457
    %v459 = vpop.f32.mrb[0].mxu0
    %v460 = vadd.f32 0.0, %v459
    %461 = vmatprep.mubr.f32.mxu0 0.0
    %462 = vmatmul.mubr.f32.gmra.mrb[0].mxu0 %v72
    %v463 = vpop.f32.mrb[0].mxu0
    %v464 = vadd.f32 0.0, %v463
    %v465 = vpop.f32.mrb[0].mxu0
    %v466 = vadd.f32 0.0, %v465
    %467 = vmatprep.mubr.f32.mxu0 0.0
    %468 = vmatmul.mubr.f32.gmra.mrb[0].mxu0 %v73
    %v469 = vpop.f32.mrb[0].mxu0
    %v470 = vadd.f32 0.0, %v469
    %v471 = vpop.f32.mrb[0].mxu0
    %v472 = vadd.f32 0.0, %v471
    %473 = vmatprep.mubr.f32.mxu0 0.0
    %474 = vmatmul.mubr.f32.gmra.mrb[0].mxu0 %v74
    %v475 = vpop.f32.mrb[0].mxu0
    %v476 = vadd.f32 0.0, %v475
    %v477 = vpop.f32.mrb[0].mxu0
    %v478 = vadd.f32 0.0, %v477
    %479 = vmatprep.mubr.f32.mxu0 0.0
    %480 = vmatmul.mubr.f32.gmra.mrb[0].mxu0 %v75
    %v481 = vpop.f32.mrb[0].mxu0
    %v482 = vadd.f32 0.0, %v481
    %v483 = vpop.f32.mrb[0].mxu0
    %v484 = vadd.f32 0.0, %v483
    %485 = vmatprep.mubr.f32.mxu0 0.0
    %486 = vmatmul.mubr.f32.gmra.mrb[0].mxu0 %v76
    %v487 = vpop.f32.mrb[0].mxu0
    %v488 = vadd.f32 0.0, %v487
    %v489 = vpop.f32.mrb[0].mxu0
    %v490 = vadd.f32 0.0, %v489
    %491 = vmatprep.mubr.f32.mxu0 0.0
    %492 = vmatmul.mubr.f32.gmra.mrb[0].mxu0 %v77
    %v493 = vpop.f32.mrb[0].mxu0
    %v494 = vadd.f32 0.0, %v493
    %v495 = vpop.f32.mrb[0].mxu0
    %v496 = vadd.f32 0.0, %v495
    %497 = vmatprep.mubr.f32.mxu0 0.0
    %498 = vmatmul.mubr.f32.gmra.mrb[0].mxu0 %v78
    %v499 = vpop.f32.mrb[0].mxu0
    %v500 = vadd.f32 0.0, %v499
    %v501 = vpop.f32.mrb[0].mxu0
    %v502 = vadd.f32 0.0, %v501
    %503 = vmatprep.mubr.f32.mxu0 0.0
    %504 = vmatmul.mubr.f32.gmra.mrb[0].mxu0 %v79
    %v505 = vpop.f32.mrb[0].mxu0
    %v506 = vadd.f32 0.0, %v505
    %v507 = vpop.f32.mrb[0].mxu0
    %v508 = vadd.f32 0.0, %v507
    %509 = vmatprep.mubr.f32.mxu0 0.0
    %510 = vmatmul.mubr.f32.gmra.mrb[0].mxu0 %v80
    %v511 = vpop.f32.mrb[0].mxu0
    %v512 = vadd.f32 0.0, %v511
    %v513 = vpop.f32.mrb[0].mxu0
    %v514 = vadd.f32 0.0, %v513
    %515 = vmatprep.mubr.f32.mxu0 0.0
    %516 = vmatmul.mubr.f32.gmra.mrb[0].mxu0 %v81
    %v517 = vpop.f32.mrb[0].mxu0
    %v518 = vadd.f32 0.0, %v517
    %v519 = vpop.f32.mrb[0].mxu0
    %v520 = vadd.f32 0.0, %v519
    %521 = vmatprep.mubr.f32.mxu0 0.0
    %522 = vmatmul.mubr.f32.gmra.mrb[0].mxu0 %v82
    %v523 = vpop.f32.mrb[0].mxu0
    %v524 = vadd.f32 0.0, %v523
    %v525 = vpop.f32.mrb[0].mxu0
    %v526 = vadd.f32 0.0, %v525
    %527 = vmatprep.mubr.f32.mxu0 0.0
    %528 = vmatmul.mubr.f32.gmra.mrb[0].mxu0 %v83
    %v529 = vpop.f32.mrb[0].mxu0
    %v530 = vadd.f32 0.0, %v529
    %v531 = vpop.f32.mrb[0].mxu0
    %v532 = vadd.f32 0.0, %v531
    %533 = vmatprep.mubr.f32.mxu0 0.0
    %534 = vmatmul.mubr.f32.gmra.mrb[0].mxu0 %v84
    %v535 = vpop.f32.mrb[0].mxu0
    %v536 = vadd.f32 0.0, %v535
    %v537 = vpop.f32.mrb[0].mxu0
    %v538 = vadd.f32 0.0, %v537
    %539 = vmatprep.mubr.f32.mxu0 0.0
    %540 = vmatmul.mubr.f32.gmra.mrb[0].mxu0 %v85
    %v541 = vpop.f32.mrb[0].mxu0
    %v542 = vadd.f32 0.0, %v541
    %v543 = vpop.f32.mrb[0].mxu0
    %v544 = vadd.f32 0.0, %v543
    %545 = vmatprep.mubr.f32.mxu0 0.0
    %546 = vmatmul.mubr.f32.gmra.mrb[0].mxu0 %v86
    %v547 = vpop.f32.mrb[0].mxu0
    %v548 = vadd.f32 0.0, %v547
    %v549 = vpop.f32.mrb[0].mxu0
    %v550 = vadd.f32 0.0, %v549
    %551 = vmatprep.mubr.f32.mxu0 0.0
    %552 = vmatmul.mubr.f32.gmra.mrb[0].mxu0 %v87
    %v553 = vpop.f32.mrb[0].mxu0
    %v554 = vadd.f32 0.0, %v553
    %v555 = vpop.f32.mrb[0].mxu0
    %v556 = vadd.f32 0.0, %v555
    %557 = vmatprep.mubr.f32.mxu0 0.0
    %558 = vmatmul.mubr.f32.gmra.mrb[0].mxu0 %v88
    %v559 = vpop.f32.mrb[0].mxu0
    %v560 = vadd.f32 0.0, %v559
    %v561 = vpop.f32.mrb[0].mxu0
    %v562 = vadd.f32 0.0, %v561
    %563 = vmatprep.mubr.f32.mxu0 0.0
    %564 = vmatmul.mubr.f32.gmra.mrb[0].mxu0 %v89
    %v565 = vpop.f32.mrb[0].mxu0
    %v566 = vadd.f32 0.0, %v565
    %v567 = vpop.f32.mrb[0].mxu0
    %v568 = vadd.f32 0.0, %v567
    %569 = vmatprep.mubr.f32.mxu0 0.0
    %570 = vmatmul.mubr.f32.gmra.mrb[0].mxu0 %v90
    %v571 = vpop.f32.mrb[0].mxu0
    %v572 = vadd.f32 0.0, %v571
    %v573 = vpop.f32.mrb[0].mxu0
    %v574 = vadd.f32 0.0, %v573
    %575 = vmatprep.mubr.f32.mxu0 0.0
    %576 = vmatmul.mubr.f32.gmra.mrb[0].mxu0 %v91
    %v577 = vpop.f32.mrb[0].mxu0
    %v578 = vadd.f32 0.0, %v577
    %v579 = vpop.f32.mrb[0].mxu0
    %v580 = vadd.f32 0.0, %v579
    %581 = vmatprep.mubr.f32.mxu0 0.0
    %582 = vmatmul.mubr.f32.gmra.mrb[0].mxu0 %v92
    %v583 = vpop.f32.mrb[0].mxu0
    %v584 = vadd.f32 0.0, %v583
    %v585 = vpop.f32.mrb[0].mxu0
    %v586 = vadd.f32 0.0, %v585
    %587 = vmatprep.mubr.f32.mxu0 0.0
    %588 = vmatmul.mubr.f32.gmra.mrb[0].mxu0 %v93
    %v589 = vpop.f32.mrb[0].mxu0
    %v590 = vadd.f32 0.0, %v589
    %v591 = vpop.f32.mrb[0].mxu0
    %v592 = vadd.f32 0.0, %v591
    %593 = vmatprep.mubr.f32.mxu0 0.0
    %594 = vmatmul.mubr.f32.gmra.mrb[0].mxu0 %v94
    %v595 = vpop.f32.mrb[0].mxu0
    %v596 = vadd.f32 0.0, %v595
    %v597 = vpop.f32.mrb[0].mxu0
    %v598 = vadd.f32 0.0, %v597
    %599 = vmatprep.mubr.f32.mxu0 0.0
    %600 = vmatmul.mubr.f32.gmra.mrb[0].mxu0 %v95
    %v601 = vpop.f32.mrb[0].mxu0
    %v602 = vadd.f32 0.0, %v601
    %v603 = vpop.f32.mrb[0].mxu0
    %v604 = vadd.f32 0.0, %v603
    %605 = vmatprep.mubr.f32.mxu0 0.0
    %606 = vmatmul.mubr.f32.gmra.mrb[0].mxu0 %v96
    %v607 = vpop.f32.mrb[0].mxu0
    %v608 = vadd.f32 0.0, %v607
    %v609 = vpop.f32.mrb[0].mxu0
    %v610 = vadd.f32 0.0, %v609
    %611 = vmatprep.mubr.f32.mxu0 0.0
    %612 = vmatmul.mubr.f32.gmra.mrb[0].mxu0 %v97
    %v613 = vpop.f32.mrb[0].mxu0
    %v614 = vadd.f32 0.0, %v613
    %v615 = vpop.f32.mrb[0].mxu0
    %v616 = vadd.f32 0.0, %v615
    %617 = vmatprep.mubr.f32.mxu0 0.0
    %618 = vmatmul.mubr.f32.gmra.mrb[0].mxu0 %v98
    %v619 = vpop.f32.mrb[0].mxu0
    %v620 = vadd.f32 0.0, %v619
    %v621 = vpop.f32.mrb[0].mxu0
    %v622 = vadd.f32 0.0, %v621
    %623 = vmatprep.mubr.f32.mxu0 0.0
    %624 = vmatmul.mubr.f32.gmra.mrb[0].mxu0 %v99
    %v625 = vpop.f32.mrb[0].mxu0
    %v626 = vadd.f32 0.0, %v625
    %v627 = vpop.f32.mrb[0].mxu0
    %v628 = vadd.f32 0.0, %v627
    %629 = vmatprep.mubr.f32.mxu0 0.0
    %630 = vmatmul.mubr.f32.gmra.mrb[0].mxu0 %v100
    %v631 = vpop.f32.mrb[0].mxu0
    %v632 = vadd.f32 0.0, %v631
    %v633 = vpop.f32.mrb[0].mxu0
    %v634 = vadd.f32 0.0, %v633
    %635 = vmatprep.mubr.f32.mxu0 0.0
    %636 = vmatmul.mubr.f32.gmra.mrb[0].mxu0 %v101
    %v637 = vpop.f32.mrb[0].mxu0
    %v638 = vadd.f32 0.0, %v637
    %v639 = vpop.f32.mrb[0].mxu0
    %v640 = vadd.f32 0.0, %v639
    %641 = vmatprep.mubr.f32.mxu0 0.0
    %642 = vmatmul.mubr.f32.gmra.mrb[0].mxu0 %v102
    %v643 = vpop.f32.mrb[0].mxu0
    %v644 = vadd.f32 0.0, %v643
    %v645 = vpop.f32.mrb[0].mxu0
    %v646 = vadd.f32 0.0, %v645
    %647 = vmatprep.mubr.f32.mxu0 0.0
    %648 = vmatmul.mubr.f32.gmra.mrb[0].mxu0 %v103
    %v649 = vpop.f32.mrb[0].mxu0
    %v650 = vadd.f32 0.0, %v649
    %v651 = vpop.f32.mrb[0].mxu0
    %v652 = vadd.f32 0.0, %v651
    %653 = vmatprep.mubr.f32.mxu0 0.0
    %654 = vmatmul.mubr.f32.gmra.mrb[0].mxu0 %v104
    %v655 = vpop.f32.mrb[0].mxu0
    %v656 = vadd.f32 0.0, %v655
    %v657 = vpop.f32.mrb[0].mxu0
    %v658 = vadd.f32 0.0, %v657
    %659 = vmatprep.mubr.f32.mxu0 0.0
    %660 = vmatmul.mubr.f32.gmra.mrb[0].mxu0 %v105
    %v661 = vpop.f32.mrb[0].mxu0
    %v662 = vadd.f32 0.0, %v661
    %v663 = vpop.f32.mrb[0].mxu0
    %v664 = vadd.f32 0.0, %v663
    %665 = vmatprep.mubr.f32.mxu0 0.0
    %666 = vmatmul.mubr.f32.gmra.mrb[0].mxu0 %v106
    %v667 = vpop.f32.mrb[0].mxu0
    %v668 = vadd.f32 0.0, %v667
    %v669 = vpop.f32.mrb[0].mxu0
    %v670 = vadd.f32 0.0, %v669
    %671 = vmatprep.mubr.f32.mxu0 0.0
    %672 = vmatmul.mubr.f32.gmra.mrb[0].mxu0 %v107
    %v673 = vpop.f32.mrb[0].mxu0
    %v674 = vadd.f32 0.0, %v673
    %v675 = vpop.f32.mrb[0].mxu0
    %v676 = vadd.f32 0.0, %v675
    %677 = vmatprep.mubr.f32.mxu0 0.0
    %678 = vmatmul.mubr.f32.gmra.mrb[0].mxu0 %v108
    %v679 = vpop.f32.mrb[0].mxu0
    %v680 = vadd.f32 0.0, %v679
    %v681 = vpop.f32.mrb[0].mxu0
    %v682 = vadd.f32 0.0, %v681
    %683 = vmatprep.mubr.f32.mxu0 0.0
    %684 = vmatmul.mubr.f32.gmra.mrb[0].mxu0 %v109
    %v685 = vpop.f32.mrb[0].mxu0
    %v686 = vadd.f32 0.0, %v685
    %v687 = vpop.f32.mrb[0].mxu0
    %v688 = vadd.f32 0.0, %v687
    %689 = vmatprep.mubr.f32.mxu0 0.0
    %690 = vmatmul.mubr.f32.gmra.mrb[0].mxu0 %v110
    %v691 = vpop.f32.mrb[0].mxu0
    %v692 = vadd.f32 0.0, %v691
    %v693 = vpop.f32.mrb[0].mxu0
    %v694 = vadd.f32 0.0, %v693
    %695 = vmatprep.mubr.f32.mxu0 0.0
    %696 = vmatmul.mubr.f32.gmra.mrb[0].mxu0 %v111
    %v697 = vpop.f32.mrb[0].mxu0
    %v698 = vadd.f32 0.0, %v697
    %v699 = vpop.f32.mrb[0].mxu0
    %v700 = vadd.f32 0.0, %v699
    %701 = vmatprep.mubr.f32.mxu0 0.0
    %702 = vmatmul.mubr.f32.gmra.mrb[0].mxu0 %v112
    %v703 = vpop.f32.mrb[0].mxu0
    %v704 = vadd.f32 0.0, %v703
    %v705 = vpop.f32.mrb[0].mxu0
    %v706 = vadd.f32 0.0, %v705
    %707 = vmatprep.mubr.f32.mxu0 0.0
    %708 = vmatmul.mubr.f32.gmra.mrb[0].mxu0 %v113
    %v709 = vpop.f32.mrb[0].mxu0
    %v710 = vadd.f32 0.0, %v709
    %v711 = vpop.f32.mrb[0].mxu0
    %v712 = vadd.f32 0.0, %v711
    %713 = vmatprep.mubr.f32.mxu0 0.0
    %714 = vmatmul.mubr.f32.gmra.mrb[0].mxu0 %v114
    %v715 = vpop.f32.mrb[0].mxu0
    %v716 = vadd.f32 0.0, %v715
    %v717 = vpop.f32.mrb[0].mxu0
    %v718 = vadd.f32 0.0, %v717
    %719 = vmatprep.mubr.f32.mxu0 0.0
    %720 = vmatmul.mubr.f32.gmra.mrb[0].mxu0 %v115
    %v721 = vpop.f32.mrb[0].mxu0
    %v722 = vadd.f32 0.0, %v721
    %v723 = vpop.f32.mrb[0].mxu0
    %v724 = vadd.f32 0.0, %v723
    %725 = vmatprep.mubr.f32.mxu0 0.0
    %726 = vmatmul.mubr.f32.gmra.mrb[0].mxu0 %v116
    %v727 = vpop.f32.mrb[0].mxu0
    %v728 = vadd.f32 0.0, %v727
    %v729 = vpop.f32.mrb[0].mxu0
    %v730 = vadd.f32 0.0, %v729
    %731 = vmatprep.mubr.f32.mxu0 0.0
    %732 = vmatmul.mubr.f32.gmra.mrb[0].mxu0 %v117
    %v733 = vpop.f32.mrb[0].mxu0
    %v734 = vadd.f32 0.0, %v733
    %v735 = vpop.f32.mrb[0].mxu0
    %v736 = vadd.f32 0.0, %v735
    %737 = vmatprep.mubr.f32.mxu0 0.0
    %738 = vmatmul.mubr.f32.gmra.mrb[0].mxu0 %v118
    %v739 = vpop.f32.mrb[0].mxu0
    %v740 = vadd.f32 0.0, %v739
    %v741 = vpop.f32.mrb[0].mxu0
    %v742 = vadd.f32 0.0, %v741
    %743 = vmatprep.mubr.f32.mxu0 0.0
    %744 = vmatmul.mubr.f32.gmra.mrb[0].mxu0 %v119
    %v745 = vpop.f32.mrb[0].mxu0
    %v746 = vadd.f32 0.0, %v745
    %v747 = vpop.f32.mrb[0].mxu0
    %v748 = vadd.f32 0.0, %v747
    %749 = vmatprep.mubr.f32.mxu0 0.0
    %750 = vmatmul.mubr.f32.gmra.mrb[0].mxu0 %v120
    %v751 = vpop.f32.mrb[0].mxu0
    %v752 = vadd.f32 0.0, %v751
    %v753 = vpop.f32.mrb[0].mxu0
    %v754 = vadd.f32 0.0, %v753
    %755 = vmatprep.mubr.f32.mxu0 0.0
    %756 = vmatmul.mubr.f32.gmra.mrb[0].mxu0 %v121
    %v757 = vpop.f32.mrb[0].mxu0
    %v758 = vadd.f32 0.0, %v757
    %v759 = vpop.f32.mrb[0].mxu0
    %v760 = vadd.f32 0.0, %v759
    %761 = vmatprep.mubr.f32.mxu0 0.0
    %762 = vmatmul.mubr.f32.gmra.mrb[0].mxu0 %v122
    %v763 = vpop.f32.mrb[0].mxu0
    %v764 = vadd.f32 0.0, %v763
    %v765 = vpop.f32.mrb[0].mxu0
    %v766 = vadd.f32 0.0, %v765
    %767 = vmatprep.mubr.f32.mxu0 0.0
    %768 = vmatmul.mubr.f32.gmra.mrb[0].mxu0 %v123
    %v769 = vpop.f32.mrb[0].mxu0
    %v770 = vadd.f32 0.0, %v769
    %v771 = vpop.f32.mrb[0].mxu0
    %v772 = vadd.f32 0.0, %v771
    %773 = vmatprep.mubr.f32.mxu0 0.0
    %774 = vmatmul.mubr.f32.gmra.mrb[0].mxu0 %v124
    %v775 = vpop.f32.mrb[0].mxu0
    %v776 = vadd.f32 0.0, %v775
    %v777 = vpop.f32.mrb[0].mxu0
    %v778 = vadd.f32 0.0, %v777
    %779 = vmatprep.mubr.f32.mxu0 0.0
    %780 = vmatmul.mubr.f32.gmra.mrb[0].mxu0 %v125
    %v781 = vpop.f32.mrb[0].mxu0
    %v782 = vadd.f32 0.0, %v781
    %v783 = vpop.f32.mrb[0].mxu0
    %v784 = vadd.f32 0.0, %v783
    %785 = vmatprep.mubr.f32.mxu0 0.0
    %786 = vmatmul.mubr.f32.gmra.mrb[0].mxu0 %v126
    %v787 = vpop.f32.mrb[0].mxu0
    %v788 = vadd.f32 0.0, %v787
    %v789 = vpop.f32.mrb[0].mxu0
    %v790 = vadd.f32 0.0, %v789
    %791 = vmatprep.mubr.f32.mxu0 0.0
    %792 = vmatmul.mubr.f32.gmra.mrb[0].mxu0 %v127
    %v793 = vpop.f32.mrb[0].mxu0
    %v794 = vadd.f32 0.0, %v793
    %v795 = vpop.f32.mrb[0].mxu0
    %v796 = vadd.f32 0.0, %v795
    %797 = vmatprep.mubr.f32.mxu0 0.0
    %798 = vmatmul.mubr.f32.gmra.mrb[0].mxu0 %v128
    %v799 = vpop.f32.mrb[0].mxu0
    %v800 = vadd.f32 0.0, %v799
    %v801 = vpop.f32.mrb[0].mxu0
    %v802 = vadd.f32 0.0, %v801
    %803 = vmatprep.mubr.f32.mxu0 0.0
    %804 = vmatmul.mubr.f32.gmra.mrb[0].mxu0 %v129
    %v805 = vpop.f32.mrb[0].mxu0
    %v806 = vadd.f32 0.0, %v805
    %v807 = vpop.f32.mrb[0].mxu0
    %v808 = vadd.f32 0.0, %v807
    %809 = vmatprep.mubr.f32.mxu0 0.0
    %810 = vmatmul.mubr.f32.gmra.mrb[0].mxu0 %v130
    %v811 = vpop.f32.mrb[0].mxu0
    %v812 = vadd.f32 0.0, %v811
    %v813 = vpop.f32.mrb[0].mxu0
    %v814 = vadd.f32 0.0, %v813
    %815 = vmatprep.mubr.f32.mxu0 0.0
    %816 = vmatmul.mubr.f32.gmra.mrb[0].mxu0 %v131
    %v817 = vpop.f32.mrb[0].mxu0
    %v818 = vadd.f32 0.0, %v817
    %v819 = vpop.f32.mrb[0].mxu0
    %v820 = vadd.f32 0.0, %v819
    %821 = vmatprep.mubr.f32.mxu0 0.0
    %822 = vmatmul.mubr.f32.gmra.mrb[0].mxu0 %v132
    %v823 = vpop.f32.mrb[0].mxu0
    %v824 = vadd.f32 0.0, %v823
    %v825 = vpop.f32.mrb[0].mxu0
    %v826 = vadd.f32 0.0, %v825
    %827 = vmatprep.mubr.f32.mxu0 0.0
    %828 = vmatmul.mubr.f32.gmra.mrb[0].mxu0 %v133
    %v829 = vpop.f32.mrb[0].mxu0
    %v830 = vadd.f32 0.0, %v829
    %v831 = vpop.f32.mrb[0].mxu0
    %v832 = vadd.f32 0.0, %v831
    %833 = vmatprep.mubr.f32.mxu0 0.0
    %834 = vmatmul.mubr.f32.gmra.mrb[0].mxu0 %v134
    %v835 = vpop.f32.mrb[0].mxu0
    %v836 = vadd.f32 0.0, %v835
    %v837 = vpop.f32.mrb[0].mxu0
    %v838 = vadd.f32 0.0, %v837
    %839 = vmatprep.mubr.f32.mxu0 0.0
    %840 = vmatmul.mubr.f32.gmra.mrb[0].mxu0 %v135
    %v841 = vpop.f32.mrb[0].mxu0
    %v842 = vadd.f32 0.0, %v841
    %v843 = vpop.f32.mrb[0].mxu0
    %v844 = vadd.f32 0.0, %v843
    %845 = vmatprep.mubr.f32.mxu0 0.0
    %846 = vmatmul.mubr.f32.gmra.mrb[0].mxu0 %v136
    %v847 = vpop.f32.mrb[0].mxu0
    %v848 = vadd.f32 0.0, %v847
    %v849 = vpop.f32.mrb[0].mxu0
    %v850 = vadd.f32 0.0, %v849
    %851 = vmatprep.mubr.f32.mxu0 0.0
    %852 = vmatmul.mubr.f32.gmra.mrb[0].mxu0 %v137
    %v853 = vpop.f32.mrb[0].mxu0
    %v854 = vadd.f32 0.0, %v853
    %v855 = vpop.f32.mrb[0].mxu0
    %v856 = vadd.f32 0.0, %v855
    %857 = vmatprep.mubr.f32.mxu0 0.0
    %858 = vmatmul.mubr.f32.gmra.mrb[0].mxu0 %v138
    %v859 = vpop.f32.mrb[0].mxu0
    %v860 = vadd.f32 0.0, %v859
    %v861 = vpop.f32.mrb[0].mxu0
    %v862 = vadd.f32 0.0, %v861
    %863 = vmatprep.mubr.f32.mxu0 0.0
    %864 = vmatmul.mubr.f32.gmra.mrb[0].mxu0 %v139
    %v865 = vpop.f32.mrb[0].mxu0
    %v866 = vadd.f32 0.0, %v865
    %v867 = vpop.f32.mrb[0].mxu0
    %v868 = vadd.f32 0.0, %v867
    %869 = vmatprep.mubr.f32.mxu0 0.0
    %870 = vmatmul.mubr.f32.gmra.mrb[0].mxu0 %v140
    %v871 = vpop.f32.mrb[0].mxu0
    %v872 = vadd.f32 0.0, %v871
    %v873 = vpop.f32.mrb[0].mxu0
    %v874 = vadd.f32 0.0, %v873
    %875 = vmatprep.mubr.f32.mxu0 0.0
    %876 = vmatmul.mubr.f32.gmra.mrb[0].mxu0 %v141
    %v877 = vpop.f32.mrb[0].mxu0
    %v878 = vadd.f32 0.0, %v877
    %v879 = vpop.f32.mrb[0].mxu0
    %v880 = vadd.f32 0.0, %v879
    %881 = vmatprep.mubr.f32.mxu0 0.0
    %882 = vmatmul.mubr.f32.gmra.mrb[0].mxu0 %v142
    %v883 = vpop.f32.mrb[0].mxu0
    %v884 = vadd.f32 0.0, %v883
    %v885 = vpop.f32.mrb[0].mxu0
    %v886 = vadd.f32 0.0, %v885
    %887 = vmatprep.mubr.f32.mxu0 0.0
    %888 = vmatmul.mubr.f32.gmra.mrb[0].mxu0 %v143
    %v889 = vpop.f32.mrb[0].mxu0
    %v890 = vadd.f32 0.0, %v889
    %v891 = vpop.f32.mrb[0].mxu0
    %v892 = vadd.f32 0.0, %v891
    %893 = vmatprep.mubr.f32.mxu0 0.0
    %894 = vmatmul.mubr.f32.gmra.mrb[0].mxu0 %v144
    %v895 = vpop.f32.mrb[0].mxu0
    %v896 = vadd.f32 0.0, %v895
    %v897 = vpop.f32.mrb[0].mxu0
    %v898 = vadd.f32 0.0, %v897
    %899 = vmatprep.mubr.f32.mxu0 0.0
    %900 = vmatmul.mubr.f32.gmra.mrb[0].mxu0 %v145
    %v901 = vpop.f32.mrb[0].mxu0
    %v902 = vadd.f32 0.0, %v901
    %v903 = vpop.f32.mrb[0].mxu0
    %v904 = vadd.f32 0.0, %v903
    %905 = vmatprep.mubr.f32.mxu0 0.0
    %906 = vmatmul.mubr.f32.gmra.mrb[0].mxu0 %v146
    %v907 = vpop.f32.mrb[0].mxu0
    %v908 = vadd.f32 0.0, %v907
    %v909 = vpop.f32.mrb[0].mxu0
    %v910 = vadd.f32 0.0, %v909
    %911 = vmatprep.mubr.f32.mxu0 0.0
    %912 = vmatmul.mubr.f32.gmra.mrb[0].mxu0 %v147
    %v913 = vpop.f32.mrb[0].mxu0
    %v914 = vadd.f32 0.0, %v913
    %v915 = vpop.f32.mrb[0].mxu0
    %v916 = vadd.f32 0.0, %v915
    %917 = vmatprep.mubr.f32.mxu0 0.0
    %918 = vmatmul.mubr.f32.gmra.mrb[0].mxu0 %v148
    %v919 = vpop.f32.mrb[0].mxu0
    %v920 = vadd.f32 0.0, %v919
    %v921 = vpop.f32.mrb[0].mxu0
    %v922 = vadd.f32 0.0, %v921
    %923 = vmatprep.mubr.f32.mxu0 0.0
    %924 = vmatmul.mubr.f32.gmra.mrb[0].mxu0 %v149
    %v925 = vpop.f32.mrb[0].mxu0
    %v926 = vadd.f32 0.0, %v925
    %v927 = vpop.f32.mrb[0].mxu0
    %v928 = vadd.f32 0.0, %v927
    %929 = vmatprep.mubr.f32.mxu0 0.0
    %930 = vmatmul.mubr.f32.gmra.mrb[0].mxu0 %v150
    %v931 = vpop.f32.mrb[0].mxu0
    %v932 = vadd.f32 0.0, %v931
    %v933 = vpop.f32.mrb[0].mxu0
    %v934 = vadd.f32 0.0, %v933
    %935 = vmatprep.mubr.f32.mxu0 0.0
    %936 = vmatmul.mubr.f32.gmra.mrb[0].mxu0 %v151
    %v937 = vpop.f32.mrb[0].mxu0
    %v938 = vadd.f32 0.0, %v937
    %v939 = vpop.f32.mrb[0].mxu0
    %v940 = vadd.f32 0.0, %v939
    %941 = vmatprep.mubr.f32.mxu0 0.0
    %942 = vmatmul.mubr.f32.gmra.mrb[0].mxu0 %v152
    %v943 = vpop.f32.mrb[0].mxu0
    %v944 = vadd.f32 0.0, %v943
    %v945 = vpop.f32.mrb[0].mxu0
    %v946 = vadd.f32 0.0, %v945
    %947 = vmatprep.mubr.f32.mxu0 0.0
    %948 = vmatmul.mubr.f32.gmra.mrb[0].mxu0 %v153
    %v949 = vpop.f32.mrb[0].mxu0
    %v950 = vadd.f32 0.0, %v949
    %v951 = vpop.f32.mrb[0].mxu0
    %v952 = vadd.f32 0.0, %v951
    %953 = vmatprep.mubr.f32.mxu0 0.0
    %954 = vmatmul.mubr.f32.gmra.mrb[0].mxu0 %v154
    %v955 = vpop.f32.mrb[0].mxu0
    %v956 = vadd.f32 0.0, %v955
    %v957 = vpop.f32.mrb[0].mxu0
    %v958 = vadd.f32 0.0, %v957
    %959 = vmatprep.mubr.f32.mxu0 0.0
    %960 = vmatmul.mubr.f32.gmra.mrb[0].mxu0 %v155
    %v961 = vpop.f32.mrb[0].mxu0
    %v962 = vadd.f32 0.0, %v961
    %v963 = vpop.f32.mrb[0].mxu0
    %v964 = vadd.f32 0.0, %v963
    %965 = vmatprep.mubr.f32.mxu0 0.0
    %966 = vmatmul.mubr.f32.gmra.mrb[0].mxu0 %v156
    %v967 = vpop.f32.mrb[0].mxu0
    %v968 = vadd.f32 0.0, %v967
    %v969 = vpop.f32.mrb[0].mxu0
    %v970 = vadd.f32 0.0, %v969
    %971 = vmatprep.mubr.f32.mxu0 0.0
    %972 = vmatmul.mubr.f32.gmra.mrb[0].mxu0 %v157
    %v973 = vpop.f32.mrb[0].mxu0
    %v974 = vadd.f32 0.0, %v973
    %v975 = vpop.f32.mrb[0].mxu0
    %v976 = vadd.f32 0.0, %v975
    %977 = vmatprep.mubr.f32.mxu0 0.0
    %978 = vmatmul.mubr.f32.gmra.mrb[0].mxu0 %v158
    %v979 = vpop.f32.mrb[0].mxu0
    %v980 = vadd.f32 0.0, %v979
    %v981 = vpop.f32.mrb[0].mxu0
    %v982 = vadd.f32 0.0, %v981
    %983 = vmatprep.mubr.f32.mxu0 0.0
    %984 = vmatmul.mubr.f32.gmra.mrb[0].mxu0 %v159
    %v985 = vpop.f32.mrb[0].mxu0
    %v986 = vadd.f32 0.0, %v985
    %v987 = vpop.f32.mrb[0].mxu0
    %v988 = vadd.f32 0.0, %v987
    %989 = vmatprep.mubr.f32.mxu0 0.0
    %990 = vmatmul.mubr.f32.gmra.mrb[0].mxu0 %v160
    %v991 = vpop.f32.mrb[0].mxu0
    %v992 = vadd.f32 0.0, %v991
    %v993 = vpop.f32.mrb[0].mxu0
    %v994 = vadd.f32 0.0, %v993
    %995 = vmatprep.mubr.f32.mxu0 0.0
    %996 = vmatmul.mubr.f32.gmra.mrb[0].mxu0 %v161
    %v997 = vpop.f32.mrb[0].mxu0
    %v998 = vadd.f32 0.0, %v997
    %v999 = vpop.f32.mrb[0].mxu0
    %v1000 = vadd.f32 0.0, %v999
    %1001 = vmatprep.mubr.f32.mxu0 0.0
    %1002 = vmatmul.mubr.f32.gmra.mrb[0].mxu0 %v162
    %v1003 = vpop.f32.mrb[0].mxu0
    %v1004 = vadd.f32 0.0, %v1003
    %v1005 = vpop.f32.mrb[0].mxu0
    %v1006 = vadd.f32 0.0, %v1005
    %1007 = vmatprep.mubr.f32.mxu0 0.0
    %1008 = vmatmul.mubr.f32.gmra.mrb[0].mxu0 %v163
    %v1009 = vpop.f32.mrb[0].mxu0
    %v1010 = vadd.f32 0.0, %v1009
    %v1011 = vpop.f32.mrb[0].mxu0
    %v1012 = vadd.f32 0.0, %v1011
    %1013 = vmatprep.mubr.f32.mxu0 0.0
    %1014 = vmatmul.mubr.f32.gmra.mrb[0].mxu0 %v164
    %v1015 = vpop.f32.mrb[0].mxu0
    %v1016 = vadd.f32 0.0, %v1015
    %v1017 = vpop.f32.mrb[0].mxu0
    %v1018 = vadd.f32 0.0, %v1017
    %1019 = vmatprep.mubr.f32.mxu0 0.0
    %1020 = vmatmul.mubr.f32.gmra.mrb[0].mxu0 %v165
    %v1021 = vpop.f32.mrb[0].mxu0
    %v1022 = vadd.f32 0.0, %v1021
    %v1023 = vpop.f32.mrb[0].mxu0
    %v1024 = vadd.f32 0.0, %v1023
    %1025 = vmatprep.mubr.f32.mxu0 0.0
    %1026 = vmatmul.mubr.f32.gmra.mrb[0].mxu0 %v166
    %v1027 = vpop.f32.mrb[0].mxu0
    %v1028 = vadd.f32 0.0, %v1027
    %v1029 = vpop.f32.mrb[0].mxu0
    %v1030 = vadd.f32 0.0, %v1029
    %1031 = vdwg.mxu0
    %v1032 = vld [vmem:[%s2] sm:$0x1]
    %v1034 = vlaneseq
    %v1035 = vshrl.u32 %v1034, 7
    %v1036 = vsub.s32 0, %v1035
    %v1037 = vrot.slane %v1032, %v1036
    %v1039 = vadd.f32 %v268, %v1037
    %v1040 = vadd.f32 %v274, %v1037
    %v1041 = vadd.f32 %v280, %v1037
    %v1042 = vadd.f32 %v286, %v1037
    %v1043 = vadd.f32 %v292, %v1037
    %v1044 = vadd.f32 %v298, %v1037
    %v1045 = vadd.f32 %v304, %v1037
    %v1046 = vadd.f32 %v310, %v1037
    %v1047 = vadd.f32 %v316, %v1037
    %v1048 = vadd.f32 %v322, %v1037
    %v1049 = vadd.f32 %v328, %v1037
    %v1050 = vadd.f32 %v334, %v1037
    %v1051 = vadd.f32 %v340, %v1037
    %v1052 = vadd.f32 %v346, %v1037
    %v1053 = vadd.f32 %v352, %v1037
    %v1054 = vadd.f32 %v358, %v1037
    %v1055 = vadd.f32 %v364, %v1037
    %v1056 = vadd.f32 %v370, %v1037
    %v1057 = vadd.f32 %v376, %v1037
    %v1058 = vadd.f32 %v382, %v1037
    %v1059 = vadd.f32 %v388, %v1037
    %v1060 = vadd.f32 %v394, %v1037
    %v1061 = vadd.f32 %v400, %v1037
    %v1062 = vadd.f32 %v406, %v1037
    %v1063 = vadd.f32 %v412, %v1037
    %v1064 = vadd.f32 %v418, %v1037
    %v1065 = vadd.f32 %v424, %v1037
    %v1066 = vadd.f32 %v430, %v1037
    %v1067 = vadd.f32 %v436, %v1037
    %v1068 = vadd.f32 %v442, %v1037
    %v1069 = vadd.f32 %v448, %v1037
    %v1070 = vadd.f32 %v454, %v1037
    %v1071 = vadd.f32 %v460, %v1037
    %v1072 = vadd.f32 %v466, %v1037
    %v1073 = vadd.f32 %v472, %v1037
    %v1074 = vadd.f32 %v478, %v1037
    %v1075 = vadd.f32 %v484, %v1037
    %v1076 = vadd.f32 %v490, %v1037
    %v1077 = vadd.f32 %v496, %v1037
    %v1078 = vadd.f32 %v502, %v1037
    %v1079 = vadd.f32 %v508, %v1037
    %v1080 = vadd.f32 %v514, %v1037
    %v1081 = vadd.f32 %v520, %v1037
    %v1082 = vadd.f32 %v526, %v1037
    %v1083 = vadd.f32 %v532, %v1037
    %v1084 = vadd.f32 %v538, %v1037
    %v1085 = vadd.f32 %v544, %v1037
    %v1086 = vadd.f32 %v550, %v1037
    %v1087 = vadd.f32 %v556, %v1037
    %v1088 = vadd.f32 %v562, %v1037
    %v1089 = vadd.f32 %v568, %v1037
    %v1090 = vadd.f32 %v574, %v1037
    %v1091 = vadd.f32 %v580, %v1037
    %v1092 = vadd.f32 %v586, %v1037
    %v1093 = vadd.f32 %v592, %v1037
    %v1094 = vadd.f32 %v598, %v1037
    %v1095 = vadd.f32 %v604, %v1037
    %v1096 = vadd.f32 %v610, %v1037
    %v1097 = vadd.f32 %v616, %v1037
    %v1098 = vadd.f32 %v622, %v1037
    %v1099 = vadd.f32 %v628, %v1037
    %v1100 = vadd.f32 %v634, %v1037
    %v1101 = vadd.f32 %v640, %v1037
    %v1102 = vadd.f32 %v646, %v1037
    %v1103 = vadd.f32 %v652, %v1037
    %v1104 = vadd.f32 %v658, %v1037
    %v1105 = vadd.f32 %v664, %v1037
    %v1106 = vadd.f32 %v670, %v1037
    %v1107 = vadd.f32 %v676, %v1037
    %v1108 = vadd.f32 %v682, %v1037
    %v1109 = vadd.f32 %v688, %v1037
    %v1110 = vadd.f32 %v694, %v1037
    %v1111 = vadd.f32 %v700, %v1037
    %v1112 = vadd.f32 %v706, %v1037
    %v1113 = vadd.f32 %v712, %v1037
    %v1114 = vadd.f32 %v718, %v1037
    %v1115 = vadd.f32 %v724, %v1037
    %v1116 = vadd.f32 %v730, %v1037
    %v1117 = vadd.f32 %v736, %v1037
    %v1118 = vadd.f32 %v742, %v1037
    %v1119 = vadd.f32 %v748, %v1037
    %v1120 = vadd.f32 %v754, %v1037
    %v1121 = vadd.f32 %v760, %v1037
    %v1122 = vadd.f32 %v766, %v1037
    %v1123 = vadd.f32 %v772, %v1037
    %v1124 = vadd.f32 %v778, %v1037
    %v1125 = vadd.f32 %v784, %v1037
    %v1126 = vadd.f32 %v790, %v1037
    %v1127 = vadd.f32 %v796, %v1037
    %v1128 = vadd.f32 %v802, %v1037
    %v1129 = vadd.f32 %v808, %v1037
    %v1130 = vadd.f32 %v814, %v1037
    %v1131 = vadd.f32 %v820, %v1037
    %v1132 = vadd.f32 %v826, %v1037
    %v1133 = vadd.f32 %v832, %v1037
    %v1134 = vadd.f32 %v838, %v1037
    %v1135 = vadd.f32 %v844, %v1037
    %v1136 = vadd.f32 %v850, %v1037
    %v1137 = vadd.f32 %v856, %v1037
    %v1138 = vadd.f32 %v862, %v1037
    %v1139 = vadd.f32 %v868, %v1037
    %v1140 = vadd.f32 %v874, %v1037
    %v1141 = vadd.f32 %v880, %v1037
    %v1142 = vadd.f32 %v886, %v1037
    %v1143 = vadd.f32 %v892, %v1037
    %v1144 = vadd.f32 %v898, %v1037
    %v1145 = vadd.f32 %v904, %v1037
    %v1146 = vadd.f32 %v910, %v1037
    %v1147 = vadd.f32 %v916, %v1037
    %v1148 = vadd.f32 %v922, %v1037
    %v1149 = vadd.f32 %v928, %v1037
    %v1150 = vadd.f32 %v934, %v1037
    %v1151 = vadd.f32 %v940, %v1037
    %v1152 = vadd.f32 %v946, %v1037
    %v1153 = vadd.f32 %v952, %v1037
    %v1154 = vadd.f32 %v958, %v1037
    %v1155 = vadd.f32 %v964, %v1037
    %v1156 = vadd.f32 %v970, %v1037
    %v1157 = vadd.f32 %v976, %v1037
    %v1158 = vadd.f32 %v982, %v1037
    %v1159 = vadd.f32 %v988, %v1037
    %v1160 = vadd.f32 %v994, %v1037
    %v1161 = vadd.f32 %v1000, %v1037
    %v1162 = vadd.f32 %v1006, %v1037
    %v1163 = vadd.f32 %v1012, %v1037
    %v1164 = vadd.f32 %v1018, %v1037
    %v1165 = vadd.f32 %v1024, %v1037
    %v1166 = vadd.f32 %v1030, %v1037
    %v1167 = vadd.f32 %v266, %v272
    %v1168 = vadd.f32 %v1167, %v278
    %v1169 = vadd.f32 %v1168, %v284
    %v1170 = vadd.f32 %v1169, %v290
    %v1171 = vadd.f32 %v1170, %v296
    %v1172 = vadd.f32 %v1171, %v302
    %v1173 = vadd.f32 %v1172, %v308
    %v1174 = vadd.f32 %v1173, %v314
    %v1175 = vadd.f32 %v1174, %v320
    %v1176 = vadd.f32 %v1175, %v326
    %v1177 = vadd.f32 %v1176, %v332
    %v1178 = vadd.f32 %v1177, %v338
    %v1179 = vadd.f32 %v1178, %v344
    %v1180 = vadd.f32 %v1179, %v350
    %v1181 = vadd.f32 %v1180, %v356
    %v1182 = vadd.f32 %v1181, %v362
    %v1183 = vadd.f32 %v1182, %v368
    %v1184 = vadd.f32 %v1183, %v374
    %v1185 = vadd.f32 %v1184, %v380
    %v1186 = vadd.f32 %v1185, %v386
    %v1187 = vadd.f32 %v1186, %v392
    %v1188 = vadd.f32 %v1187, %v398
    %v1189 = vadd.f32 %v1188, %v404
    %v1190 = vadd.f32 %v1189, %v410
    %v1191 = vadd.f32 %v1190, %v416
    %v1192 = vadd.f32 %v1191, %v422
    %v1193 = vadd.f32 %v1192, %v428
    %v1194 = vadd.f32 %v1193, %v434
    %v1195 = vadd.f32 %v1194, %v440
    %v1196 = vadd.f32 %v1195, %v446
    %v1197 = vadd.f32 %v1196, %v452
    %v1198 = vadd.f32 %v1197, %v458
    %v1199 = vadd.f32 %v1198, %v464
    %v1200 = vadd.f32 %v1199, %v470
    %v1201 = vadd.f32 %v1200, %v476
    %v1202 = vadd.f32 %v1201, %v482
    %v1203 = vadd.f32 %v1202, %v488
    %v1204 = vadd.f32 %v1203, %v494
    %v1205 = vadd.f32 %v1204, %v500
    %v1206 = vadd.f32 %v1205, %v506
    %v1207 = vadd.f32 %v1206, %v512
    %v1208 = vadd.f32 %v1207, %v518
    %v1209 = vadd.f32 %v1208, %v524
    %v1210 = vadd.f32 %v1209, %v530
    %v1211 = vadd.f32 %v1210, %v536
    %v1212 = vadd.f32 %v1211, %v542
    %v1213 = vadd.f32 %v1212, %v548
    %v1214 = vadd.f32 %v1213, %v554
    %v1215 = vadd.f32 %v1214, %v560
    %v1216 = vadd.f32 %v1215, %v566
    %v1217 = vadd.f32 %v1216, %v572
    %v1218 = vadd.f32 %v1217, %v578
    %v1219 = vadd.f32 %v1218, %v584
    %v1220 = vadd.f32 %v1219, %v590
    %v1221 = vadd.f32 %v1220, %v596
    %v1222 = vadd.f32 %v1221, %v602
    %v1223 = vadd.f32 %v1222, %v608
    %v1224 = vadd.f32 %v1223, %v614
    %v1225 = vadd.f32 %v1224, %v620
    %v1226 = vadd.f32 %v1225, %v626
    %v1227 = vadd.f32 %v1226, %v632
    %v1228 = vadd.f32 %v1227, %v638
    %v1229 = vadd.f32 %v1228, %v644
    %v1230 = vadd.f32 %v1229, %v650
    %v1231 = vadd.f32 %v1230, %v656
    %v1232 = vadd.f32 %v1231, %v662
    %v1233 = vadd.f32 %v1232, %v668
    %v1234 = vadd.f32 %v1233, %v674
    %v1235 = vadd.f32 %v1234, %v680
    %v1236 = vadd.f32 %v1235, %v686
    %v1237 = vadd.f32 %v1236, %v692
    %v1238 = vadd.f32 %v1237, %v698
    %v1239 = vadd.f32 %v1238, %v704
    %v1240 = vadd.f32 %v1239, %v710
    %v1241 = vadd.f32 %v1240, %v716
    %v1242 = vadd.f32 %v1241, %v722
    %v1243 = vadd.f32 %v1242, %v728
    %v1244 = vadd.f32 %v1243, %v734
    %v1245 = vadd.f32 %v1244, %v740
    %v1246 = vadd.f32 %v1245, %v746
    %v1247 = vadd.f32 %v1246, %v752
    %v1248 = vadd.f32 %v1247, %v758
    %v1249 = vadd.f32 %v1248, %v764
    %v1250 = vadd.f32 %v1249, %v770
    %v1251 = vadd.f32 %v1250, %v776
    %v1252 = vadd.f32 %v1251, %v782
    %v1253 = vadd.f32 %v1252, %v788
    %v1254 = vadd.f32 %v1253, %v794
    %v1255 = vadd.f32 %v1254, %v800
    %v1256 = vadd.f32 %v1255, %v806
    %v1257 = vadd.f32 %v1256, %v812
    %v1258 = vadd.f32 %v1257, %v818
    %v1259 = vadd.f32 %v1258, %v824
    %v1260 = vadd.f32 %v1259, %v830
    %v1261 = vadd.f32 %v1260, %v836
    %v1262 = vadd.f32 %v1261, %v842
    %v1263 = vadd.f32 %v1262, %v848
    %v1264 = vadd.f32 %v1263, %v854
    %v1265 = vadd.f32 %v1264, %v860
    %v1266 = vadd.f32 %v1265, %v866
    %v1267 = vadd.f32 %v1266, %v872
    %v1268 = vadd.f32 %v1267, %v878
    %v1269 = vadd.f32 %v1268, %v884
    %v1270 = vadd.f32 %v1269, %v890
    %v1271 = vadd.f32 %v1270, %v896
    %v1272 = vadd.f32 %v1271, %v902
    %v1273 = vadd.f32 %v1272, %v908
    %v1274 = vadd.f32 %v1273, %v914
    %v1275 = vadd.f32 %v1274, %v920
    %v1276 = vadd.f32 %v1275, %v926
    %v1277 = vadd.f32 %v1276, %v932
    %v1278 = vadd.f32 %v1277, %v938
    %v1279 = vadd.f32 %v1278, %v944
    %v1280 = vadd.f32 %v1279, %v950
    %v1281 = vadd.f32 %v1280, %v956
    %v1282 = vadd.f32 %v1281, %v962
    %v1283 = vadd.f32 %v1282, %v968
    %v1284 = vadd.f32 %v1283, %v974
    %v1285 = vadd.f32 %v1284, %v980
    %v1286 = vadd.f32 %v1285, %v986
    %v1287 = vadd.f32 %v1286, %v992
    %v1288 = vadd.f32 %v1287, %v998
    %v1289 = vadd.f32 %v1288, %v1004
    %v1290 = vadd.f32 %v1289, %v1010
    %v1291 = vadd.f32 %v1290, %v1016
    %v1292 = vadd.f32 %v1291, %v1022
    %v1293 = vadd.f32 %v1292, %v1028
    %v1294 = vrot.slane %v1293, 4
    %v1295 = vadd.f32 %v1293, %v1294
    %v1296 = vrot.slane %v1295, 2
    %v1297 = vadd.f32 %v1295, %v1296
    %v1298 = vrot.slane %v1297, 1
    %v1299 = vadd.f32 %v1297, %v1298
    %v1300 = vmul.f32 %v1299, 0.0009765625
    %v1301 = vmul.f32 %v266, %v266
    %v1302 = vmul.f32 %v272, %v272
    %v1303 = vmul.f32 %v278, %v278
    %v1304 = vmul.f32 %v284, %v284
    %v1305 = vmul.f32 %v290, %v290
    %v1306 = vmul.f32 %v296, %v296
    %v1307 = vmul.f32 %v302, %v302
    %v1308 = vmul.f32 %v308, %v308
    %v1309 = vmul.f32 %v314, %v314
    %v1310 = vmul.f32 %v320, %v320
    %v1311 = vmul.f32 %v326, %v326
    %v1312 = vmul.f32 %v332, %v332
    %v1313 = vmul.f32 %v338, %v338
    %v1314 = vmul.f32 %v344, %v344
    %v1315 = vmul.f32 %v350, %v350
    %v1316 = vmul.f32 %v356, %v356
    %v1317 = vmul.f32 %v362, %v362
    %v1318 = vmul.f32 %v368, %v368
    %v1319 = vmul.f32 %v374, %v374
    %v1320 = vmul.f32 %v380, %v380
    %v1321 = vmul.f32 %v386, %v386
    %v1322 = vmul.f32 %v392, %v392
    %v1323 = vmul.f32 %v398, %v398
    %v1324 = vmul.f32 %v404, %v404
    %v1325 = vmul.f32 %v410, %v410
    %v1326 = vmul.f32 %v416, %v416
    %v1327 = vmul.f32 %v422, %v422
    %v1328 = vmul.f32 %v428, %v428
    %v1329 = vmul.f32 %v434, %v434
    %v1330 = vmul.f32 %v440, %v440
    %v1331 = vmul.f32 %v446, %v446
    %v1332 = vmul.f32 %v452, %v452
    %v1333 = vmul.f32 %v458, %v458
    %v1334 = vmul.f32 %v464, %v464
    %v1335 = vmul.f32 %v470, %v470
    %v1336 = vmul.f32 %v476, %v476
    %v1337 = vmul.f32 %v482, %v482
    %v1338 = vmul.f32 %v488, %v488
    %v1339 = vmul.f32 %v494, %v494
    %v1340 = vmul.f32 %v500, %v500
    %v1341 = vmul.f32 %v506, %v506
    %v1342 = vmul.f32 %v512, %v512
    %v1343 = vmul.f32 %v518, %v518
    %v1344 = vmul.f32 %v524, %v524
    %v1345 = vmul.f32 %v530, %v530
    %v1346 = vmul.f32 %v536, %v536
    %v1347 = vmul.f32 %v542, %v542
    %v1348 = vmul.f32 %v548, %v548
    %v1349 = vmul.f32 %v554, %v554
    %v1350 = vmul.f32 %v560, %v560
    %v1351 = vmul.f32 %v566, %v566
    %v1352 = vmul.f32 %v572, %v572
    %v1353 = vmul.f32 %v578, %v578
    %v1354 = vmul.f32 %v584, %v584
    %v1355 = vmul.f32 %v590, %v590
    %v1356 = vmul.f32 %v596, %v596
    %v1357 = vmul.f32 %v602, %v602
    %v1358 = vmul.f32 %v608, %v608
    %v1359 = vmul.f32 %v614, %v614
    %v1360 = vmul.f32 %v620, %v620
    %v1361 = vmul.f32 %v626, %v626
    %v1362 = vmul.f32 %v632, %v632
    %v1363 = vmul.f32 %v638, %v638
    %v1364 = vmul.f32 %v644, %v644
    %v1365 = vmul.f32 %v650, %v650
    %v1366 = vmul.f32 %v656, %v656
    %v1367 = vmul.f32 %v662, %v662
    %v1368 = vmul.f32 %v668, %v668
    %v1369 = vmul.f32 %v674, %v674
    %v1370 = vmul.f32 %v680, %v680
    %v1371 = vmul.f32 %v686, %v686
    %v1372 = vmul.f32 %v692, %v692
    %v1373 = vmul.f32 %v698, %v698
    %v1374 = vmul.f32 %v704, %v704
    %v1375 = vmul.f32 %v710, %v710
    %v1376 = vmul.f32 %v716, %v716
    %v1377 = vmul.f32 %v722, %v722
    %v1378 = vmul.f32 %v728, %v728
    %v1379 = vmul.f32 %v734, %v734
    %v1380 = vmul.f32 %v740, %v740
    %v1381 = vmul.f32 %v746, %v746
    %v1382 = vmul.f32 %v752, %v752
    %v1383 = vmul.f32 %v758, %v758
    %v1384 = vmul.f32 %v764, %v764
    %v1385 = vmul.f32 %v770, %v770
    %v1386 = vmul.f32 %v776, %v776
    %v1387 = vmul.f32 %v782, %v782
    %v1388 = vmul.f32 %v788, %v788
    %v1389 = vmul.f32 %v794, %v794
    %v1390 = vmul.f32 %v800, %v800
    %v1391 = vmul.f32 %v806, %v806
    %v1392 = vmul.f32 %v812, %v812
    %v1393 = vmul.f32 %v818, %v818
    %v1394 = vmul.f32 %v824, %v824
    %v1395 = vmul.f32 %v830, %v830
    %v1396 = vmul.f32 %v836, %v836
    %v1397 = vmul.f32 %v842, %v842
    %v1398 = vmul.f32 %v848, %v848
    %v1399 = vmul.f32 %v854, %v854
    %v1400 = vmul.f32 %v860, %v860
    %v1401 = vmul.f32 %v866, %v866
    %v1402 = vmul.f32 %v872, %v872
    %v1403 = vmul.f32 %v878, %v878
    %v1404 = vmul.f32 %v884, %v884
    %v1405 = vmul.f32 %v890, %v890
    %v1406 = vmul.f32 %v896, %v896
    %v1407 = vmul.f32 %v902, %v902
    %v1408 = vmul.f32 %v908, %v908
    %v1409 = vmul.f32 %v914, %v914
    %v1410 = vmul.f32 %v920, %v920
    %v1411 = vmul.f32 %v926, %v926
    %v1412 = vmul.f32 %v932, %v932
    %v1413 = vmul.f32 %v938, %v938
    %v1414 = vmul.f32 %v944, %v944
    %v1415 = vmul.f32 %v950, %v950
    %v1416 = vmul.f32 %v956, %v956
    %v1417 = vmul.f32 %v962, %v962
    %v1418 = vmul.f32 %v968, %v968
    %v1419 = vmul.f32 %v974, %v974
    %v1420 = vmul.f32 %v980, %v980
    %v1421 = vmul.f32 %v986, %v986
    %v1422 = vmul.f32 %v992, %v992
    %v1423 = vmul.f32 %v998, %v998
    %v1424 = vmul.f32 %v1004, %v1004
    %v1425 = vmul.f32 %v1010, %v1010
    %v1426 = vmul.f32 %v1016, %v1016
    %v1427 = vmul.f32 %v1022, %v1022
    %v1428 = vmul.f32 %v1028, %v1028
    %v1429 = vadd.f32 %v1301, %v1302
    %v1430 = vadd.f32 %v1429, %v1303
    %v1431 = vadd.f32 %v1430, %v1304
    %v1432 = vadd.f32 %v1431, %v1305
    %v1433 = vadd.f32 %v1432, %v1306
    %v1434 = vadd.f32 %v1433, %v1307
    %v1435 = vadd.f32 %v1434, %v1308
    %v1436 = vadd.f32 %v1435, %v1309
    %v1437 = vadd.f32 %v1436, %v1310
    %v1438 = vadd.f32 %v1437, %v1311
    %v1439 = vadd.f32 %v1438, %v1312
    %v1440 = vadd.f32 %v1439, %v1313
    %v1441 = vadd.f32 %v1440, %v1314
    %v1442 = vadd.f32 %v1441, %v1315
    %v1443 = vadd.f32 %v1442, %v1316
    %v1444 = vadd.f32 %v1443, %v1317
    %v1445 = vadd.f32 %v1444, %v1318
    %v1446 = vadd.f32 %v1445, %v1319
    %v1447 = vadd.f32 %v1446, %v1320
    %v1448 = vadd.f32 %v1447, %v1321
    %v1449 = vadd.f32 %v1448, %v1322
    %v1450 = vadd.f32 %v1449, %v1323
    %v1451 = vadd.f32 %v1450, %v1324
    %v1452 = vadd.f32 %v1451, %v1325
    %v1453 = vadd.f32 %v1452, %v1326
    %v1454 = vadd.f32 %v1453, %v1327
    %v1455 = vadd.f32 %v1454, %v1328
    %v1456 = vadd.f32 %v1455, %v1329
    %v1457 = vadd.f32 %v1456, %v1330
    %v1458 = vadd.f32 %v1457, %v1331
    %v1459 = vadd.f32 %v1458, %v1332
    %v1460 = vadd.f32 %v1459, %v1333
    %v1461 = vadd.f32 %v1460, %v1334
    %v1462 = vadd.f32 %v1461, %v1335
    %v1463 = vadd.f32 %v1462, %v1336
    %v1464 = vadd.f32 %v1463, %v1337
    %v1465 = vadd.f32 %v1464, %v1338
    %v1466 = vadd.f32 %v1465, %v1339
    %v1467 = vadd.f32 %v1466, %v1340
    %v1468 = vadd.f32 %v1467, %v1341
    %v1469 = vadd.f32 %v1468, %v1342
    %v1470 = vadd.f32 %v1469, %v1343
    %v1471 = vadd.f32 %v1470, %v1344
    %v1472 = vadd.f32 %v1471, %v1345
    %v1473 = vadd.f32 %v1472, %v1346
    %v1474 = vadd.f32 %v1473, %v1347
    %v1475 = vadd.f32 %v1474, %v1348
    %v1476 = vadd.f32 %v1475, %v1349
    %v1477 = vadd.f32 %v1476, %v1350
    %v1478 = vadd.f32 %v1477, %v1351
    %v1479 = vadd.f32 %v1478, %v1352
    %v1480 = vadd.f32 %v1479, %v1353
    %v1481 = vadd.f32 %v1480, %v1354
    %v1482 = vadd.f32 %v1481, %v1355
    %v1483 = vadd.f32 %v1482, %v1356
    %v1484 = vadd.f32 %v1483, %v1357
    %v1485 = vadd.f32 %v1484, %v1358
    %v1486 = vadd.f32 %v1485, %v1359
    %v1487 = vadd.f32 %v1486, %v1360
    %v1488 = vadd.f32 %v1487, %v1361
    %v1489 = vadd.f32 %v1488, %v1362
    %v1490 = vadd.f32 %v1489, %v1363
    %v1491 = vadd.f32 %v1490, %v1364
    %v1492 = vadd.f32 %v1491, %v1365
    %v1493 = vadd.f32 %v1492, %v1366
    %v1494 = vadd.f32 %v1493, %v1367
    %v1495 = vadd.f32 %v1494, %v1368
    %v1496 = vadd.f32 %v1495, %v1369
    %v1497 = vadd.f32 %v1496, %v1370
    %v1498 = vadd.f32 %v1497, %v1371
    %v1499 = vadd.f32 %v1498, %v1372
    %v1500 = vadd.f32 %v1499, %v1373
    %v1501 = vadd.f32 %v1500, %v1374
    %v1502 = vadd.f32 %v1501, %v1375
    %v1503 = vadd.f32 %v1502, %v1376
    %v1504 = vadd.f32 %v1503, %v1377
    %v1505 = vadd.f32 %v1504, %v1378
    %v1506 = vadd.f32 %v1505, %v1379
    %v1507 = vadd.f32 %v1506, %v1380
    %v1508 = vadd.f32 %v1507, %v1381
    %v1509 = vadd.f32 %v1508, %v1382
    %v1510 = vadd.f32 %v1509, %v1383
    %v1511 = vadd.f32 %v1510, %v1384
    %v1512 = vadd.f32 %v1511, %v1385
    %v1513 = vadd.f32 %v1512, %v1386
    %v1514 = vadd.f32 %v1513, %v1387
    %v1515 = vadd.f32 %v1514, %v1388
    %v1516 = vadd.f32 %v1515, %v1389
    %v1517 = vadd.f32 %v1516, %v1390
    %v1518 = vadd.f32 %v1517, %v1391
    %v1519 = vadd.f32 %v1518, %v1392
    %v1520 = vadd.f32 %v1519, %v1393
    %v1521 = vadd.f32 %v1520, %v1394
    %v1522 = vadd.f32 %v1521, %v1395
    %v1523 = vadd.f32 %v1522, %v1396
    %v1524 = vadd.f32 %v1523, %v1397
    %v1525 = vadd.f32 %v1524, %v1398
    %v1526 = vadd.f32 %v1525, %v1399
    %v1527 = vadd.f32 %v1526, %v1400
    %v1528 = vadd.f32 %v1527, %v1401
    %v1529 = vadd.f32 %v1528, %v1402
    %v1530 = vadd.f32 %v1529, %v1403
    %v1531 = vadd.f32 %v1530, %v1404
    %v1532 = vadd.f32 %v1531, %v1405
    %v1533 = vadd.f32 %v1532, %v1406
    %v1534 = vadd.f32 %v1533, %v1407
    %v1535 = vadd.f32 %v1534, %v1408
    %v1536 = vadd.f32 %v1535, %v1409
    %v1537 = vadd.f32 %v1536, %v1410
    %v1538 = vadd.f32 %v1537, %v1411
    %v1539 = vadd.f32 %v1538, %v1412
    %v1540 = vadd.f32 %v1539, %v1413
    %v1541 = vadd.f32 %v1540, %v1414
    %v1542 = vadd.f32 %v1541, %v1415
    %v1543 = vadd.f32 %v1542, %v1416
    %v1544 = vadd.f32 %v1543, %v1417
    %v1545 = vadd.f32 %v1544, %v1418
    %v1546 = vadd.f32 %v1545, %v1419
    %v1547 = vadd.f32 %v1546, %v1420
    %v1548 = vadd.f32 %v1547, %v1421
    %v1549 = vadd.f32 %v1548, %v1422
    %v1550 = vadd.f32 %v1549, %v1423
    %v1551 = vadd.f32 %v1550, %v1424
    %v1552 = vadd.f32 %v1551, %v1425
    %v1553 = vadd.f32 %v1552, %v1426
    %v1554 = vadd.f32 %v1553, %v1427
    %v1555 = vadd.f32 %v1554, %v1428
    %v1556 = vrot.slane %v1555, 4
    %v1557 = vadd.f32 %v1555, %v1556
    %v1558 = vrot.slane %v1557, 2
    %v1559 = vadd.f32 %v1557, %v1558
    %v1560 = vrot.slane %v1559, 1
    %v1561 = vadd.f32 %v1559, %v1560
    %v1562 = vmul.f32 %v1561, 0.0009765625
    %v1563 = vmul.f32 %v1300, %v1300
    %v1564 = vsub.f32 %v1562, %v1563
    %v1565 = vmax.f32 %v1564, 0.0
    %v1566 = vld [vmem:[%s5] sm:$0x1]
    %v1567 = vadd.f32 %v1565, 1e-05
    %v1568 = vrsqrt.pop %v1567
    %v1569 = vmul.f32 %v1566, %v1568
    %v1570 = vld [vmem:[%s6] sm:$0x1]
    %v1571 = vmul.f32 %v1300, %v1569
    %v1572 = vsub.f32 %v1570, %v1571
    %v1574 = vlaneseq
    %v1575 = vshrl.u32 %v1574, 7
    %v1576 = vsub.s32 0, %v1575
    %v1577 = vrot.slane %v1569, %v1576
    %v1579 = vmul.f32 %v266, %v1577
    %v1580 = vmul.f32 %v272, %v1577
    %v1581 = vmul.f32 %v278, %v1577
    %v1582 = vmul.f32 %v284, %v1577
    %v1583 = vmul.f32 %v290, %v1577
    %v1584 = vmul.f32 %v296, %v1577
    %v1585 = vmul.f32 %v302, %v1577
    %v1586 = vmul.f32 %v308, %v1577
    %v1587 = vmul.f32 %v314, %v1577
    %v1588 = vmul.f32 %v320, %v1577
    %v1589 = vmul.f32 %v326, %v1577
    %v1590 = vmul.f32 %v332, %v1577
    %v1591 = vmul.f32 %v338, %v1577
    %v1592 = vmul.f32 %v344, %v1577
    %v1593 = vmul.f32 %v350, %v1577
    %v1594 = vmul.f32 %v356, %v1577
    %v1595 = vmul.f32 %v362, %v1577
    %v1596 = vmul.f32 %v368, %v1577
    %v1597 = vmul.f32 %v374, %v1577
    %v1598 = vmul.f32 %v380, %v1577
    %v1599 = vmul.f32 %v386, %v1577
    %v1600 = vmul.f32 %v392, %v1577
    %v1601 = vmul.f32 %v398, %v1577
    %v1602 = vmul.f32 %v404, %v1577
    %v1603 = vmul.f32 %v410, %v1577
    %v1604 = vmul.f32 %v416, %v1577
    %v1605 = vmul.f32 %v422, %v1577
    %v1606 = vmul.f32 %v428, %v1577
    %v1607 = vmul.f32 %v434, %v1577
    %v1608 = vmul.f32 %v440, %v1577
    %v1609 = vmul.f32 %v446, %v1577
    %v1610 = vmul.f32 %v452, %v1577
    %v1611 = vmul.f32 %v458, %v1577
    %v1612 = vmul.f32 %v464, %v1577
    %v1613 = vmul.f32 %v470, %v1577
    %v1614 = vmul.f32 %v476, %v1577
    %v1615 = vmul.f32 %v482, %v1577
    %v1616 = vmul.f32 %v488, %v1577
    %v1617 = vmul.f32 %v494, %v1577
    %v1618 = vmul.f32 %v500, %v1577
    %v1619 = vmul.f32 %v506, %v1577
    %v1620 = vmul.f32 %v512, %v1577
    %v1621 = vmul.f32 %v518, %v1577
    %v1622 = vmul.f32 %v524, %v1577
    %v1623 = vmul.f32 %v530, %v1577
    %v1624 = vmul.f32 %v536, %v1577
    %v1625 = vmul.f32 %v542, %v1577
    %v1626 = vmul.f32 %v548, %v1577
    %v1627 = vmul.f32 %v554, %v1577
    %v1628 = vmul.f32 %v560, %v1577
    %v1629 = vmul.f32 %v566, %v1577
    %v1630 = vmul.f32 %v572, %v1577
    %v1631 = vmul.f32 %v578, %v1577
    %v1632 = vmul.f32 %v584, %v1577
    %v1633 = vmul.f32 %v590, %v1577
    %v1634 = vmul.f32 %v596, %v1577
    %v1635 = vmul.f32 %v602, %v1577
    %v1636 = vmul.f32 %v608, %v1577
    %v1637 = vmul.f32 %v614, %v1577
    %v1638 = vmul.f32 %v620, %v1577
    %v1639 = vmul.f32 %v626, %v1577
    %v1640 = vmul.f32 %v632, %v1577
    %v1641 = vmul.f32 %v638, %v1577
    %v1642 = vmul.f32 %v644, %v1577
    %v1643 = vmul.f32 %v650, %v1577
    %v1644 = vmul.f32 %v656, %v1577
    %v1645 = vmul.f32 %v662, %v1577
    %v1646 = vmul.f32 %v668, %v1577
    %v1647 = vmul.f32 %v674, %v1577
    %v1648 = vmul.f32 %v680, %v1577
    %v1649 = vmul.f32 %v686, %v1577
    %v1650 = vmul.f32 %v692, %v1577
    %v1651 = vmul.f32 %v698, %v1577
    %v1652 = vmul.f32 %v704, %v1577
    %v1653 = vmul.f32 %v710, %v1577
    %v1654 = vmul.f32 %v716, %v1577
    %v1655 = vmul.f32 %v722, %v1577
    %v1656 = vmul.f32 %v728, %v1577
    %v1657 = vmul.f32 %v734, %v1577
    %v1658 = vmul.f32 %v740, %v1577
    %v1659 = vmul.f32 %v746, %v1577
    %v1660 = vmul.f32 %v752, %v1577
    %v1661 = vmul.f32 %v758, %v1577
    %v1662 = vmul.f32 %v764, %v1577
    %v1663 = vmul.f32 %v770, %v1577
    %v1664 = vmul.f32 %v776, %v1577
    %v1665 = vmul.f32 %v782, %v1577
    %v1666 = vmul.f32 %v788, %v1577
    %v1667 = vmul.f32 %v794, %v1577
    %v1668 = vmul.f32 %v800, %v1577
    %v1669 = vmul.f32 %v806, %v1577
    %v1670 = vmul.f32 %v812, %v1577
    %v1671 = vmul.f32 %v818, %v1577
    %v1672 = vmul.f32 %v824, %v1577
    %v1673 = vmul.f32 %v830, %v1577
    %v1674 = vmul.f32 %v836, %v1577
    %v1675 = vmul.f32 %v842, %v1577
    %v1676 = vmul.f32 %v848, %v1577
    %v1677 = vmul.f32 %v854, %v1577
    %v1678 = vmul.f32 %v860, %v1577
    %v1679 = vmul.f32 %v866, %v1577
    %v1680 = vmul.f32 %v872, %v1577
    %v1681 = vmul.f32 %v878, %v1577
    %v1682 = vmul.f32 %v884, %v1577
    %v1683 = vmul.f32 %v890, %v1577
    %v1684 = vmul.f32 %v896, %v1577
    %v1685 = vmul.f32 %v902, %v1577
    %v1686 = vmul.f32 %v908, %v1577
    %v1687 = vmul.f32 %v914, %v1577
    %v1688 = vmul.f32 %v920, %v1577
    %v1689 = vmul.f32 %v926, %v1577
    %v1690 = vmul.f32 %v932, %v1577
    %v1691 = vmul.f32 %v938, %v1577
    %v1692 = vmul.f32 %v944, %v1577
    %v1693 = vmul.f32 %v950, %v1577
    %v1694 = vmul.f32 %v956, %v1577
    %v1695 = vmul.f32 %v962, %v1577
    %v1696 = vmul.f32 %v968, %v1577
    %v1697 = vmul.f32 %v974, %v1577
    %v1698 = vmul.f32 %v980, %v1577
    %v1699 = vmul.f32 %v986, %v1577
    %v1700 = vmul.f32 %v992, %v1577
    %v1701 = vmul.f32 %v998, %v1577
    %v1702 = vmul.f32 %v1004, %v1577
    %v1703 = vmul.f32 %v1010, %v1577
    %v1704 = vmul.f32 %v1016, %v1577
    %v1705 = vmul.f32 %v1022, %v1577
    %v1706 = vmul.f32 %v1028, %v1577
    %v1708 = vlaneseq
    %v1709 = vshrl.u32 %v1708, 7
    %v1710 = vsub.s32 0, %v1709
    %v1711 = vrot.slane %v1572, %v1710
    %v1713 = vadd.f32 %v1579, %v1711
    %v1714 = vadd.f32 %v1580, %v1711
    %v1715 = vadd.f32 %v1581, %v1711
    %v1716 = vadd.f32 %v1582, %v1711
    %v1717 = vadd.f32 %v1583, %v1711
    %v1718 = vadd.f32 %v1584, %v1711
    %v1719 = vadd.f32 %v1585, %v1711
    %v1720 = vadd.f32 %v1586, %v1711
    %v1721 = vadd.f32 %v1587, %v1711
    %v1722 = vadd.f32 %v1588, %v1711
    %v1723 = vadd.f32 %v1589, %v1711
    %v1724 = vadd.f32 %v1590, %v1711
    %v1725 = vadd.f32 %v1591, %v1711
    %v1726 = vadd.f32 %v1592, %v1711
    %v1727 = vadd.f32 %v1593, %v1711
    %v1728 = vadd.f32 %v1594, %v1711
    %v1729 = vadd.f32 %v1595, %v1711
    %v1730 = vadd.f32 %v1596, %v1711
    %v1731 = vadd.f32 %v1597, %v1711
    %v1732 = vadd.f32 %v1598, %v1711
    %v1733 = vadd.f32 %v1599, %v1711
    %v1734 = vadd.f32 %v1600, %v1711
    %v1735 = vadd.f32 %v1601, %v1711
    %v1736 = vadd.f32 %v1602, %v1711
    %v1737 = vadd.f32 %v1603, %v1711
    %v1738 = vadd.f32 %v1604, %v1711
    %v1739 = vadd.f32 %v1605, %v1711
    %v1740 = vadd.f32 %v1606, %v1711
    %v1741 = vadd.f32 %v1607, %v1711
    %v1742 = vadd.f32 %v1608, %v1711
    %v1743 = vadd.f32 %v1609, %v1711
    %v1744 = vadd.f32 %v1610, %v1711
    %v1745 = vadd.f32 %v1611, %v1711
    %v1746 = vadd.f32 %v1612, %v1711
    %v1747 = vadd.f32 %v1613, %v1711
    %v1748 = vadd.f32 %v1614, %v1711
    %v1749 = vadd.f32 %v1615, %v1711
    %v1750 = vadd.f32 %v1616, %v1711
    %v1751 = vadd.f32 %v1617, %v1711
    %v1752 = vadd.f32 %v1618, %v1711
    %v1753 = vadd.f32 %v1619, %v1711
    %v1754 = vadd.f32 %v1620, %v1711
    %v1755 = vadd.f32 %v1621, %v1711
    %v1756 = vadd.f32 %v1622, %v1711
    %v1757 = vadd.f32 %v1623, %v1711
    %v1758 = vadd.f32 %v1624, %v1711
    %v1759 = vadd.f32 %v1625, %v1711
    %v1760 = vadd.f32 %v1626, %v1711
    %v1761 = vadd.f32 %v1627, %v1711
    %v1762 = vadd.f32 %v1628, %v1711
    %v1763 = vadd.f32 %v1629, %v1711
    %v1764 = vadd.f32 %v1630, %v1711
    %v1765 = vadd.f32 %v1631, %v1711
    %v1766 = vadd.f32 %v1632, %v1711
    %v1767 = vadd.f32 %v1633, %v1711
    %v1768 = vadd.f32 %v1634, %v1711
    %v1769 = vadd.f32 %v1635, %v1711
    %v1770 = vadd.f32 %v1636, %v1711
    %v1771 = vadd.f32 %v1637, %v1711
    %v1772 = vadd.f32 %v1638, %v1711
    %v1773 = vadd.f32 %v1639, %v1711
    %v1774 = vadd.f32 %v1640, %v1711
    %v1775 = vadd.f32 %v1641, %v1711
    %v1776 = vadd.f32 %v1642, %v1711
    %v1777 = vadd.f32 %v1643, %v1711
    %v1778 = vadd.f32 %v1644, %v1711
    %v1779 = vadd.f32 %v1645, %v1711
    %v1780 = vadd.f32 %v1646, %v1711
    %v1781 = vadd.f32 %v1647, %v1711
    %v1782 = vadd.f32 %v1648, %v1711
    %v1783 = vadd.f32 %v1649, %v1711
    %v1784 = vadd.f32 %v1650, %v1711
    %v1785 = vadd.f32 %v1651, %v1711
    %v1786 = vadd.f32 %v1652, %v1711
    %v1787 = vadd.f32 %v1653, %v1711
    %v1788 = vadd.f32 %v1654, %v1711
    %v1789 = vadd.f32 %v1655, %v1711
    %v1790 = vadd.f32 %v1656, %v1711
    %v1791 = vadd.f32 %v1657, %v1711
    %v1792 = vadd.f32 %v1658, %v1711
    %v1793 = vadd.f32 %v1659, %v1711
    %v1794 = vadd.f32 %v1660, %v1711
    %v1795 = vadd.f32 %v1661, %v1711
    %v1796 = vadd.f32 %v1662, %v1711
    %v1797 = vadd.f32 %v1663, %v1711
    %v1798 = vadd.f32 %v1664, %v1711
    %v1799 = vadd.f32 %v1665, %v1711
    %v1800 = vadd.f32 %v1666, %v1711
    %v1801 = vadd.f32 %v1667, %v1711
    %v1802 = vadd.f32 %v1668, %v1711
    %v1803 = vadd.f32 %v1669, %v1711
    %v1804 = vadd.f32 %v1670, %v1711
    %v1805 = vadd.f32 %v1671, %v1711
    %v1806 = vadd.f32 %v1672, %v1711
    %v1807 = vadd.f32 %v1673, %v1711
    %v1808 = vadd.f32 %v1674, %v1711
    %v1809 = vadd.f32 %v1675, %v1711
    %v1810 = vadd.f32 %v1676, %v1711
    %v1811 = vadd.f32 %v1677, %v1711
    %v1812 = vadd.f32 %v1678, %v1711
    %v1813 = vadd.f32 %v1679, %v1711
    %v1814 = vadd.f32 %v1680, %v1711
    %v1815 = vadd.f32 %v1681, %v1711
    %v1816 = vadd.f32 %v1682, %v1711
    %v1817 = vadd.f32 %v1683, %v1711
    %v1818 = vadd.f32 %v1684, %v1711
    %v1819 = vadd.f32 %v1685, %v1711
    %v1820 = vadd.f32 %v1686, %v1711
    %v1821 = vadd.f32 %v1687, %v1711
    %v1822 = vadd.f32 %v1688, %v1711
    %v1823 = vadd.f32 %v1689, %v1711
    %v1824 = vadd.f32 %v1690, %v1711
    %v1825 = vadd.f32 %v1691, %v1711
    %v1826 = vadd.f32 %v1692, %v1711
    %v1827 = vadd.f32 %v1693, %v1711
    %v1828 = vadd.f32 %v1694, %v1711
    %v1829 = vadd.f32 %v1695, %v1711
    %v1830 = vadd.f32 %v1696, %v1711
    %v1831 = vadd.f32 %v1697, %v1711
    %v1832 = vadd.f32 %v1698, %v1711
    %v1833 = vadd.f32 %v1699, %v1711
    %v1834 = vadd.f32 %v1700, %v1711
    %v1835 = vadd.f32 %v1701, %v1711
    %v1836 = vadd.f32 %v1702, %v1711
    %v1837 = vadd.f32 %v1703, %v1711
    %v1838 = vadd.f32 %v1704, %v1711
    %v1839 = vadd.f32 %v1705, %v1711
    %v1840 = vadd.f32 %v1706, %v1711
    %v1841 = vmax.f32 %v1713, 0.0
    %v1842 = vmax.f32 %v1714, 0.0
    %v1843 = vmax.f32 %v1715, 0.0
    %v1844 = vmax.f32 %v1716, 0.0
    %v1845 = vmax.f32 %v1717, 0.0
    %v1846 = vmax.f32 %v1718, 0.0
    %v1847 = vmax.f32 %v1719, 0.0
    %v1848 = vmax.f32 %v1720, 0.0
    %v1849 = vmax.f32 %v1721, 0.0
    %v1850 = vmax.f32 %v1722, 0.0
    %v1851 = vmax.f32 %v1723, 0.0
    %v1852 = vmax.f32 %v1724, 0.0
    %v1853 = vmax.f32 %v1725, 0.0
    %v1854 = vmax.f32 %v1726, 0.0
    %v1855 = vmax.f32 %v1727, 0.0
    %v1856 = vmax.f32 %v1728, 0.0
    %v1857 = vmax.f32 %v1729, 0.0
    %v1858 = vmax.f32 %v1730, 0.0
    %v1859 = vmax.f32 %v1731, 0.0
    %v1860 = vmax.f32 %v1732, 0.0
    %v1861 = vmax.f32 %v1733, 0.0
    %v1862 = vmax.f32 %v1734, 0.0
    %v1863 = vmax.f32 %v1735, 0.0
    %v1864 = vmax.f32 %v1736, 0.0
    %v1865 = vmax.f32 %v1737, 0.0
    %v1866 = vmax.f32 %v1738, 0.0
    %v1867 = vmax.f32 %v1739, 0.0
    %v1868 = vmax.f32 %v1740, 0.0
    %v1869 = vmax.f32 %v1741, 0.0
    %v1870 = vmax.f32 %v1742, 0.0
    %v1871 = vmax.f32 %v1743, 0.0
    %v1872 = vmax.f32 %v1744, 0.0
    %v1873 = vmax.f32 %v1745, 0.0
    %v1874 = vmax.f32 %v1746, 0.0
    %v1875 = vmax.f32 %v1747, 0.0
    %v1876 = vmax.f32 %v1748, 0.0
    %v1877 = vmax.f32 %v1749, 0.0
    %v1878 = vmax.f32 %v1750, 0.0
    %v1879 = vmax.f32 %v1751, 0.0
    %v1880 = vmax.f32 %v1752, 0.0
    %v1881 = vmax.f32 %v1753, 0.0
    %v1882 = vmax.f32 %v1754, 0.0
    %v1883 = vmax.f32 %v1755, 0.0
    %v1884 = vmax.f32 %v1756, 0.0
    %v1885 = vmax.f32 %v1757, 0.0
    %v1886 = vmax.f32 %v1758, 0.0
    %v1887 = vmax.f32 %v1759, 0.0
    %v1888 = vmax.f32 %v1760, 0.0
    %v1889 = vmax.f32 %v1761, 0.0
    %v1890 = vmax.f32 %v1762, 0.0
    %v1891 = vmax.f32 %v1763, 0.0
    %v1892 = vmax.f32 %v1764, 0.0
    %v1893 = vmax.f32 %v1765, 0.0
    %v1894 = vmax.f32 %v1766, 0.0
    %v1895 = vmax.f32 %v1767, 0.0
    %v1896 = vmax.f32 %v1768, 0.0
    %v1897 = vmax.f32 %v1769, 0.0
    %v1898 = vmax.f32 %v1770, 0.0
    %v1899 = vmax.f32 %v1771, 0.0
    %v1900 = vmax.f32 %v1772, 0.0
    %v1901 = vmax.f32 %v1773, 0.0
    %v1902 = vmax.f32 %v1774, 0.0
    %v1903 = vmax.f32 %v1775, 0.0
    %v1904 = vmax.f32 %v1776, 0.0
    %v1905 = vmax.f32 %v1777, 0.0
    %v1906 = vmax.f32 %v1778, 0.0
    %v1907 = vmax.f32 %v1779, 0.0
    %v1908 = vmax.f32 %v1780, 0.0
    %v1909 = vmax.f32 %v1781, 0.0
    %v1910 = vmax.f32 %v1782, 0.0
    %v1911 = vmax.f32 %v1783, 0.0
    %v1912 = vmax.f32 %v1784, 0.0
    %v1913 = vmax.f32 %v1785, 0.0
    %v1914 = vmax.f32 %v1786, 0.0
    %v1915 = vmax.f32 %v1787, 0.0
    %v1916 = vmax.f32 %v1788, 0.0
    %v1917 = vmax.f32 %v1789, 0.0
    %v1918 = vmax.f32 %v1790, 0.0
    %v1919 = vmax.f32 %v1791, 0.0
    %v1920 = vmax.f32 %v1792, 0.0
    %v1921 = vmax.f32 %v1793, 0.0
    %v1922 = vmax.f32 %v1794, 0.0
    %v1923 = vmax.f32 %v1795, 0.0
    %v1924 = vmax.f32 %v1796, 0.0
    %v1925 = vmax.f32 %v1797, 0.0
    %v1926 = vmax.f32 %v1798, 0.0
    %v1927 = vmax.f32 %v1799, 0.0
    %v1928 = vmax.f32 %v1800, 0.0
    %v1929 = vmax.f32 %v1801, 0.0
    %v1930 = vmax.f32 %v1802, 0.0
    %v1931 = vmax.f32 %v1803, 0.0
    %v1932 = vmax.f32 %v1804, 0.0
    %v1933 = vmax.f32 %v1805, 0.0
    %v1934 = vmax.f32 %v1806, 0.0
    %v1935 = vmax.f32 %v1807, 0.0
    %v1936 = vmax.f32 %v1808, 0.0
    %v1937 = vmax.f32 %v1809, 0.0
    %v1938 = vmax.f32 %v1810, 0.0
    %v1939 = vmax.f32 %v1811, 0.0
    %v1940 = vmax.f32 %v1812, 0.0
    %v1941 = vmax.f32 %v1813, 0.0
    %v1942 = vmax.f32 %v1814, 0.0
    %v1943 = vmax.f32 %v1815, 0.0
    %v1944 = vmax.f32 %v1816, 0.0
    %v1945 = vmax.f32 %v1817, 0.0
    %v1946 = vmax.f32 %v1818, 0.0
    %v1947 = vmax.f32 %v1819, 0.0
    %v1948 = vmax.f32 %v1820, 0.0
    %v1949 = vmax.f32 %v1821, 0.0
    %v1950 = vmax.f32 %v1822, 0.0
    %v1951 = vmax.f32 %v1823, 0.0
    %v1952 = vmax.f32 %v1824, 0.0
    %v1953 = vmax.f32 %v1825, 0.0
    %v1954 = vmax.f32 %v1826, 0.0
    %v1955 = vmax.f32 %v1827, 0.0
    %v1956 = vmax.f32 %v1828, 0.0
    %v1957 = vmax.f32 %v1829, 0.0
    %v1958 = vmax.f32 %v1830, 0.0
    %v1959 = vmax.f32 %v1831, 0.0
    %v1960 = vmax.f32 %v1832, 0.0
    %v1961 = vmax.f32 %v1833, 0.0
    %v1962 = vmax.f32 %v1834, 0.0
    %v1963 = vmax.f32 %v1835, 0.0
    %v1964 = vmax.f32 %v1836, 0.0
    %v1965 = vmax.f32 %v1837, 0.0
    %v1966 = vmax.f32 %v1838, 0.0
    %v1967 = vmax.f32 %v1839, 0.0
    %v1968 = vmax.f32 %v1840, 0.0
    %v1969 = vlaneseq
    %v1970 = vshrl.u32 %v1969, 7
    %v1971 = vadd.s32 %v1970, 8
    %v1972 = vadd.s32 %v1970, 16
    %v1973 = vadd.s32 %v1970, 24
    %v1974 = vadd.s32 %v1970, 32
    %v1975 = vadd.s32 %v1970, 40
    %v1976 = vadd.s32 %v1970, 48
    %v1977 = vadd.s32 %v1970, 56
    %v1978 = vadd.s32 %v1970, 64
    %v1979 = vadd.s32 %v1970, 72
    %v1980 = vadd.s32 %v1970, 80
    %v1981 = vadd.s32 %v1970, 88
    %v1982 = vadd.s32 %v1970, 96
    %v1983 = vadd.s32 %v1970, 104
    %v1984 = vadd.s32 %v1970, 112
    %v1985 = vadd.s32 %v1970, 120
    %v1986 = vadd.s32 %v1970, 128
    %v1987 = vadd.s32 %v1970, 136
    %v1988 = vadd.s32 %v1970, 144
    %v1989 = vadd.s32 %v1970, 152
    %v1990 = vadd.s32 %v1970, 160
    %v1991 = vadd.s32 %v1970, 168
    %v1992 = vadd.s32 %v1970, 176
    %v1993 = vadd.s32 %v1970, 184
    %v1994 = vadd.s32 %v1970, 192
    %v1995 = vadd.s32 %v1970, 200
    %v1996 = vadd.s32 %v1970, 208
    %v1997 = vadd.s32 %v1970, 216
    %v1998 = vadd.s32 %v1970, 224
    %v1999 = vadd.s32 %v1970, 232
    %v2000 = vadd.s32 %v1970, 240
    %v2001 = vadd.s32 %v1970, 248
    %v2002 = vadd.s32 %v1970, 256
    %v2003 = vadd.s32 %v1970, 264
    %v2004 = vadd.s32 %v1970, 272
    %v2005 = vadd.s32 %v1970, 280
    %v2006 = vadd.s32 %v1970, 288
    %v2007 = vadd.s32 %v1970, 296
    %v2008 = vadd.s32 %v1970, 304
    %v2009 = vadd.s32 %v1970, 312
    %v2010 = vadd.s32 %v1970, 320
    %v2011 = vadd.s32 %v1970, 328
    %v2012 = vadd.s32 %v1970, 336
    %v2013 = vadd.s32 %v1970, 344
    %v2014 = vadd.s32 %v1970, 352
    %v2015 = vadd.s32 %v1970, 360
    %v2016 = vadd.s32 %v1970, 368
    %v2017 = vadd.s32 %v1970, 376
    %v2018 = vadd.s32 %v1970, 384
    %v2019 = vadd.s32 %v1970, 392
    %v2020 = vadd.s32 %v1970, 400
    %v2021 = vadd.s32 %v1970, 408
    %v2022 = vadd.s32 %v1970, 416
    %v2023 = vadd.s32 %v1970, 424
    %v2024 = vadd.s32 %v1970, 432
    %v2025 = vadd.s32 %v1970, 440
    %v2026 = vadd.s32 %v1970, 448
    %v2027 = vadd.s32 %v1970, 456
    %v2028 = vadd.s32 %v1970, 464
    %v2029 = vadd.s32 %v1970, 472
    %v2030 = vadd.s32 %v1970, 480
    %v2031 = vadd.s32 %v1970, 488
    %v2032 = vadd.s32 %v1970, 496
    %v2033 = vadd.s32 %v1970, 504
    %v2034 = vadd.s32 %v1970, 512
    %v2035 = vadd.s32 %v1970, 520
    %v2036 = vadd.s32 %v1970, 528
    %v2037 = vadd.s32 %v1970, 536
    %v2038 = vadd.s32 %v1970, 544
    %v2039 = vadd.s32 %v1970, 552
    %v2040 = vadd.s32 %v1970, 560
    %v2041 = vadd.s32 %v1970, 568
    %v2042 = vadd.s32 %v1970, 576
    %v2043 = vadd.s32 %v1970, 584
    %v2044 = vadd.s32 %v1970, 592
    %v2045 = vadd.s32 %v1970, 600
    %v2046 = vadd.s32 %v1970, 608
    %v2047 = vadd.s32 %v1970, 616
    %v2048 = vadd.s32 %v1970, 624
    %v2049 = vadd.s32 %v1970, 632
    %v2050 = vadd.s32 %v1970, 640
    %v2051 = vadd.s32 %v1970, 648
    %v2052 = vadd.s32 %v1970, 656
    %v2053 = vadd.s32 %v1970, 664
    %v2054 = vadd.s32 %v1970, 672
    %v2055 = vadd.s32 %v1970, 680
    %v2056 = vadd.s32 %v1970, 688
    %v2057 = vadd.s32 %v1970, 696
    %v2058 = vadd.s32 %v1970, 704
    %v2059 = vadd.s32 %v1970, 712
    %v2060 = vadd.s32 %v1970, 720
    %v2061 = vadd.s32 %v1970, 728
    %v2062 = vadd.s32 %v1970, 736
    %v2063 = vadd.s32 %v1970, 744
    %v2064 = vadd.s32 %v1970, 752
    %v2065 = vadd.s32 %v1970, 760
    %v2066 = vadd.s32 %v1970, 768
    %v2067 = vadd.s32 %v1970, 776
    %v2068 = vadd.s32 %v1970, 784
    %v2069 = vadd.s32 %v1970, 792
    %v2070 = vadd.s32 %v1970, 800
    %v2071 = vadd.s32 %v1970, 808
    %v2072 = vadd.s32 %v1970, 816
    %v2073 = vadd.s32 %v1970, 824
    %v2074 = vadd.s32 %v1970, 832
    %v2075 = vadd.s32 %v1970, 840
    %v2076 = vadd.s32 %v1970, 848
    %v2077 = vadd.s32 %v1970, 856
    %v2078 = vadd.s32 %v1970, 864
    %v2079 = vadd.s32 %v1970, 872
    %v2080 = vadd.s32 %v1970, 880
    %v2081 = vadd.s32 %v1970, 888
    %v2082 = vadd.s32 %v1970, 896
    %v2083 = vadd.s32 %v1970, 904
    %v2084 = vadd.s32 %v1970, 912
    %v2085 = vadd.s32 %v1970, 920
    %v2086 = vadd.s32 %v1970, 928
    %v2087 = vadd.s32 %v1970, 936
    %v2088 = vadd.s32 %v1970, 944
    %v2089 = vadd.s32 %v1970, 952
    %v2090 = vadd.s32 %v1970, 960
    %v2091 = vadd.s32 %v1970, 968
    %v2092 = vadd.s32 %v1970, 976
    %v2093 = vadd.s32 %v1970, 984
    %v2094 = vadd.s32 %v1970, 992
    %v2095 = vadd.s32 %v1970, 1000
    %v2096 = vadd.s32 %v1970, 1008
    %v2097 = vadd.s32 %v1970, 1016
    %vm2098 = vcmp.lt.s32.totalorder %v1970, 0
    %v2099 = vsub.s32 0, %v1970
    %v2100 = vsel %vm2098, %v2099, %v1970
    %v2101 = vshrl.u32 %v2100, 8
    %v2102 = vand.u32 %v2100, 255
    %v2103 = vsub.s32 0, %v2102
    %v2104 = vsel %vm2098, %v2103, %v2102
    %vm2105 = vcmp.lt.s32.totalorder %v1971, 0
    %v2106 = vsub.s32 0, %v1971
    %v2107 = vsel %vm2105, %v2106, %v1971
    %v2108 = vshrl.u32 %v2107, 8
    %v2109 = vand.u32 %v2107, 255
    %v2110 = vsub.s32 0, %v2109
    %v2111 = vsel %vm2105, %v2110, %v2109
    %vm2112 = vcmp.lt.s32.totalorder %v1972, 0
    %v2113 = vsub.s32 0, %v1972
    %v2114 = vsel %vm2112, %v2113, %v1972
    %v2115 = vshrl.u32 %v2114, 8
    %v2116 = vand.u32 %v2114, 255
    %v2117 = vsub.s32 0, %v2116
    %v2118 = vsel %vm2112, %v2117, %v2116
    %vm2119 = vcmp.lt.s32.totalorder %v1973, 0
    %v2120 = vsub.s32 0, %v1973
    %v2121 = vsel %vm2119, %v2120, %v1973
    %v2122 = vshrl.u32 %v2121, 8
    %v2123 = vand.u32 %v2121, 255
    %v2124 = vsub.s32 0, %v2123
    %v2125 = vsel %vm2119, %v2124, %v2123
    %vm2126 = vcmp.lt.s32.totalorder %v1974, 0
    %v2127 = vsub.s32 0, %v1974
    %v2128 = vsel %vm2126, %v2127, %v1974
    %v2129 = vshrl.u32 %v2128, 8
    %v2130 = vand.u32 %v2128, 255
    %v2131 = vsub.s32 0, %v2130
    %v2132 = vsel %vm2126, %v2131, %v2130
    %vm2133 = vcmp.lt.s32.totalorder %v1975, 0
    %v2134 = vsub.s32 0, %v1975
    %v2135 = vsel %vm2133, %v2134, %v1975
    %v2136 = vshrl.u32 %v2135, 8
    %v2137 = vand.u32 %v2135, 255
    %v2138 = vsub.s32 0, %v2137
    %v2139 = vsel %vm2133, %v2138, %v2137
    %vm2140 = vcmp.lt.s32.totalorder %v1976, 0
    %v2141 = vsub.s32 0, %v1976
    %v2142 = vsel %vm2140, %v2141, %v1976
    %v2143 = vshrl.u32 %v2142, 8
    %v2144 = vand.u32 %v2142, 255
    %v2145 = vsub.s32 0, %v2144
    %v2146 = vsel %vm2140, %v2145, %v2144
    %vm2147 = vcmp.lt.s32.totalorder %v1977, 0
    %v2148 = vsub.s32 0, %v1977
    %v2149 = vsel %vm2147, %v2148, %v1977
    %v2150 = vshrl.u32 %v2149, 8
    %v2151 = vand.u32 %v2149, 255
    %v2152 = vsub.s32 0, %v2151
    %v2153 = vsel %vm2147, %v2152, %v2151
    %vm2154 = vcmp.lt.s32.totalorder %v1978, 0
    %v2155 = vsub.s32 0, %v1978
    %v2156 = vsel %vm2154, %v2155, %v1978
    %v2157 = vshrl.u32 %v2156, 8
    %v2158 = vand.u32 %v2156, 255
    %v2159 = vsub.s32 0, %v2158
    %v2160 = vsel %vm2154, %v2159, %v2158
    %vm2161 = vcmp.lt.s32.totalorder %v1979, 0
    %v2162 = vsub.s32 0, %v1979
    %v2163 = vsel %vm2161, %v2162, %v1979
    %v2164 = vshrl.u32 %v2163, 8
    %v2165 = vand.u32 %v2163, 255
    %v2166 = vsub.s32 0, %v2165
    %v2167 = vsel %vm2161, %v2166, %v2165
    %vm2168 = vcmp.lt.s32.totalorder %v1980, 0
    %v2169 = vsub.s32 0, %v1980
    %v2170 = vsel %vm2168, %v2169, %v1980
    %v2171 = vshrl.u32 %v2170, 8
    %v2172 = vand.u32 %v2170, 255
    %v2173 = vsub.s32 0, %v2172
    %v2174 = vsel %vm2168, %v2173, %v2172
    %vm2175 = vcmp.lt.s32.totalorder %v1981, 0
    %v2176 = vsub.s32 0, %v1981
    %v2177 = vsel %vm2175, %v2176, %v1981
    %v2178 = vshrl.u32 %v2177, 8
    %v2179 = vand.u32 %v2177, 255
    %v2180 = vsub.s32 0, %v2179
    %v2181 = vsel %vm2175, %v2180, %v2179
    %vm2182 = vcmp.lt.s32.totalorder %v1982, 0
    %v2183 = vsub.s32 0, %v1982
    %v2184 = vsel %vm2182, %v2183, %v1982
    %v2185 = vshrl.u32 %v2184, 8
    %v2186 = vand.u32 %v2184, 255
    %v2187 = vsub.s32 0, %v2186
    %v2188 = vsel %vm2182, %v2187, %v2186
    %vm2189 = vcmp.lt.s32.totalorder %v1983, 0
    %v2190 = vsub.s32 0, %v1983
    %v2191 = vsel %vm2189, %v2190, %v1983
    %v2192 = vshrl.u32 %v2191, 8
    %v2193 = vand.u32 %v2191, 255
    %v2194 = vsub.s32 0, %v2193
    %v2195 = vsel %vm2189, %v2194, %v2193
    %vm2196 = vcmp.lt.s32.totalorder %v1984, 0
    %v2197 = vsub.s32 0, %v1984
    %v2198 = vsel %vm2196, %v2197, %v1984
    %v2199 = vshrl.u32 %v2198, 8
    %v2200 = vand.u32 %v2198, 255
    %v2201 = vsub.s32 0, %v2200
    %v2202 = vsel %vm2196, %v2201, %v2200
    %vm2203 = vcmp.lt.s32.totalorder %v1985, 0
    %v2204 = vsub.s32 0, %v1985
    %v2205 = vsel %vm2203, %v2204, %v1985
    %v2206 = vshrl.u32 %v2205, 8
    %v2207 = vand.u32 %v2205, 255
    %v2208 = vsub.s32 0, %v2207
    %v2209 = vsel %vm2203, %v2208, %v2207
    %vm2210 = vcmp.lt.s32.totalorder %v1986, 0
    %v2211 = vsub.s32 0, %v1986
    %v2212 = vsel %vm2210, %v2211, %v1986
    %v2213 = vshrl.u32 %v2212, 8
    %v2214 = vand.u32 %v2212, 255
    %v2215 = vsub.s32 0, %v2214
    %v2216 = vsel %vm2210, %v2215, %v2214
    %vm2217 = vcmp.lt.s32.totalorder %v1987, 0
    %v2218 = vsub.s32 0, %v1987
    %v2219 = vsel %vm2217, %v2218, %v1987
    %v2220 = vshrl.u32 %v2219, 8
    %v2221 = vand.u32 %v2219, 255
    %v2222 = vsub.s32 0, %v2221
    %v2223 = vsel %vm2217, %v2222, %v2221
    %vm2224 = vcmp.lt.s32.totalorder %v1988, 0
    %v2225 = vsub.s32 0, %v1988
    %v2226 = vsel %vm2224, %v2225, %v1988
    %v2227 = vshrl.u32 %v2226, 8
    %v2228 = vand.u32 %v2226, 255
    %v2229 = vsub.s32 0, %v2228
    %v2230 = vsel %vm2224, %v2229, %v2228
    %vm2231 = vcmp.lt.s32.totalorder %v1989, 0
    %v2232 = vsub.s32 0, %v1989
    %v2233 = vsel %vm2231, %v2232, %v1989
    %v2234 = vshrl.u32 %v2233, 8
    %v2235 = vand.u32 %v2233, 255
    %v2236 = vsub.s32 0, %v2235
    %v2237 = vsel %vm2231, %v2236, %v2235
    %vm2238 = vcmp.lt.s32.totalorder %v1990, 0
    %v2239 = vsub.s32 0, %v1990
    %v2240 = vsel %vm2238, %v2239, %v1990
    %v2241 = vshrl.u32 %v2240, 8
    %v2242 = vand.u32 %v2240, 255
    %v2243 = vsub.s32 0, %v2242
    %v2244 = vsel %vm2238, %v2243, %v2242
    %vm2245 = vcmp.lt.s32.totalorder %v1991, 0
    %v2246 = vsub.s32 0, %v1991
    %v2247 = vsel %vm2245, %v2246, %v1991
    %v2248 = vshrl.u32 %v2247, 8
    %v2249 = vand.u32 %v2247, 255
    %v2250 = vsub.s32 0, %v2249
    %v2251 = vsel %vm2245, %v2250, %v2249
    %vm2252 = vcmp.lt.s32.totalorder %v1992, 0
    %v2253 = vsub.s32 0, %v1992
    %v2254 = vsel %vm2252, %v2253, %v1992
    %v2255 = vshrl.u32 %v2254, 8
    %v2256 = vand.u32 %v2254, 255
    %v2257 = vsub.s32 0, %v2256
    %v2258 = vsel %vm2252, %v2257, %v2256
    %vm2259 = vcmp.lt.s32.totalorder %v1993, 0
    %v2260 = vsub.s32 0, %v1993
    %v2261 = vsel %vm2259, %v2260, %v1993
    %v2262 = vshrl.u32 %v2261, 8
    %v2263 = vand.u32 %v2261, 255
    %v2264 = vsub.s32 0, %v2263
    %v2265 = vsel %vm2259, %v2264, %v2263
    %vm2266 = vcmp.lt.s32.totalorder %v1994, 0
    %v2267 = vsub.s32 0, %v1994
    %v2268 = vsel %vm2266, %v2267, %v1994
    %v2269 = vshrl.u32 %v2268, 8
    %v2270 = vand.u32 %v2268, 255
    %v2271 = vsub.s32 0, %v2270
    %v2272 = vsel %vm2266, %v2271, %v2270
    %vm2273 = vcmp.lt.s32.totalorder %v1995, 0
    %v2274 = vsub.s32 0, %v1995
    %v2275 = vsel %vm2273, %v2274, %v1995
    %v2276 = vshrl.u32 %v2275, 8
    %v2277 = vand.u32 %v2275, 255
    %v2278 = vsub.s32 0, %v2277
    %v2279 = vsel %vm2273, %v2278, %v2277
    %vm2280 = vcmp.lt.s32.totalorder %v1996, 0
    %v2281 = vsub.s32 0, %v1996
    %v2282 = vsel %vm2280, %v2281, %v1996
    %v2283 = vshrl.u32 %v2282, 8
    %v2284 = vand.u32 %v2282, 255
    %v2285 = vsub.s32 0, %v2284
    %v2286 = vsel %vm2280, %v2285, %v2284
    %vm2287 = vcmp.lt.s32.totalorder %v1997, 0
    %v2288 = vsub.s32 0, %v1997
    %v2289 = vsel %vm2287, %v2288, %v1997
    %v2290 = vshrl.u32 %v2289, 8
    %v2291 = vand.u32 %v2289, 255
    %v2292 = vsub.s32 0, %v2291
    %v2293 = vsel %vm2287, %v2292, %v2291
    %vm2294 = vcmp.lt.s32.totalorder %v1998, 0
    %v2295 = vsub.s32 0, %v1998
    %v2296 = vsel %vm2294, %v2295, %v1998
    %v2297 = vshrl.u32 %v2296, 8
    %v2298 = vand.u32 %v2296, 255
    %v2299 = vsub.s32 0, %v2298
    %v2300 = vsel %vm2294, %v2299, %v2298
    %vm2301 = vcmp.lt.s32.totalorder %v1999, 0
    %v2302 = vsub.s32 0, %v1999
    %v2303 = vsel %vm2301, %v2302, %v1999
    %v2304 = vshrl.u32 %v2303, 8
    %v2305 = vand.u32 %v2303, 255
    %v2306 = vsub.s32 0, %v2305
    %v2307 = vsel %vm2301, %v2306, %v2305
    %vm2308 = vcmp.lt.s32.totalorder %v2000, 0
    %v2309 = vsub.s32 0, %v2000
    %v2310 = vsel %vm2308, %v2309, %v2000
    %v2311 = vshrl.u32 %v2310, 8
    %v2312 = vand.u32 %v2310, 255
    %v2313 = vsub.s32 0, %v2312
    %v2314 = vsel %vm2308, %v2313, %v2312
    %vm2315 = vcmp.lt.s32.totalorder %v2001, 0
    %v2316 = vsub.s32 0, %v2001
    %v2317 = vsel %vm2315, %v2316, %v2001
    %v2318 = vshrl.u32 %v2317, 8
    %v2319 = vand.u32 %v2317, 255
    %v2320 = vsub.s32 0, %v2319
    %v2321 = vsel %vm2315, %v2320, %v2319
    %vm2322 = vcmp.lt.s32.totalorder %v2002, 0
    %v2323 = vsub.s32 0, %v2002
    %v2324 = vsel %vm2322, %v2323, %v2002
    %v2325 = vshrl.u32 %v2324, 8
    %v2326 = vand.u32 %v2324, 255
    %v2327 = vsub.s32 0, %v2326
    %v2328 = vsel %vm2322, %v2327, %v2326
    %vm2329 = vcmp.lt.s32.totalorder %v2003, 0
    %v2330 = vsub.s32 0, %v2003
    %v2331 = vsel %vm2329, %v2330, %v2003
    %v2332 = vshrl.u32 %v2331, 8
    %v2333 = vand.u32 %v2331, 255
    %v2334 = vsub.s32 0, %v2333
    %v2335 = vsel %vm2329, %v2334, %v2333
    %vm2336 = vcmp.lt.s32.totalorder %v2004, 0
    %v2337 = vsub.s32 0, %v2004
    %v2338 = vsel %vm2336, %v2337, %v2004
    %v2339 = vshrl.u32 %v2338, 8
    %v2340 = vand.u32 %v2338, 255
    %v2341 = vsub.s32 0, %v2340
    %v2342 = vsel %vm2336, %v2341, %v2340
    %vm2343 = vcmp.lt.s32.totalorder %v2005, 0
    %v2344 = vsub.s32 0, %v2005
    %v2345 = vsel %vm2343, %v2344, %v2005
    %v2346 = vshrl.u32 %v2345, 8
    %v2347 = vand.u32 %v2345, 255
    %v2348 = vsub.s32 0, %v2347
    %v2349 = vsel %vm2343, %v2348, %v2347
    %vm2350 = vcmp.lt.s32.totalorder %v2006, 0
    %v2351 = vsub.s32 0, %v2006
    %v2352 = vsel %vm2350, %v2351, %v2006
    %v2353 = vshrl.u32 %v2352, 8
    %v2354 = vand.u32 %v2352, 255
    %v2355 = vsub.s32 0, %v2354
    %v2356 = vsel %vm2350, %v2355, %v2354
    %vm2357 = vcmp.lt.s32.totalorder %v2007, 0
    %v2358 = vsub.s32 0, %v2007
    %v2359 = vsel %vm2357, %v2358, %v2007
    %v2360 = vshrl.u32 %v2359, 8
    %v2361 = vand.u32 %v2359, 255
    %v2362 = vsub.s32 0, %v2361
    %v2363 = vsel %vm2357, %v2362, %v2361
    %vm2364 = vcmp.lt.s32.totalorder %v2008, 0
    %v2365 = vsub.s32 0, %v2008
    %v2366 = vsel %vm2364, %v2365, %v2008
    %v2367 = vshrl.u32 %v2366, 8
    %v2368 = vand.u32 %v2366, 255
    %v2369 = vsub.s32 0, %v2368
    %v2370 = vsel %vm2364, %v2369, %v2368
    %vm2371 = vcmp.lt.s32.totalorder %v2009, 0
    %v2372 = vsub.s32 0, %v2009
    %v2373 = vsel %vm2371, %v2372, %v2009
    %v2374 = vshrl.u32 %v2373, 8
    %v2375 = vand.u32 %v2373, 255
    %v2376 = vsub.s32 0, %v2375
    %v2377 = vsel %vm2371, %v2376, %v2375
    %vm2378 = vcmp.lt.s32.totalorder %v2010, 0
    %v2379 = vsub.s32 0, %v2010
    %v2380 = vsel %vm2378, %v2379, %v2010
    %v2381 = vshrl.u32 %v2380, 8
    %v2382 = vand.u32 %v2380, 255
    %v2383 = vsub.s32 0, %v2382
    %v2384 = vsel %vm2378, %v2383, %v2382
    %vm2385 = vcmp.lt.s32.totalorder %v2011, 0
    %v2386 = vsub.s32 0, %v2011
    %v2387 = vsel %vm2385, %v2386, %v2011
    %v2388 = vshrl.u32 %v2387, 8
    %v2389 = vand.u32 %v2387, 255
    %v2390 = vsub.s32 0, %v2389
    %v2391 = vsel %vm2385, %v2390, %v2389
    %vm2392 = vcmp.lt.s32.totalorder %v2012, 0
    %v2393 = vsub.s32 0, %v2012
    %v2394 = vsel %vm2392, %v2393, %v2012
    %v2395 = vshrl.u32 %v2394, 8
    %v2396 = vand.u32 %v2394, 255
    %v2397 = vsub.s32 0, %v2396
    %v2398 = vsel %vm2392, %v2397, %v2396
    %vm2399 = vcmp.lt.s32.totalorder %v2013, 0
    %v2400 = vsub.s32 0, %v2013
    %v2401 = vsel %vm2399, %v2400, %v2013
    %v2402 = vshrl.u32 %v2401, 8
    %v2403 = vand.u32 %v2401, 255
    %v2404 = vsub.s32 0, %v2403
    %v2405 = vsel %vm2399, %v2404, %v2403
    %vm2406 = vcmp.lt.s32.totalorder %v2014, 0
    %v2407 = vsub.s32 0, %v2014
    %v2408 = vsel %vm2406, %v2407, %v2014
    %v2409 = vshrl.u32 %v2408, 8
    %v2410 = vand.u32 %v2408, 255
    %v2411 = vsub.s32 0, %v2410
    %v2412 = vsel %vm2406, %v2411, %v2410
    %vm2413 = vcmp.lt.s32.totalorder %v2015, 0
    %v2414 = vsub.s32 0, %v2015
    %v2415 = vsel %vm2413, %v2414, %v2015
    %v2416 = vshrl.u32 %v2415, 8
    %v2417 = vand.u32 %v2415, 255
    %v2418 = vsub.s32 0, %v2417
    %v2419 = vsel %vm2413, %v2418, %v2417
    %vm2420 = vcmp.lt.s32.totalorder %v2016, 0
    %v2421 = vsub.s32 0, %v2016
    %v2422 = vsel %vm2420, %v2421, %v2016
    %v2423 = vshrl.u32 %v2422, 8
    %v2424 = vand.u32 %v2422, 255
    %v2425 = vsub.s32 0, %v2424
    %v2426 = vsel %vm2420, %v2425, %v2424
    %vm2427 = vcmp.lt.s32.totalorder %v2017, 0
    %v2428 = vsub.s32 0, %v2017
    %v2429 = vsel %vm2427, %v2428, %v2017
    %v2430 = vshrl.u32 %v2429, 8
    %v2431 = vand.u32 %v2429, 255
    %v2432 = vsub.s32 0, %v2431
    %v2433 = vsel %vm2427, %v2432, %v2431
    %vm2434 = vcmp.lt.s32.totalorder %v2018, 0
    %v2435 = vsub.s32 0, %v2018
    %v2436 = vsel %vm2434, %v2435, %v2018
    %v2437 = vshrl.u32 %v2436, 8
    %v2438 = vand.u32 %v2436, 255
    %v2439 = vsub.s32 0, %v2438
    %v2440 = vsel %vm2434, %v2439, %v2438
    %vm2441 = vcmp.lt.s32.totalorder %v2019, 0
    %v2442 = vsub.s32 0, %v2019
    %v2443 = vsel %vm2441, %v2442, %v2019
    %v2444 = vshrl.u32 %v2443, 8
    %v2445 = vand.u32 %v2443, 255
    %v2446 = vsub.s32 0, %v2445
    %v2447 = vsel %vm2441, %v2446, %v2445
    %vm2448 = vcmp.lt.s32.totalorder %v2020, 0
    %v2449 = vsub.s32 0, %v2020
    %v2450 = vsel %vm2448, %v2449, %v2020
    %v2451 = vshrl.u32 %v2450, 8
    %v2452 = vand.u32 %v2450, 255
    %v2453 = vsub.s32 0, %v2452
    %v2454 = vsel %vm2448, %v2453, %v2452
    %vm2455 = vcmp.lt.s32.totalorder %v2021, 0
    %v2456 = vsub.s32 0, %v2021
    %v2457 = vsel %vm2455, %v2456, %v2021
    %v2458 = vshrl.u32 %v2457, 8
    %v2459 = vand.u32 %v2457, 255
    %v2460 = vsub.s32 0, %v2459
    %v2461 = vsel %vm2455, %v2460, %v2459
    %vm2462 = vcmp.lt.s32.totalorder %v2022, 0
    %v2463 = vsub.s32 0, %v2022
    %v2464 = vsel %vm2462, %v2463, %v2022
    %v2465 = vshrl.u32 %v2464, 8
    %v2466 = vand.u32 %v2464, 255
    %v2467 = vsub.s32 0, %v2466
    %v2468 = vsel %vm2462, %v2467, %v2466
    %vm2469 = vcmp.lt.s32.totalorder %v2023, 0
    %v2470 = vsub.s32 0, %v2023
    %v2471 = vsel %vm2469, %v2470, %v2023
    %v2472 = vshrl.u32 %v2471, 8
    %v2473 = vand.u32 %v2471, 255
    %v2474 = vsub.s32 0, %v2473
    %v2475 = vsel %vm2469, %v2474, %v2473
    %vm2476 = vcmp.lt.s32.totalorder %v2024, 0
    %v2477 = vsub.s32 0, %v2024
    %v2478 = vsel %vm2476, %v2477, %v2024
    %v2479 = vshrl.u32 %v2478, 8
    %v2480 = vand.u32 %v2478, 255
    %v2481 = vsub.s32 0, %v2480
    %v2482 = vsel %vm2476, %v2481, %v2480
    %vm2483 = vcmp.lt.s32.totalorder %v2025, 0
    %v2484 = vsub.s32 0, %v2025
    %v2485 = vsel %vm2483, %v2484, %v2025
    %v2486 = vshrl.u32 %v2485, 8
    %v2487 = vand.u32 %v2485, 255
    %v2488 = vsub.s32 0, %v2487
    %v2489 = vsel %vm2483, %v2488, %v2487
    %vm2490 = vcmp.lt.s32.totalorder %v2026, 0
    %v2491 = vsub.s32 0, %v2026
    %v2492 = vsel %vm2490, %v2491, %v2026
    %v2493 = vshrl.u32 %v2492, 8
    %v2494 = vand.u32 %v2492, 255
    %v2495 = vsub.s32 0, %v2494
    %v2496 = vsel %vm2490, %v2495, %v2494
    %vm2497 = vcmp.lt.s32.totalorder %v2027, 0
    %v2498 = vsub.s32 0, %v2027
    %v2499 = vsel %vm2497, %v2498, %v2027
    %v2500 = vshrl.u32 %v2499, 8
    %v2501 = vand.u32 %v2499, 255
    %v2502 = vsub.s32 0, %v2501
    %v2503 = vsel %vm2497, %v2502, %v2501
    %vm2504 = vcmp.lt.s32.totalorder %v2028, 0
    %v2505 = vsub.s32 0, %v2028
    %v2506 = vsel %vm2504, %v2505, %v2028
    %v2507 = vshrl.u32 %v2506, 8
    %v2508 = vand.u32 %v2506, 255
    %v2509 = vsub.s32 0, %v2508
    %v2510 = vsel %vm2504, %v2509, %v2508
    %vm2511 = vcmp.lt.s32.totalorder %v2029, 0
    %v2512 = vsub.s32 0, %v2029
    %v2513 = vsel %vm2511, %v2512, %v2029
    %v2514 = vshrl.u32 %v2513, 8
    %v2515 = vand.u32 %v2513, 255
    %v2516 = vsub.s32 0, %v2515
    %v2517 = vsel %vm2511, %v2516, %v2515
    %vm2518 = vcmp.lt.s32.totalorder %v2030, 0
    %v2519 = vsub.s32 0, %v2030
    %v2520 = vsel %vm2518, %v2519, %v2030
    %v2521 = vshrl.u32 %v2520, 8
    %v2522 = vand.u32 %v2520, 255
    %v2523 = vsub.s32 0, %v2522
    %v2524 = vsel %vm2518, %v2523, %v2522
    %vm2525 = vcmp.lt.s32.totalorder %v2031, 0
    %v2526 = vsub.s32 0, %v2031
    %v2527 = vsel %vm2525, %v2526, %v2031
    %v2528 = vshrl.u32 %v2527, 8
    %v2529 = vand.u32 %v2527, 255
    %v2530 = vsub.s32 0, %v2529
    %v2531 = vsel %vm2525, %v2530, %v2529
    %vm2532 = vcmp.lt.s32.totalorder %v2032, 0
    %v2533 = vsub.s32 0, %v2032
    %v2534 = vsel %vm2532, %v2533, %v2032
    %v2535 = vshrl.u32 %v2534, 8
    %v2536 = vand.u32 %v2534, 255
    %v2537 = vsub.s32 0, %v2536
    %v2538 = vsel %vm2532, %v2537, %v2536
    %vm2539 = vcmp.lt.s32.totalorder %v2033, 0
    %v2540 = vsub.s32 0, %v2033
    %v2541 = vsel %vm2539, %v2540, %v2033
    %v2542 = vshrl.u32 %v2541, 8
    %v2543 = vand.u32 %v2541, 255
    %v2544 = vsub.s32 0, %v2543
    %v2545 = vsel %vm2539, %v2544, %v2543
    %vm2546 = vcmp.lt.s32.totalorder %v2034, 0
    %v2547 = vsub.s32 0, %v2034
    %v2548 = vsel %vm2546, %v2547, %v2034
    %v2549 = vshrl.u32 %v2548, 8
    %v2550 = vand.u32 %v2548, 255
    %v2551 = vsub.s32 0, %v2550
    %v2552 = vsel %vm2546, %v2551, %v2550
    %vm2553 = vcmp.lt.s32.totalorder %v2035, 0
    %v2554 = vsub.s32 0, %v2035
    %v2555 = vsel %vm2553, %v2554, %v2035
    %v2556 = vshrl.u32 %v2555, 8
    %v2557 = vand.u32 %v2555, 255
    %v2558 = vsub.s32 0, %v2557
    %v2559 = vsel %vm2553, %v2558, %v2557
    %vm2560 = vcmp.lt.s32.totalorder %v2036, 0
    %v2561 = vsub.s32 0, %v2036
    %v2562 = vsel %vm2560, %v2561, %v2036
    %v2563 = vshrl.u32 %v2562, 8
    %v2564 = vand.u32 %v2562, 255
    %v2565 = vsub.s32 0, %v2564
    %v2566 = vsel %vm2560, %v2565, %v2564
    %vm2567 = vcmp.lt.s32.totalorder %v2037, 0
    %v2568 = vsub.s32 0, %v2037
    %v2569 = vsel %vm2567, %v2568, %v2037
    %v2570 = vshrl.u32 %v2569, 8
    %v2571 = vand.u32 %v2569, 255
    %v2572 = vsub.s32 0, %v2571
    %v2573 = vsel %vm2567, %v2572, %v2571
    %vm2574 = vcmp.lt.s32.totalorder %v2038, 0
    %v2575 = vsub.s32 0, %v2038
    %v2576 = vsel %vm2574, %v2575, %v2038
    %v2577 = vshrl.u32 %v2576, 8
    %v2578 = vand.u32 %v2576, 255
    %v2579 = vsub.s32 0, %v2578
    %v2580 = vsel %vm2574, %v2579, %v2578
    %vm2581 = vcmp.lt.s32.totalorder %v2039, 0
    %v2582 = vsub.s32 0, %v2039
    %v2583 = vsel %vm2581, %v2582, %v2039
    %v2584 = vshrl.u32 %v2583, 8
    %v2585 = vand.u32 %v2583, 255
    %v2586 = vsub.s32 0, %v2585
    %v2587 = vsel %vm2581, %v2586, %v2585
    %vm2588 = vcmp.lt.s32.totalorder %v2040, 0
    %v2589 = vsub.s32 0, %v2040
    %v2590 = vsel %vm2588, %v2589, %v2040
    %v2591 = vshrl.u32 %v2590, 8
    %v2592 = vand.u32 %v2590, 255
    %v2593 = vsub.s32 0, %v2592
    %v2594 = vsel %vm2588, %v2593, %v2592
    %vm2595 = vcmp.lt.s32.totalorder %v2041, 0
    %v2596 = vsub.s32 0, %v2041
    %v2597 = vsel %vm2595, %v2596, %v2041
    %v2598 = vshrl.u32 %v2597, 8
    %v2599 = vand.u32 %v2597, 255
    %v2600 = vsub.s32 0, %v2599
    %v2601 = vsel %vm2595, %v2600, %v2599
    %vm2602 = vcmp.lt.s32.totalorder %v2042, 0
    %v2603 = vsub.s32 0, %v2042
    %v2604 = vsel %vm2602, %v2603, %v2042
    %v2605 = vshrl.u32 %v2604, 8
    %v2606 = vand.u32 %v2604, 255
    %v2607 = vsub.s32 0, %v2606
    %v2608 = vsel %vm2602, %v2607, %v2606
    %vm2609 = vcmp.lt.s32.totalorder %v2043, 0
    %v2610 = vsub.s32 0, %v2043
    %v2611 = vsel %vm2609, %v2610, %v2043
    %v2612 = vshrl.u32 %v2611, 8
    %v2613 = vand.u32 %v2611, 255
    %v2614 = vsub.s32 0, %v2613
    %v2615 = vsel %vm2609, %v2614, %v2613
    %vm2616 = vcmp.lt.s32.totalorder %v2044, 0
    %v2617 = vsub.s32 0, %v2044
    %v2618 = vsel %vm2616, %v2617, %v2044
    %v2619 = vshrl.u32 %v2618, 8
    %v2620 = vand.u32 %v2618, 255
    %v2621 = vsub.s32 0, %v2620
    %v2622 = vsel %vm2616, %v2621, %v2620
    %vm2623 = vcmp.lt.s32.totalorder %v2045, 0
    %v2624 = vsub.s32 0, %v2045
    %v2625 = vsel %vm2623, %v2624, %v2045
    %v2626 = vshrl.u32 %v2625, 8
    %v2627 = vand.u32 %v2625, 255
    %v2628 = vsub.s32 0, %v2627
    %v2629 = vsel %vm2623, %v2628, %v2627
    %vm2630 = vcmp.lt.s32.totalorder %v2046, 0
    %v2631 = vsub.s32 0, %v2046
    %v2632 = vsel %vm2630, %v2631, %v2046
    %v2633 = vshrl.u32 %v2632, 8
    %v2634 = vand.u32 %v2632, 255
    %v2635 = vsub.s32 0, %v2634
    %v2636 = vsel %vm2630, %v2635, %v2634
    %vm2637 = vcmp.lt.s32.totalorder %v2047, 0
    %v2638 = vsub.s32 0, %v2047
    %v2639 = vsel %vm2637, %v2638, %v2047
    %v2640 = vshrl.u32 %v2639, 8
    %v2641 = vand.u32 %v2639, 255
    %v2642 = vsub.s32 0, %v2641
    %v2643 = vsel %vm2637, %v2642, %v2641
    %vm2644 = vcmp.lt.s32.totalorder %v2048, 0
    %v2645 = vsub.s32 0, %v2048
    %v2646 = vsel %vm2644, %v2645, %v2048
    %v2647 = vshrl.u32 %v2646, 8
    %v2648 = vand.u32 %v2646, 255
    %v2649 = vsub.s32 0, %v2648
    %v2650 = vsel %vm2644, %v2649, %v2648
    %vm2651 = vcmp.lt.s32.totalorder %v2049, 0
    %v2652 = vsub.s32 0, %v2049
    %v2653 = vsel %vm2651, %v2652, %v2049
    %v2654 = vshrl.u32 %v2653, 8
    %v2655 = vand.u32 %v2653, 255
    %v2656 = vsub.s32 0, %v2655
    %v2657 = vsel %vm2651, %v2656, %v2655
    %vm2658 = vcmp.lt.s32.totalorder %v2050, 0
    %v2659 = vsub.s32 0, %v2050
    %v2660 = vsel %vm2658, %v2659, %v2050
    %v2661 = vshrl.u32 %v2660, 8
    %v2662 = vand.u32 %v2660, 255
    %v2663 = vsub.s32 0, %v2662
    %v2664 = vsel %vm2658, %v2663, %v2662
    %vm2665 = vcmp.lt.s32.totalorder %v2051, 0
    %v2666 = vsub.s32 0, %v2051
    %v2667 = vsel %vm2665, %v2666, %v2051
    %v2668 = vshrl.u32 %v2667, 8
    %v2669 = vand.u32 %v2667, 255
    %v2670 = vsub.s32 0, %v2669
    %v2671 = vsel %vm2665, %v2670, %v2669
    %vm2672 = vcmp.lt.s32.totalorder %v2052, 0
    %v2673 = vsub.s32 0, %v2052
    %v2674 = vsel %vm2672, %v2673, %v2052
    %v2675 = vshrl.u32 %v2674, 8
    %v2676 = vand.u32 %v2674, 255
    %v2677 = vsub.s32 0, %v2676
    %v2678 = vsel %vm2672, %v2677, %v2676
    %vm2679 = vcmp.lt.s32.totalorder %v2053, 0
    %v2680 = vsub.s32 0, %v2053
    %v2681 = vsel %vm2679, %v2680, %v2053
    %v2682 = vshrl.u32 %v2681, 8
    %v2683 = vand.u32 %v2681, 255
    %v2684 = vsub.s32 0, %v2683
    %v2685 = vsel %vm2679, %v2684, %v2683
    %vm2686 = vcmp.lt.s32.totalorder %v2054, 0
    %v2687 = vsub.s32 0, %v2054
    %v2688 = vsel %vm2686, %v2687, %v2054
    %v2689 = vshrl.u32 %v2688, 8
    %v2690 = vand.u32 %v2688, 255
    %v2691 = vsub.s32 0, %v2690
    %v2692 = vsel %vm2686, %v2691, %v2690
    %vm2693 = vcmp.lt.s32.totalorder %v2055, 0
    %v2694 = vsub.s32 0, %v2055
    %v2695 = vsel %vm2693, %v2694, %v2055
    %v2696 = vshrl.u32 %v2695, 8
    %v2697 = vand.u32 %v2695, 255
    %v2698 = vsub.s32 0, %v2697
    %v2699 = vsel %vm2693, %v2698, %v2697
    %vm2700 = vcmp.lt.s32.totalorder %v2056, 0
    %v2701 = vsub.s32 0, %v2056
    %v2702 = vsel %vm2700, %v2701, %v2056
    %v2703 = vshrl.u32 %v2702, 8
    %v2704 = vand.u32 %v2702, 255
    %v2705 = vsub.s32 0, %v2704
    %v2706 = vsel %vm2700, %v2705, %v2704
    %vm2707 = vcmp.lt.s32.totalorder %v2057, 0
    %v2708 = vsub.s32 0, %v2057
    %v2709 = vsel %vm2707, %v2708, %v2057
    %v2710 = vshrl.u32 %v2709, 8
    %v2711 = vand.u32 %v2709, 255
    %v2712 = vsub.s32 0, %v2711
    %v2713 = vsel %vm2707, %v2712, %v2711
    %vm2714 = vcmp.lt.s32.totalorder %v2058, 0
    %v2715 = vsub.s32 0, %v2058
    %v2716 = vsel %vm2714, %v2715, %v2058
    %v2717 = vshrl.u32 %v2716, 8
    %v2718 = vand.u32 %v2716, 255
    %v2719 = vsub.s32 0, %v2718
    %v2720 = vsel %vm2714, %v2719, %v2718
    %vm2721 = vcmp.lt.s32.totalorder %v2059, 0
    %v2722 = vsub.s32 0, %v2059
    %v2723 = vsel %vm2721, %v2722, %v2059
    %v2724 = vshrl.u32 %v2723, 8
    %v2725 = vand.u32 %v2723, 255
    %v2726 = vsub.s32 0, %v2725
    %v2727 = vsel %vm2721, %v2726, %v2725
    %vm2728 = vcmp.lt.s32.totalorder %v2060, 0
    %v2729 = vsub.s32 0, %v2060
    %v2730 = vsel %vm2728, %v2729, %v2060
    %v2731 = vshrl.u32 %v2730, 8
    %v2732 = vand.u32 %v2730, 255
    %v2733 = vsub.s32 0, %v2732
    %v2734 = vsel %vm2728, %v2733, %v2732
    %vm2735 = vcmp.lt.s32.totalorder %v2061, 0
    %v2736 = vsub.s32 0, %v2061
    %v2737 = vsel %vm2735, %v2736, %v2061
    %v2738 = vshrl.u32 %v2737, 8
    %v2739 = vand.u32 %v2737, 255
    %v2740 = vsub.s32 0, %v2739
    %v2741 = vsel %vm2735, %v2740, %v2739
    %vm2742 = vcmp.lt.s32.totalorder %v2062, 0
    %v2743 = vsub.s32 0, %v2062
    %v2744 = vsel %vm2742, %v2743, %v2062
    %v2745 = vshrl.u32 %v2744, 8
    %v2746 = vand.u32 %v2744, 255
    %v2747 = vsub.s32 0, %v2746
    %v2748 = vsel %vm2742, %v2747, %v2746
    %vm2749 = vcmp.lt.s32.totalorder %v2063, 0
    %v2750 = vsub.s32 0, %v2063
    %v2751 = vsel %vm2749, %v2750, %v2063
    %v2752 = vshrl.u32 %v2751, 8
    %v2753 = vand.u32 %v2751, 255
    %v2754 = vsub.s32 0, %v2753
    %v2755 = vsel %vm2749, %v2754, %v2753
    %vm2756 = vcmp.lt.s32.totalorder %v2064, 0
    %v2757 = vsub.s32 0, %v2064
    %v2758 = vsel %vm2756, %v2757, %v2064
    %v2759 = vshrl.u32 %v2758, 8
    %v2760 = vand.u32 %v2758, 255
    %v2761 = vsub.s32 0, %v2760
    %v2762 = vsel %vm2756, %v2761, %v2760
    %vm2763 = vcmp.lt.s32.totalorder %v2065, 0
    %v2764 = vsub.s32 0, %v2065
    %v2765 = vsel %vm2763, %v2764, %v2065
    %v2766 = vshrl.u32 %v2765, 8
    %v2767 = vand.u32 %v2765, 255
    %v2768 = vsub.s32 0, %v2767
    %v2769 = vsel %vm2763, %v2768, %v2767
    %vm2770 = vcmp.lt.s32.totalorder %v2066, 0
    %v2771 = vsub.s32 0, %v2066
    %v2772 = vsel %vm2770, %v2771, %v2066
    %v2773 = vshrl.u32 %v2772, 8
    %v2774 = vand.u32 %v2772, 255
    %v2775 = vsub.s32 0, %v2774
    %v2776 = vsel %vm2770, %v2775, %v2774
    %vm2777 = vcmp.lt.s32.totalorder %v2067, 0
    %v2778 = vsub.s32 0, %v2067
    %v2779 = vsel %vm2777, %v2778, %v2067
    %v2780 = vshrl.u32 %v2779, 8
    %v2781 = vand.u32 %v2779, 255
    %v2782 = vsub.s32 0, %v2781
    %v2783 = vsel %vm2777, %v2782, %v2781
    %vm2784 = vcmp.lt.s32.totalorder %v2068, 0
    %v2785 = vsub.s32 0, %v2068
    %v2786 = vsel %vm2784, %v2785, %v2068
    %v2787 = vshrl.u32 %v2786, 8
    %v2788 = vand.u32 %v2786, 255
    %v2789 = vsub.s32 0, %v2788
    %v2790 = vsel %vm2784, %v2789, %v2788
    %vm2791 = vcmp.lt.s32.totalorder %v2069, 0
    %v2792 = vsub.s32 0, %v2069
    %v2793 = vsel %vm2791, %v2792, %v2069
    %v2794 = vshrl.u32 %v2793, 8
    %v2795 = vand.u32 %v2793, 255
    %v2796 = vsub.s32 0, %v2795
    %v2797 = vsel %vm2791, %v2796, %v2795
    %vm2798 = vcmp.lt.s32.totalorder %v2070, 0
    %v2799 = vsub.s32 0, %v2070
    %v2800 = vsel %vm2798, %v2799, %v2070
    %v2801 = vshrl.u32 %v2800, 8
    %v2802 = vand.u32 %v2800, 255
    %v2803 = vsub.s32 0, %v2802
    %v2804 = vsel %vm2798, %v2803, %v2802
    %vm2805 = vcmp.lt.s32.totalorder %v2071, 0
    %v2806 = vsub.s32 0, %v2071
    %v2807 = vsel %vm2805, %v2806, %v2071
    %v2808 = vshrl.u32 %v2807, 8
    %v2809 = vand.u32 %v2807, 255
    %v2810 = vsub.s32 0, %v2809
    %v2811 = vsel %vm2805, %v2810, %v2809
    %vm2812 = vcmp.lt.s32.totalorder %v2072, 0
    %v2813 = vsub.s32 0, %v2072
    %v2814 = vsel %vm2812, %v2813, %v2072
    %v2815 = vshrl.u32 %v2814, 8
    %v2816 = vand.u32 %v2814, 255
    %v2817 = vsub.s32 0, %v2816
    %v2818 = vsel %vm2812, %v2817, %v2816
    %vm2819 = vcmp.lt.s32.totalorder %v2073, 0
    %v2820 = vsub.s32 0, %v2073
    %v2821 = vsel %vm2819, %v2820, %v2073
    %v2822 = vshrl.u32 %v2821, 8
    %v2823 = vand.u32 %v2821, 255
    %v2824 = vsub.s32 0, %v2823
    %v2825 = vsel %vm2819, %v2824, %v2823
    %vm2826 = vcmp.lt.s32.totalorder %v2074, 0
    %v2827 = vsub.s32 0, %v2074
    %v2828 = vsel %vm2826, %v2827, %v2074
    %v2829 = vshrl.u32 %v2828, 8
    %v2830 = vand.u32 %v2828, 255
    %v2831 = vsub.s32 0, %v2830
    %v2832 = vsel %vm2826, %v2831, %v2830
    %vm2833 = vcmp.lt.s32.totalorder %v2075, 0
    %v2834 = vsub.s32 0, %v2075
    %v2835 = vsel %vm2833, %v2834, %v2075
    %v2836 = vshrl.u32 %v2835, 8
    %v2837 = vand.u32 %v2835, 255
    %v2838 = vsub.s32 0, %v2837
    %v2839 = vsel %vm2833, %v2838, %v2837
    %vm2840 = vcmp.lt.s32.totalorder %v2076, 0
    %v2841 = vsub.s32 0, %v2076
    %v2842 = vsel %vm2840, %v2841, %v2076
    %v2843 = vshrl.u32 %v2842, 8
    %v2844 = vand.u32 %v2842, 255
    %v2845 = vsub.s32 0, %v2844
    %v2846 = vsel %vm2840, %v2845, %v2844
    %vm2847 = vcmp.lt.s32.totalorder %v2077, 0
    %v2848 = vsub.s32 0, %v2077
    %v2849 = vsel %vm2847, %v2848, %v2077
    %v2850 = vshrl.u32 %v2849, 8
    %v2851 = vand.u32 %v2849, 255
    %v2852 = vsub.s32 0, %v2851
    %v2853 = vsel %vm2847, %v2852, %v2851
    %vm2854 = vcmp.lt.s32.totalorder %v2078, 0
    %v2855 = vsub.s32 0, %v2078
    %v2856 = vsel %vm2854, %v2855, %v2078
    %v2857 = vshrl.u32 %v2856, 8
    %v2858 = vand.u32 %v2856, 255
    %v2859 = vsub.s32 0, %v2858
    %v2860 = vsel %vm2854, %v2859, %v2858
    %vm2861 = vcmp.lt.s32.totalorder %v2079, 0
    %v2862 = vsub.s32 0, %v2079
    %v2863 = vsel %vm2861, %v2862, %v2079
    %v2864 = vshrl.u32 %v2863, 8
    %v2865 = vand.u32 %v2863, 255
    %v2866 = vsub.s32 0, %v2865
    %v2867 = vsel %vm2861, %v2866, %v2865
    %vm2868 = vcmp.lt.s32.totalorder %v2080, 0
    %v2869 = vsub.s32 0, %v2080
    %v2870 = vsel %vm2868, %v2869, %v2080
    %v2871 = vshrl.u32 %v2870, 8
    %v2872 = vand.u32 %v2870, 255
    %v2873 = vsub.s32 0, %v2872
    %v2874 = vsel %vm2868, %v2873, %v2872
    %vm2875 = vcmp.lt.s32.totalorder %v2081, 0
    %v2876 = vsub.s32 0, %v2081
    %v2877 = vsel %vm2875, %v2876, %v2081
    %v2878 = vshrl.u32 %v2877, 8
    %v2879 = vand.u32 %v2877, 255
    %v2880 = vsub.s32 0, %v2879
    %v2881 = vsel %vm2875, %v2880, %v2879
    %vm2882 = vcmp.lt.s32.totalorder %v2082, 0
    %v2883 = vsub.s32 0, %v2082
    %v2884 = vsel %vm2882, %v2883, %v2082
    %v2885 = vshrl.u32 %v2884, 8
    %v2886 = vand.u32 %v2884, 255
    %v2887 = vsub.s32 0, %v2886
    %v2888 = vsel %vm2882, %v2887, %v2886
    %vm2889 = vcmp.lt.s32.totalorder %v2083, 0
    %v2890 = vsub.s32 0, %v2083
    %v2891 = vsel %vm2889, %v2890, %v2083
    %v2892 = vshrl.u32 %v2891, 8
    %v2893 = vand.u32 %v2891, 255
    %v2894 = vsub.s32 0, %v2893
    %v2895 = vsel %vm2889, %v2894, %v2893
    %vm2896 = vcmp.lt.s32.totalorder %v2084, 0
    %v2897 = vsub.s32 0, %v2084
    %v2898 = vsel %vm2896, %v2897, %v2084
    %v2899 = vshrl.u32 %v2898, 8
    %v2900 = vand.u32 %v2898, 255
    %v2901 = vsub.s32 0, %v2900
    %v2902 = vsel %vm2896, %v2901, %v2900
    %vm2903 = vcmp.lt.s32.totalorder %v2085, 0
    %v2904 = vsub.s32 0, %v2085
    %v2905 = vsel %vm2903, %v2904, %v2085
    %v2906 = vshrl.u32 %v2905, 8
    %v2907 = vand.u32 %v2905, 255
    %v2908 = vsub.s32 0, %v2907
    %v2909 = vsel %vm2903, %v2908, %v2907
    %vm2910 = vcmp.lt.s32.totalorder %v2086, 0
    %v2911 = vsub.s32 0, %v2086
    %v2912 = vsel %vm2910, %v2911, %v2086
    %v2913 = vshrl.u32 %v2912, 8
    %v2914 = vand.u32 %v2912, 255
    %v2915 = vsub.s32 0, %v2914
    %v2916 = vsel %vm2910, %v2915, %v2914
    %vm2917 = vcmp.lt.s32.totalorder %v2087, 0
    %v2918 = vsub.s32 0, %v2087
    %v2919 = vsel %vm2917, %v2918, %v2087
    %v2920 = vshrl.u32 %v2919, 8
    %v2921 = vand.u32 %v2919, 255
    %v2922 = vsub.s32 0, %v2921
    %v2923 = vsel %vm2917, %v2922, %v2921
    %vm2924 = vcmp.lt.s32.totalorder %v2088, 0
    %v2925 = vsub.s32 0, %v2088
    %v2926 = vsel %vm2924, %v2925, %v2088
    %v2927 = vshrl.u32 %v2926, 8
    %v2928 = vand.u32 %v2926, 255
    %v2929 = vsub.s32 0, %v2928
    %v2930 = vsel %vm2924, %v2929, %v2928
    %vm2931 = vcmp.lt.s32.totalorder %v2089, 0
    %v2932 = vsub.s32 0, %v2089
    %v2933 = vsel %vm2931, %v2932, %v2089
    %v2934 = vshrl.u32 %v2933, 8
    %v2935 = vand.u32 %v2933, 255
    %v2936 = vsub.s32 0, %v2935
    %v2937 = vsel %vm2931, %v2936, %v2935
    %vm2938 = vcmp.lt.s32.totalorder %v2090, 0
    %v2939 = vsub.s32 0, %v2090
    %v2940 = vsel %vm2938, %v2939, %v2090
    %v2941 = vshrl.u32 %v2940, 8
    %v2942 = vand.u32 %v2940, 255
    %v2943 = vsub.s32 0, %v2942
    %v2944 = vsel %vm2938, %v2943, %v2942
    %vm2945 = vcmp.lt.s32.totalorder %v2091, 0
    %v2946 = vsub.s32 0, %v2091
    %v2947 = vsel %vm2945, %v2946, %v2091
    %v2948 = vshrl.u32 %v2947, 8
    %v2949 = vand.u32 %v2947, 255
    %v2950 = vsub.s32 0, %v2949
    %v2951 = vsel %vm2945, %v2950, %v2949
    %vm2952 = vcmp.lt.s32.totalorder %v2092, 0
    %v2953 = vsub.s32 0, %v2092
    %v2954 = vsel %vm2952, %v2953, %v2092
    %v2955 = vshrl.u32 %v2954, 8
    %v2956 = vand.u32 %v2954, 255
    %v2957 = vsub.s32 0, %v2956
    %v2958 = vsel %vm2952, %v2957, %v2956
    %vm2959 = vcmp.lt.s32.totalorder %v2093, 0
    %v2960 = vsub.s32 0, %v2093
    %v2961 = vsel %vm2959, %v2960, %v2093
    %v2962 = vshrl.u32 %v2961, 8
    %v2963 = vand.u32 %v2961, 255
    %v2964 = vsub.s32 0, %v2963
    %v2965 = vsel %vm2959, %v2964, %v2963
    %vm2966 = vcmp.lt.s32.totalorder %v2094, 0
    %v2967 = vsub.s32 0, %v2094
    %v2968 = vsel %vm2966, %v2967, %v2094
    %v2969 = vshrl.u32 %v2968, 8
    %v2970 = vand.u32 %v2968, 255
    %v2971 = vsub.s32 0, %v2970
    %v2972 = vsel %vm2966, %v2971, %v2970
    %vm2973 = vcmp.lt.s32.totalorder %v2095, 0
    %v2974 = vsub.s32 0, %v2095
    %v2975 = vsel %vm2973, %v2974, %v2095
    %v2976 = vshrl.u32 %v2975, 8
    %v2977 = vand.u32 %v2975, 255
    %v2978 = vsub.s32 0, %v2977
    %v2979 = vsel %vm2973, %v2978, %v2977
    %vm2980 = vcmp.lt.s32.totalorder %v2096, 0
    %v2981 = vsub.s32 0, %v2096
    %v2982 = vsel %vm2980, %v2981, %v2096
    %v2983 = vshrl.u32 %v2982, 8
    %v2984 = vand.u32 %v2982, 255
    %v2985 = vsub.s32 0, %v2984
    %v2986 = vsel %vm2980, %v2985, %v2984
    %vm2987 = vcmp.lt.s32.totalorder %v2097, 0
    %v2988 = vsub.s32 0, %v2097
    %v2989 = vsel %vm2987, %v2988, %v2097
    %v2990 = vshrl.u32 %v2989, 8
    %v2991 = vand.u32 %v2989, 255
    %v2992 = vsub.s32 0, %v2991
    %v2993 = vsel %vm2987, %v2992, %v2991
    %vm2994 = vcmp.ne.s32.totalorder %v2104, 0
    %vm2995 = vcmp.ne.s32.totalorder %v2111, 0
    %vm2996 = vcmp.ne.s32.totalorder %v2118, 0
    %vm2997 = vcmp.ne.s32.totalorder %v2125, 0
    %vm2998 = vcmp.ne.s32.totalorder %v2132, 0
    %vm2999 = vcmp.ne.s32.totalorder %v2139, 0
    %vm3000 = vcmp.ne.s32.totalorder %v2146, 0
    %vm3001 = vcmp.ne.s32.totalorder %v2153, 0
    %vm3002 = vcmp.ne.s32.totalorder %v2160, 0
    %vm3003 = vcmp.ne.s32.totalorder %v2167, 0
    %vm3004 = vcmp.ne.s32.totalorder %v2174, 0
    %vm3005 = vcmp.ne.s32.totalorder %v2181, 0
    %vm3006 = vcmp.ne.s32.totalorder %v2188, 0
    %vm3007 = vcmp.ne.s32.totalorder %v2195, 0
    %vm3008 = vcmp.ne.s32.totalorder %v2202, 0
    %vm3009 = vcmp.ne.s32.totalorder %v2209, 0
    %vm3010 = vcmp.ne.s32.totalorder %v2216, 0
    %vm3011 = vcmp.ne.s32.totalorder %v2223, 0
    %vm3012 = vcmp.ne.s32.totalorder %v2230, 0
    %vm3013 = vcmp.ne.s32.totalorder %v2237, 0
    %vm3014 = vcmp.ne.s32.totalorder %v2244, 0
    %vm3015 = vcmp.ne.s32.totalorder %v2251, 0
    %vm3016 = vcmp.ne.s32.totalorder %v2258, 0
    %vm3017 = vcmp.ne.s32.totalorder %v2265, 0
    %vm3018 = vcmp.ne.s32.totalorder %v2272, 0
    %vm3019 = vcmp.ne.s32.totalorder %v2279, 0
    %vm3020 = vcmp.ne.s32.totalorder %v2286, 0
    %vm3021 = vcmp.ne.s32.totalorder %v2293, 0
    %vm3022 = vcmp.ne.s32.totalorder %v2300, 0
    %vm3023 = vcmp.ne.s32.totalorder %v2307, 0
    %vm3024 = vcmp.ne.s32.totalorder %v2314, 0
    %vm3025 = vcmp.ne.s32.totalorder %v2321, 0
    %vm3026 = vcmp.ne.s32.totalorder %v2328, 0
    %vm3027 = vcmp.ne.s32.totalorder %v2335, 0
    %vm3028 = vcmp.ne.s32.totalorder %v2342, 0
    %vm3029 = vcmp.ne.s32.totalorder %v2349, 0
    %vm3030 = vcmp.ne.s32.totalorder %v2356, 0
    %vm3031 = vcmp.ne.s32.totalorder %v2363, 0
    %vm3032 = vcmp.ne.s32.totalorder %v2370, 0
    %vm3033 = vcmp.ne.s32.totalorder %v2377, 0
    %vm3034 = vcmp.ne.s32.totalorder %v2384, 0
    %vm3035 = vcmp.ne.s32.totalorder %v2391, 0
    %vm3036 = vcmp.ne.s32.totalorder %v2398, 0
    %vm3037 = vcmp.ne.s32.totalorder %v2405, 0
    %vm3038 = vcmp.ne.s32.totalorder %v2412, 0
    %vm3039 = vcmp.ne.s32.totalorder %v2419, 0
    %vm3040 = vcmp.ne.s32.totalorder %v2426, 0
    %vm3041 = vcmp.ne.s32.totalorder %v2433, 0
    %vm3042 = vcmp.ne.s32.totalorder %v2440, 0
    %vm3043 = vcmp.ne.s32.totalorder %v2447, 0
    %vm3044 = vcmp.ne.s32.totalorder %v2454, 0
    %vm3045 = vcmp.ne.s32.totalorder %v2461, 0
    %vm3046 = vcmp.ne.s32.totalorder %v2468, 0
    %vm3047 = vcmp.ne.s32.totalorder %v2475, 0
    %vm3048 = vcmp.ne.s32.totalorder %v2482, 0
    %vm3049 = vcmp.ne.s32.totalorder %v2489, 0
    %vm3050 = vcmp.ne.s32.totalorder %v2496, 0
    %vm3051 = vcmp.ne.s32.totalorder %v2503, 0
    %vm3052 = vcmp.ne.s32.totalorder %v2510, 0
    %vm3053 = vcmp.ne.s32.totalorder %v2517, 0
    %vm3054 = vcmp.ne.s32.totalorder %v2524, 0
    %vm3055 = vcmp.ne.s32.totalorder %v2531, 0
    %vm3056 = vcmp.ne.s32.totalorder %v2538, 0
    %vm3057 = vcmp.ne.s32.totalorder %v2545, 0
    %vm3058 = vcmp.ne.s32.totalorder %v2552, 0
    %vm3059 = vcmp.ne.s32.totalorder %v2559, 0
    %vm3060 = vcmp.ne.s32.totalorder %v2566, 0
    %vm3061 = vcmp.ne.s32.totalorder %v2573, 0
    %vm3062 = vcmp.ne.s32.totalorder %v2580, 0
    %vm3063 = vcmp.ne.s32.totalorder %v2587, 0
    %vm3064 = vcmp.ne.s32.totalorder %v2594, 0
    %vm3065 = vcmp.ne.s32.totalorder %v2601, 0
    %vm3066 = vcmp.ne.s32.totalorder %v2608, 0
    %vm3067 = vcmp.ne.s32.totalorder %v2615, 0
    %vm3068 = vcmp.ne.s32.totalorder %v2622, 0
    %vm3069 = vcmp.ne.s32.totalorder %v2629, 0
    %vm3070 = vcmp.ne.s32.totalorder %v2636, 0
    %vm3071 = vcmp.ne.s32.totalorder %v2643, 0
    %vm3072 = vcmp.ne.s32.totalorder %v2650, 0
    %vm3073 = vcmp.ne.s32.totalorder %v2657, 0
    %vm3074 = vcmp.ne.s32.totalorder %v2664, 0
    %vm3075 = vcmp.ne.s32.totalorder %v2671, 0
    %vm3076 = vcmp.ne.s32.totalorder %v2678, 0
    %vm3077 = vcmp.ne.s32.totalorder %v2685, 0
    %vm3078 = vcmp.ne.s32.totalorder %v2692, 0
    %vm3079 = vcmp.ne.s32.totalorder %v2699, 0
    %vm3080 = vcmp.ne.s32.totalorder %v2706, 0
    %vm3081 = vcmp.ne.s32.totalorder %v2713, 0
    %vm3082 = vcmp.ne.s32.totalorder %v2720, 0
    %vm3083 = vcmp.ne.s32.totalorder %v2727, 0
    %vm3084 = vcmp.ne.s32.totalorder %v2734, 0
    %vm3085 = vcmp.ne.s32.totalorder %v2741, 0
    %vm3086 = vcmp.ne.s32.totalorder %v2748, 0
    %vm3087 = vcmp.ne.s32.totalorder %v2755, 0
    %vm3088 = vcmp.ne.s32.totalorder %v2762, 0
    %vm3089 = vcmp.ne.s32.totalorder %v2769, 0
    %vm3090 = vcmp.ne.s32.totalorder %v2776, 0
    %vm3091 = vcmp.ne.s32.totalorder %v2783, 0
    %vm3092 = vcmp.ne.s32.totalorder %v2790, 0
    %vm3093 = vcmp.ne.s32.totalorder %v2797, 0
    %vm3094 = vcmp.ne.s32.totalorder %v2804, 0
    %vm3095 = vcmp.ne.s32.totalorder %v2811, 0
    %vm3096 = vcmp.ne.s32.totalorder %v2818, 0
    %vm3097 = vcmp.ne.s32.totalorder %v2825, 0
    %vm3098 = vcmp.ne.s32.totalorder %v2832, 0
    %vm3099 = vcmp.ne.s32.totalorder %v2839, 0
    %vm3100 = vcmp.ne.s32.totalorder %v2846, 0
    %vm3101 = vcmp.ne.s32.totalorder %v2853, 0
    %vm3102 = vcmp.ne.s32.totalorder %v2860, 0
    %vm3103 = vcmp.ne.s32.totalorder %v2867, 0
    %vm3104 = vcmp.ne.s32.totalorder %v2874, 0
    %vm3105 = vcmp.ne.s32.totalorder %v2881, 0
    %vm3106 = vcmp.ne.s32.totalorder %v2888, 0
    %vm3107 = vcmp.ne.s32.totalorder %v2895, 0
    %vm3108 = vcmp.ne.s32.totalorder %v2902, 0
    %vm3109 = vcmp.ne.s32.totalorder %v2909, 0
    %vm3110 = vcmp.ne.s32.totalorder %v2916, 0
    %vm3111 = vcmp.ne.s32.totalorder %v2923, 0
    %vm3112 = vcmp.ne.s32.totalorder %v2930, 0
    %vm3113 = vcmp.ne.s32.totalorder %v2937, 0
    %vm3114 = vcmp.ne.s32.totalorder %v2944, 0
    %vm3115 = vcmp.ne.s32.totalorder %v2951, 0
    %vm3116 = vcmp.ne.s32.totalorder %v2958, 0
    %vm3117 = vcmp.ne.s32.totalorder %v2965, 0
    %vm3118 = vcmp.ne.s32.totalorder %v2972, 0
    %vm3119 = vcmp.ne.s32.totalorder %v2979, 0
    %vm3120 = vcmp.ne.s32.totalorder %v2986, 0
    %vm3121 = vcmp.ne.s32.totalorder %v2993, 0
    %vm3122 = vcmp.lt.s32.totalorder %v2104, 0
    %vm3123 = vcmp.lt.s32.totalorder %v2111, 0
    %vm3124 = vcmp.lt.s32.totalorder %v2118, 0
    %vm3125 = vcmp.lt.s32.totalorder %v2125, 0
    %vm3126 = vcmp.lt.s32.totalorder %v2132, 0
    %vm3127 = vcmp.lt.s32.totalorder %v2139, 0
    %vm3128 = vcmp.lt.s32.totalorder %v2146, 0
    %vm3129 = vcmp.lt.s32.totalorder %v2153, 0
    %vm3130 = vcmp.lt.s32.totalorder %v2160, 0
    %vm3131 = vcmp.lt.s32.totalorder %v2167, 0
    %vm3132 = vcmp.lt.s32.totalorder %v2174, 0
    %vm3133 = vcmp.lt.s32.totalorder %v2181, 0
    %vm3134 = vcmp.lt.s32.totalorder %v2188, 0
    %vm3135 = vcmp.lt.s32.totalorder %v2195, 0
    %vm3136 = vcmp.lt.s32.totalorder %v2202, 0
    %vm3137 = vcmp.lt.s32.totalorder %v2209, 0
    %vm3138 = vcmp.lt.s32.totalorder %v2216, 0
    %vm3139 = vcmp.lt.s32.totalorder %v2223, 0
    %vm3140 = vcmp.lt.s32.totalorder %v2230, 0
    %vm3141 = vcmp.lt.s32.totalorder %v2237, 0
    %vm3142 = vcmp.lt.s32.totalorder %v2244, 0
    %vm3143 = vcmp.lt.s32.totalorder %v2251, 0
    %vm3144 = vcmp.lt.s32.totalorder %v2258, 0
    %vm3145 = vcmp.lt.s32.totalorder %v2265, 0
    %vm3146 = vcmp.lt.s32.totalorder %v2272, 0
    %vm3147 = vcmp.lt.s32.totalorder %v2279, 0
    %vm3148 = vcmp.lt.s32.totalorder %v2286, 0
    %vm3149 = vcmp.lt.s32.totalorder %v2293, 0
    %vm3150 = vcmp.lt.s32.totalorder %v2300, 0
    %vm3151 = vcmp.lt.s32.totalorder %v2307, 0
    %vm3152 = vcmp.lt.s32.totalorder %v2314, 0
    %vm3153 = vcmp.lt.s32.totalorder %v2321, 0
    %vm3154 = vcmp.lt.s32.totalorder %v2328, 0
    %vm3155 = vcmp.lt.s32.totalorder %v2335, 0
    %vm3156 = vcmp.lt.s32.totalorder %v2342, 0
    %vm3157 = vcmp.lt.s32.totalorder %v2349, 0
    %vm3158 = vcmp.lt.s32.totalorder %v2356, 0
    %vm3159 = vcmp.lt.s32.totalorder %v2363, 0
    %vm3160 = vcmp.lt.s32.totalorder %v2370, 0
    %vm3161 = vcmp.lt.s32.totalorder %v2377, 0
    %vm3162 = vcmp.lt.s32.totalorder %v2384, 0
    %vm3163 = vcmp.lt.s32.totalorder %v2391, 0
    %vm3164 = vcmp.lt.s32.totalorder %v2398, 0
    %vm3165 = vcmp.lt.s32.totalorder %v2405, 0
    %vm3166 = vcmp.lt.s32.totalorder %v2412, 0
    %vm3167 = vcmp.lt.s32.totalorder %v2419, 0
    %vm3168 = vcmp.lt.s32.totalorder %v2426, 0
    %vm3169 = vcmp.lt.s32.totalorder %v2433, 0
    %vm3170 = vcmp.lt.s32.totalorder %v2440, 0
    %vm3171 = vcmp.lt.s32.totalorder %v2447, 0
    %vm3172 = vcmp.lt.s32.totalorder %v2454, 0
    %vm3173 = vcmp.lt.s32.totalorder %v2461, 0
    %vm3174 = vcmp.lt.s32.totalorder %v2468, 0
    %vm3175 = vcmp.lt.s32.totalorder %v2475, 0
    %vm3176 = vcmp.lt.s32.totalorder %v2482, 0
    %vm3177 = vcmp.lt.s32.totalorder %v2489, 0
    %vm3178 = vcmp.lt.s32.totalorder %v2496, 0
    %vm3179 = vcmp.lt.s32.totalorder %v2503, 0
    %vm3180 = vcmp.lt.s32.totalorder %v2510, 0
    %vm3181 = vcmp.lt.s32.totalorder %v2517, 0
    %vm3182 = vcmp.lt.s32.totalorder %v2524, 0
    %vm3183 = vcmp.lt.s32.totalorder %v2531, 0
    %vm3184 = vcmp.lt.s32.totalorder %v2538, 0
    %vm3185 = vcmp.lt.s32.totalorder %v2545, 0
    %vm3186 = vcmp.lt.s32.totalorder %v2552, 0
    %vm3187 = vcmp.lt.s32.totalorder %v2559, 0
    %vm3188 = vcmp.lt.s32.totalorder %v2566, 0
    %vm3189 = vcmp.lt.s32.totalorder %v2573, 0
    %vm3190 = vcmp.lt.s32.totalorder %v2580, 0
    %vm3191 = vcmp.lt.s32.totalorder %v2587, 0
    %vm3192 = vcmp.lt.s32.totalorder %v2594, 0
    %vm3193 = vcmp.lt.s32.totalorder %v2601, 0
    %vm3194 = vcmp.lt.s32.totalorder %v2608, 0
    %vm3195 = vcmp.lt.s32.totalorder %v2615, 0
    %vm3196 = vcmp.lt.s32.totalorder %v2622, 0
    %vm3197 = vcmp.lt.s32.totalorder %v2629, 0
    %vm3198 = vcmp.lt.s32.totalorder %v2636, 0
    %vm3199 = vcmp.lt.s32.totalorder %v2643, 0
    %vm3200 = vcmp.lt.s32.totalorder %v2650, 0
    %vm3201 = vcmp.lt.s32.totalorder %v2657, 0
    %vm3202 = vcmp.lt.s32.totalorder %v2664, 0
    %vm3203 = vcmp.lt.s32.totalorder %v2671, 0
    %vm3204 = vcmp.lt.s32.totalorder %v2678, 0
    %vm3205 = vcmp.lt.s32.totalorder %v2685, 0
    %vm3206 = vcmp.lt.s32.totalorder %v2692, 0
    %vm3207 = vcmp.lt.s32.totalorder %v2699, 0
    %vm3208 = vcmp.lt.s32.totalorder %v2706, 0
    %vm3209 = vcmp.lt.s32.totalorder %v2713, 0
    %vm3210 = vcmp.lt.s32.totalorder %v2720, 0
    %vm3211 = vcmp.lt.s32.totalorder %v2727, 0
    %vm3212 = vcmp.lt.s32.totalorder %v2734, 0
    %vm3213 = vcmp.lt.s32.totalorder %v2741, 0
    %vm3214 = vcmp.lt.s32.totalorder %v2748, 0
    %vm3215 = vcmp.lt.s32.totalorder %v2755, 0
    %vm3216 = vcmp.lt.s32.totalorder %v2762, 0
    %vm3217 = vcmp.lt.s32.totalorder %v2769, 0
    %vm3218 = vcmp.lt.s32.totalorder %v2776, 0
    %vm3219 = vcmp.lt.s32.totalorder %v2783, 0
    %vm3220 = vcmp.lt.s32.totalorder %v2790, 0
    %vm3221 = vcmp.lt.s32.totalorder %v2797, 0
    %vm3222 = vcmp.lt.s32.totalorder %v2804, 0
    %vm3223 = vcmp.lt.s32.totalorder %v2811, 0
    %vm3224 = vcmp.lt.s32.totalorder %v2818, 0
    %vm3225 = vcmp.lt.s32.totalorder %v2825, 0
    %vm3226 = vcmp.lt.s32.totalorder %v2832, 0
    %vm3227 = vcmp.lt.s32.totalorder %v2839, 0
    %vm3228 = vcmp.lt.s32.totalorder %v2846, 0
    %vm3229 = vcmp.lt.s32.totalorder %v2853, 0
    %vm3230 = vcmp.lt.s32.totalorder %v2860, 0
    %vm3231 = vcmp.lt.s32.totalorder %v2867, 0
    %vm3232 = vcmp.lt.s32.totalorder %v2874, 0
    %vm3233 = vcmp.lt.s32.totalorder %v2881, 0
    %vm3234 = vcmp.lt.s32.totalorder %v2888, 0
    %vm3235 = vcmp.lt.s32.totalorder %v2895, 0
    %vm3236 = vcmp.lt.s32.totalorder %v2902, 0
    %vm3237 = vcmp.lt.s32.totalorder %v2909, 0
    %vm3238 = vcmp.lt.s32.totalorder %v2916, 0
    %vm3239 = vcmp.lt.s32.totalorder %v2923, 0
    %vm3240 = vcmp.lt.s32.totalorder %v2930, 0
    %vm3241 = vcmp.lt.s32.totalorder %v2937, 0
    %vm3242 = vcmp.lt.s32.totalorder %v2944, 0
    %vm3243 = vcmp.lt.s32.totalorder %v2951, 0
    %vm3244 = vcmp.lt.s32.totalorder %v2958, 0
    %vm3245 = vcmp.lt.s32.totalorder %v2965, 0
    %vm3246 = vcmp.lt.s32.totalorder %v2972, 0
    %vm3247 = vcmp.lt.s32.totalorder %v2979, 0
    %vm3248 = vcmp.lt.s32.totalorder %v2986, 0
    %vm3249 = vcmp.lt.s32.totalorder %v2993, 0
    %vm3250 = vmand %vm3122, %vm2994
    %vm3251 = vmand %vm3123, %vm2995
    %vm3252 = vmand %vm3124, %vm2996
    %vm3253 = vmand %vm3125, %vm2997
    %vm3254 = vmand %vm3126, %vm2998
    %vm3255 = vmand %vm3127, %vm2999
    %vm3256 = vmand %vm3128, %vm3000
    %vm3257 = vmand %vm3129, %vm3001
    %vm3258 = vmand %vm3130, %vm3002
    %vm3259 = vmand %vm3131, %vm3003
    %vm3260 = vmand %vm3132, %vm3004
    %vm3261 = vmand %vm3133, %vm3005
    %vm3262 = vmand %vm3134, %vm3006
    %vm3263 = vmand %vm3135, %vm3007
    %vm3264 = vmand %vm3136, %vm3008
    %vm3265 = vmand %vm3137, %vm3009
    %vm3266 = vmand %vm3138, %vm3010
    %vm3267 = vmand %vm3139, %vm3011
    %vm3268 = vmand %vm3140, %vm3012
    %vm3269 = vmand %vm3141, %vm3013
    %vm3270 = vmand %vm3142, %vm3014
    %vm3271 = vmand %vm3143, %vm3015
    %vm3272 = vmand %vm3144, %vm3016
    %vm3273 = vmand %vm3145, %vm3017
    %vm3274 = vmand %vm3146, %vm3018
    %vm3275 = vmand %vm3147, %vm3019
    %vm3276 = vmand %vm3148, %vm3020
    %vm3277 = vmand %vm3149, %vm3021
    %vm3278 = vmand %vm3150, %vm3022
    %vm3279 = vmand %vm3151, %vm3023
    %vm3280 = vmand %vm3152, %vm3024
    %vm3281 = vmand %vm3153, %vm3025
    %vm3282 = vmand %vm3154, %vm3026
    %vm3283 = vmand %vm3155, %vm3027
    %vm3284 = vmand %vm3156, %vm3028
    %vm3285 = vmand %vm3157, %vm3029
    %vm3286 = vmand %vm3158, %vm3030
    %vm3287 = vmand %vm3159, %vm3031
    %vm3288 = vmand %vm3160, %vm3032
    %vm3289 = vmand %vm3161, %vm3033
    %vm3290 = vmand %vm3162, %vm3034
    %vm3291 = vmand %vm3163, %vm3035
    %vm3292 = vmand %vm3164, %vm3036
    %vm3293 = vmand %vm3165, %vm3037
    %vm3294 = vmand %vm3166, %vm3038
    %vm3295 = vmand %vm3167, %vm3039
    %vm3296 = vmand %vm3168, %vm3040
    %vm3297 = vmand %vm3169, %vm3041
    %vm3298 = vmand %vm3170, %vm3042
    %vm3299 = vmand %vm3171, %vm3043
    %vm3300 = vmand %vm3172, %vm3044
    %vm3301 = vmand %vm3173, %vm3045
    %vm3302 = vmand %vm3174, %vm3046
    %vm3303 = vmand %vm3175, %vm3047
    %vm3304 = vmand %vm3176, %vm3048
    %vm3305 = vmand %vm3177, %vm3049
    %vm3306 = vmand %vm3178, %vm3050
    %vm3307 = vmand %vm3179, %vm3051
    %vm3308 = vmand %vm3180, %vm3052
    %vm3309 = vmand %vm3181, %vm3053
    %vm3310 = vmand %vm3182, %vm3054
    %vm3311 = vmand %vm3183, %vm3055
    %vm3312 = vmand %vm3184, %vm3056
    %vm3313 = vmand %vm3185, %vm3057
    %vm3314 = vmand %vm3186, %vm3058
    %vm3315 = vmand %vm3187, %vm3059
    %vm3316 = vmand %vm3188, %vm3060
    %vm3317 = vmand %vm3189, %vm3061
    %vm3318 = vmand %vm3190, %vm3062
    %vm3319 = vmand %vm3191, %vm3063
    %vm3320 = vmand %vm3192, %vm3064
    %vm3321 = vmand %vm3193, %vm3065
    %vm3322 = vmand %vm3194, %vm3066
    %vm3323 = vmand %vm3195, %vm3067
    %vm3324 = vmand %vm3196, %vm3068
    %vm3325 = vmand %vm3197, %vm3069
    %vm3326 = vmand %vm3198, %vm3070
    %vm3327 = vmand %vm3199, %vm3071
    %vm3328 = vmand %vm3200, %vm3072
    %vm3329 = vmand %vm3201, %vm3073
    %vm3330 = vmand %vm3202, %vm3074
    %vm3331 = vmand %vm3203, %vm3075
    %vm3332 = vmand %vm3204, %vm3076
    %vm3333 = vmand %vm3205, %vm3077
    %vm3334 = vmand %vm3206, %vm3078
    %vm3335 = vmand %vm3207, %vm3079
    %vm3336 = vmand %vm3208, %vm3080
    %vm3337 = vmand %vm3209, %vm3081
    %vm3338 = vmand %vm3210, %vm3082
    %vm3339 = vmand %vm3211, %vm3083
    %vm3340 = vmand %vm3212, %vm3084
    %vm3341 = vmand %vm3213, %vm3085
    %vm3342 = vmand %vm3214, %vm3086
    %vm3343 = vmand %vm3215, %vm3087
    %vm3344 = vmand %vm3216, %vm3088
    %vm3345 = vmand %vm3217, %vm3089
    %vm3346 = vmand %vm3218, %vm3090
    %vm3347 = vmand %vm3219, %vm3091
    %vm3348 = vmand %vm3220, %vm3092
    %vm3349 = vmand %vm3221, %vm3093
    %vm3350 = vmand %vm3222, %vm3094
    %vm3351 = vmand %vm3223, %vm3095
    %vm3352 = vmand %vm3224, %vm3096
    %vm3353 = vmand %vm3225, %vm3097
    %vm3354 = vmand %vm3226, %vm3098
    %vm3355 = vmand %vm3227, %vm3099
    %vm3356 = vmand %vm3228, %vm3100
    %vm3357 = vmand %vm3229, %vm3101
    %vm3358 = vmand %vm3230, %vm3102
    %vm3359 = vmand %vm3231, %vm3103
    %vm3360 = vmand %vm3232, %vm3104
    %vm3361 = vmand %vm3233, %vm3105
    %vm3362 = vmand %vm3234, %vm3106
    %vm3363 = vmand %vm3235, %vm3107
    %vm3364 = vmand %vm3236, %vm3108
    %vm3365 = vmand %vm3237, %vm3109
    %vm3366 = vmand %vm3238, %vm3110
    %vm3367 = vmand %vm3239, %vm3111
    %vm3368 = vmand %vm3240, %vm3112
    %vm3369 = vmand %vm3241, %vm3113
    %vm3370 = vmand %vm3242, %vm3114
    %vm3371 = vmand %vm3243, %vm3115
    %vm3372 = vmand %vm3244, %vm3116
    %vm3373 = vmand %vm3245, %vm3117
    %vm3374 = vmand %vm3246, %vm3118
    %vm3375 = vmand %vm3247, %vm3119
    %vm3376 = vmand %vm3248, %vm3120
    %vm3377 = vmand %vm3249, %vm3121
    %v3378 = vadd.s32 %v2104, 256
    %v3379 = vadd.s32 %v2111, 256
    %v3380 = vadd.s32 %v2118, 256
    %v3381 = vadd.s32 %v2125, 256
    %v3382 = vadd.s32 %v2132, 256
    %v3383 = vadd.s32 %v2139, 256
    %v3384 = vadd.s32 %v2146, 256
    %v3385 = vadd.s32 %v2153, 256
    %v3386 = vadd.s32 %v2160, 256
    %v3387 = vadd.s32 %v2167, 256
    %v3388 = vadd.s32 %v2174, 256
    %v3389 = vadd.s32 %v2181, 256
    %v3390 = vadd.s32 %v2188, 256
    %v3391 = vadd.s32 %v2195, 256
    %v3392 = vadd.s32 %v2202, 256
    %v3393 = vadd.s32 %v2209, 256
    %v3394 = vadd.s32 %v2216, 256
    %v3395 = vadd.s32 %v2223, 256
    %v3396 = vadd.s32 %v2230, 256
    %v3397 = vadd.s32 %v2237, 256
    %v3398 = vadd.s32 %v2244, 256
    %v3399 = vadd.s32 %v2251, 256
    %v3400 = vadd.s32 %v2258, 256
    %v3401 = vadd.s32 %v2265, 256
    %v3402 = vadd.s32 %v2272, 256
    %v3403 = vadd.s32 %v2279, 256
    %v3404 = vadd.s32 %v2286, 256
    %v3405 = vadd.s32 %v2293, 256
    %v3406 = vadd.s32 %v2300, 256
    %v3407 = vadd.s32 %v2307, 256
    %v3408 = vadd.s32 %v2314, 256
    %v3409 = vadd.s32 %v2321, 256
    %v3410 = vadd.s32 %v2328, 256
    %v3411 = vadd.s32 %v2335, 256
    %v3412 = vadd.s32 %v2342, 256
    %v3413 = vadd.s32 %v2349, 256
    %v3414 = vadd.s32 %v2356, 256
    %v3415 = vadd.s32 %v2363, 256
    %v3416 = vadd.s32 %v2370, 256
    %v3417 = vadd.s32 %v2377, 256
    %v3418 = vadd.s32 %v2384, 256
    %v3419 = vadd.s32 %v2391, 256
    %v3420 = vadd.s32 %v2398, 256
    %v3421 = vadd.s32 %v2405, 256
    %v3422 = vadd.s32 %v2412, 256
    %v3423 = vadd.s32 %v2419, 256
    %v3424 = vadd.s32 %v2426, 256
    %v3425 = vadd.s32 %v2433, 256
    %v3426 = vadd.s32 %v2440, 256
    %v3427 = vadd.s32 %v2447, 256
    %v3428 = vadd.s32 %v2454, 256
    %v3429 = vadd.s32 %v2461, 256
    %v3430 = vadd.s32 %v2468, 256
    %v3431 = vadd.s32 %v2475, 256
    %v3432 = vadd.s32 %v2482, 256
    %v3433 = vadd.s32 %v2489, 256
    %v3434 = vadd.s32 %v2496, 256
    %v3435 = vadd.s32 %v2503, 256
    %v3436 = vadd.s32 %v2510, 256
    %v3437 = vadd.s32 %v2517, 256
    %v3438 = vadd.s32 %v2524, 256
    %v3439 = vadd.s32 %v2531, 256
    %v3440 = vadd.s32 %v2538, 256
    %v3441 = vadd.s32 %v2545, 256
    %v3442 = vadd.s32 %v2552, 256
    %v3443 = vadd.s32 %v2559, 256
    %v3444 = vadd.s32 %v2566, 256
    %v3445 = vadd.s32 %v2573, 256
    %v3446 = vadd.s32 %v2580, 256
    %v3447 = vadd.s32 %v2587, 256
    %v3448 = vadd.s32 %v2594, 256
    %v3449 = vadd.s32 %v2601, 256
    %v3450 = vadd.s32 %v2608, 256
    %v3451 = vadd.s32 %v2615, 256
    %v3452 = vadd.s32 %v2622, 256
    %v3453 = vadd.s32 %v2629, 256
    %v3454 = vadd.s32 %v2636, 256
    %v3455 = vadd.s32 %v2643, 256
    %v3456 = vadd.s32 %v2650, 256
    %v3457 = vadd.s32 %v2657, 256
    %v3458 = vadd.s32 %v2664, 256
    %v3459 = vadd.s32 %v2671, 256
    %v3460 = vadd.s32 %v2678, 256
    %v3461 = vadd.s32 %v2685, 256
    %v3462 = vadd.s32 %v2692, 256
    %v3463 = vadd.s32 %v2699, 256
    %v3464 = vadd.s32 %v2706, 256
    %v3465 = vadd.s32 %v2713, 256
    %v3466 = vadd.s32 %v2720, 256
    %v3467 = vadd.s32 %v2727, 256
    %v3468 = vadd.s32 %v2734, 256
    %v3469 = vadd.s32 %v2741, 256
    %v3470 = vadd.s32 %v2748, 256
    %v3471 = vadd.s32 %v2755, 256
    %v3472 = vadd.s32 %v2762, 256
    %v3473 = vadd.s32 %v2769, 256
    %v3474 = vadd.s32 %v2776, 256
    %v3475 = vadd.s32 %v2783, 256
    %v3476 = vadd.s32 %v2790, 256
    %v3477 = vadd.s32 %v2797, 256
    %v3478 = vadd.s32 %v2804, 256
    %v3479 = vadd.s32 %v2811, 256
    %v3480 = vadd.s32 %v2818, 256
    %v3481 = vadd.s32 %v2825, 256
    %v3482 = vadd.s32 %v2832, 256
    %v3483 = vadd.s32 %v2839, 256
    %v3484 = vadd.s32 %v2846, 256
    %v3485 = vadd.s32 %v2853, 256
    %v3486 = vadd.s32 %v2860, 256
    %v3487 = vadd.s32 %v2867, 256
    %v3488 = vadd.s32 %v2874, 256
    %v3489 = vadd.s32 %v2881, 256
    %v3490 = vadd.s32 %v2888, 256
    %v3491 = vadd.s32 %v2895, 256
    %v3492 = vadd.s32 %v2902, 256
    %v3493 = vadd.s32 %v2909, 256
    %v3494 = vadd.s32 %v2916, 256
    %v3495 = vadd.s32 %v2923, 256
    %v3496 = vadd.s32 %v2930, 256
    %v3497 = vadd.s32 %v2937, 256
    %v3498 = vadd.s32 %v2944, 256
    %v3499 = vadd.s32 %v2951, 256
    %v3500 = vadd.s32 %v2958, 256
    %v3501 = vadd.s32 %v2965, 256
    %v3502 = vadd.s32 %v2972, 256
    %v3503 = vadd.s32 %v2979, 256
    %v3504 = vadd.s32 %v2986, 256
    %v3505 = vadd.s32 %v2993, 256
    %v3506 = vsel %vm3250, %v3378, %v2104
    %v3507 = vsel %vm3251, %v3379, %v2111
    %v3508 = vsel %vm3252, %v3380, %v2118
    %v3509 = vsel %vm3253, %v3381, %v2125
    %v3510 = vsel %vm3254, %v3382, %v2132
    %v3511 = vsel %vm3255, %v3383, %v2139
    %v3512 = vsel %vm3256, %v3384, %v2146
    %v3513 = vsel %vm3257, %v3385, %v2153
    %v3514 = vsel %vm3258, %v3386, %v2160
    %v3515 = vsel %vm3259, %v3387, %v2167
    %v3516 = vsel %vm3260, %v3388, %v2174
    %v3517 = vsel %vm3261, %v3389, %v2181
    %v3518 = vsel %vm3262, %v3390, %v2188
    %v3519 = vsel %vm3263, %v3391, %v2195
    %v3520 = vsel %vm3264, %v3392, %v2202
    %v3521 = vsel %vm3265, %v3393, %v2209
    %v3522 = vsel %vm3266, %v3394, %v2216
    %v3523 = vsel %vm3267, %v3395, %v2223
    %v3524 = vsel %vm3268, %v3396, %v2230
    %v3525 = vsel %vm3269, %v3397, %v2237
    %v3526 = vsel %vm3270, %v3398, %v2244
    %v3527 = vsel %vm3271, %v3399, %v2251
    %v3528 = vsel %vm3272, %v3400, %v2258
    %v3529 = vsel %vm3273, %v3401, %v2265
    %v3530 = vsel %vm3274, %v3402, %v2272
    %v3531 = vsel %vm3275, %v3403, %v2279
    %v3532 = vsel %vm3276, %v3404, %v2286
    %v3533 = vsel %vm3277, %v3405, %v2293
    %v3534 = vsel %vm3278, %v3406, %v2300
    %v3535 = vsel %vm3279, %v3407, %v2307
    %v3536 = vsel %vm3280, %v3408, %v2314
    %v3537 = vsel %vm3281, %v3409, %v2321
    %v3538 = vsel %vm3282, %v3410, %v2328
    %v3539 = vsel %vm3283, %v3411, %v2335
    %v3540 = vsel %vm3284, %v3412, %v2342
    %v3541 = vsel %vm3285, %v3413, %v2349
    %v3542 = vsel %vm3286, %v3414, %v2356
    %v3543 = vsel %vm3287, %v3415, %v2363
    %v3544 = vsel %vm3288, %v3416, %v2370
    %v3545 = vsel %vm3289, %v3417, %v2377
    %v3546 = vsel %vm3290, %v3418, %v2384
    %v3547 = vsel %vm3291, %v3419, %v2391
    %v3548 = vsel %vm3292, %v3420, %v2398
    %v3549 = vsel %vm3293, %v3421, %v2405
    %v3550 = vsel %vm3294, %v3422, %v2412
    %v3551 = vsel %vm3295, %v3423, %v2419
    %v3552 = vsel %vm3296, %v3424, %v2426
    %v3553 = vsel %vm3297, %v3425, %v2433
    %v3554 = vsel %vm3298, %v3426, %v2440
    %v3555 = vsel %vm3299, %v3427, %v2447
    %v3556 = vsel %vm3300, %v3428, %v2454
    %v3557 = vsel %vm3301, %v3429, %v2461
    %v3558 = vsel %vm3302, %v3430, %v2468
    %v3559 = vsel %vm3303, %v3431, %v2475
    %v3560 = vsel %vm3304, %v3432, %v2482
    %v3561 = vsel %vm3305, %v3433, %v2489
    %v3562 = vsel %vm3306, %v3434, %v2496
    %v3563 = vsel %vm3307, %v3435, %v2503
    %v3564 = vsel %vm3308, %v3436, %v2510
    %v3565 = vsel %vm3309, %v3437, %v2517
    %v3566 = vsel %vm3310, %v3438, %v2524
    %v3567 = vsel %vm3311, %v3439, %v2531
    %v3568 = vsel %vm3312, %v3440, %v2538
    %v3569 = vsel %vm3313, %v3441, %v2545
    %v3570 = vsel %vm3314, %v3442, %v2552
    %v3571 = vsel %vm3315, %v3443, %v2559
    %v3572 = vsel %vm3316, %v3444, %v2566
    %v3573 = vsel %vm3317, %v3445, %v2573
    %v3574 = vsel %vm3318, %v3446, %v2580
    %v3575 = vsel %vm3319, %v3447, %v2587
    %v3576 = vsel %vm3320, %v3448, %v2594
    %v3577 = vsel %vm3321, %v3449, %v2601
    %v3578 = vsel %vm3322, %v3450, %v2608
    %v3579 = vsel %vm3323, %v3451, %v2615
    %v3580 = vsel %vm3324, %v3452, %v2622
    %v3581 = vsel %vm3325, %v3453, %v2629
    %v3582 = vsel %vm3326, %v3454, %v2636
    %v3583 = vsel %vm3327, %v3455, %v2643
    %v3584 = vsel %vm3328, %v3456, %v2650
    %v3585 = vsel %vm3329, %v3457, %v2657
    %v3586 = vsel %vm3330, %v3458, %v2664
    %v3587 = vsel %vm3331, %v3459, %v2671
    %v3588 = vsel %vm3332, %v3460, %v2678
    %v3589 = vsel %vm3333, %v3461, %v2685
    %v3590 = vsel %vm3334, %v3462, %v2692
    %v3591 = vsel %vm3335, %v3463, %v2699
    %v3592 = vsel %vm3336, %v3464, %v2706
    %v3593 = vsel %vm3337, %v3465, %v2713
    %v3594 = vsel %vm3338, %v3466, %v2720
    %v3595 = vsel %vm3339, %v3467, %v2727
    %v3596 = vsel %vm3340, %v3468, %v2734
    %v3597 = vsel %vm3341, %v3469, %v2741
    %v3598 = vsel %vm3342, %v3470, %v2748
    %v3599 = vsel %vm3343, %v3471, %v2755
    %v3600 = vsel %vm3344, %v3472, %v2762
    %v3601 = vsel %vm3345, %v3473, %v2769
    %v3602 = vsel %vm3346, %v3474, %v2776
    %v3603 = vsel %vm3347, %v3475, %v2783
    %v3604 = vsel %vm3348, %v3476, %v2790
    %v3605 = vsel %vm3349, %v3477, %v2797
    %v3606 = vsel %vm3350, %v3478, %v2804
    %v3607 = vsel %vm3351, %v3479, %v2811
    %v3608 = vsel %vm3352, %v3480, %v2818
    %v3609 = vsel %vm3353, %v3481, %v2825
    %v3610 = vsel %vm3354, %v3482, %v2832
    %v3611 = vsel %vm3355, %v3483, %v2839
    %v3612 = vsel %vm3356, %v3484, %v2846
    %v3613 = vsel %vm3357, %v3485, %v2853
    %v3614 = vsel %vm3358, %v3486, %v2860
    %v3615 = vsel %vm3359, %v3487, %v2867
    %v3616 = vsel %vm3360, %v3488, %v2874
    %v3617 = vsel %vm3361, %v3489, %v2881
    %v3618 = vsel %vm3362, %v3490, %v2888
    %v3619 = vsel %vm3363, %v3491, %v2895
    %v3620 = vsel %vm3364, %v3492, %v2902
    %v3621 = vsel %vm3365, %v3493, %v2909
    %v3622 = vsel %vm3366, %v3494, %v2916
    %v3623 = vsel %vm3367, %v3495, %v2923
    %v3624 = vsel %vm3368, %v3496, %v2930
    %v3625 = vsel %vm3369, %v3497, %v2937
    %v3626 = vsel %vm3370, %v3498, %v2944
    %v3627 = vsel %vm3371, %v3499, %v2951
    %v3628 = vsel %vm3372, %v3500, %v2958
    %v3629 = vsel %vm3373, %v3501, %v2965
    %v3630 = vsel %vm3374, %v3502, %v2972
    %v3631 = vsel %vm3375, %v3503, %v2979
    %v3632 = vsel %vm3376, %v3504, %v2986
    %v3633 = vsel %vm3377, %v3505, %v2993
    %vm3634 = vcmp.eq.s32.totalorder %v3506, 0
    %vm3635 = vcmp.eq.s32.totalorder %v3507, 0
    %vm3636 = vcmp.eq.s32.totalorder %v3508, 0
    %vm3637 = vcmp.eq.s32.totalorder %v3509, 0
    %vm3638 = vcmp.eq.s32.totalorder %v3510, 0
    %vm3639 = vcmp.eq.s32.totalorder %v3511, 0
    %vm3640 = vcmp.eq.s32.totalorder %v3512, 0
    %vm3641 = vcmp.eq.s32.totalorder %v3513, 0
    %vm3642 = vcmp.eq.s32.totalorder %v3514, 0
    %vm3643 = vcmp.eq.s32.totalorder %v3515, 0
    %vm3644 = vcmp.eq.s32.totalorder %v3516, 0
    %vm3645 = vcmp.eq.s32.totalorder %v3517, 0
    %vm3646 = vcmp.eq.s32.totalorder %v3518, 0
    %vm3647 = vcmp.eq.s32.totalorder %v3519, 0
    %vm3648 = vcmp.eq.s32.totalorder %v3520, 0
    %vm3649 = vcmp.eq.s32.totalorder %v3521, 0
    %vm3650 = vcmp.eq.s32.totalorder %v3522, 0
    %vm3651 = vcmp.eq.s32.totalorder %v3523, 0
    %vm3652 = vcmp.eq.s32.totalorder %v3524, 0
    %vm3653 = vcmp.eq.s32.totalorder %v3525, 0
    %vm3654 = vcmp.eq.s32.totalorder %v3526, 0
    %vm3655 = vcmp.eq.s32.totalorder %v3527, 0
    %vm3656 = vcmp.eq.s32.totalorder %v3528, 0
    %vm3657 = vcmp.eq.s32.totalorder %v3529, 0
    %vm3658 = vcmp.eq.s32.totalorder %v3530, 0
    %vm3659 = vcmp.eq.s32.totalorder %v3531, 0
    %vm3660 = vcmp.eq.s32.totalorder %v3532, 0
    %vm3661 = vcmp.eq.s32.totalorder %v3533, 0
    %vm3662 = vcmp.eq.s32.totalorder %v3534, 0
    %vm3663 = vcmp.eq.s32.totalorder %v3535, 0
    %vm3664 = vcmp.eq.s32.totalorder %v3536, 0
    %vm3665 = vcmp.eq.s32.totalorder %v3537, 0
    %vm3666 = vcmp.eq.s32.totalorder %v3538, 0
    %vm3667 = vcmp.eq.s32.totalorder %v3539, 0
    %vm3668 = vcmp.eq.s32.totalorder %v3540, 0
    %vm3669 = vcmp.eq.s32.totalorder %v3541, 0
    %vm3670 = vcmp.eq.s32.totalorder %v3542, 0
    %vm3671 = vcmp.eq.s32.totalorder %v3543, 0
    %vm3672 = vcmp.eq.s32.totalorder %v3544, 0
    %vm3673 = vcmp.eq.s32.totalorder %v3545, 0
    %vm3674 = vcmp.eq.s32.totalorder %v3546, 0
    %vm3675 = vcmp.eq.s32.totalorder %v3547, 0
    %vm3676 = vcmp.eq.s32.totalorder %v3548, 0
    %vm3677 = vcmp.eq.s32.totalorder %v3549, 0
    %vm3678 = vcmp.eq.s32.totalorder %v3550, 0
    %vm3679 = vcmp.eq.s32.totalorder %v3551, 0
    %vm3680 = vcmp.eq.s32.totalorder %v3552, 0
    %vm3681 = vcmp.eq.s32.totalorder %v3553, 0
    %vm3682 = vcmp.eq.s32.totalorder %v3554, 0
    %vm3683 = vcmp.eq.s32.totalorder %v3555, 0
    %vm3684 = vcmp.eq.s32.totalorder %v3556, 0
    %vm3685 = vcmp.eq.s32.totalorder %v3557, 0
    %vm3686 = vcmp.eq.s32.totalorder %v3558, 0
    %vm3687 = vcmp.eq.s32.totalorder %v3559, 0
    %vm3688 = vcmp.eq.s32.totalorder %v3560, 0
    %vm3689 = vcmp.eq.s32.totalorder %v3561, 0
    %vm3690 = vcmp.eq.s32.totalorder %v3562, 0
    %vm3691 = vcmp.eq.s32.totalorder %v3563, 0
    %vm3692 = vcmp.eq.s32.totalorder %v3564, 0
    %vm3693 = vcmp.eq.s32.totalorder %v3565, 0
    %vm3694 = vcmp.eq.s32.totalorder %v3566, 0
    %vm3695 = vcmp.eq.s32.totalorder %v3567, 0
    %vm3696 = vcmp.eq.s32.totalorder %v3568, 0
    %vm3697 = vcmp.eq.s32.totalorder %v3569, 0
    %vm3698 = vcmp.eq.s32.totalorder %v3570, 0
    %vm3699 = vcmp.eq.s32.totalorder %v3571, 0
    %vm3700 = vcmp.eq.s32.totalorder %v3572, 0
    %vm3701 = vcmp.eq.s32.totalorder %v3573, 0
    %vm3702 = vcmp.eq.s32.totalorder %v3574, 0
    %vm3703 = vcmp.eq.s32.totalorder %v3575, 0
    %vm3704 = vcmp.eq.s32.totalorder %v3576, 0
    %vm3705 = vcmp.eq.s32.totalorder %v3577, 0
    %vm3706 = vcmp.eq.s32.totalorder %v3578, 0
    %vm3707 = vcmp.eq.s32.totalorder %v3579, 0
    %vm3708 = vcmp.eq.s32.totalorder %v3580, 0
    %vm3709 = vcmp.eq.s32.totalorder %v3581, 0
    %vm3710 = vcmp.eq.s32.totalorder %v3582, 0
    %vm3711 = vcmp.eq.s32.totalorder %v3583, 0
    %vm3712 = vcmp.eq.s32.totalorder %v3584, 0
    %vm3713 = vcmp.eq.s32.totalorder %v3585, 0
    %vm3714 = vcmp.eq.s32.totalorder %v3586, 0
    %vm3715 = vcmp.eq.s32.totalorder %v3587, 0
    %vm3716 = vcmp.eq.s32.totalorder %v3588, 0
    %vm3717 = vcmp.eq.s32.totalorder %v3589, 0
    %vm3718 = vcmp.eq.s32.totalorder %v3590, 0
    %vm3719 = vcmp.eq.s32.totalorder %v3591, 0
    %vm3720 = vcmp.eq.s32.totalorder %v3592, 0
    %vm3721 = vcmp.eq.s32.totalorder %v3593, 0
    %vm3722 = vcmp.eq.s32.totalorder %v3594, 0
    %vm3723 = vcmp.eq.s32.totalorder %v3595, 0
    %vm3724 = vcmp.eq.s32.totalorder %v3596, 0
    %vm3725 = vcmp.eq.s32.totalorder %v3597, 0
    %vm3726 = vcmp.eq.s32.totalorder %v3598, 0
    %vm3727 = vcmp.eq.s32.totalorder %v3599, 0
    %vm3728 = vcmp.eq.s32.totalorder %v3600, 0
    %vm3729 = vcmp.eq.s32.totalorder %v3601, 0
    %vm3730 = vcmp.eq.s32.totalorder %v3602, 0
    %vm3731 = vcmp.eq.s32.totalorder %v3603, 0
    %vm3732 = vcmp.eq.s32.totalorder %v3604, 0
    %vm3733 = vcmp.eq.s32.totalorder %v3605, 0
    %vm3734 = vcmp.eq.s32.totalorder %v3606, 0
    %vm3735 = vcmp.eq.s32.totalorder %v3607, 0
    %vm3736 = vcmp.eq.s32.totalorder %v3608, 0
    %vm3737 = vcmp.eq.s32.totalorder %v3609, 0
    %vm3738 = vcmp.eq.s32.totalorder %v3610, 0
    %vm3739 = vcmp.eq.s32.totalorder %v3611, 0
    %vm3740 = vcmp.eq.s32.totalorder %v3612, 0
    %vm3741 = vcmp.eq.s32.totalorder %v3613, 0
    %vm3742 = vcmp.eq.s32.totalorder %v3614, 0
    %vm3743 = vcmp.eq.s32.totalorder %v3615, 0
    %vm3744 = vcmp.eq.s32.totalorder %v3616, 0
    %vm3745 = vcmp.eq.s32.totalorder %v3617, 0
    %vm3746 = vcmp.eq.s32.totalorder %v3618, 0
    %vm3747 = vcmp.eq.s32.totalorder %v3619, 0
    %vm3748 = vcmp.eq.s32.totalorder %v3620, 0
    %vm3749 = vcmp.eq.s32.totalorder %v3621, 0
    %vm3750 = vcmp.eq.s32.totalorder %v3622, 0
    %vm3751 = vcmp.eq.s32.totalorder %v3623, 0
    %vm3752 = vcmp.eq.s32.totalorder %v3624, 0
    %vm3753 = vcmp.eq.s32.totalorder %v3625, 0
    %vm3754 = vcmp.eq.s32.totalorder %v3626, 0
    %vm3755 = vcmp.eq.s32.totalorder %v3627, 0
    %vm3756 = vcmp.eq.s32.totalorder %v3628, 0
    %vm3757 = vcmp.eq.s32.totalorder %v3629, 0
    %vm3758 = vcmp.eq.s32.totalorder %v3630, 0
    %vm3759 = vcmp.eq.s32.totalorder %v3631, 0
    %vm3760 = vcmp.eq.s32.totalorder %v3632, 0
    %vm3761 = vcmp.eq.s32.totalorder %v3633, 0
    %v3762 = vrot.slane %v1841, 7
    %v3763 = vrot.slane %v1842, 7
    %v3764 = vrot.slane %v1843, 7
    %v3765 = vrot.slane %v1844, 7
    %v3766 = vrot.slane %v1845, 7
    %v3767 = vrot.slane %v1846, 7
    %v3768 = vrot.slane %v1847, 7
    %v3769 = vrot.slane %v1848, 7
    %v3770 = vrot.slane %v1849, 7
    %v3771 = vrot.slane %v1850, 7
    %v3772 = vrot.slane %v1851, 7
    %v3773 = vrot.slane %v1852, 7
    %v3774 = vrot.slane %v1853, 7
    %v3775 = vrot.slane %v1854, 7
    %v3776 = vrot.slane %v1855, 7
    %v3777 = vrot.slane %v1856, 7
    %v3778 = vrot.slane %v1857, 7
    %v3779 = vrot.slane %v1858, 7
    %v3780 = vrot.slane %v1859, 7
    %v3781 = vrot.slane %v1860, 7
    %v3782 = vrot.slane %v1861, 7
    %v3783 = vrot.slane %v1862, 7
    %v3784 = vrot.slane %v1863, 7
    %v3785 = vrot.slane %v1864, 7
    %v3786 = vrot.slane %v1865, 7
    %v3787 = vrot.slane %v1866, 7
    %v3788 = vrot.slane %v1867, 7
    %v3789 = vrot.slane %v1868, 7
    %v3790 = vrot.slane %v1869, 7
    %v3791 = vrot.slane %v1870, 7
    %v3792 = vrot.slane %v1871, 7
    %v3793 = vrot.slane %v1872, 7
    %v3794 = vrot.slane %v1873, 7
    %v3795 = vrot.slane %v1874, 7
    %v3796 = vrot.slane %v1875, 7
    %v3797 = vrot.slane %v1876, 7
    %v3798 = vrot.slane %v1877, 7
    %v3799 = vrot.slane %v1878, 7
    %v3800 = vrot.slane %v1879, 7
    %v3801 = vrot.slane %v1880, 7
    %v3802 = vrot.slane %v1881, 7
    %v3803 = vrot.slane %v1882, 7
    %v3804 = vrot.slane %v1883, 7
    %v3805 = vrot.slane %v1884, 7
    %v3806 = vrot.slane %v1885, 7
    %v3807 = vrot.slane %v1886, 7
    %v3808 = vrot.slane %v1887, 7
    %v3809 = vrot.slane %v1888, 7
    %v3810 = vrot.slane %v1889, 7
    %v3811 = vrot.slane %v1890, 7
    %v3812 = vrot.slane %v1891, 7
    %v3813 = vrot.slane %v1892, 7
    %v3814 = vrot.slane %v1893, 7
    %v3815 = vrot.slane %v1894, 7
    %v3816 = vrot.slane %v1895, 7
    %v3817 = vrot.slane %v1896, 7
    %v3818 = vrot.slane %v1897, 7
    %v3819 = vrot.slane %v1898, 7
    %v3820 = vrot.slane %v1899, 7
    %v3821 = vrot.slane %v1900, 7
    %v3822 = vrot.slane %v1901, 7
    %v3823 = vrot.slane %v1902, 7
    %v3824 = vrot.slane %v1903, 7
    %v3825 = vrot.slane %v1904, 7
    %v3826 = vrot.slane %v1905, 7
    %v3827 = vrot.slane %v1906, 7
    %v3828 = vrot.slane %v1907, 7
    %v3829 = vrot.slane %v1908, 7
    %v3830 = vrot.slane %v1909, 7
    %v3831 = vrot.slane %v1910, 7
    %v3832 = vrot.slane %v1911, 7
    %v3833 = vrot.slane %v1912, 7
    %v3834 = vrot.slane %v1913, 7
    %v3835 = vrot.slane %v1914, 7
    %v3836 = vrot.slane %v1915, 7
    %v3837 = vrot.slane %v1916, 7
    %v3838 = vrot.slane %v1917, 7
    %v3839 = vrot.slane %v1918, 7
    %v3840 = vrot.slane %v1919, 7
    %v3841 = vrot.slane %v1920, 7
    %v3842 = vrot.slane %v1921, 7
    %v3843 = vrot.slane %v1922, 7
    %v3844 = vrot.slane %v1923, 7
    %v3845 = vrot.slane %v1924, 7
    %v3846 = vrot.slane %v1925, 7
    %v3847 = vrot.slane %v1926, 7
    %v3848 = vrot.slane %v1927, 7
    %v3849 = vrot.slane %v1928, 7
    %v3850 = vrot.slane %v1929, 7
    %v3851 = vrot.slane %v1930, 7
    %v3852 = vrot.slane %v1931, 7
    %v3853 = vrot.slane %v1932, 7
    %v3854 = vrot.slane %v1933, 7
    %v3855 = vrot.slane %v1934, 7
    %v3856 = vrot.slane %v1935, 7
    %v3857 = vrot.slane %v1936, 7
    %v3858 = vrot.slane %v1937, 7
    %v3859 = vrot.slane %v1938, 7
    %v3860 = vrot.slane %v1939, 7
    %v3861 = vrot.slane %v1940, 7
    %v3862 = vrot.slane %v1941, 7
    %v3863 = vrot.slane %v1942, 7
    %v3864 = vrot.slane %v1943, 7
    %v3865 = vrot.slane %v1944, 7
    %v3866 = vrot.slane %v1945, 7
    %v3867 = vrot.slane %v1946, 7
    %v3868 = vrot.slane %v1947, 7
    %v3869 = vrot.slane %v1948, 7
    %v3870 = vrot.slane %v1949, 7
    %v3871 = vrot.slane %v1950, 7
    %v3872 = vrot.slane %v1951, 7
    %v3873 = vrot.slane %v1952, 7
    %v3874 = vrot.slane %v1953, 7
    %v3875 = vrot.slane %v1954, 7
    %v3876 = vrot.slane %v1955, 7
    %v3877 = vrot.slane %v1956, 7
    %v3878 = vrot.slane %v1957, 7
    %v3879 = vrot.slane %v1958, 7
    %v3880 = vrot.slane %v1959, 7
    %v3881 = vrot.slane %v1960, 7
    %v3882 = vrot.slane %v1961, 7
    %v3883 = vrot.slane %v1962, 7
    %v3884 = vrot.slane %v1963, 7
    %v3885 = vrot.slane %v1964, 7
    %v3886 = vrot.slane %v1965, 7
    %v3887 = vrot.slane %v1966, 7
    %v3888 = vrot.slane %v1967, 7
    %v3889 = vrot.slane %v1968, 7
    %vm3890 = vcmp.lt.s32.totalorder %v1970, 1
    %v3891 = vsel %vm3890, %v3888, %v3889
    %v3892 = vsel %vm3890, %v3887, %v3888
    %v3893 = vsel %vm3890, %v3886, %v3887
    %v3894 = vsel %vm3890, %v3885, %v3886
    %v3895 = vsel %vm3890, %v3884, %v3885
    %v3896 = vsel %vm3890, %v3883, %v3884
    %v3897 = vsel %vm3890, %v3882, %v3883
    %v3898 = vsel %vm3890, %v3881, %v3882
    %v3899 = vsel %vm3890, %v3880, %v3881
    %v3900 = vsel %vm3890, %v3879, %v3880
    %v3901 = vsel %vm3890, %v3878, %v3879
    %v3902 = vsel %vm3890, %v3877, %v3878
    %v3903 = vsel %vm3890, %v3876, %v3877
    %v3904 = vsel %vm3890, %v3875, %v3876
    %v3905 = vsel %vm3890, %v3874, %v3875
    %v3906 = vsel %vm3890, %v3873, %v3874
    %v3907 = vsel %vm3890, %v3872, %v3873
    %v3908 = vsel %vm3890, %v3871, %v3872
    %v3909 = vsel %vm3890, %v3870, %v3871
    %v3910 = vsel %vm3890, %v3869, %v3870
    %v3911 = vsel %vm3890, %v3868, %v3869
    %v3912 = vsel %vm3890, %v3867, %v3868
    %v3913 = vsel %vm3890, %v3866, %v3867
    %v3914 = vsel %vm3890, %v3865, %v3866
    %v3915 = vsel %vm3890, %v3864, %v3865
    %v3916 = vsel %vm3890, %v3863, %v3864
    %v3917 = vsel %vm3890, %v3862, %v3863
    %v3918 = vsel %vm3890, %v3861, %v3862
    %v3919 = vsel %vm3890, %v3860, %v3861
    %v3920 = vsel %vm3890, %v3859, %v3860
    %v3921 = vsel %vm3890, %v3858, %v3859
    %v3922 = vsel %vm3890, %v3857, %v3858
    %v3923 = vsel %vm3890, %v3856, %v3857
    %v3924 = vsel %vm3890, %v3855, %v3856
    %v3925 = vsel %vm3890, %v3854, %v3855
    %v3926 = vsel %vm3890, %v3853, %v3854
    %v3927 = vsel %vm3890, %v3852, %v3853
    %v3928 = vsel %vm3890, %v3851, %v3852
    %v3929 = vsel %vm3890, %v3850, %v3851
    %v3930 = vsel %vm3890, %v3849, %v3850
    %v3931 = vsel %vm3890, %v3848, %v3849
    %v3932 = vsel %vm3890, %v3847, %v3848
    %v3933 = vsel %vm3890, %v3846, %v3847
    %v3934 = vsel %vm3890, %v3845, %v3846
    %v3935 = vsel %vm3890, %v3844, %v3845
    %v3936 = vsel %vm3890, %v3843, %v3844
    %v3937 = vsel %vm3890, %v3842, %v3843
    %v3938 = vsel %vm3890, %v3841, %v3842
    %v3939 = vsel %vm3890, %v3840, %v3841
    %v3940 = vsel %vm3890, %v3839, %v3840
    %v3941 = vsel %vm3890, %v3838, %v3839
    %v3942 = vsel %vm3890, %v3837, %v3838
    %v3943 = vsel %vm3890, %v3836, %v3837
    %v3944 = vsel %vm3890, %v3835, %v3836
    %v3945 = vsel %vm3890, %v3834, %v3835
    %v3946 = vsel %vm3890, %v3833, %v3834
    %v3947 = vsel %vm3890, %v3832, %v3833
    %v3948 = vsel %vm3890, %v3831, %v3832
    %v3949 = vsel %vm3890, %v3830, %v3831
    %v3950 = vsel %vm3890, %v3829, %v3830
    %v3951 = vsel %vm3890, %v3828, %v3829
    %v3952 = vsel %vm3890, %v3827, %v3828
    %v3953 = vsel %vm3890, %v3826, %v3827
    %v3954 = vsel %vm3890, %v3825, %v3826
    %v3955 = vsel %vm3890, %v3824, %v3825
    %v3956 = vsel %vm3890, %v3823, %v3824
    %v3957 = vsel %vm3890, %v3822, %v3823
    %v3958 = vsel %vm3890, %v3821, %v3822
    %v3959 = vsel %vm3890, %v3820, %v3821
    %v3960 = vsel %vm3890, %v3819, %v3820
    %v3961 = vsel %vm3890, %v3818, %v3819
    %v3962 = vsel %vm3890, %v3817, %v3818
    %v3963 = vsel %vm3890, %v3816, %v3817
    %v3964 = vsel %vm3890, %v3815, %v3816
    %v3965 = vsel %vm3890, %v3814, %v3815
    %v3966 = vsel %vm3890, %v3813, %v3814
    %v3967 = vsel %vm3890, %v3812, %v3813
    %v3968 = vsel %vm3890, %v3811, %v3812
    %v3969 = vsel %vm3890, %v3810, %v3811
    %v3970 = vsel %vm3890, %v3809, %v3810
    %v3971 = vsel %vm3890, %v3808, %v3809
    %v3972 = vsel %vm3890, %v3807, %v3808
    %v3973 = vsel %vm3890, %v3806, %v3807
    %v3974 = vsel %vm3890, %v3805, %v3806
    %v3975 = vsel %vm3890, %v3804, %v3805
    %v3976 = vsel %vm3890, %v3803, %v3804
    %v3977 = vsel %vm3890, %v3802, %v3803
    %v3978 = vsel %vm3890, %v3801, %v3802
    %v3979 = vsel %vm3890, %v3800, %v3801
    %v3980 = vsel %vm3890, %v3799, %v3800
    %v3981 = vsel %vm3890, %v3798, %v3799
    %v3982 = vsel %vm3890, %v3797, %v3798
    %v3983 = vsel %vm3890, %v3796, %v3797
    %v3984 = vsel %vm3890, %v3795, %v3796
    %v3985 = vsel %vm3890, %v3794, %v3795
    %v3986 = vsel %vm3890, %v3793, %v3794
    %v3987 = vsel %vm3890, %v3792, %v3793
    %v3988 = vsel %vm3890, %v3791, %v3792
    %v3989 = vsel %vm3890, %v3790, %v3791
    %v3990 = vsel %vm3890, %v3789, %v3790
    %v3991 = vsel %vm3890, %v3788, %v3789
    %v3992 = vsel %vm3890, %v3787, %v3788
    %v3993 = vsel %vm3890, %v3786, %v3787
    %v3994 = vsel %vm3890, %v3785, %v3786
    %v3995 = vsel %vm3890, %v3784, %v3785
    %v3996 = vsel %vm3890, %v3783, %v3784
    %v3997 = vsel %vm3890, %v3782, %v3783
    %v3998 = vsel %vm3890, %v3781, %v3782
    %v3999 = vsel %vm3890, %v3780, %v3781
    %v4000 = vsel %vm3890, %v3779, %v3780
    %v4001 = vsel %vm3890, %v3778, %v3779
    %v4002 = vsel %vm3890, %v3777, %v3778
    %v4003 = vsel %vm3890, %v3776, %v3777
    %v4004 = vsel %vm3890, %v3775, %v3776
    %v4005 = vsel %vm3890, %v3774, %v3775
    %v4006 = vsel %vm3890, %v3773, %v3774
    %v4007 = vsel %vm3890, %v3772, %v3773
    %v4008 = vsel %vm3890, %v3771, %v3772
    %v4009 = vsel %vm3890, %v3770, %v3771
    %v4010 = vsel %vm3890, %v3769, %v3770
    %v4011 = vsel %vm3890, %v3768, %v3769
    %v4012 = vsel %vm3890, %v3767, %v3768
    %v4013 = vsel %vm3890, %v3766, %v3767
    %v4014 = vsel %vm3890, %v3765, %v3766
    %v4015 = vsel %vm3890, %v3764, %v3765
    %v4016 = vsel %vm3890, %v3763, %v3764
    %v4017 = vsel %vm3890, %v3762, %v3763
    %v4018 = vsel %vm3890, %v3889, %v3762
    %v4019 = vsel %vm3634, 0.0, %v4018
    %v4020 = vsel %vm3635, 0.0, %v4017
    %v4021 = vsel %vm3636, 0.0, %v4016
    %v4022 = vsel %vm3637, 0.0, %v4015
    %v4023 = vsel %vm3638, 0.0, %v4014
    %v4024 = vsel %vm3639, 0.0, %v4013
    %v4025 = vsel %vm3640, 0.0, %v4012
    %v4026 = vsel %vm3641, 0.0, %v4011
    %v4027 = vsel %vm3642, 0.0, %v4010
    %v4028 = vsel %vm3643, 0.0, %v4009
    %v4029 = vsel %vm3644, 0.0, %v4008
    %v4030 = vsel %vm3645, 0.0, %v4007
    %v4031 = vsel %vm3646, 0.0, %v4006
    %v4032 = vsel %vm3647, 0.0, %v4005
    %v4033 = vsel %vm3648, 0.0, %v4004
    %v4034 = vsel %vm3649, 0.0, %v4003
    %v4035 = vsel %vm3650, 0.0, %v4002
    %v4036 = vsel %vm3651, 0.0, %v4001
    %v4037 = vsel %vm3652, 0.0, %v4000
    %v4038 = vsel %vm3653, 0.0, %v3999
    %v4039 = vsel %vm3654, 0.0, %v3998
    %v4040 = vsel %vm3655, 0.0, %v3997
    %v4041 = vsel %vm3656, 0.0, %v3996
    %v4042 = vsel %vm3657, 0.0, %v3995
    %v4043 = vsel %vm3658, 0.0, %v3994
    %v4044 = vsel %vm3659, 0.0, %v3993
    %v4045 = vsel %vm3660, 0.0, %v3992
    %v4046 = vsel %vm3661, 0.0, %v3991
    %v4047 = vsel %vm3662, 0.0, %v3990
    %v4048 = vsel %vm3663, 0.0, %v3989
    %v4049 = vsel %vm3664, 0.0, %v3988
    %v4050 = vsel %vm3665, 0.0, %v3987
    %v4051 = vsel %vm3666, 0.0, %v3986
    %v4052 = vsel %vm3667, 0.0, %v3985
    %v4053 = vsel %vm3668, 0.0, %v3984
    %v4054 = vsel %vm3669, 0.0, %v3983
    %v4055 = vsel %vm3670, 0.0, %v3982
    %v4056 = vsel %vm3671, 0.0, %v3981
    %v4057 = vsel %vm3672, 0.0, %v3980
    %v4058 = vsel %vm3673, 0.0, %v3979
    %v4059 = vsel %vm3674, 0.0, %v3978
    %v4060 = vsel %vm3675, 0.0, %v3977
    %v4061 = vsel %vm3676, 0.0, %v3976
    %v4062 = vsel %vm3677, 0.0, %v3975
    %v4063 = vsel %vm3678, 0.0, %v3974
    %v4064 = vsel %vm3679, 0.0, %v3973
    %v4065 = vsel %vm3680, 0.0, %v3972
    %v4066 = vsel %vm3681, 0.0, %v3971
    %v4067 = vsel %vm3682, 0.0, %v3970
    %v4068 = vsel %vm3683, 0.0, %v3969
    %v4069 = vsel %vm3684, 0.0, %v3968
    %v4070 = vsel %vm3685, 0.0, %v3967
    %v4071 = vsel %vm3686, 0.0, %v3966
    %v4072 = vsel %vm3687, 0.0, %v3965
    %v4073 = vsel %vm3688, 0.0, %v3964
    %v4074 = vsel %vm3689, 0.0, %v3963
    %v4075 = vsel %vm3690, 0.0, %v3962
    %v4076 = vsel %vm3691, 0.0, %v3961
    %v4077 = vsel %vm3692, 0.0, %v3960
    %v4078 = vsel %vm3693, 0.0, %v3959
    %v4079 = vsel %vm3694, 0.0, %v3958
    %v4080 = vsel %vm3695, 0.0, %v3957
    %v4081 = vsel %vm3696, 0.0, %v3956
    %v4082 = vsel %vm3697, 0.0, %v3955
    %v4083 = vsel %vm3698, 0.0, %v3954
    %v4084 = vsel %vm3699, 0.0, %v3953
    %v4085 = vsel %vm3700, 0.0, %v3952
    %v4086 = vsel %vm3701, 0.0, %v3951
    %v4087 = vsel %vm3702, 0.0, %v3950
    %v4088 = vsel %vm3703, 0.0, %v3949
    %v4089 = vsel %vm3704, 0.0, %v3948
    %v4090 = vsel %vm3705, 0.0, %v3947
    %v4091 = vsel %vm3706, 0.0, %v3946
    %v4092 = vsel %vm3707, 0.0, %v3945
    %v4093 = vsel %vm3708, 0.0, %v3944
    %v4094 = vsel %vm3709, 0.0, %v3943
    %v4095 = vsel %vm3710, 0.0, %v3942
    %v4096 = vsel %vm3711, 0.0, %v3941
    %v4097 = vsel %vm3712, 0.0, %v3940
    %v4098 = vsel %vm3713, 0.0, %v3939
    %v4099 = vsel %vm3714, 0.0, %v3938
    %v4100 = vsel %vm3715, 0.0, %v3937
    %v4101 = vsel %vm3716, 0.0, %v3936
    %v4102 = vsel %vm3717, 0.0, %v3935
    %v4103 = vsel %vm3718, 0.0, %v3934
    %v4104 = vsel %vm3719, 0.0, %v3933
    %v4105 = vsel %vm3720, 0.0, %v3932
    %v4106 = vsel %vm3721, 0.0, %v3931
    %v4107 = vsel %vm3722, 0.0, %v3930
    %v4108 = vsel %vm3723, 0.0, %v3929
    %v4109 = vsel %vm3724, 0.0, %v3928
    %v4110 = vsel %vm3725, 0.0, %v3927
    %v4111 = vsel %vm3726, 0.0, %v3926
    %v4112 = vsel %vm3727, 0.0, %v3925
    %v4113 = vsel %vm3728, 0.0, %v3924
    %v4114 = vsel %vm3729, 0.0, %v3923
    %v4115 = vsel %vm3730, 0.0, %v3922
    %v4116 = vsel %vm3731, 0.0, %v3921
    %v4117 = vsel %vm3732, 0.0, %v3920
    %v4118 = vsel %vm3733, 0.0, %v3919
    %v4119 = vsel %vm3734, 0.0, %v3918
    %v4120 = vsel %vm3735, 0.0, %v3917
    %v4121 = vsel %vm3736, 0.0, %v3916
    %v4122 = vsel %vm3737, 0.0, %v3915
    %v4123 = vsel %vm3738, 0.0, %v3914
    %v4124 = vsel %vm3739, 0.0, %v3913
    %v4125 = vsel %vm3740, 0.0, %v3912
    %v4126 = vsel %vm3741, 0.0, %v3911
    %v4127 = vsel %vm3742, 0.0, %v3910
    %v4128 = vsel %vm3743, 0.0, %v3909
    %v4129 = vsel %vm3744, 0.0, %v3908
    %v4130 = vsel %vm3745, 0.0, %v3907
    %v4131 = vsel %vm3746, 0.0, %v3906
    %v4132 = vsel %vm3747, 0.0, %v3905
    %v4133 = vsel %vm3748, 0.0, %v3904
    %v4134 = vsel %vm3749, 0.0, %v3903
    %v4135 = vsel %vm3750, 0.0, %v3902
    %v4136 = vsel %vm3751, 0.0, %v3901
    %v4137 = vsel %vm3752, 0.0, %v3900
    %v4138 = vsel %vm3753, 0.0, %v3899
    %v4139 = vsel %vm3754, 0.0, %v3898
    %v4140 = vsel %vm3755, 0.0, %v3897
    %v4141 = vsel %vm3756, 0.0, %v3896
    %v4142 = vsel %vm3757, 0.0, %v3895
    %v4143 = vsel %vm3758, 0.0, %v3894
    %v4144 = vsel %vm3759, 0.0, %v3893
    %v4145 = vsel %vm3760, 0.0, %v3892
    %v4146 = vsel %vm3761, 0.0, %v3891
    %vm4147 = vcmp.eq.s32.totalorder %v3506, 255
    %vm4148 = vcmp.eq.s32.totalorder %v3507, 255
    %vm4149 = vcmp.eq.s32.totalorder %v3508, 255
    %vm4150 = vcmp.eq.s32.totalorder %v3509, 255
    %vm4151 = vcmp.eq.s32.totalorder %v3510, 255
    %vm4152 = vcmp.eq.s32.totalorder %v3511, 255
    %vm4153 = vcmp.eq.s32.totalorder %v3512, 255
    %vm4154 = vcmp.eq.s32.totalorder %v3513, 255
    %vm4155 = vcmp.eq.s32.totalorder %v3514, 255
    %vm4156 = vcmp.eq.s32.totalorder %v3515, 255
    %vm4157 = vcmp.eq.s32.totalorder %v3516, 255
    %vm4158 = vcmp.eq.s32.totalorder %v3517, 255
    %vm4159 = vcmp.eq.s32.totalorder %v3518, 255
    %vm4160 = vcmp.eq.s32.totalorder %v3519, 255
    %vm4161 = vcmp.eq.s32.totalorder %v3520, 255
    %vm4162 = vcmp.eq.s32.totalorder %v3521, 255
    %vm4163 = vcmp.eq.s32.totalorder %v3522, 255
    %vm4164 = vcmp.eq.s32.totalorder %v3523, 255
    %vm4165 = vcmp.eq.s32.totalorder %v3524, 255
    %vm4166 = vcmp.eq.s32.totalorder %v3525, 255
    %vm4167 = vcmp.eq.s32.totalorder %v3526, 255
    %vm4168 = vcmp.eq.s32.totalorder %v3527, 255
    %vm4169 = vcmp.eq.s32.totalorder %v3528, 255
    %vm4170 = vcmp.eq.s32.totalorder %v3529, 255
    %vm4171 = vcmp.eq.s32.totalorder %v3530, 255
    %vm4172 = vcmp.eq.s32.totalorder %v3531, 255
    %vm4173 = vcmp.eq.s32.totalorder %v3532, 255
    %vm4174 = vcmp.eq.s32.totalorder %v3533, 255
    %vm4175 = vcmp.eq.s32.totalorder %v3534, 255
    %vm4176 = vcmp.eq.s32.totalorder %v3535, 255
    %vm4177 = vcmp.eq.s32.totalorder %v3536, 255
    %vm4178 = vcmp.eq.s32.totalorder %v3537, 255
    %vm4179 = vcmp.eq.s32.totalorder %v3538, 255
    %vm4180 = vcmp.eq.s32.totalorder %v3539, 255
    %vm4181 = vcmp.eq.s32.totalorder %v3540, 255
    %vm4182 = vcmp.eq.s32.totalorder %v3541, 255
    %vm4183 = vcmp.eq.s32.totalorder %v3542, 255
    %vm4184 = vcmp.eq.s32.totalorder %v3543, 255
    %vm4185 = vcmp.eq.s32.totalorder %v3544, 255
    %vm4186 = vcmp.eq.s32.totalorder %v3545, 255
    %vm4187 = vcmp.eq.s32.totalorder %v3546, 255
    %vm4188 = vcmp.eq.s32.totalorder %v3547, 255
    %vm4189 = vcmp.eq.s32.totalorder %v3548, 255
    %vm4190 = vcmp.eq.s32.totalorder %v3549, 255
    %vm4191 = vcmp.eq.s32.totalorder %v3550, 255
    %vm4192 = vcmp.eq.s32.totalorder %v3551, 255
    %vm4193 = vcmp.eq.s32.totalorder %v3552, 255
    %vm4194 = vcmp.eq.s32.totalorder %v3553, 255
    %vm4195 = vcmp.eq.s32.totalorder %v3554, 255
    %vm4196 = vcmp.eq.s32.totalorder %v3555, 255
    %vm4197 = vcmp.eq.s32.totalorder %v3556, 255
    %vm4198 = vcmp.eq.s32.totalorder %v3557, 255
    %vm4199 = vcmp.eq.s32.totalorder %v3558, 255
    %vm4200 = vcmp.eq.s32.totalorder %v3559, 255
    %vm4201 = vcmp.eq.s32.totalorder %v3560, 255
    %vm4202 = vcmp.eq.s32.totalorder %v3561, 255
    %vm4203 = vcmp.eq.s32.totalorder %v3562, 255
    %vm4204 = vcmp.eq.s32.totalorder %v3563, 255
    %vm4205 = vcmp.eq.s32.totalorder %v3564, 255
    %vm4206 = vcmp.eq.s32.totalorder %v3565, 255
    %vm4207 = vcmp.eq.s32.totalorder %v3566, 255
    %vm4208 = vcmp.eq.s32.totalorder %v3567, 255
    %vm4209 = vcmp.eq.s32.totalorder %v3568, 255
    %vm4210 = vcmp.eq.s32.totalorder %v3569, 255
    %vm4211 = vcmp.eq.s32.totalorder %v3570, 255
    %vm4212 = vcmp.eq.s32.totalorder %v3571, 255
    %vm4213 = vcmp.eq.s32.totalorder %v3572, 255
    %vm4214 = vcmp.eq.s32.totalorder %v3573, 255
    %vm4215 = vcmp.eq.s32.totalorder %v3574, 255
    %vm4216 = vcmp.eq.s32.totalorder %v3575, 255
    %vm4217 = vcmp.eq.s32.totalorder %v3576, 255
    %vm4218 = vcmp.eq.s32.totalorder %v3577, 255
    %vm4219 = vcmp.eq.s32.totalorder %v3578, 255
    %vm4220 = vcmp.eq.s32.totalorder %v3579, 255
    %vm4221 = vcmp.eq.s32.totalorder %v3580, 255
    %vm4222 = vcmp.eq.s32.totalorder %v3581, 255
    %vm4223 = vcmp.eq.s32.totalorder %v3582, 255
    %vm4224 = vcmp.eq.s32.totalorder %v3583, 255
    %vm4225 = vcmp.eq.s32.totalorder %v3584, 255
    %vm4226 = vcmp.eq.s32.totalorder %v3585, 255
    %vm4227 = vcmp.eq.s32.totalorder %v3586, 255
    %vm4228 = vcmp.eq.s32.totalorder %v3587, 255
    %vm4229 = vcmp.eq.s32.totalorder %v3588, 255
    %vm4230 = vcmp.eq.s32.totalorder %v3589, 255
    %vm4231 = vcmp.eq.s32.totalorder %v3590, 255
    %vm4232 = vcmp.eq.s32.totalorder %v3591, 255
    %vm4233 = vcmp.eq.s32.totalorder %v3592, 255
    %vm4234 = vcmp.eq.s32.totalorder %v3593, 255
    %vm4235 = vcmp.eq.s32.totalorder %v3594, 255
    %vm4236 = vcmp.eq.s32.totalorder %v3595, 255
    %vm4237 = vcmp.eq.s32.totalorder %v3596, 255
    %vm4238 = vcmp.eq.s32.totalorder %v3597, 255
    %vm4239 = vcmp.eq.s32.totalorder %v3598, 255
    %vm4240 = vcmp.eq.s32.totalorder %v3599, 255
    %vm4241 = vcmp.eq.s32.totalorder %v3600, 255
    %vm4242 = vcmp.eq.s32.totalorder %v3601, 255
    %vm4243 = vcmp.eq.s32.totalorder %v3602, 255
    %vm4244 = vcmp.eq.s32.totalorder %v3603, 255
    %vm4245 = vcmp.eq.s32.totalorder %v3604, 255
    %vm4246 = vcmp.eq.s32.totalorder %v3605, 255
    %vm4247 = vcmp.eq.s32.totalorder %v3606, 255
    %vm4248 = vcmp.eq.s32.totalorder %v3607, 255
    %vm4249 = vcmp.eq.s32.totalorder %v3608, 255
    %vm4250 = vcmp.eq.s32.totalorder %v3609, 255
    %vm4251 = vcmp.eq.s32.totalorder %v3610, 255
    %vm4252 = vcmp.eq.s32.totalorder %v3611, 255
    %vm4253 = vcmp.eq.s32.totalorder %v3612, 255
    %vm4254 = vcmp.eq.s32.totalorder %v3613, 255
    %vm4255 = vcmp.eq.s32.totalorder %v3614, 255
    %vm4256 = vcmp.eq.s32.totalorder %v3615, 255
    %vm4257 = vcmp.eq.s32.totalorder %v3616, 255
    %vm4258 = vcmp.eq.s32.totalorder %v3617, 255
    %vm4259 = vcmp.eq.s32.totalorder %v3618, 255
    %vm4260 = vcmp.eq.s32.totalorder %v3619, 255
    %vm4261 = vcmp.eq.s32.totalorder %v3620, 255
    %vm4262 = vcmp.eq.s32.totalorder %v3621, 255
    %vm4263 = vcmp.eq.s32.totalorder %v3622, 255
    %vm4264 = vcmp.eq.s32.totalorder %v3623, 255
    %vm4265 = vcmp.eq.s32.totalorder %v3624, 255
    %vm4266 = vcmp.eq.s32.totalorder %v3625, 255
    %vm4267 = vcmp.eq.s32.totalorder %v3626, 255
    %vm4268 = vcmp.eq.s32.totalorder %v3627, 255
    %vm4269 = vcmp.eq.s32.totalorder %v3628, 255
    %vm4270 = vcmp.eq.s32.totalorder %v3629, 255
    %vm4271 = vcmp.eq.s32.totalorder %v3630, 255
    %vm4272 = vcmp.eq.s32.totalorder %v3631, 255
    %vm4273 = vcmp.eq.s32.totalorder %v3632, 255
    %vm4274 = vcmp.eq.s32.totalorder %v3633, 255
    %v4275 = vrot.slane %v1841, 1
    %v4276 = vrot.slane %v1842, 1
    %v4277 = vrot.slane %v1843, 1
    %v4278 = vrot.slane %v1844, 1
    %v4279 = vrot.slane %v1845, 1
    %v4280 = vrot.slane %v1846, 1
    %v4281 = vrot.slane %v1847, 1
    %v4282 = vrot.slane %v1848, 1
    %v4283 = vrot.slane %v1849, 1
    %v4284 = vrot.slane %v1850, 1
    %v4285 = vrot.slane %v1851, 1
    %v4286 = vrot.slane %v1852, 1
    %v4287 = vrot.slane %v1853, 1
    %v4288 = vrot.slane %v1854, 1
    %v4289 = vrot.slane %v1855, 1
    %v4290 = vrot.slane %v1856, 1
    %v4291 = vrot.slane %v1857, 1
    %v4292 = vrot.slane %v1858, 1
    %v4293 = vrot.slane %v1859, 1
    %v4294 = vrot.slane %v1860, 1
    %v4295 = vrot.slane %v1861, 1
    %v4296 = vrot.slane %v1862, 1
    %v4297 = vrot.slane %v1863, 1
    %v4298 = vrot.slane %v1864, 1
    %v4299 = vrot.slane %v1865, 1
    %v4300 = vrot.slane %v1866, 1
    %v4301 = vrot.slane %v1867, 1
    %v4302 = vrot.slane %v1868, 1
    %v4303 = vrot.slane %v1869, 1
    %v4304 = vrot.slane %v1870, 1
    %v4305 = vrot.slane %v1871, 1
    %v4306 = vrot.slane %v1872, 1
    %v4307 = vrot.slane %v1873, 1
    %v4308 = vrot.slane %v1874, 1
    %v4309 = vrot.slane %v1875, 1
    %v4310 = vrot.slane %v1876, 1
    %v4311 = vrot.slane %v1877, 1
    %v4312 = vrot.slane %v1878, 1
    %v4313 = vrot.slane %v1879, 1
    %v4314 = vrot.slane %v1880, 1
    %v4315 = vrot.slane %v1881, 1
    %v4316 = vrot.slane %v1882, 1
    %v4317 = vrot.slane %v1883, 1
    %v4318 = vrot.slane %v1884, 1
    %v4319 = vrot.slane %v1885, 1
    %v4320 = vrot.slane %v1886, 1
    %v4321 = vrot.slane %v1887, 1
    %v4322 = vrot.slane %v1888, 1
    %v4323 = vrot.slane %v1889, 1
    %v4324 = vrot.slane %v1890, 1
    %v4325 = vrot.slane %v1891, 1
    %v4326 = vrot.slane %v1892, 1
    %v4327 = vrot.slane %v1893, 1
    %v4328 = vrot.slane %v1894, 1
    %v4329 = vrot.slane %v1895, 1
    %v4330 = vrot.slane %v1896, 1
    %v4331 = vrot.slane %v1897, 1
    %v4332 = vrot.slane %v1898, 1
    %v4333 = vrot.slane %v1899, 1
    %v4334 = vrot.slane %v1900, 1
    %v4335 = vrot.slane %v1901, 1
    %v4336 = vrot.slane %v1902, 1
    %v4337 = vrot.slane %v1903, 1
    %v4338 = vrot.slane %v1904, 1
    %v4339 = vrot.slane %v1905, 1
    %v4340 = vrot.slane %v1906, 1
    %v4341 = vrot.slane %v1907, 1
    %v4342 = vrot.slane %v1908, 1
    %v4343 = vrot.slane %v1909, 1
    %v4344 = vrot.slane %v1910, 1
    %v4345 = vrot.slane %v1911, 1
    %v4346 = vrot.slane %v1912, 1
    %v4347 = vrot.slane %v1913, 1
    %v4348 = vrot.slane %v1914, 1
    %v4349 = vrot.slane %v1915, 1
    %v4350 = vrot.slane %v1916, 1
    %v4351 = vrot.slane %v1917, 1
    %v4352 = vrot.slane %v1918, 1
    %v4353 = vrot.slane %v1919, 1
    %v4354 = vrot.slane %v1920, 1
    %v4355 = vrot.slane %v1921, 1
    %v4356 = vrot.slane %v1922, 1
    %v4357 = vrot.slane %v1923, 1
    %v4358 = vrot.slane %v1924, 1
    %v4359 = vrot.slane %v1925, 1
    %v4360 = vrot.slane %v1926, 1
    %v4361 = vrot.slane %v1927, 1
    %v4362 = vrot.slane %v1928, 1
    %v4363 = vrot.slane %v1929, 1
    %v4364 = vrot.slane %v1930, 1
    %v4365 = vrot.slane %v1931, 1
    %v4366 = vrot.slane %v1932, 1
    %v4367 = vrot.slane %v1933, 1
    %v4368 = vrot.slane %v1934, 1
    %v4369 = vrot.slane %v1935, 1
    %v4370 = vrot.slane %v1936, 1
    %v4371 = vrot.slane %v1937, 1
    %v4372 = vrot.slane %v1938, 1
    %v4373 = vrot.slane %v1939, 1
    %v4374 = vrot.slane %v1940, 1
    %v4375 = vrot.slane %v1941, 1
    %v4376 = vrot.slane %v1942, 1
    %v4377 = vrot.slane %v1943, 1
    %v4378 = vrot.slane %v1944, 1
    %v4379 = vrot.slane %v1945, 1
    %v4380 = vrot.slane %v1946, 1
    %v4381 = vrot.slane %v1947, 1
    %v4382 = vrot.slane %v1948, 1
    %v4383 = vrot.slane %v1949, 1
    %v4384 = vrot.slane %v1950, 1
    %v4385 = vrot.slane %v1951, 1
    %v4386 = vrot.slane %v1952, 1
    %v4387 = vrot.slane %v1953, 1
    %v4388 = vrot.slane %v1954, 1
    %v4389 = vrot.slane %v1955, 1
    %v4390 = vrot.slane %v1956, 1
    %v4391 = vrot.slane %v1957, 1
    %v4392 = vrot.slane %v1958, 1
    %v4393 = vrot.slane %v1959, 1
    %v4394 = vrot.slane %v1960, 1
    %v4395 = vrot.slane %v1961, 1
    %v4396 = vrot.slane %v1962, 1
    %v4397 = vrot.slane %v1963, 1
    %v4398 = vrot.slane %v1964, 1
    %v4399 = vrot.slane %v1965, 1
    %v4400 = vrot.slane %v1966, 1
    %v4401 = vrot.slane %v1967, 1
    %v4402 = vrot.slane %v1968, 1
    %vm4403 = vcmp.lt.s32.totalorder %v1970, 7
    %v4404 = vsel %vm4403, %v4401, %v4402
    %v4405 = vsel %vm4403, %v4400, %v4401
    %v4406 = vsel %vm4403, %v4399, %v4400
    %v4407 = vsel %vm4403, %v4398, %v4399
    %v4408 = vsel %vm4403, %v4397, %v4398
    %v4409 = vsel %vm4403, %v4396, %v4397
    %v4410 = vsel %vm4403, %v4395, %v4396
    %v4411 = vsel %vm4403, %v4394, %v4395
    %v4412 = vsel %vm4403, %v4393, %v4394
    %v4413 = vsel %vm4403, %v4392, %v4393
    %v4414 = vsel %vm4403, %v4391, %v4392
    %v4415 = vsel %vm4403, %v4390, %v4391
    %v4416 = vsel %vm4403, %v4389, %v4390
    %v4417 = vsel %vm4403, %v4388, %v4389
    %v4418 = vsel %vm4403, %v4387, %v4388
    %v4419 = vsel %vm4403, %v4386, %v4387
    %v4420 = vsel %vm4403, %v4385, %v4386
    %v4421 = vsel %vm4403, %v4384, %v4385
    %v4422 = vsel %vm4403, %v4383, %v4384
    %v4423 = vsel %vm4403, %v4382, %v4383
    %v4424 = vsel %vm4403, %v4381, %v4382
    %v4425 = vsel %vm4403, %v4380, %v4381
    %v4426 = vsel %vm4403, %v4379, %v4380
    %v4427 = vsel %vm4403, %v4378, %v4379
    %v4428 = vsel %vm4403, %v4377, %v4378
    %v4429 = vsel %vm4403, %v4376, %v4377
    %v4430 = vsel %vm4403, %v4375, %v4376
    %v4431 = vsel %vm4403, %v4374, %v4375
    %v4432 = vsel %vm4403, %v4373, %v4374
    %v4433 = vsel %vm4403, %v4372, %v4373
    %v4434 = vsel %vm4403, %v4371, %v4372
    %v4435 = vsel %vm4403, %v4370, %v4371
    %v4436 = vsel %vm4403, %v4369, %v4370
    %v4437 = vsel %vm4403, %v4368, %v4369
    %v4438 = vsel %vm4403, %v4367, %v4368
    %v4439 = vsel %vm4403, %v4366, %v4367
    %v4440 = vsel %vm4403, %v4365, %v4366
    %v4441 = vsel %vm4403, %v4364, %v4365
    %v4442 = vsel %vm4403, %v4363, %v4364
    %v4443 = vsel %vm4403, %v4362, %v4363
    %v4444 = vsel %vm4403, %v4361, %v4362
    %v4445 = vsel %vm4403, %v4360, %v4361
    %v4446 = vsel %vm4403, %v4359, %v4360
    %v4447 = vsel %vm4403, %v4358, %v4359
    %v4448 = vsel %vm4403, %v4357, %v4358
    %v4449 = vsel %vm4403, %v4356, %v4357
    %v4450 = vsel %vm4403, %v4355, %v4356
    %v4451 = vsel %vm4403, %v4354, %v4355
    %v4452 = vsel %vm4403, %v4353, %v4354
    %v4453 = vsel %vm4403, %v4352, %v4353
    %v4454 = vsel %vm4403, %v4351, %v4352
    %v4455 = vsel %vm4403, %v4350, %v4351
    %v4456 = vsel %vm4403, %v4349, %v4350
    %v4457 = vsel %vm4403, %v4348, %v4349
    %v4458 = vsel %vm4403, %v4347, %v4348
    %v4459 = vsel %vm4403, %v4346, %v4347
    %v4460 = vsel %vm4403, %v4345, %v4346
    %v4461 = vsel %vm4403, %v4344, %v4345
    %v4462 = vsel %vm4403, %v4343, %v4344
    %v4463 = vsel %vm4403, %v4342, %v4343
    %v4464 = vsel %vm4403, %v4341, %v4342
    %v4465 = vsel %vm4403, %v4340, %v4341
    %v4466 = vsel %vm4403, %v4339, %v4340
    %v4467 = vsel %vm4403, %v4338, %v4339
    %v4468 = vsel %vm4403, %v4337, %v4338
    %v4469 = vsel %vm4403, %v4336, %v4337
    %v4470 = vsel %vm4403, %v4335, %v4336
    %v4471 = vsel %vm4403, %v4334, %v4335
    %v4472 = vsel %vm4403, %v4333, %v4334
    %v4473 = vsel %vm4403, %v4332, %v4333
    %v4474 = vsel %vm4403, %v4331, %v4332
    %v4475 = vsel %vm4403, %v4330, %v4331
    %v4476 = vsel %vm4403, %v4329, %v4330
    %v4477 = vsel %vm4403, %v4328, %v4329
    %v4478 = vsel %vm4403, %v4327, %v4328
    %v4479 = vsel %vm4403, %v4326, %v4327
    %v4480 = vsel %vm4403, %v4325, %v4326
    %v4481 = vsel %vm4403, %v4324, %v4325
    %v4482 = vsel %vm4403, %v4323, %v4324
    %v4483 = vsel %vm4403, %v4322, %v4323
    %v4484 = vsel %vm4403, %v4321, %v4322
    %v4485 = vsel %vm4403, %v4320, %v4321
    %v4486 = vsel %vm4403, %v4319, %v4320
    %v4487 = vsel %vm4403, %v4318, %v4319
    %v4488 = vsel %vm4403, %v4317, %v4318
    %v4489 = vsel %vm4403, %v4316, %v4317
    %v4490 = vsel %vm4403, %v4315, %v4316
    %v4491 = vsel %vm4403, %v4314, %v4315
    %v4492 = vsel %vm4403, %v4313, %v4314
    %v4493 = vsel %vm4403, %v4312, %v4313
    %v4494 = vsel %vm4403, %v4311, %v4312
    %v4495 = vsel %vm4403, %v4310, %v4311
    %v4496 = vsel %vm4403, %v4309, %v4310
    %v4497 = vsel %vm4403, %v4308, %v4309
    %v4498 = vsel %vm4403, %v4307, %v4308
    %v4499 = vsel %vm4403, %v4306, %v4307
    %v4500 = vsel %vm4403, %v4305, %v4306
    %v4501 = vsel %vm4403, %v4304, %v4305
    %v4502 = vsel %vm4403, %v4303, %v4304
    %v4503 = vsel %vm4403, %v4302, %v4303
    %v4504 = vsel %vm4403, %v4301, %v4302
    %v4505 = vsel %vm4403, %v4300, %v4301
    %v4506 = vsel %vm4403, %v4299, %v4300
    %v4507 = vsel %vm4403, %v4298, %v4299
    %v4508 = vsel %vm4403, %v4297, %v4298
    %v4509 = vsel %vm4403, %v4296, %v4297
    %v4510 = vsel %vm4403, %v4295, %v4296
    %v4511 = vsel %vm4403, %v4294, %v4295
    %v4512 = vsel %vm4403, %v4293, %v4294
    %v4513 = vsel %vm4403, %v4292, %v4293
    %v4514 = vsel %vm4403, %v4291, %v4292
    %v4515 = vsel %vm4403, %v4290, %v4291
    %v4516 = vsel %vm4403, %v4289, %v4290
    %v4517 = vsel %vm4403, %v4288, %v4289
    %v4518 = vsel %vm4403, %v4287, %v4288
    %v4519 = vsel %vm4403, %v4286, %v4287
    %v4520 = vsel %vm4403, %v4285, %v4286
    %v4521 = vsel %vm4403, %v4284, %v4285
    %v4522 = vsel %vm4403, %v4283, %v4284
    %v4523 = vsel %vm4403, %v4282, %v4283
    %v4524 = vsel %vm4403, %v4281, %v4282
    %v4525 = vsel %vm4403, %v4280, %v4281
    %v4526 = vsel %vm4403, %v4279, %v4280
    %v4527 = vsel %vm4403, %v4278, %v4279
    %v4528 = vsel %vm4403, %v4277, %v4278
    %v4529 = vsel %vm4403, %v4276, %v4277
    %v4530 = vsel %vm4403, %v4275, %v4276
    %v4531 = vsel %vm4403, %v4402, %v4275
    %v4532 = vsel %vm4147, 0.0, %v4530
    %v4533 = vsel %vm4148, 0.0, %v4529
    %v4534 = vsel %vm4149, 0.0, %v4528
    %v4535 = vsel %vm4150, 0.0, %v4527
    %v4536 = vsel %vm4151, 0.0, %v4526
    %v4537 = vsel %vm4152, 0.0, %v4525
    %v4538 = vsel %vm4153, 0.0, %v4524
    %v4539 = vsel %vm4154, 0.0, %v4523
    %v4540 = vsel %vm4155, 0.0, %v4522
    %v4541 = vsel %vm4156, 0.0, %v4521
    %v4542 = vsel %vm4157, 0.0, %v4520
    %v4543 = vsel %vm4158, 0.0, %v4519
    %v4544 = vsel %vm4159, 0.0, %v4518
    %v4545 = vsel %vm4160, 0.0, %v4517
    %v4546 = vsel %vm4161, 0.0, %v4516
    %v4547 = vsel %vm4162, 0.0, %v4515
    %v4548 = vsel %vm4163, 0.0, %v4514
    %v4549 = vsel %vm4164, 0.0, %v4513
    %v4550 = vsel %vm4165, 0.0, %v4512
    %v4551 = vsel %vm4166, 0.0, %v4511
    %v4552 = vsel %vm4167, 0.0, %v4510
    %v4553 = vsel %vm4168, 0.0, %v4509
    %v4554 = vsel %vm4169, 0.0, %v4508
    %v4555 = vsel %vm4170, 0.0, %v4507
    %v4556 = vsel %vm4171, 0.0, %v4506
    %v4557 = vsel %vm4172, 0.0, %v4505
    %v4558 = vsel %vm4173, 0.0, %v4504
    %v4559 = vsel %vm4174, 0.0, %v4503
    %v4560 = vsel %vm4175, 0.0, %v4502
    %v4561 = vsel %vm4176, 0.0, %v4501
    %v4562 = vsel %vm4177, 0.0, %v4500
    %v4563 = vsel %vm4178, 0.0, %v4499
    %v4564 = vsel %vm4179, 0.0, %v4498
    %v4565 = vsel %vm4180, 0.0, %v4497
    %v4566 = vsel %vm4181, 0.0, %v4496
    %v4567 = vsel %vm4182, 0.0, %v4495
    %v4568 = vsel %vm4183, 0.0, %v4494
    %v4569 = vsel %vm4184, 0.0, %v4493
    %v4570 = vsel %vm4185, 0.0, %v4492
    %v4571 = vsel %vm4186, 0.0, %v4491
    %v4572 = vsel %vm4187, 0.0, %v4490
    %v4573 = vsel %vm4188, 0.0, %v4489
    %v4574 = vsel %vm4189, 0.0, %v4488
    %v4575 = vsel %vm4190, 0.0, %v4487
    %v4576 = vsel %vm4191, 0.0, %v4486
    %v4577 = vsel %vm4192, 0.0, %v4485
    %v4578 = vsel %vm4193, 0.0, %v4484
    %v4579 = vsel %vm4194, 0.0, %v4483
    %v4580 = vsel %vm4195, 0.0, %v4482
    %v4581 = vsel %vm4196, 0.0, %v4481
    %v4582 = vsel %vm4197, 0.0, %v4480
    %v4583 = vsel %vm4198, 0.0, %v4479
    %v4584 = vsel %vm4199, 0.0, %v4478
    %v4585 = vsel %vm4200, 0.0, %v4477
    %v4586 = vsel %vm4201, 0.0, %v4476
    %v4587 = vsel %vm4202, 0.0, %v4475
    %v4588 = vsel %vm4203, 0.0, %v4474
    %v4589 = vsel %vm4204, 0.0, %v4473
    %v4590 = vsel %vm4205, 0.0, %v4472
    %v4591 = vsel %vm4206, 0.0, %v4471
    %v4592 = vsel %vm4207, 0.0, %v4470
    %v4593 = vsel %vm4208, 0.0, %v4469
    %v4594 = vsel %vm4209, 0.0, %v4468
    %v4595 = vsel %vm4210, 0.0, %v4467
    %v4596 = vsel %vm4211, 0.0, %v4466
    %v4597 = vsel %vm4212, 0.0, %v4465
    %v4598 = vsel %vm4213, 0.0, %v4464
    %v4599 = vsel %vm4214, 0.0, %v4463
    %v4600 = vsel %vm4215, 0.0, %v4462
    %v4601 = vsel %vm4216, 0.0, %v4461
    %v4602 = vsel %vm4217, 0.0, %v4460
    %v4603 = vsel %vm4218, 0.0, %v4459
    %v4604 = vsel %vm4219, 0.0, %v4458
    %v4605 = vsel %vm4220, 0.0, %v4457
    %v4606 = vsel %vm4221, 0.0, %v4456
    %v4607 = vsel %vm4222, 0.0, %v4455
    %v4608 = vsel %vm4223, 0.0, %v4454
    %v4609 = vsel %vm4224, 0.0, %v4453
    %v4610 = vsel %vm4225, 0.0, %v4452
    %v4611 = vsel %vm4226, 0.0, %v4451
    %v4612 = vsel %vm4227, 0.0, %v4450
    %v4613 = vsel %vm4228, 0.0, %v4449
    %v4614 = vsel %vm4229, 0.0, %v4448
    %v4615 = vsel %vm4230, 0.0, %v4447
    %v4616 = vsel %vm4231, 0.0, %v4446
    %v4617 = vsel %vm4232, 0.0, %v4445
    %v4618 = vsel %vm4233, 0.0, %v4444
    %v4619 = vsel %vm4234, 0.0, %v4443
    %v4620 = vsel %vm4235, 0.0, %v4442
    %v4621 = vsel %vm4236, 0.0, %v4441
    %v4622 = vsel %vm4237, 0.0, %v4440
    %v4623 = vsel %vm4238, 0.0, %v4439
    %v4624 = vsel %vm4239, 0.0, %v4438
    %v4625 = vsel %vm4240, 0.0, %v4437
    %v4626 = vsel %vm4241, 0.0, %v4436
    %v4627 = vsel %vm4242, 0.0, %v4435
    %v4628 = vsel %vm4243, 0.0, %v4434
    %v4629 = vsel %vm4244, 0.0, %v4433
    %v4630 = vsel %vm4245, 0.0, %v4432
    %v4631 = vsel %vm4246, 0.0, %v4431
    %v4632 = vsel %vm4247, 0.0, %v4430
    %v4633 = vsel %vm4248, 0.0, %v4429
    %v4634 = vsel %vm4249, 0.0, %v4428
    %v4635 = vsel %vm4250, 0.0, %v4427
    %v4636 = vsel %vm4251, 0.0, %v4426
    %v4637 = vsel %vm4252, 0.0, %v4425
    %v4638 = vsel %vm4253, 0.0, %v4424
    %v4639 = vsel %vm4254, 0.0, %v4423
    %v4640 = vsel %vm4255, 0.0, %v4422
    %v4641 = vsel %vm4256, 0.0, %v4421
    %v4642 = vsel %vm4257, 0.0, %v4420
    %v4643 = vsel %vm4258, 0.0, %v4419
    %v4644 = vsel %vm4259, 0.0, %v4418
    %v4645 = vsel %vm4260, 0.0, %v4417
    %v4646 = vsel %vm4261, 0.0, %v4416
    %v4647 = vsel %vm4262, 0.0, %v4415
    %v4648 = vsel %vm4263, 0.0, %v4414
    %v4649 = vsel %vm4264, 0.0, %v4413
    %v4650 = vsel %vm4265, 0.0, %v4412
    %v4651 = vsel %vm4266, 0.0, %v4411
    %v4652 = vsel %vm4267, 0.0, %v4410
    %v4653 = vsel %vm4268, 0.0, %v4409
    %v4654 = vsel %vm4269, 0.0, %v4408
    %v4655 = vsel %vm4270, 0.0, %v4407
    %v4656 = vsel %vm4271, 0.0, %v4406
    %v4657 = vsel %vm4272, 0.0, %v4405
    %v4658 = vsel %vm4273, 0.0, %v4404
    %v4659 = vsel %vm4274, 0.0, %v4531
    %v4660 = vld [vmem:[%s3] sm:$0xff]
    %v4661 = vld [vmem:[%s3 + $0x8] sm:$0xff]
    %v4662 = vld [vmem:[%s3 + $0x10] sm:$0xff]
    %v4663 = vld [vmem:[%s3 + $0x18] sm:$0xff]
    %v4664 = vld [vmem:[%s3 + $0x20] sm:$0xff]
    %v4665 = vld [vmem:[%s3 + $0x28] sm:$0xff]
    %v4666 = vld [vmem:[%s3 + $0x30] sm:$0xff]
    %v4667 = vld [vmem:[%s3 + $0x38] sm:$0xff]
    %v4668 = vld [vmem:[%s3 + $0x40] sm:$0xff]
    %v4669 = vld [vmem:[%s3 + $0x48] sm:$0xff]
    %v4670 = vld [vmem:[%s3 + $0x50] sm:$0xff]
    %v4671 = vld [vmem:[%s3 + $0x58] sm:$0xff]
    %v4672 = vld [vmem:[%s3 + $0x60] sm:$0xff]
    %v4673 = vld [vmem:[%s3 + $0x68] sm:$0xff]
    %v4674 = vld [vmem:[%s3 + $0x70] sm:$0xff]
    %v4675 = vld [vmem:[%s3 + $0x78] sm:$0xff]
    %s4676 = scalar_lea.vmem %s3, 128
    %v4677 = vld [vmem:[%s4676] sm:$0xff]
    %v4678 = vld [vmem:[%s4676 + $0x8] sm:$0xff]
    %v4679 = vld [vmem:[%s4676 + $0x10] sm:$0xff]
    %v4680 = vld [vmem:[%s4676 + $0x18] sm:$0xff]
    %v4681 = vld [vmem:[%s4676 + $0x20] sm:$0xff]
    %v4682 = vld [vmem:[%s4676 + $0x28] sm:$0xff]
    %v4683 = vld [vmem:[%s4676 + $0x30] sm:$0xff]
    %v4684 = vld [vmem:[%s4676 + $0x38] sm:$0xff]
    %v4685 = vld [vmem:[%s4676 + $0x40] sm:$0xff]
    %v4686 = vld [vmem:[%s4676 + $0x48] sm:$0xff]
    %v4687 = vld [vmem:[%s4676 + $0x50] sm:$0xff]
    %v4688 = vld [vmem:[%s4676 + $0x58] sm:$0xff]
    %v4689 = vld [vmem:[%s4676 + $0x60] sm:$0xff]
    %v4690 = vld [vmem:[%s4676 + $0x68] sm:$0xff]
    %v4691 = vld [vmem:[%s4676 + $0x70] sm:$0xff]
    %v4692 = vld [vmem:[%s4676 + $0x78] sm:$0xff]
    %4693 = vmatprep.subr.mxu0 0.0
    %4694 = vmatpush1.msra.mxu0 %v4677
    %4695 = vmatprep.subr.mxu0 0.0
    %4696 = vmatpush1.msra.mxu0 %v4678
    %4697 = vmatprep.subr.mxu0 0.0
    %4698 = vmatpush1.msra.mxu0 %v4679
    %4699 = vmatprep.subr.mxu0 0.0
    %4700 = vmatpush1.msra.mxu0 %v4680
    %4701 = vmatprep.subr.mxu0 0.0
    %4702 = vmatpush1.msra.mxu0 %v4681
    %4703 = vmatprep.subr.mxu0 0.0
    %4704 = vmatpush1.msra.mxu0 %v4682
    %4705 = vmatprep.subr.mxu0 0.0
    %4706 = vmatpush1.msra.mxu0 %v4683
    %4707 = vmatprep.subr.mxu0 0.0
    %4708 = vmatpush1.msra.mxu0 %v4684
    %4709 = vmatprep.subr.mxu0 0.0
    %4710 = vmatpush1.msra.mxu0 %v4685
    %4711 = vmatprep.subr.mxu0 0.0
    %4712 = vmatpush1.msra.mxu0 %v4686
    %4713 = vmatprep.subr.mxu0 0.0
    %4714 = vmatpush1.msra.mxu0 %v4687
    %4715 = vmatprep.subr.mxu0 0.0
    %4716 = vmatpush1.msra.mxu0 %v4688
    %4717 = vmatprep.subr.mxu0 0.0
    %4718 = vmatpush1.msra.mxu0 %v4689
    %4719 = vmatprep.subr.mxu0 0.0
    %4720 = vmatpush1.msra.mxu0 %v4690
    %4721 = vmatprep.subr.mxu0 0.0
    %4722 = vmatpush1.msra.mxu0 %v4691
    %4723 = vmatprep.subr.mxu0 0.0
    %4724 = vmatpush1.msra.mxu0 %v4692
    %4725 = vmatprep.subr.mxu0 0.0
    %4726 = vmatpush1.msra.mxu0 0.0
    %4727 = vmatprep.subr.mxu0 0.0
    %4728 = vmatpush1.msra.mxu0 0.0
    %4729 = vmatprep.subr.mxu0 0.0
    %4730 = vmatpush1.msra.mxu0 0.0
    %4731 = vmatprep.subr.mxu0 0.0
    %4732 = vmatpush1.msra.mxu0 0.0
    %4733 = vmatprep.subr.mxu0 0.0
    %4734 = vmatpush1.msra.mxu0 0.0
    %4735 = vmatprep.subr.mxu0 0.0
    %4736 = vmatpush1.msra.mxu0 0.0
    %4737 = vmatprep.subr.mxu0 0.0
    %4738 = vmatpush1.msra.mxu0 0.0
    %4739 = vmatprep.subr.mxu0 0.0
    %4740 = vmatpush1.msra.mxu0 0.0
    %4741 = vmatprep.subr.mxu0 0.0
    %4742 = vmatpush1.msra.mxu0 0.0
    %4743 = vmatprep.subr.mxu0 0.0
    %4744 = vmatpush1.msra.mxu0 0.0
    %4745 = vmatprep.subr.mxu0 0.0
    %4746 = vmatpush1.msra.mxu0 0.0
    %4747 = vmatprep.subr.mxu0 0.0
    %4748 = vmatpush1.msra.mxu0 0.0
    %4749 = vmatprep.subr.mxu0 0.0
    %4750 = vmatpush1.msra.mxu0 0.0
    %4751 = vmatprep.subr.mxu0 0.0
    %4752 = vmatpush1.msra.mxu0 0.0
    %4753 = vmatprep.subr.mxu0 0.0
    %4754 = vmatpush1.msra.mxu0 0.0
    %4755 = vmatprep.subr.mxu0 0.0
    %4756 = vmatpush1.msra.mxu0 0.0
    %4757 = vmatprep.mubr.f32.mxu0 0.0
    %4758 = vmatmul.mubr.f32.gmra.mrb[0].mxu0 %v1841
    %v4759 = vpop.f32.mrb[0].mxu0
    %v4760 = vadd.f32 0.0, %v4759
    %v4761 = vpop.f32.mrb[0].mxu0
    %4762 = vmatprep.mubr.f32.mxu0 0.0
    %4763 = vmatmul.mubr.f32.gmra.mrb[0].mxu0 %v1842
    %v4764 = vpop.f32.mrb[0].mxu0
    %v4765 = vadd.f32 0.0, %v4764
    %v4766 = vpop.f32.mrb[0].mxu0
    %4767 = vmatprep.mubr.f32.mxu0 0.0
    %4768 = vmatmul.mubr.f32.gmra.mrb[0].mxu0 %v1843
    %v4769 = vpop.f32.mrb[0].mxu0
    %v4770 = vadd.f32 0.0, %v4769
    %v4771 = vpop.f32.mrb[0].mxu0
    %4772 = vmatprep.mubr.f32.mxu0 0.0
    %4773 = vmatmul.mubr.f32.gmra.mrb[0].mxu0 %v1844
    %v4774 = vpop.f32.mrb[0].mxu0
    %v4775 = vadd.f32 0.0, %v4774
    %v4776 = vpop.f32.mrb[0].mxu0
    %4777 = vmatprep.mubr.f32.mxu0 0.0
    %4778 = vmatmul.mubr.f32.gmra.mrb[0].mxu0 %v1845
    %v4779 = vpop.f32.mrb[0].mxu0
    %v4780 = vadd.f32 0.0, %v4779
    %v4781 = vpop.f32.mrb[0].mxu0
    %4782 = vmatprep.mubr.f32.mxu0 0.0
    %4783 = vmatmul.mubr.f32.gmra.mrb[0].mxu0 %v1846
    %v4784 = vpop.f32.mrb[0].mxu0
    %v4785 = vadd.f32 0.0, %v4784
    %v4786 = vpop.f32.mrb[0].mxu0
    %4787 = vmatprep.mubr.f32.mxu0 0.0
    %4788 = vmatmul.mubr.f32.gmra.mrb[0].mxu0 %v1847
    %v4789 = vpop.f32.mrb[0].mxu0
    %v4790 = vadd.f32 0.0, %v4789
    %v4791 = vpop.f32.mrb[0].mxu0
    %4792 = vmatprep.mubr.f32.mxu0 0.0
    %4793 = vmatmul.mubr.f32.gmra.mrb[0].mxu0 %v1848
    %v4794 = vpop.f32.mrb[0].mxu0
    %v4795 = vadd.f32 0.0, %v4794
    %v4796 = vpop.f32.mrb[0].mxu0
    %4797 = vmatprep.mubr.f32.mxu0 0.0
    %4798 = vmatmul.mubr.f32.gmra.mrb[0].mxu0 %v1849
    %v4799 = vpop.f32.mrb[0].mxu0
    %v4800 = vadd.f32 0.0, %v4799
    %v4801 = vpop.f32.mrb[0].mxu0
    %4802 = vmatprep.mubr.f32.mxu0 0.0
    %4803 = vmatmul.mubr.f32.gmra.mrb[0].mxu0 %v1850
    %v4804 = vpop.f32.mrb[0].mxu0
    %v4805 = vadd.f32 0.0, %v4804
    %v4806 = vpop.f32.mrb[0].mxu0
    %4807 = vmatprep.mubr.f32.mxu0 0.0
    %4808 = vmatmul.mubr.f32.gmra.mrb[0].mxu0 %v1851
    %v4809 = vpop.f32.mrb[0].mxu0
    %v4810 = vadd.f32 0.0, %v4809
    %v4811 = vpop.f32.mrb[0].mxu0
    %4812 = vmatprep.mubr.f32.mxu0 0.0
    %4813 = vmatmul.mubr.f32.gmra.mrb[0].mxu0 %v1852
    %v4814 = vpop.f32.mrb[0].mxu0
    %v4815 = vadd.f32 0.0, %v4814
    %v4816 = vpop.f32.mrb[0].mxu0
    %4817 = vmatprep.mubr.f32.mxu0 0.0
    %4818 = vmatmul.mubr.f32.gmra.mrb[0].mxu0 %v1853
    %v4819 = vpop.f32.mrb[0].mxu0
    %v4820 = vadd.f32 0.0, %v4819
    %v4821 = vpop.f32.mrb[0].mxu0
    %4822 = vmatprep.mubr.f32.mxu0 0.0
    %4823 = vmatmul.mubr.f32.gmra.mrb[0].mxu0 %v1854
    %v4824 = vpop.f32.mrb[0].mxu0
    %v4825 = vadd.f32 0.0, %v4824
    %v4826 = vpop.f32.mrb[0].mxu0
    %4827 = vmatprep.mubr.f32.mxu0 0.0
    %4828 = vmatmul.mubr.f32.gmra.mrb[0].mxu0 %v1855
    %v4829 = vpop.f32.mrb[0].mxu0
    %v4830 = vadd.f32 0.0, %v4829
    %v4831 = vpop.f32.mrb[0].mxu0
    %4832 = vmatprep.mubr.f32.mxu0 0.0
    %4833 = vmatmul.mubr.f32.gmra.mrb[0].mxu0 %v1856
    %v4834 = vpop.f32.mrb[0].mxu0
    %v4835 = vadd.f32 0.0, %v4834
    %v4836 = vpop.f32.mrb[0].mxu0
    %4837 = vmatprep.mubr.f32.mxu0 0.0
    %4838 = vmatmul.mubr.f32.gmra.mrb[0].mxu0 %v1857
    %v4839 = vpop.f32.mrb[0].mxu0
    %v4840 = vadd.f32 0.0, %v4839
    %v4841 = vpop.f32.mrb[0].mxu0
    %4842 = vmatprep.mubr.f32.mxu0 0.0
    %4843 = vmatmul.mubr.f32.gmra.mrb[0].mxu0 %v1858
    %v4844 = vpop.f32.mrb[0].mxu0
    %v4845 = vadd.f32 0.0, %v4844
    %v4846 = vpop.f32.mrb[0].mxu0
    %4847 = vmatprep.mubr.f32.mxu0 0.0
    %4848 = vmatmul.mubr.f32.gmra.mrb[0].mxu0 %v1859
    %v4849 = vpop.f32.mrb[0].mxu0
    %v4850 = vadd.f32 0.0, %v4849
    %v4851 = vpop.f32.mrb[0].mxu0
    %4852 = vmatprep.mubr.f32.mxu0 0.0
    %4853 = vmatmul.mubr.f32.gmra.mrb[0].mxu0 %v1860
    %v4854 = vpop.f32.mrb[0].mxu0
    %v4855 = vadd.f32 0.0, %v4854
    %v4856 = vpop.f32.mrb[0].mxu0
    %4857 = vmatprep.mubr.f32.mxu0 0.0
    %4858 = vmatmul.mubr.f32.gmra.mrb[0].mxu0 %v1861
    %v4859 = vpop.f32.mrb[0].mxu0
    %v4860 = vadd.f32 0.0, %v4859
    %v4861 = vpop.f32.mrb[0].mxu0
    %4862 = vmatprep.mubr.f32.mxu0 0.0
    %4863 = vmatmul.mubr.f32.gmra.mrb[0].mxu0 %v1862
    %v4864 = vpop.f32.mrb[0].mxu0
    %v4865 = vadd.f32 0.0, %v4864
    %v4866 = vpop.f32.mrb[0].mxu0
    %4867 = vmatprep.mubr.f32.mxu0 0.0
    %4868 = vmatmul.mubr.f32.gmra.mrb[0].mxu0 %v1863
    %v4869 = vpop.f32.mrb[0].mxu0
    %v4870 = vadd.f32 0.0, %v4869
    %v4871 = vpop.f32.mrb[0].mxu0
    %4872 = vmatprep.mubr.f32.mxu0 0.0
    %4873 = vmatmul.mubr.f32.gmra.mrb[0].mxu0 %v1864
    %v4874 = vpop.f32.mrb[0].mxu0
    %v4875 = vadd.f32 0.0, %v4874
    %v4876 = vpop.f32.mrb[0].mxu0
    %4877 = vmatprep.mubr.f32.mxu0 0.0
    %4878 = vmatmul.mubr.f32.gmra.mrb[0].mxu0 %v1865
    %v4879 = vpop.f32.mrb[0].mxu0
    %v4880 = vadd.f32 0.0, %v4879
    %v4881 = vpop.f32.mrb[0].mxu0
    %4882 = vmatprep.mubr.f32.mxu0 0.0
    %4883 = vmatmul.mubr.f32.gmra.mrb[0].mxu0 %v1866
    %v4884 = vpop.f32.mrb[0].mxu0
    %v4885 = vadd.f32 0.0, %v4884
    %v4886 = vpop.f32.mrb[0].mxu0
    %4887 = vmatprep.mubr.f32.mxu0 0.0
    %4888 = vmatmul.mubr.f32.gmra.mrb[0].mxu0 %v1867
    %v4889 = vpop.f32.mrb[0].mxu0
    %v4890 = vadd.f32 0.0, %v4889
    %v4891 = vpop.f32.mrb[0].mxu0
    %4892 = vmatprep.mubr.f32.mxu0 0.0
    %4893 = vmatmul.mubr.f32.gmra.mrb[0].mxu0 %v1868
    %v4894 = vpop.f32.mrb[0].mxu0
    %v4895 = vadd.f32 0.0, %v4894
    %v4896 = vpop.f32.mrb[0].mxu0
    %4897 = vmatprep.mubr.f32.mxu0 0.0
    %4898 = vmatmul.mubr.f32.gmra.mrb[0].mxu0 %v1869
    %v4899 = vpop.f32.mrb[0].mxu0
    %v4900 = vadd.f32 0.0, %v4899
    %v4901 = vpop.f32.mrb[0].mxu0
    %4902 = vmatprep.mubr.f32.mxu0 0.0
    %4903 = vmatmul.mubr.f32.gmra.mrb[0].mxu0 %v1870
    %v4904 = vpop.f32.mrb[0].mxu0
    %v4905 = vadd.f32 0.0, %v4904
    %v4906 = vpop.f32.mrb[0].mxu0
    %4907 = vmatprep.mubr.f32.mxu0 0.0
    %4908 = vmatmul.mubr.f32.gmra.mrb[0].mxu0 %v1871
    %v4909 = vpop.f32.mrb[0].mxu0
    %v4910 = vadd.f32 0.0, %v4909
    %v4911 = vpop.f32.mrb[0].mxu0
    %4912 = vmatprep.mubr.f32.mxu0 0.0
    %4913 = vmatmul.mubr.f32.gmra.mrb[0].mxu0 %v1872
    %v4914 = vpop.f32.mrb[0].mxu0
    %v4915 = vadd.f32 0.0, %v4914
    %v4916 = vpop.f32.mrb[0].mxu0
    %4917 = vmatprep.mubr.f32.mxu0 0.0
    %4918 = vmatmul.mubr.f32.gmra.mrb[0].mxu0 %v1873
    %v4919 = vpop.f32.mrb[0].mxu0
    %v4920 = vadd.f32 0.0, %v4919
    %v4921 = vpop.f32.mrb[0].mxu0
    %4922 = vmatprep.mubr.f32.mxu0 0.0
    %4923 = vmatmul.mubr.f32.gmra.mrb[0].mxu0 %v1874
    %v4924 = vpop.f32.mrb[0].mxu0
    %v4925 = vadd.f32 0.0, %v4924
    %v4926 = vpop.f32.mrb[0].mxu0
    %4927 = vmatprep.mubr.f32.mxu0 0.0
    %4928 = vmatmul.mubr.f32.gmra.mrb[0].mxu0 %v1875
    %v4929 = vpop.f32.mrb[0].mxu0
    %v4930 = vadd.f32 0.0, %v4929
    %v4931 = vpop.f32.mrb[0].mxu0
    %4932 = vmatprep.mubr.f32.mxu0 0.0
    %4933 = vmatmul.mubr.f32.gmra.mrb[0].mxu0 %v1876
    %v4934 = vpop.f32.mrb[0].mxu0
    %v4935 = vadd.f32 0.0, %v4934
    %v4936 = vpop.f32.mrb[0].mxu0
    %4937 = vmatprep.mubr.f32.mxu0 0.0
    %4938 = vmatmul.mubr.f32.gmra.mrb[0].mxu0 %v1877
    %v4939 = vpop.f32.mrb[0].mxu0
    %v4940 = vadd.f32 0.0, %v4939
    %v4941 = vpop.f32.mrb[0].mxu0
    %4942 = vmatprep.mubr.f32.mxu0 0.0
    %4943 = vmatmul.mubr.f32.gmra.mrb[0].mxu0 %v1878
    %v4944 = vpop.f32.mrb[0].mxu0
    %v4945 = vadd.f32 0.0, %v4944
    %v4946 = vpop.f32.mrb[0].mxu0
    %4947 = vmatprep.mubr.f32.mxu0 0.0
    %4948 = vmatmul.mubr.f32.gmra.mrb[0].mxu0 %v1879
    %v4949 = vpop.f32.mrb[0].mxu0
    %v4950 = vadd.f32 0.0, %v4949
    %v4951 = vpop.f32.mrb[0].mxu0
    %4952 = vmatprep.mubr.f32.mxu0 0.0
    %4953 = vmatmul.mubr.f32.gmra.mrb[0].mxu0 %v1880
    %v4954 = vpop.f32.mrb[0].mxu0
    %v4955 = vadd.f32 0.0, %v4954
    %v4956 = vpop.f32.mrb[0].mxu0
    %4957 = vmatprep.mubr.f32.mxu0 0.0
    %4958 = vmatmul.mubr.f32.gmra.mrb[0].mxu0 %v1881
    %v4959 = vpop.f32.mrb[0].mxu0
    %v4960 = vadd.f32 0.0, %v4959
    %v4961 = vpop.f32.mrb[0].mxu0
    %4962 = vmatprep.mubr.f32.mxu0 0.0
    %4963 = vmatmul.mubr.f32.gmra.mrb[0].mxu0 %v1882
    %v4964 = vpop.f32.mrb[0].mxu0
    %v4965 = vadd.f32 0.0, %v4964
    %v4966 = vpop.f32.mrb[0].mxu0
    %4967 = vmatprep.mubr.f32.mxu0 0.0
    %4968 = vmatmul.mubr.f32.gmra.mrb[0].mxu0 %v1883
    %v4969 = vpop.f32.mrb[0].mxu0
    %v4970 = vadd.f32 0.0, %v4969
    %v4971 = vpop.f32.mrb[0].mxu0
    %4972 = vmatprep.mubr.f32.mxu0 0.0
    %4973 = vmatmul.mubr.f32.gmra.mrb[0].mxu0 %v1884
    %v4974 = vpop.f32.mrb[0].mxu0
    %v4975 = vadd.f32 0.0, %v4974
    %v4976 = vpop.f32.mrb[0].mxu0
    %4977 = vmatprep.mubr.f32.mxu0 0.0
    %4978 = vmatmul.mubr.f32.gmra.mrb[0].mxu0 %v1885
    %v4979 = vpop.f32.mrb[0].mxu0
    %v4980 = vadd.f32 0.0, %v4979
    %v4981 = vpop.f32.mrb[0].mxu0
    %4982 = vmatprep.mubr.f32.mxu0 0.0
    %4983 = vmatmul.mubr.f32.gmra.mrb[0].mxu0 %v1886
    %v4984 = vpop.f32.mrb[0].mxu0
    %v4985 = vadd.f32 0.0, %v4984
    %v4986 = vpop.f32.mrb[0].mxu0
    %4987 = vmatprep.mubr.f32.mxu0 0.0
    %4988 = vmatmul.mubr.f32.gmra.mrb[0].mxu0 %v1887
    %v4989 = vpop.f32.mrb[0].mxu0
    %v4990 = vadd.f32 0.0, %v4989
    %v4991 = vpop.f32.mrb[0].mxu0
    %4992 = vmatprep.mubr.f32.mxu0 0.0
    %4993 = vmatmul.mubr.f32.gmra.mrb[0].mxu0 %v1888
    %v4994 = vpop.f32.mrb[0].mxu0
    %v4995 = vadd.f32 0.0, %v4994
    %v4996 = vpop.f32.mrb[0].mxu0
    %4997 = vmatprep.mubr.f32.mxu0 0.0
    %4998 = vmatmul.mubr.f32.gmra.mrb[0].mxu0 %v1889
    %v4999 = vpop.f32.mrb[0].mxu0
    %v5000 = vadd.f32 0.0, %v4999
    %v5001 = vpop.f32.mrb[0].mxu0
    %5002 = vmatprep.mubr.f32.mxu0 0.0
    %5003 = vmatmul.mubr.f32.gmra.mrb[0].mxu0 %v1890
    %v5004 = vpop.f32.mrb[0].mxu0
    %v5005 = vadd.f32 0.0, %v5004
    %v5006 = vpop.f32.mrb[0].mxu0
    %5007 = vmatprep.mubr.f32.mxu0 0.0
    %5008 = vmatmul.mubr.f32.gmra.mrb[0].mxu0 %v1891
    %v5009 = vpop.f32.mrb[0].mxu0
    %v5010 = vadd.f32 0.0, %v5009
    %v5011 = vpop.f32.mrb[0].mxu0
    %5012 = vmatprep.mubr.f32.mxu0 0.0
    %5013 = vmatmul.mubr.f32.gmra.mrb[0].mxu0 %v1892
    %v5014 = vpop.f32.mrb[0].mxu0
    %v5015 = vadd.f32 0.0, %v5014
    %v5016 = vpop.f32.mrb[0].mxu0
    %5017 = vmatprep.mubr.f32.mxu0 0.0
    %5018 = vmatmul.mubr.f32.gmra.mrb[0].mxu0 %v1893
    %v5019 = vpop.f32.mrb[0].mxu0
    %v5020 = vadd.f32 0.0, %v5019
    %v5021 = vpop.f32.mrb[0].mxu0
    %5022 = vmatprep.mubr.f32.mxu0 0.0
    %5023 = vmatmul.mubr.f32.gmra.mrb[0].mxu0 %v1894
    %v5024 = vpop.f32.mrb[0].mxu0
    %v5025 = vadd.f32 0.0, %v5024
    %v5026 = vpop.f32.mrb[0].mxu0
    %5027 = vmatprep.mubr.f32.mxu0 0.0
    %5028 = vmatmul.mubr.f32.gmra.mrb[0].mxu0 %v1895
    %v5029 = vpop.f32.mrb[0].mxu0
    %v5030 = vadd.f32 0.0, %v5029
    %v5031 = vpop.f32.mrb[0].mxu0
    %5032 = vmatprep.mubr.f32.mxu0 0.0
    %5033 = vmatmul.mubr.f32.gmra.mrb[0].mxu0 %v1896
    %v5034 = vpop.f32.mrb[0].mxu0
    %v5035 = vadd.f32 0.0, %v5034
    %v5036 = vpop.f32.mrb[0].mxu0
    %5037 = vmatprep.mubr.f32.mxu0 0.0
    %5038 = vmatmul.mubr.f32.gmra.mrb[0].mxu0 %v1897
    %v5039 = vpop.f32.mrb[0].mxu0
    %v5040 = vadd.f32 0.0, %v5039
    %v5041 = vpop.f32.mrb[0].mxu0
    %5042 = vmatprep.mubr.f32.mxu0 0.0
    %5043 = vmatmul.mubr.f32.gmra.mrb[0].mxu0 %v1898
    %v5044 = vpop.f32.mrb[0].mxu0
    %v5045 = vadd.f32 0.0, %v5044
    %v5046 = vpop.f32.mrb[0].mxu0
    %5047 = vmatprep.mubr.f32.mxu0 0.0
    %5048 = vmatmul.mubr.f32.gmra.mrb[0].mxu0 %v1899
    %v5049 = vpop.f32.mrb[0].mxu0
    %v5050 = vadd.f32 0.0, %v5049
    %v5051 = vpop.f32.mrb[0].mxu0
    %5052 = vmatprep.mubr.f32.mxu0 0.0
    %5053 = vmatmul.mubr.f32.gmra.mrb[0].mxu0 %v1900
    %v5054 = vpop.f32.mrb[0].mxu0
    %v5055 = vadd.f32 0.0, %v5054
    %v5056 = vpop.f32.mrb[0].mxu0
    %5057 = vmatprep.mubr.f32.mxu0 0.0
    %5058 = vmatmul.mubr.f32.gmra.mrb[0].mxu0 %v1901
    %v5059 = vpop.f32.mrb[0].mxu0
    %v5060 = vadd.f32 0.0, %v5059
    %v5061 = vpop.f32.mrb[0].mxu0
    %5062 = vmatprep.mubr.f32.mxu0 0.0
    %5063 = vmatmul.mubr.f32.gmra.mrb[0].mxu0 %v1902
    %v5064 = vpop.f32.mrb[0].mxu0
    %v5065 = vadd.f32 0.0, %v5064
    %v5066 = vpop.f32.mrb[0].mxu0
    %5067 = vmatprep.mubr.f32.mxu0 0.0
    %5068 = vmatmul.mubr.f32.gmra.mrb[0].mxu0 %v1903
    %v5069 = vpop.f32.mrb[0].mxu0
    %v5070 = vadd.f32 0.0, %v5069
    %v5071 = vpop.f32.mrb[0].mxu0
    %5072 = vmatprep.mubr.f32.mxu0 0.0
    %5073 = vmatmul.mubr.f32.gmra.mrb[0].mxu0 %v1904
    %v5074 = vpop.f32.mrb[0].mxu0
    %v5075 = vadd.f32 0.0, %v5074
    %v5076 = vpop.f32.mrb[0].mxu0
    %5077 = vmatprep.mubr.f32.mxu0 0.0
    %5078 = vmatmul.mubr.f32.gmra.mrb[0].mxu0 %v1905
    %v5079 = vpop.f32.mrb[0].mxu0
    %v5080 = vadd.f32 0.0, %v5079
    %v5081 = vpop.f32.mrb[0].mxu0
    %5082 = vmatprep.mubr.f32.mxu0 0.0
    %5083 = vmatmul.mubr.f32.gmra.mrb[0].mxu0 %v1906
    %v5084 = vpop.f32.mrb[0].mxu0
    %v5085 = vadd.f32 0.0, %v5084
    %v5086 = vpop.f32.mrb[0].mxu0
    %5087 = vmatprep.mubr.f32.mxu0 0.0
    %5088 = vmatmul.mubr.f32.gmra.mrb[0].mxu0 %v1907
    %v5089 = vpop.f32.mrb[0].mxu0
    %v5090 = vadd.f32 0.0, %v5089
    %v5091 = vpop.f32.mrb[0].mxu0
    %5092 = vmatprep.mubr.f32.mxu0 0.0
    %5093 = vmatmul.mubr.f32.gmra.mrb[0].mxu0 %v1908
    %v5094 = vpop.f32.mrb[0].mxu0
    %v5095 = vadd.f32 0.0, %v5094
    %v5096 = vpop.f32.mrb[0].mxu0
    %5097 = vmatprep.mubr.f32.mxu0 0.0
    %5098 = vmatmul.mubr.f32.gmra.mrb[0].mxu0 %v1909
    %v5099 = vpop.f32.mrb[0].mxu0
    %v5100 = vadd.f32 0.0, %v5099
    %v5101 = vpop.f32.mrb[0].mxu0
    %5102 = vmatprep.mubr.f32.mxu0 0.0
    %5103 = vmatmul.mubr.f32.gmra.mrb[0].mxu0 %v1910
    %v5104 = vpop.f32.mrb[0].mxu0
    %v5105 = vadd.f32 0.0, %v5104
    %v5106 = vpop.f32.mrb[0].mxu0
    %5107 = vmatprep.mubr.f32.mxu0 0.0
    %5108 = vmatmul.mubr.f32.gmra.mrb[0].mxu0 %v1911
    %v5109 = vpop.f32.mrb[0].mxu0
    %v5110 = vadd.f32 0.0, %v5109
    %v5111 = vpop.f32.mrb[0].mxu0
    %5112 = vmatprep.mubr.f32.mxu0 0.0
    %5113 = vmatmul.mubr.f32.gmra.mrb[0].mxu0 %v1912
    %v5114 = vpop.f32.mrb[0].mxu0
    %v5115 = vadd.f32 0.0, %v5114
    %v5116 = vpop.f32.mrb[0].mxu0
    %5117 = vmatprep.mubr.f32.mxu0 0.0
    %5118 = vmatmul.mubr.f32.gmra.mrb[0].mxu0 %v1913
    %v5119 = vpop.f32.mrb[0].mxu0
    %v5120 = vadd.f32 0.0, %v5119
    %v5121 = vpop.f32.mrb[0].mxu0
    %5122 = vmatprep.mubr.f32.mxu0 0.0
    %5123 = vmatmul.mubr.f32.gmra.mrb[0].mxu0 %v1914
    %v5124 = vpop.f32.mrb[0].mxu0
    %v5125 = vadd.f32 0.0, %v5124
    %v5126 = vpop.f32.mrb[0].mxu0
    %5127 = vmatprep.mubr.f32.mxu0 0.0
    %5128 = vmatmul.mubr.f32.gmra.mrb[0].mxu0 %v1915
    %v5129 = vpop.f32.mrb[0].mxu0
    %v5130 = vadd.f32 0.0, %v5129
    %v5131 = vpop.f32.mrb[0].mxu0
    %5132 = vmatprep.mubr.f32.mxu0 0.0
    %5133 = vmatmul.mubr.f32.gmra.mrb[0].mxu0 %v1916
    %v5134 = vpop.f32.mrb[0].mxu0
    %v5135 = vadd.f32 0.0, %v5134
    %v5136 = vpop.f32.mrb[0].mxu0
    %5137 = vmatprep.mubr.f32.mxu0 0.0
    %5138 = vmatmul.mubr.f32.gmra.mrb[0].mxu0 %v1917
    %v5139 = vpop.f32.mrb[0].mxu0
    %v5140 = vadd.f32 0.0, %v5139
    %v5141 = vpop.f32.mrb[0].mxu0
    %5142 = vmatprep.mubr.f32.mxu0 0.0
    %5143 = vmatmul.mubr.f32.gmra.mrb[0].mxu0 %v1918
    %v5144 = vpop.f32.mrb[0].mxu0
    %v5145 = vadd.f32 0.0, %v5144
    %v5146 = vpop.f32.mrb[0].mxu0
    %5147 = vmatprep.mubr.f32.mxu0 0.0
    %5148 = vmatmul.mubr.f32.gmra.mrb[0].mxu0 %v1919
    %v5149 = vpop.f32.mrb[0].mxu0
    %v5150 = vadd.f32 0.0, %v5149
    %v5151 = vpop.f32.mrb[0].mxu0
    %5152 = vmatprep.mubr.f32.mxu0 0.0
    %5153 = vmatmul.mubr.f32.gmra.mrb[0].mxu0 %v1920
    %v5154 = vpop.f32.mrb[0].mxu0
    %v5155 = vadd.f32 0.0, %v5154
    %v5156 = vpop.f32.mrb[0].mxu0
    %5157 = vmatprep.mubr.f32.mxu0 0.0
    %5158 = vmatmul.mubr.f32.gmra.mrb[0].mxu0 %v1921
    %v5159 = vpop.f32.mrb[0].mxu0
    %v5160 = vadd.f32 0.0, %v5159
    %v5161 = vpop.f32.mrb[0].mxu0
    %5162 = vmatprep.mubr.f32.mxu0 0.0
    %5163 = vmatmul.mubr.f32.gmra.mrb[0].mxu0 %v1922
    %v5164 = vpop.f32.mrb[0].mxu0
    %v5165 = vadd.f32 0.0, %v5164
    %v5166 = vpop.f32.mrb[0].mxu0
    %5167 = vmatprep.mubr.f32.mxu0 0.0
    %5168 = vmatmul.mubr.f32.gmra.mrb[0].mxu0 %v1923
    %v5169 = vpop.f32.mrb[0].mxu0
    %v5170 = vadd.f32 0.0, %v5169
    %v5171 = vpop.f32.mrb[0].mxu0
    %5172 = vmatprep.mubr.f32.mxu0 0.0
    %5173 = vmatmul.mubr.f32.gmra.mrb[0].mxu0 %v1924
    %v5174 = vpop.f32.mrb[0].mxu0
    %v5175 = vadd.f32 0.0, %v5174
    %v5176 = vpop.f32.mrb[0].mxu0
    %5177 = vmatprep.mubr.f32.mxu0 0.0
    %5178 = vmatmul.mubr.f32.gmra.mrb[0].mxu0 %v1925
    %v5179 = vpop.f32.mrb[0].mxu0
    %v5180 = vadd.f32 0.0, %v5179
    %v5181 = vpop.f32.mrb[0].mxu0
    %5182 = vmatprep.mubr.f32.mxu0 0.0
    %5183 = vmatmul.mubr.f32.gmra.mrb[0].mxu0 %v1926
    %v5184 = vpop.f32.mrb[0].mxu0
    %v5185 = vadd.f32 0.0, %v5184
    %v5186 = vpop.f32.mrb[0].mxu0
    %5187 = vmatprep.mubr.f32.mxu0 0.0
    %5188 = vmatmul.mubr.f32.gmra.mrb[0].mxu0 %v1927
    %v5189 = vpop.f32.mrb[0].mxu0
    %v5190 = vadd.f32 0.0, %v5189
    %v5191 = vpop.f32.mrb[0].mxu0
    %5192 = vmatprep.mubr.f32.mxu0 0.0
    %5193 = vmatmul.mubr.f32.gmra.mrb[0].mxu0 %v1928
    %v5194 = vpop.f32.mrb[0].mxu0
    %v5195 = vadd.f32 0.0, %v5194
    %v5196 = vpop.f32.mrb[0].mxu0
    %5197 = vmatprep.mubr.f32.mxu0 0.0
    %5198 = vmatmul.mubr.f32.gmra.mrb[0].mxu0 %v1929
    %v5199 = vpop.f32.mrb[0].mxu0
    %v5200 = vadd.f32 0.0, %v5199
    %v5201 = vpop.f32.mrb[0].mxu0
    %5202 = vmatprep.mubr.f32.mxu0 0.0
    %5203 = vmatmul.mubr.f32.gmra.mrb[0].mxu0 %v1930
    %v5204 = vpop.f32.mrb[0].mxu0
    %v5205 = vadd.f32 0.0, %v5204
    %v5206 = vpop.f32.mrb[0].mxu0
    %5207 = vmatprep.mubr.f32.mxu0 0.0
    %5208 = vmatmul.mubr.f32.gmra.mrb[0].mxu0 %v1931
    %v5209 = vpop.f32.mrb[0].mxu0
    %v5210 = vadd.f32 0.0, %v5209
    %v5211 = vpop.f32.mrb[0].mxu0
    %5212 = vmatprep.mubr.f32.mxu0 0.0
    %5213 = vmatmul.mubr.f32.gmra.mrb[0].mxu0 %v1932
    %v5214 = vpop.f32.mrb[0].mxu0
    %v5215 = vadd.f32 0.0, %v5214
    %v5216 = vpop.f32.mrb[0].mxu0
    %5217 = vmatprep.mubr.f32.mxu0 0.0
    %5218 = vmatmul.mubr.f32.gmra.mrb[0].mxu0 %v1933
    %v5219 = vpop.f32.mrb[0].mxu0
    %v5220 = vadd.f32 0.0, %v5219
    %v5221 = vpop.f32.mrb[0].mxu0
    %5222 = vmatprep.mubr.f32.mxu0 0.0
    %5223 = vmatmul.mubr.f32.gmra.mrb[0].mxu0 %v1934
    %v5224 = vpop.f32.mrb[0].mxu0
    %v5225 = vadd.f32 0.0, %v5224
    %v5226 = vpop.f32.mrb[0].mxu0
    %5227 = vmatprep.mubr.f32.mxu0 0.0
    %5228 = vmatmul.mubr.f32.gmra.mrb[0].mxu0 %v1935
    %v5229 = vpop.f32.mrb[0].mxu0
    %v5230 = vadd.f32 0.0, %v5229
    %v5231 = vpop.f32.mrb[0].mxu0
    %5232 = vmatprep.mubr.f32.mxu0 0.0
    %5233 = vmatmul.mubr.f32.gmra.mrb[0].mxu0 %v1936
    %v5234 = vpop.f32.mrb[0].mxu0
    %v5235 = vadd.f32 0.0, %v5234
    %v5236 = vpop.f32.mrb[0].mxu0
    %5237 = vmatprep.mubr.f32.mxu0 0.0
    %5238 = vmatmul.mubr.f32.gmra.mrb[0].mxu0 %v1937
    %v5239 = vpop.f32.mrb[0].mxu0
    %v5240 = vadd.f32 0.0, %v5239
    %v5241 = vpop.f32.mrb[0].mxu0
    %5242 = vmatprep.mubr.f32.mxu0 0.0
    %5243 = vmatmul.mubr.f32.gmra.mrb[0].mxu0 %v1938
    %v5244 = vpop.f32.mrb[0].mxu0
    %v5245 = vadd.f32 0.0, %v5244
    %v5246 = vpop.f32.mrb[0].mxu0
    %5247 = vmatprep.mubr.f32.mxu0 0.0
    %5248 = vmatmul.mubr.f32.gmra.mrb[0].mxu0 %v1939
    %v5249 = vpop.f32.mrb[0].mxu0
    %v5250 = vadd.f32 0.0, %v5249
    %v5251 = vpop.f32.mrb[0].mxu0
    %5252 = vmatprep.mubr.f32.mxu0 0.0
    %5253 = vmatmul.mubr.f32.gmra.mrb[0].mxu0 %v1940
    %v5254 = vpop.f32.mrb[0].mxu0
    %v5255 = vadd.f32 0.0, %v5254
    %v5256 = vpop.f32.mrb[0].mxu0
    %5257 = vmatprep.mubr.f32.mxu0 0.0
    %5258 = vmatmul.mubr.f32.gmra.mrb[0].mxu0 %v1941
    %v5259 = vpop.f32.mrb[0].mxu0
    %v5260 = vadd.f32 0.0, %v5259
    %v5261 = vpop.f32.mrb[0].mxu0
    %5262 = vmatprep.mubr.f32.mxu0 0.0
    %5263 = vmatmul.mubr.f32.gmra.mrb[0].mxu0 %v1942
    %v5264 = vpop.f32.mrb[0].mxu0
    %v5265 = vadd.f32 0.0, %v5264
    %v5266 = vpop.f32.mrb[0].mxu0
    %5267 = vmatprep.mubr.f32.mxu0 0.0
    %5268 = vmatmul.mubr.f32.gmra.mrb[0].mxu0 %v1943
    %v5269 = vpop.f32.mrb[0].mxu0
    %v5270 = vadd.f32 0.0, %v5269
    %v5271 = vpop.f32.mrb[0].mxu0
    %5272 = vmatprep.mubr.f32.mxu0 0.0
    %5273 = vmatmul.mubr.f32.gmra.mrb[0].mxu0 %v1944
    %v5274 = vpop.f32.mrb[0].mxu0
    %v5275 = vadd.f32 0.0, %v5274
    %v5276 = vpop.f32.mrb[0].mxu0
    %5277 = vmatprep.mubr.f32.mxu0 0.0
    %5278 = vmatmul.mubr.f32.gmra.mrb[0].mxu0 %v1945
    %v5279 = vpop.f32.mrb[0].mxu0
    %v5280 = vadd.f32 0.0, %v5279
    %v5281 = vpop.f32.mrb[0].mxu0
    %5282 = vmatprep.mubr.f32.mxu0 0.0
    %5283 = vmatmul.mubr.f32.gmra.mrb[0].mxu0 %v1946
    %v5284 = vpop.f32.mrb[0].mxu0
    %v5285 = vadd.f32 0.0, %v5284
    %v5286 = vpop.f32.mrb[0].mxu0
    %5287 = vmatprep.mubr.f32.mxu0 0.0
    %5288 = vmatmul.mubr.f32.gmra.mrb[0].mxu0 %v1947
    %v5289 = vpop.f32.mrb[0].mxu0
    %v5290 = vadd.f32 0.0, %v5289
    %v5291 = vpop.f32.mrb[0].mxu0
    %5292 = vmatprep.mubr.f32.mxu0 0.0
    %5293 = vmatmul.mubr.f32.gmra.mrb[0].mxu0 %v1948
    %v5294 = vpop.f32.mrb[0].mxu0
    %v5295 = vadd.f32 0.0, %v5294
    %v5296 = vpop.f32.mrb[0].mxu0
    %5297 = vmatprep.mubr.f32.mxu0 0.0
    %5298 = vmatmul.mubr.f32.gmra.mrb[0].mxu0 %v1949
    %v5299 = vpop.f32.mrb[0].mxu0
    %v5300 = vadd.f32 0.0, %v5299
    %v5301 = vpop.f32.mrb[0].mxu0
    %5302 = vmatprep.mubr.f32.mxu0 0.0
    %5303 = vmatmul.mubr.f32.gmra.mrb[0].mxu0 %v1950
    %v5304 = vpop.f32.mrb[0].mxu0
    %v5305 = vadd.f32 0.0, %v5304
    %v5306 = vpop.f32.mrb[0].mxu0
    %5307 = vmatprep.mubr.f32.mxu0 0.0
    %5308 = vmatmul.mubr.f32.gmra.mrb[0].mxu0 %v1951
    %v5309 = vpop.f32.mrb[0].mxu0
    %v5310 = vadd.f32 0.0, %v5309
    %v5311 = vpop.f32.mrb[0].mxu0
    %5312 = vmatprep.mubr.f32.mxu0 0.0
    %5313 = vmatmul.mubr.f32.gmra.mrb[0].mxu0 %v1952
    %v5314 = vpop.f32.mrb[0].mxu0
    %v5315 = vadd.f32 0.0, %v5314
    %v5316 = vpop.f32.mrb[0].mxu0
    %5317 = vmatprep.mubr.f32.mxu0 0.0
    %5318 = vmatmul.mubr.f32.gmra.mrb[0].mxu0 %v1953
    %v5319 = vpop.f32.mrb[0].mxu0
    %v5320 = vadd.f32 0.0, %v5319
    %v5321 = vpop.f32.mrb[0].mxu0
    %5322 = vmatprep.mubr.f32.mxu0 0.0
    %5323 = vmatmul.mubr.f32.gmra.mrb[0].mxu0 %v1954
    %v5324 = vpop.f32.mrb[0].mxu0
    %v5325 = vadd.f32 0.0, %v5324
    %v5326 = vpop.f32.mrb[0].mxu0
    %5327 = vmatprep.mubr.f32.mxu0 0.0
    %5328 = vmatmul.mubr.f32.gmra.mrb[0].mxu0 %v1955
    %v5329 = vpop.f32.mrb[0].mxu0
    %v5330 = vadd.f32 0.0, %v5329
    %v5331 = vpop.f32.mrb[0].mxu0
    %5332 = vmatprep.mubr.f32.mxu0 0.0
    %5333 = vmatmul.mubr.f32.gmra.mrb[0].mxu0 %v1956
    %v5334 = vpop.f32.mrb[0].mxu0
    %v5335 = vadd.f32 0.0, %v5334
    %v5336 = vpop.f32.mrb[0].mxu0
    %5337 = vmatprep.mubr.f32.mxu0 0.0
    %5338 = vmatmul.mubr.f32.gmra.mrb[0].mxu0 %v1957
    %v5339 = vpop.f32.mrb[0].mxu0
    %v5340 = vadd.f32 0.0, %v5339
    %v5341 = vpop.f32.mrb[0].mxu0
    %5342 = vmatprep.mubr.f32.mxu0 0.0
    %5343 = vmatmul.mubr.f32.gmra.mrb[0].mxu0 %v1958
    %v5344 = vpop.f32.mrb[0].mxu0
    %v5345 = vadd.f32 0.0, %v5344
    %v5346 = vpop.f32.mrb[0].mxu0
    %5347 = vmatprep.mubr.f32.mxu0 0.0
    %5348 = vmatmul.mubr.f32.gmra.mrb[0].mxu0 %v1959
    %v5349 = vpop.f32.mrb[0].mxu0
    %v5350 = vadd.f32 0.0, %v5349
    %v5351 = vpop.f32.mrb[0].mxu0
    %5352 = vmatprep.mubr.f32.mxu0 0.0
    %5353 = vmatmul.mubr.f32.gmra.mrb[0].mxu0 %v1960
    %v5354 = vpop.f32.mrb[0].mxu0
    %v5355 = vadd.f32 0.0, %v5354
    %v5356 = vpop.f32.mrb[0].mxu0
    %5357 = vmatprep.mubr.f32.mxu0 0.0
    %5358 = vmatmul.mubr.f32.gmra.mrb[0].mxu0 %v1961
    %v5359 = vpop.f32.mrb[0].mxu0
    %v5360 = vadd.f32 0.0, %v5359
    %v5361 = vpop.f32.mrb[0].mxu0
    %5362 = vmatprep.mubr.f32.mxu0 0.0
    %5363 = vmatmul.mubr.f32.gmra.mrb[0].mxu0 %v1962
    %v5364 = vpop.f32.mrb[0].mxu0
    %v5365 = vadd.f32 0.0, %v5364
    %v5366 = vpop.f32.mrb[0].mxu0
    %5367 = vmatprep.mubr.f32.mxu0 0.0
    %5368 = vmatmul.mubr.f32.gmra.mrb[0].mxu0 %v1963
    %v5369 = vpop.f32.mrb[0].mxu0
    %v5370 = vadd.f32 0.0, %v5369
    %v5371 = vpop.f32.mrb[0].mxu0
    %5372 = vmatprep.mubr.f32.mxu0 0.0
    %5373 = vmatmul.mubr.f32.gmra.mrb[0].mxu0 %v1964
    %v5374 = vpop.f32.mrb[0].mxu0
    %v5375 = vadd.f32 0.0, %v5374
    %v5376 = vpop.f32.mrb[0].mxu0
    %5377 = vmatprep.mubr.f32.mxu0 0.0
    %5378 = vmatmul.mubr.f32.gmra.mrb[0].mxu0 %v1965
    %v5379 = vpop.f32.mrb[0].mxu0
    %v5380 = vadd.f32 0.0, %v5379
    %v5381 = vpop.f32.mrb[0].mxu0
    %5382 = vmatprep.mubr.f32.mxu0 0.0
    %5383 = vmatmul.mubr.f32.gmra.mrb[0].mxu0 %v1966
    %v5384 = vpop.f32.mrb[0].mxu0
    %v5385 = vadd.f32 0.0, %v5384
    %v5386 = vpop.f32.mrb[0].mxu0
    %5387 = vmatprep.mubr.f32.mxu0 0.0
    %5388 = vmatmul.mubr.f32.gmra.mrb[0].mxu0 %v1967
    %v5389 = vpop.f32.mrb[0].mxu0
    %v5390 = vadd.f32 0.0, %v5389
    %v5391 = vpop.f32.mrb[0].mxu0
    %5392 = vmatprep.mubr.f32.mxu0 0.0
    %5393 = vmatmul.mubr.f32.gmra.mrb[0].mxu0 %v1968
    %v5394 = vpop.f32.mrb[0].mxu0
    %v5395 = vadd.f32 0.0, %v5394
    %v5396 = vpop.f32.mrb[0].mxu0
    %5397 = vdwg.mxu0
    %5398 = vmatprep.subr.mxu0 0.0
    %5399 = vmatpush1.msra.mxu0 %v4660
    %5400 = vmatprep.subr.mxu0 0.0
    %5401 = vmatpush1.msra.mxu0 %v4661
    %5402 = vmatprep.subr.mxu0 0.0
    %5403 = vmatpush1.msra.mxu0 %v4662
    %5404 = vmatprep.subr.mxu0 0.0
    %5405 = vmatpush1.msra.mxu0 %v4663
    %5406 = vmatprep.subr.mxu0 0.0
    %5407 = vmatpush1.msra.mxu0 %v4664
    %5408 = vmatprep.subr.mxu0 0.0
    %5409 = vmatpush1.msra.mxu0 %v4665
    %5410 = vmatprep.subr.mxu0 0.0
    %5411 = vmatpush1.msra.mxu0 %v4666
    %5412 = vmatprep.subr.mxu0 0.0
    %5413 = vmatpush1.msra.mxu0 %v4667
    %5414 = vmatprep.subr.mxu0 0.0
    %5415 = vmatpush1.msra.mxu0 %v4668
    %5416 = vmatprep.subr.mxu0 0.0
    %5417 = vmatpush1.msra.mxu0 %v4669
    %5418 = vmatprep.subr.mxu0 0.0
    %5419 = vmatpush1.msra.mxu0 %v4670
    %5420 = vmatprep.subr.mxu0 0.0
    %5421 = vmatpush1.msra.mxu0 %v4671
    %5422 = vmatprep.subr.mxu0 0.0
    %5423 = vmatpush1.msra.mxu0 %v4672
    %5424 = vmatprep.subr.mxu0 0.0
    %5425 = vmatpush1.msra.mxu0 %v4673
    %5426 = vmatprep.subr.mxu0 0.0
    %5427 = vmatpush1.msra.mxu0 %v4674
    %5428 = vmatprep.subr.mxu0 0.0
    %5429 = vmatpush1.msra.mxu0 %v4675
    %5430 = vmatprep.subr.mxu0 0.0
    %5431 = vmatpush1.msra.mxu0 0.0
    %5432 = vmatprep.subr.mxu0 0.0
    %5433 = vmatpush1.msra.mxu0 0.0
    %5434 = vmatprep.subr.mxu0 0.0
    %5435 = vmatpush1.msra.mxu0 0.0
    %5436 = vmatprep.subr.mxu0 0.0
    %5437 = vmatpush1.msra.mxu0 0.0
    %5438 = vmatprep.subr.mxu0 0.0
    %5439 = vmatpush1.msra.mxu0 0.0
    %5440 = vmatprep.subr.mxu0 0.0
    %5441 = vmatpush1.msra.mxu0 0.0
    %5442 = vmatprep.subr.mxu0 0.0
    %5443 = vmatpush1.msra.mxu0 0.0
    %5444 = vmatprep.subr.mxu0 0.0
    %5445 = vmatpush1.msra.mxu0 0.0
    %5446 = vmatprep.subr.mxu0 0.0
    %5447 = vmatpush1.msra.mxu0 0.0
    %5448 = vmatprep.subr.mxu0 0.0
    %5449 = vmatpush1.msra.mxu0 0.0
    %5450 = vmatprep.subr.mxu0 0.0
    %5451 = vmatpush1.msra.mxu0 0.0
    %5452 = vmatprep.subr.mxu0 0.0
    %5453 = vmatpush1.msra.mxu0 0.0
    %5454 = vmatprep.subr.mxu0 0.0
    %5455 = vmatpush1.msra.mxu0 0.0
    %5456 = vmatprep.subr.mxu0 0.0
    %5457 = vmatpush1.msra.mxu0 0.0
    %5458 = vmatprep.subr.mxu0 0.0
    %5459 = vmatpush1.msra.mxu0 0.0
    %5460 = vmatprep.subr.mxu0 0.0
    %5461 = vmatpush1.msra.mxu0 0.0
    %5462 = vmatprep.mubr.f32.mxu0 0.0
    %5463 = vmatmul.mubr.f32.gmra.mrb[0].mxu0 %v4019
    %v5464 = vpop.f32.mrb[0].mxu0
    %v5465 = vadd.f32 %v4760, %v5464
    %v5466 = vpop.f32.mrb[0].mxu0
    %5467 = vmatprep.mubr.f32.mxu0 0.0
    %5468 = vmatmul.mubr.f32.gmra.mrb[0].mxu0 %v4020
    %v5469 = vpop.f32.mrb[0].mxu0
    %v5470 = vadd.f32 %v4765, %v5469
    %v5471 = vpop.f32.mrb[0].mxu0
    %5472 = vmatprep.mubr.f32.mxu0 0.0
    %5473 = vmatmul.mubr.f32.gmra.mrb[0].mxu0 %v4021
    %v5474 = vpop.f32.mrb[0].mxu0
    %v5475 = vadd.f32 %v4770, %v5474
    %v5476 = vpop.f32.mrb[0].mxu0
    %5477 = vmatprep.mubr.f32.mxu0 0.0
    %5478 = vmatmul.mubr.f32.gmra.mrb[0].mxu0 %v4022
    %v5479 = vpop.f32.mrb[0].mxu0
    %v5480 = vadd.f32 %v4775, %v5479
    %v5481 = vpop.f32.mrb[0].mxu0
    %5482 = vmatprep.mubr.f32.mxu0 0.0
    %5483 = vmatmul.mubr.f32.gmra.mrb[0].mxu0 %v4023
    %v5484 = vpop.f32.mrb[0].mxu0
    %v5485 = vadd.f32 %v4780, %v5484
    %v5486 = vpop.f32.mrb[0].mxu0
    %5487 = vmatprep.mubr.f32.mxu0 0.0
    %5488 = vmatmul.mubr.f32.gmra.mrb[0].mxu0 %v4024
    %v5489 = vpop.f32.mrb[0].mxu0
    %v5490 = vadd.f32 %v4785, %v5489
    %v5491 = vpop.f32.mrb[0].mxu0
    %5492 = vmatprep.mubr.f32.mxu0 0.0
    %5493 = vmatmul.mubr.f32.gmra.mrb[0].mxu0 %v4025
    %v5494 = vpop.f32.mrb[0].mxu0
    %v5495 = vadd.f32 %v4790, %v5494
    %v5496 = vpop.f32.mrb[0].mxu0
    %5497 = vmatprep.mubr.f32.mxu0 0.0
    %5498 = vmatmul.mubr.f32.gmra.mrb[0].mxu0 %v4026
    %v5499 = vpop.f32.mrb[0].mxu0
    %v5500 = vadd.f32 %v4795, %v5499
    %v5501 = vpop.f32.mrb[0].mxu0
    %5502 = vmatprep.mubr.f32.mxu0 0.0
    %5503 = vmatmul.mubr.f32.gmra.mrb[0].mxu0 %v4027
    %v5504 = vpop.f32.mrb[0].mxu0
    %v5505 = vadd.f32 %v4800, %v5504
    %v5506 = vpop.f32.mrb[0].mxu0
    %5507 = vmatprep.mubr.f32.mxu0 0.0
    %5508 = vmatmul.mubr.f32.gmra.mrb[0].mxu0 %v4028
    %v5509 = vpop.f32.mrb[0].mxu0
    %v5510 = vadd.f32 %v4805, %v5509
    %v5511 = vpop.f32.mrb[0].mxu0
    %5512 = vmatprep.mubr.f32.mxu0 0.0
    %5513 = vmatmul.mubr.f32.gmra.mrb[0].mxu0 %v4029
    %v5514 = vpop.f32.mrb[0].mxu0
    %v5515 = vadd.f32 %v4810, %v5514
    %v5516 = vpop.f32.mrb[0].mxu0
    %5517 = vmatprep.mubr.f32.mxu0 0.0
    %5518 = vmatmul.mubr.f32.gmra.mrb[0].mxu0 %v4030
    %v5519 = vpop.f32.mrb[0].mxu0
    %v5520 = vadd.f32 %v4815, %v5519
    %v5521 = vpop.f32.mrb[0].mxu0
    %5522 = vmatprep.mubr.f32.mxu0 0.0
    %5523 = vmatmul.mubr.f32.gmra.mrb[0].mxu0 %v4031
    %v5524 = vpop.f32.mrb[0].mxu0
    %v5525 = vadd.f32 %v4820, %v5524
    %v5526 = vpop.f32.mrb[0].mxu0
    %5527 = vmatprep.mubr.f32.mxu0 0.0
    %5528 = vmatmul.mubr.f32.gmra.mrb[0].mxu0 %v4032
    %v5529 = vpop.f32.mrb[0].mxu0
    %v5530 = vadd.f32 %v4825, %v5529
    %v5531 = vpop.f32.mrb[0].mxu0
    %5532 = vmatprep.mubr.f32.mxu0 0.0
    %5533 = vmatmul.mubr.f32.gmra.mrb[0].mxu0 %v4033
    %v5534 = vpop.f32.mrb[0].mxu0
    %v5535 = vadd.f32 %v4830, %v5534
    %v5536 = vpop.f32.mrb[0].mxu0
    %5537 = vmatprep.mubr.f32.mxu0 0.0
    %5538 = vmatmul.mubr.f32.gmra.mrb[0].mxu0 %v4034
    %v5539 = vpop.f32.mrb[0].mxu0
    %v5540 = vadd.f32 %v4835, %v5539
    %v5541 = vpop.f32.mrb[0].mxu0
    %5542 = vmatprep.mubr.f32.mxu0 0.0
    %5543 = vmatmul.mubr.f32.gmra.mrb[0].mxu0 %v4035
    %v5544 = vpop.f32.mrb[0].mxu0
    %v5545 = vadd.f32 %v4840, %v5544
    %v5546 = vpop.f32.mrb[0].mxu0
    %5547 = vmatprep.mubr.f32.mxu0 0.0
    %5548 = vmatmul.mubr.f32.gmra.mrb[0].mxu0 %v4036
    %v5549 = vpop.f32.mrb[0].mxu0
    %v5550 = vadd.f32 %v4845, %v5549
    %v5551 = vpop.f32.mrb[0].mxu0
    %5552 = vmatprep.mubr.f32.mxu0 0.0
    %5553 = vmatmul.mubr.f32.gmra.mrb[0].mxu0 %v4037
    %v5554 = vpop.f32.mrb[0].mxu0
    %v5555 = vadd.f32 %v4850, %v5554
    %v5556 = vpop.f32.mrb[0].mxu0
    %5557 = vmatprep.mubr.f32.mxu0 0.0
    %5558 = vmatmul.mubr.f32.gmra.mrb[0].mxu0 %v4038
    %v5559 = vpop.f32.mrb[0].mxu0
    %v5560 = vadd.f32 %v4855, %v5559
    %v5561 = vpop.f32.mrb[0].mxu0
    %5562 = vmatprep.mubr.f32.mxu0 0.0
    %5563 = vmatmul.mubr.f32.gmra.mrb[0].mxu0 %v4039
    %v5564 = vpop.f32.mrb[0].mxu0
    %v5565 = vadd.f32 %v4860, %v5564
    %v5566 = vpop.f32.mrb[0].mxu0
    %5567 = vmatprep.mubr.f32.mxu0 0.0
    %5568 = vmatmul.mubr.f32.gmra.mrb[0].mxu0 %v4040
    %v5569 = vpop.f32.mrb[0].mxu0
    %v5570 = vadd.f32 %v4865, %v5569
    %v5571 = vpop.f32.mrb[0].mxu0
    %5572 = vmatprep.mubr.f32.mxu0 0.0
    %5573 = vmatmul.mubr.f32.gmra.mrb[0].mxu0 %v4041
    %v5574 = vpop.f32.mrb[0].mxu0
    %v5575 = vadd.f32 %v4870, %v5574
    %v5576 = vpop.f32.mrb[0].mxu0
    %5577 = vmatprep.mubr.f32.mxu0 0.0
    %5578 = vmatmul.mubr.f32.gmra.mrb[0].mxu0 %v4042
    %v5579 = vpop.f32.mrb[0].mxu0
    %v5580 = vadd.f32 %v4875, %v5579
    %v5581 = vpop.f32.mrb[0].mxu0
    %5582 = vmatprep.mubr.f32.mxu0 0.0
    %5583 = vmatmul.mubr.f32.gmra.mrb[0].mxu0 %v4043
    %v5584 = vpop.f32.mrb[0].mxu0
    %v5585 = vadd.f32 %v4880, %v5584
    %v5586 = vpop.f32.mrb[0].mxu0
    %5587 = vmatprep.mubr.f32.mxu0 0.0
    %5588 = vmatmul.mubr.f32.gmra.mrb[0].mxu0 %v4044
    %v5589 = vpop.f32.mrb[0].mxu0
    %v5590 = vadd.f32 %v4885, %v5589
    %v5591 = vpop.f32.mrb[0].mxu0
    %5592 = vmatprep.mubr.f32.mxu0 0.0
    %5593 = vmatmul.mubr.f32.gmra.mrb[0].mxu0 %v4045
    %v5594 = vpop.f32.mrb[0].mxu0
    %v5595 = vadd.f32 %v4890, %v5594
    %v5596 = vpop.f32.mrb[0].mxu0
    %5597 = vmatprep.mubr.f32.mxu0 0.0
    %5598 = vmatmul.mubr.f32.gmra.mrb[0].mxu0 %v4046
    %v5599 = vpop.f32.mrb[0].mxu0
    %v5600 = vadd.f32 %v4895, %v5599
    %v5601 = vpop.f32.mrb[0].mxu0
    %5602 = vmatprep.mubr.f32.mxu0 0.0
    %5603 = vmatmul.mubr.f32.gmra.mrb[0].mxu0 %v4047
    %v5604 = vpop.f32.mrb[0].mxu0
    %v5605 = vadd.f32 %v4900, %v5604
    %v5606 = vpop.f32.mrb[0].mxu0
    %5607 = vmatprep.mubr.f32.mxu0 0.0
    %5608 = vmatmul.mubr.f32.gmra.mrb[0].mxu0 %v4048
    %v5609 = vpop.f32.mrb[0].mxu0
    %v5610 = vadd.f32 %v4905, %v5609
    %v5611 = vpop.f32.mrb[0].mxu0
    %5612 = vmatprep.mubr.f32.mxu0 0.0
    %5613 = vmatmul.mubr.f32.gmra.mrb[0].mxu0 %v4049
    %v5614 = vpop.f32.mrb[0].mxu0
    %v5615 = vadd.f32 %v4910, %v5614
    %v5616 = vpop.f32.mrb[0].mxu0
    %5617 = vmatprep.mubr.f32.mxu0 0.0
    %5618 = vmatmul.mubr.f32.gmra.mrb[0].mxu0 %v4050
    %v5619 = vpop.f32.mrb[0].mxu0
    %v5620 = vadd.f32 %v4915, %v5619
    %v5621 = vpop.f32.mrb[0].mxu0
    %5622 = vmatprep.mubr.f32.mxu0 0.0
    %5623 = vmatmul.mubr.f32.gmra.mrb[0].mxu0 %v4051
    %v5624 = vpop.f32.mrb[0].mxu0
    %v5625 = vadd.f32 %v4920, %v5624
    %v5626 = vpop.f32.mrb[0].mxu0
    %5627 = vmatprep.mubr.f32.mxu0 0.0
    %5628 = vmatmul.mubr.f32.gmra.mrb[0].mxu0 %v4052
    %v5629 = vpop.f32.mrb[0].mxu0
    %v5630 = vadd.f32 %v4925, %v5629
    %v5631 = vpop.f32.mrb[0].mxu0
    %5632 = vmatprep.mubr.f32.mxu0 0.0
    %5633 = vmatmul.mubr.f32.gmra.mrb[0].mxu0 %v4053
    %v5634 = vpop.f32.mrb[0].mxu0
    %v5635 = vadd.f32 %v4930, %v5634
    %v5636 = vpop.f32.mrb[0].mxu0
    %5637 = vmatprep.mubr.f32.mxu0 0.0
    %5638 = vmatmul.mubr.f32.gmra.mrb[0].mxu0 %v4054
    %v5639 = vpop.f32.mrb[0].mxu0
    %v5640 = vadd.f32 %v4935, %v5639
    %v5641 = vpop.f32.mrb[0].mxu0
    %5642 = vmatprep.mubr.f32.mxu0 0.0
    %5643 = vmatmul.mubr.f32.gmra.mrb[0].mxu0 %v4055
    %v5644 = vpop.f32.mrb[0].mxu0
    %v5645 = vadd.f32 %v4940, %v5644
    %v5646 = vpop.f32.mrb[0].mxu0
    %5647 = vmatprep.mubr.f32.mxu0 0.0
    %5648 = vmatmul.mubr.f32.gmra.mrb[0].mxu0 %v4056
    %v5649 = vpop.f32.mrb[0].mxu0
    %v5650 = vadd.f32 %v4945, %v5649
    %v5651 = vpop.f32.mrb[0].mxu0
    %5652 = vmatprep.mubr.f32.mxu0 0.0
    %5653 = vmatmul.mubr.f32.gmra.mrb[0].mxu0 %v4057
    %v5654 = vpop.f32.mrb[0].mxu0
    %v5655 = vadd.f32 %v4950, %v5654
    %v5656 = vpop.f32.mrb[0].mxu0
    %5657 = vmatprep.mubr.f32.mxu0 0.0
    %5658 = vmatmul.mubr.f32.gmra.mrb[0].mxu0 %v4058
    %v5659 = vpop.f32.mrb[0].mxu0
    %v5660 = vadd.f32 %v4955, %v5659
    %v5661 = vpop.f32.mrb[0].mxu0
    %5662 = vmatprep.mubr.f32.mxu0 0.0
    %5663 = vmatmul.mubr.f32.gmra.mrb[0].mxu0 %v4059
    %v5664 = vpop.f32.mrb[0].mxu0
    %v5665 = vadd.f32 %v4960, %v5664
    %v5666 = vpop.f32.mrb[0].mxu0
    %5667 = vmatprep.mubr.f32.mxu0 0.0
    %5668 = vmatmul.mubr.f32.gmra.mrb[0].mxu0 %v4060
    %v5669 = vpop.f32.mrb[0].mxu0
    %v5670 = vadd.f32 %v4965, %v5669
    %v5671 = vpop.f32.mrb[0].mxu0
    %5672 = vmatprep.mubr.f32.mxu0 0.0
    %5673 = vmatmul.mubr.f32.gmra.mrb[0].mxu0 %v4061
    %v5674 = vpop.f32.mrb[0].mxu0
    %v5675 = vadd.f32 %v4970, %v5674
    %v5676 = vpop.f32.mrb[0].mxu0
    %5677 = vmatprep.mubr.f32.mxu0 0.0
    %5678 = vmatmul.mubr.f32.gmra.mrb[0].mxu0 %v4062
    %v5679 = vpop.f32.mrb[0].mxu0
    %v5680 = vadd.f32 %v4975, %v5679
    %v5681 = vpop.f32.mrb[0].mxu0
    %5682 = vmatprep.mubr.f32.mxu0 0.0
    %5683 = vmatmul.mubr.f32.gmra.mrb[0].mxu0 %v4063
    %v5684 = vpop.f32.mrb[0].mxu0
    %v5685 = vadd.f32 %v4980, %v5684
    %v5686 = vpop.f32.mrb[0].mxu0
    %5687 = vmatprep.mubr.f32.mxu0 0.0
    %5688 = vmatmul.mubr.f32.gmra.mrb[0].mxu0 %v4064
    %v5689 = vpop.f32.mrb[0].mxu0
    %v5690 = vadd.f32 %v4985, %v5689
    %v5691 = vpop.f32.mrb[0].mxu0
    %5692 = vmatprep.mubr.f32.mxu0 0.0
    %5693 = vmatmul.mubr.f32.gmra.mrb[0].mxu0 %v4065
    %v5694 = vpop.f32.mrb[0].mxu0
    %v5695 = vadd.f32 %v4990, %v5694
    %v5696 = vpop.f32.mrb[0].mxu0
    %5697 = vmatprep.mubr.f32.mxu0 0.0
    %5698 = vmatmul.mubr.f32.gmra.mrb[0].mxu0 %v4066
    %v5699 = vpop.f32.mrb[0].mxu0
    %v5700 = vadd.f32 %v4995, %v5699
    %v5701 = vpop.f32.mrb[0].mxu0
    %5702 = vmatprep.mubr.f32.mxu0 0.0
    %5703 = vmatmul.mubr.f32.gmra.mrb[0].mxu0 %v4067
    %v5704 = vpop.f32.mrb[0].mxu0
    %v5705 = vadd.f32 %v5000, %v5704
    %v5706 = vpop.f32.mrb[0].mxu0
    %5707 = vmatprep.mubr.f32.mxu0 0.0
    %5708 = vmatmul.mubr.f32.gmra.mrb[0].mxu0 %v4068
    %v5709 = vpop.f32.mrb[0].mxu0
    %v5710 = vadd.f32 %v5005, %v5709
    %v5711 = vpop.f32.mrb[0].mxu0
    %5712 = vmatprep.mubr.f32.mxu0 0.0
    %5713 = vmatmul.mubr.f32.gmra.mrb[0].mxu0 %v4069
    %v5714 = vpop.f32.mrb[0].mxu0
    %v5715 = vadd.f32 %v5010, %v5714
    %v5716 = vpop.f32.mrb[0].mxu0
    %5717 = vmatprep.mubr.f32.mxu0 0.0
    %5718 = vmatmul.mubr.f32.gmra.mrb[0].mxu0 %v4070
    %v5719 = vpop.f32.mrb[0].mxu0
    %v5720 = vadd.f32 %v5015, %v5719
    %v5721 = vpop.f32.mrb[0].mxu0
    %5722 = vmatprep.mubr.f32.mxu0 0.0
    %5723 = vmatmul.mubr.f32.gmra.mrb[0].mxu0 %v4071
    %v5724 = vpop.f32.mrb[0].mxu0
    %v5725 = vadd.f32 %v5020, %v5724
    %v5726 = vpop.f32.mrb[0].mxu0
    %5727 = vmatprep.mubr.f32.mxu0 0.0
    %5728 = vmatmul.mubr.f32.gmra.mrb[0].mxu0 %v4072
    %v5729 = vpop.f32.mrb[0].mxu0
    %v5730 = vadd.f32 %v5025, %v5729
    %v5731 = vpop.f32.mrb[0].mxu0
    %5732 = vmatprep.mubr.f32.mxu0 0.0
    %5733 = vmatmul.mubr.f32.gmra.mrb[0].mxu0 %v4073
    %v5734 = vpop.f32.mrb[0].mxu0
    %v5735 = vadd.f32 %v5030, %v5734
    %v5736 = vpop.f32.mrb[0].mxu0
    %5737 = vmatprep.mubr.f32.mxu0 0.0
    %5738 = vmatmul.mubr.f32.gmra.mrb[0].mxu0 %v4074
    %v5739 = vpop.f32.mrb[0].mxu0
    %v5740 = vadd.f32 %v5035, %v5739
    %v5741 = vpop.f32.mrb[0].mxu0
    %5742 = vmatprep.mubr.f32.mxu0 0.0
    %5743 = vmatmul.mubr.f32.gmra.mrb[0].mxu0 %v4075
    %v5744 = vpop.f32.mrb[0].mxu0
    %v5745 = vadd.f32 %v5040, %v5744
    %v5746 = vpop.f32.mrb[0].mxu0
    %5747 = vmatprep.mubr.f32.mxu0 0.0
    %5748 = vmatmul.mubr.f32.gmra.mrb[0].mxu0 %v4076
    %v5749 = vpop.f32.mrb[0].mxu0
    %v5750 = vadd.f32 %v5045, %v5749
    %v5751 = vpop.f32.mrb[0].mxu0
    %5752 = vmatprep.mubr.f32.mxu0 0.0
    %5753 = vmatmul.mubr.f32.gmra.mrb[0].mxu0 %v4077
    %v5754 = vpop.f32.mrb[0].mxu0
    %v5755 = vadd.f32 %v5050, %v5754
    %v5756 = vpop.f32.mrb[0].mxu0
    %5757 = vmatprep.mubr.f32.mxu0 0.0
    %5758 = vmatmul.mubr.f32.gmra.mrb[0].mxu0 %v4078
    %v5759 = vpop.f32.mrb[0].mxu0
    %v5760 = vadd.f32 %v5055, %v5759
    %v5761 = vpop.f32.mrb[0].mxu0
    %5762 = vmatprep.mubr.f32.mxu0 0.0
    %5763 = vmatmul.mubr.f32.gmra.mrb[0].mxu0 %v4079
    %v5764 = vpop.f32.mrb[0].mxu0
    %v5765 = vadd.f32 %v5060, %v5764
    %v5766 = vpop.f32.mrb[0].mxu0
    %5767 = vmatprep.mubr.f32.mxu0 0.0
    %5768 = vmatmul.mubr.f32.gmra.mrb[0].mxu0 %v4080
    %v5769 = vpop.f32.mrb[0].mxu0
    %v5770 = vadd.f32 %v5065, %v5769
    %v5771 = vpop.f32.mrb[0].mxu0
    %5772 = vmatprep.mubr.f32.mxu0 0.0
    %5773 = vmatmul.mubr.f32.gmra.mrb[0].mxu0 %v4081
    %v5774 = vpop.f32.mrb[0].mxu0
    %v5775 = vadd.f32 %v5070, %v5774
    %v5776 = vpop.f32.mrb[0].mxu0
    %5777 = vmatprep.mubr.f32.mxu0 0.0
    %5778 = vmatmul.mubr.f32.gmra.mrb[0].mxu0 %v4082
    %v5779 = vpop.f32.mrb[0].mxu0
    %v5780 = vadd.f32 %v5075, %v5779
    %v5781 = vpop.f32.mrb[0].mxu0
    %5782 = vmatprep.mubr.f32.mxu0 0.0
    %5783 = vmatmul.mubr.f32.gmra.mrb[0].mxu0 %v4083
    %v5784 = vpop.f32.mrb[0].mxu0
    %v5785 = vadd.f32 %v5080, %v5784
    %v5786 = vpop.f32.mrb[0].mxu0
    %5787 = vmatprep.mubr.f32.mxu0 0.0
    %5788 = vmatmul.mubr.f32.gmra.mrb[0].mxu0 %v4084
    %v5789 = vpop.f32.mrb[0].mxu0
    %v5790 = vadd.f32 %v5085, %v5789
    %v5791 = vpop.f32.mrb[0].mxu0
    %5792 = vmatprep.mubr.f32.mxu0 0.0
    %5793 = vmatmul.mubr.f32.gmra.mrb[0].mxu0 %v4085
    %v5794 = vpop.f32.mrb[0].mxu0
    %v5795 = vadd.f32 %v5090, %v5794
    %v5796 = vpop.f32.mrb[0].mxu0
    %5797 = vmatprep.mubr.f32.mxu0 0.0
    %5798 = vmatmul.mubr.f32.gmra.mrb[0].mxu0 %v4086
    %v5799 = vpop.f32.mrb[0].mxu0
    %v5800 = vadd.f32 %v5095, %v5799
    %v5801 = vpop.f32.mrb[0].mxu0
    %5802 = vmatprep.mubr.f32.mxu0 0.0
    %5803 = vmatmul.mubr.f32.gmra.mrb[0].mxu0 %v4087
    %v5804 = vpop.f32.mrb[0].mxu0
    %v5805 = vadd.f32 %v5100, %v5804
    %v5806 = vpop.f32.mrb[0].mxu0
    %5807 = vmatprep.mubr.f32.mxu0 0.0
    %5808 = vmatmul.mubr.f32.gmra.mrb[0].mxu0 %v4088
    %v5809 = vpop.f32.mrb[0].mxu0
    %v5810 = vadd.f32 %v5105, %v5809
    %v5811 = vpop.f32.mrb[0].mxu0
    %5812 = vmatprep.mubr.f32.mxu0 0.0
    %5813 = vmatmul.mubr.f32.gmra.mrb[0].mxu0 %v4089
    %v5814 = vpop.f32.mrb[0].mxu0
    %v5815 = vadd.f32 %v5110, %v5814
    %v5816 = vpop.f32.mrb[0].mxu0
    %5817 = vmatprep.mubr.f32.mxu0 0.0
    %5818 = vmatmul.mubr.f32.gmra.mrb[0].mxu0 %v4090
    %v5819 = vpop.f32.mrb[0].mxu0
    %v5820 = vadd.f32 %v5115, %v5819
    %v5821 = vpop.f32.mrb[0].mxu0
    %5822 = vmatprep.mubr.f32.mxu0 0.0
    %5823 = vmatmul.mubr.f32.gmra.mrb[0].mxu0 %v4091
    %v5824 = vpop.f32.mrb[0].mxu0
    %v5825 = vadd.f32 %v5120, %v5824
    %v5826 = vpop.f32.mrb[0].mxu0
    %5827 = vmatprep.mubr.f32.mxu0 0.0
    %5828 = vmatmul.mubr.f32.gmra.mrb[0].mxu0 %v4092
    %v5829 = vpop.f32.mrb[0].mxu0
    %v5830 = vadd.f32 %v5125, %v5829
    %v5831 = vpop.f32.mrb[0].mxu0
    %5832 = vmatprep.mubr.f32.mxu0 0.0
    %5833 = vmatmul.mubr.f32.gmra.mrb[0].mxu0 %v4093
    %v5834 = vpop.f32.mrb[0].mxu0
    %v5835 = vadd.f32 %v5130, %v5834
    %v5836 = vpop.f32.mrb[0].mxu0
    %5837 = vmatprep.mubr.f32.mxu0 0.0
    %5838 = vmatmul.mubr.f32.gmra.mrb[0].mxu0 %v4094
    %v5839 = vpop.f32.mrb[0].mxu0
    %v5840 = vadd.f32 %v5135, %v5839
    %v5841 = vpop.f32.mrb[0].mxu0
    %5842 = vmatprep.mubr.f32.mxu0 0.0
    %5843 = vmatmul.mubr.f32.gmra.mrb[0].mxu0 %v4095
    %v5844 = vpop.f32.mrb[0].mxu0
    %v5845 = vadd.f32 %v5140, %v5844
    %v5846 = vpop.f32.mrb[0].mxu0
    %5847 = vmatprep.mubr.f32.mxu0 0.0
    %5848 = vmatmul.mubr.f32.gmra.mrb[0].mxu0 %v4096
    %v5849 = vpop.f32.mrb[0].mxu0
    %v5850 = vadd.f32 %v5145, %v5849
    %v5851 = vpop.f32.mrb[0].mxu0
    %5852 = vmatprep.mubr.f32.mxu0 0.0
    %5853 = vmatmul.mubr.f32.gmra.mrb[0].mxu0 %v4097
    %v5854 = vpop.f32.mrb[0].mxu0
    %v5855 = vadd.f32 %v5150, %v5854
    %v5856 = vpop.f32.mrb[0].mxu0
    %5857 = vmatprep.mubr.f32.mxu0 0.0
    %5858 = vmatmul.mubr.f32.gmra.mrb[0].mxu0 %v4098
    %v5859 = vpop.f32.mrb[0].mxu0
    %v5860 = vadd.f32 %v5155, %v5859
    %v5861 = vpop.f32.mrb[0].mxu0
    %5862 = vmatprep.mubr.f32.mxu0 0.0
    %5863 = vmatmul.mubr.f32.gmra.mrb[0].mxu0 %v4099
    %v5864 = vpop.f32.mrb[0].mxu0
    %v5865 = vadd.f32 %v5160, %v5864
    %v5866 = vpop.f32.mrb[0].mxu0
    %5867 = vmatprep.mubr.f32.mxu0 0.0
    %5868 = vmatmul.mubr.f32.gmra.mrb[0].mxu0 %v4100
    %v5869 = vpop.f32.mrb[0].mxu0
    %v5870 = vadd.f32 %v5165, %v5869
    %v5871 = vpop.f32.mrb[0].mxu0
    %5872 = vmatprep.mubr.f32.mxu0 0.0
    %5873 = vmatmul.mubr.f32.gmra.mrb[0].mxu0 %v4101
    %v5874 = vpop.f32.mrb[0].mxu0
    %v5875 = vadd.f32 %v5170, %v5874
    %v5876 = vpop.f32.mrb[0].mxu0
    %5877 = vmatprep.mubr.f32.mxu0 0.0
    %5878 = vmatmul.mubr.f32.gmra.mrb[0].mxu0 %v4102
    %v5879 = vpop.f32.mrb[0].mxu0
    %v5880 = vadd.f32 %v5175, %v5879
    %v5881 = vpop.f32.mrb[0].mxu0
    %5882 = vmatprep.mubr.f32.mxu0 0.0
    %5883 = vmatmul.mubr.f32.gmra.mrb[0].mxu0 %v4103
    %v5884 = vpop.f32.mrb[0].mxu0
    %v5885 = vadd.f32 %v5180, %v5884
    %v5886 = vpop.f32.mrb[0].mxu0
    %5887 = vmatprep.mubr.f32.mxu0 0.0
    %5888 = vmatmul.mubr.f32.gmra.mrb[0].mxu0 %v4104
    %v5889 = vpop.f32.mrb[0].mxu0
    %v5890 = vadd.f32 %v5185, %v5889
    %v5891 = vpop.f32.mrb[0].mxu0
    %5892 = vmatprep.mubr.f32.mxu0 0.0
    %5893 = vmatmul.mubr.f32.gmra.mrb[0].mxu0 %v4105
    %v5894 = vpop.f32.mrb[0].mxu0
    %v5895 = vadd.f32 %v5190, %v5894
    %v5896 = vpop.f32.mrb[0].mxu0
    %5897 = vmatprep.mubr.f32.mxu0 0.0
    %5898 = vmatmul.mubr.f32.gmra.mrb[0].mxu0 %v4106
    %v5899 = vpop.f32.mrb[0].mxu0
    %v5900 = vadd.f32 %v5195, %v5899
    %v5901 = vpop.f32.mrb[0].mxu0
    %5902 = vmatprep.mubr.f32.mxu0 0.0
    %5903 = vmatmul.mubr.f32.gmra.mrb[0].mxu0 %v4107
    %v5904 = vpop.f32.mrb[0].mxu0
    %v5905 = vadd.f32 %v5200, %v5904
    %v5906 = vpop.f32.mrb[0].mxu0
    %5907 = vmatprep.mubr.f32.mxu0 0.0
    %5908 = vmatmul.mubr.f32.gmra.mrb[0].mxu0 %v4108
    %v5909 = vpop.f32.mrb[0].mxu0
    %v5910 = vadd.f32 %v5205, %v5909
    %v5911 = vpop.f32.mrb[0].mxu0
    %5912 = vmatprep.mubr.f32.mxu0 0.0
    %5913 = vmatmul.mubr.f32.gmra.mrb[0].mxu0 %v4109
    %v5914 = vpop.f32.mrb[0].mxu0
    %v5915 = vadd.f32 %v5210, %v5914
    %v5916 = vpop.f32.mrb[0].mxu0
    %5917 = vmatprep.mubr.f32.mxu0 0.0
    %5918 = vmatmul.mubr.f32.gmra.mrb[0].mxu0 %v4110
    %v5919 = vpop.f32.mrb[0].mxu0
    %v5920 = vadd.f32 %v5215, %v5919
    %v5921 = vpop.f32.mrb[0].mxu0
    %5922 = vmatprep.mubr.f32.mxu0 0.0
    %5923 = vmatmul.mubr.f32.gmra.mrb[0].mxu0 %v4111
    %v5924 = vpop.f32.mrb[0].mxu0
    %v5925 = vadd.f32 %v5220, %v5924
    %v5926 = vpop.f32.mrb[0].mxu0
    %5927 = vmatprep.mubr.f32.mxu0 0.0
    %5928 = vmatmul.mubr.f32.gmra.mrb[0].mxu0 %v4112
    %v5929 = vpop.f32.mrb[0].mxu0
    %v5930 = vadd.f32 %v5225, %v5929
    %v5931 = vpop.f32.mrb[0].mxu0
    %5932 = vmatprep.mubr.f32.mxu0 0.0
    %5933 = vmatmul.mubr.f32.gmra.mrb[0].mxu0 %v4113
    %v5934 = vpop.f32.mrb[0].mxu0
    %v5935 = vadd.f32 %v5230, %v5934
    %v5936 = vpop.f32.mrb[0].mxu0
    %5937 = vmatprep.mubr.f32.mxu0 0.0
    %5938 = vmatmul.mubr.f32.gmra.mrb[0].mxu0 %v4114
    %v5939 = vpop.f32.mrb[0].mxu0
    %v5940 = vadd.f32 %v5235, %v5939
    %v5941 = vpop.f32.mrb[0].mxu0
    %5942 = vmatprep.mubr.f32.mxu0 0.0
    %5943 = vmatmul.mubr.f32.gmra.mrb[0].mxu0 %v4115
    %v5944 = vpop.f32.mrb[0].mxu0
    %v5945 = vadd.f32 %v5240, %v5944
    %v5946 = vpop.f32.mrb[0].mxu0
    %5947 = vmatprep.mubr.f32.mxu0 0.0
    %5948 = vmatmul.mubr.f32.gmra.mrb[0].mxu0 %v4116
    %v5949 = vpop.f32.mrb[0].mxu0
    %v5950 = vadd.f32 %v5245, %v5949
    %v5951 = vpop.f32.mrb[0].mxu0
    %5952 = vmatprep.mubr.f32.mxu0 0.0
    %5953 = vmatmul.mubr.f32.gmra.mrb[0].mxu0 %v4117
    %v5954 = vpop.f32.mrb[0].mxu0
    %v5955 = vadd.f32 %v5250, %v5954
    %v5956 = vpop.f32.mrb[0].mxu0
    %5957 = vmatprep.mubr.f32.mxu0 0.0
    %5958 = vmatmul.mubr.f32.gmra.mrb[0].mxu0 %v4118
    %v5959 = vpop.f32.mrb[0].mxu0
    %v5960 = vadd.f32 %v5255, %v5959
    %v5961 = vpop.f32.mrb[0].mxu0
    %5962 = vmatprep.mubr.f32.mxu0 0.0
    %5963 = vmatmul.mubr.f32.gmra.mrb[0].mxu0 %v4119
    %v5964 = vpop.f32.mrb[0].mxu0
    %v5965 = vadd.f32 %v5260, %v5964
    %v5966 = vpop.f32.mrb[0].mxu0
    %5967 = vmatprep.mubr.f32.mxu0 0.0
    %5968 = vmatmul.mubr.f32.gmra.mrb[0].mxu0 %v4120
    %v5969 = vpop.f32.mrb[0].mxu0
    %v5970 = vadd.f32 %v5265, %v5969
    %v5971 = vpop.f32.mrb[0].mxu0
    %5972 = vmatprep.mubr.f32.mxu0 0.0
    %5973 = vmatmul.mubr.f32.gmra.mrb[0].mxu0 %v4121
    %v5974 = vpop.f32.mrb[0].mxu0
    %v5975 = vadd.f32 %v5270, %v5974
    %v5976 = vpop.f32.mrb[0].mxu0
    %5977 = vmatprep.mubr.f32.mxu0 0.0
    %5978 = vmatmul.mubr.f32.gmra.mrb[0].mxu0 %v4122
    %v5979 = vpop.f32.mrb[0].mxu0
    %v5980 = vadd.f32 %v5275, %v5979
    %v5981 = vpop.f32.mrb[0].mxu0
    %5982 = vmatprep.mubr.f32.mxu0 0.0
    %5983 = vmatmul.mubr.f32.gmra.mrb[0].mxu0 %v4123
    %v5984 = vpop.f32.mrb[0].mxu0
    %v5985 = vadd.f32 %v5280, %v5984
    %v5986 = vpop.f32.mrb[0].mxu0
    %5987 = vmatprep.mubr.f32.mxu0 0.0
    %5988 = vmatmul.mubr.f32.gmra.mrb[0].mxu0 %v4124
    %v5989 = vpop.f32.mrb[0].mxu0
    %v5990 = vadd.f32 %v5285, %v5989
    %v5991 = vpop.f32.mrb[0].mxu0
    %5992 = vmatprep.mubr.f32.mxu0 0.0
    %5993 = vmatmul.mubr.f32.gmra.mrb[0].mxu0 %v4125
    %v5994 = vpop.f32.mrb[0].mxu0
    %v5995 = vadd.f32 %v5290, %v5994
    %v5996 = vpop.f32.mrb[0].mxu0
    %5997 = vmatprep.mubr.f32.mxu0 0.0
    %5998 = vmatmul.mubr.f32.gmra.mrb[0].mxu0 %v4126
    %v5999 = vpop.f32.mrb[0].mxu0
    %v6000 = vadd.f32 %v5295, %v5999
    %v6001 = vpop.f32.mrb[0].mxu0
    %6002 = vmatprep.mubr.f32.mxu0 0.0
    %6003 = vmatmul.mubr.f32.gmra.mrb[0].mxu0 %v4127
    %v6004 = vpop.f32.mrb[0].mxu0
    %v6005 = vadd.f32 %v5300, %v6004
    %v6006 = vpop.f32.mrb[0].mxu0
    %6007 = vmatprep.mubr.f32.mxu0 0.0
    %6008 = vmatmul.mubr.f32.gmra.mrb[0].mxu0 %v4128
    %v6009 = vpop.f32.mrb[0].mxu0
    %v6010 = vadd.f32 %v5305, %v6009
    %v6011 = vpop.f32.mrb[0].mxu0
    %6012 = vmatprep.mubr.f32.mxu0 0.0
    %6013 = vmatmul.mubr.f32.gmra.mrb[0].mxu0 %v4129
    %v6014 = vpop.f32.mrb[0].mxu0
    %v6015 = vadd.f32 %v5310, %v6014
    %v6016 = vpop.f32.mrb[0].mxu0
    %6017 = vmatprep.mubr.f32.mxu0 0.0
    %6018 = vmatmul.mubr.f32.gmra.mrb[0].mxu0 %v4130
    %v6019 = vpop.f32.mrb[0].mxu0
    %v6020 = vadd.f32 %v5315, %v6019
    %v6021 = vpop.f32.mrb[0].mxu0
    %6022 = vmatprep.mubr.f32.mxu0 0.0
    %6023 = vmatmul.mubr.f32.gmra.mrb[0].mxu0 %v4131
    %v6024 = vpop.f32.mrb[0].mxu0
    %v6025 = vadd.f32 %v5320, %v6024
    %v6026 = vpop.f32.mrb[0].mxu0
    %6027 = vmatprep.mubr.f32.mxu0 0.0
    %6028 = vmatmul.mubr.f32.gmra.mrb[0].mxu0 %v4132
    %v6029 = vpop.f32.mrb[0].mxu0
    %v6030 = vadd.f32 %v5325, %v6029
    %v6031 = vpop.f32.mrb[0].mxu0
    %6032 = vmatprep.mubr.f32.mxu0 0.0
    %6033 = vmatmul.mubr.f32.gmra.mrb[0].mxu0 %v4133
    %v6034 = vpop.f32.mrb[0].mxu0
    %v6035 = vadd.f32 %v5330, %v6034
    %v6036 = vpop.f32.mrb[0].mxu0
    %6037 = vmatprep.mubr.f32.mxu0 0.0
    %6038 = vmatmul.mubr.f32.gmra.mrb[0].mxu0 %v4134
    %v6039 = vpop.f32.mrb[0].mxu0
    %v6040 = vadd.f32 %v5335, %v6039
    %v6041 = vpop.f32.mrb[0].mxu0
    %6042 = vmatprep.mubr.f32.mxu0 0.0
    %6043 = vmatmul.mubr.f32.gmra.mrb[0].mxu0 %v4135
    %v6044 = vpop.f32.mrb[0].mxu0
    %v6045 = vadd.f32 %v5340, %v6044
    %v6046 = vpop.f32.mrb[0].mxu0
    %6047 = vmatprep.mubr.f32.mxu0 0.0
    %6048 = vmatmul.mubr.f32.gmra.mrb[0].mxu0 %v4136
    %v6049 = vpop.f32.mrb[0].mxu0
    %v6050 = vadd.f32 %v5345, %v6049
    %v6051 = vpop.f32.mrb[0].mxu0
    %6052 = vmatprep.mubr.f32.mxu0 0.0
    %6053 = vmatmul.mubr.f32.gmra.mrb[0].mxu0 %v4137
    %v6054 = vpop.f32.mrb[0].mxu0
    %v6055 = vadd.f32 %v5350, %v6054
    %v6056 = vpop.f32.mrb[0].mxu0
    %6057 = vmatprep.mubr.f32.mxu0 0.0
    %6058 = vmatmul.mubr.f32.gmra.mrb[0].mxu0 %v4138
    %v6059 = vpop.f32.mrb[0].mxu0
    %v6060 = vadd.f32 %v5355, %v6059
    %v6061 = vpop.f32.mrb[0].mxu0
    %6062 = vmatprep.mubr.f32.mxu0 0.0
    %6063 = vmatmul.mubr.f32.gmra.mrb[0].mxu0 %v4139
    %v6064 = vpop.f32.mrb[0].mxu0
    %v6065 = vadd.f32 %v5360, %v6064
    %v6066 = vpop.f32.mrb[0].mxu0
    %6067 = vmatprep.mubr.f32.mxu0 0.0
    %6068 = vmatmul.mubr.f32.gmra.mrb[0].mxu0 %v4140
    %v6069 = vpop.f32.mrb[0].mxu0
    %v6070 = vadd.f32 %v5365, %v6069
    %v6071 = vpop.f32.mrb[0].mxu0
    %6072 = vmatprep.mubr.f32.mxu0 0.0
    %6073 = vmatmul.mubr.f32.gmra.mrb[0].mxu0 %v4141
    %v6074 = vpop.f32.mrb[0].mxu0
    %v6075 = vadd.f32 %v5370, %v6074
    %v6076 = vpop.f32.mrb[0].mxu0
    %6077 = vmatprep.mubr.f32.mxu0 0.0
    %6078 = vmatmul.mubr.f32.gmra.mrb[0].mxu0 %v4142
    %v6079 = vpop.f32.mrb[0].mxu0
    %v6080 = vadd.f32 %v5375, %v6079
    %v6081 = vpop.f32.mrb[0].mxu0
    %6082 = vmatprep.mubr.f32.mxu0 0.0
    %6083 = vmatmul.mubr.f32.gmra.mrb[0].mxu0 %v4143
    %v6084 = vpop.f32.mrb[0].mxu0
    %v6085 = vadd.f32 %v5380, %v6084
    %v6086 = vpop.f32.mrb[0].mxu0
    %6087 = vmatprep.mubr.f32.mxu0 0.0
    %6088 = vmatmul.mubr.f32.gmra.mrb[0].mxu0 %v4144
    %v6089 = vpop.f32.mrb[0].mxu0
    %v6090 = vadd.f32 %v5385, %v6089
    %v6091 = vpop.f32.mrb[0].mxu0
    %6092 = vmatprep.mubr.f32.mxu0 0.0
    %6093 = vmatmul.mubr.f32.gmra.mrb[0].mxu0 %v4145
    %v6094 = vpop.f32.mrb[0].mxu0
    %v6095 = vadd.f32 %v5390, %v6094
    %v6096 = vpop.f32.mrb[0].mxu0
    %6097 = vmatprep.mubr.f32.mxu0 0.0
    %6098 = vmatmul.mubr.f32.gmra.mrb[0].mxu0 %v4146
    %v6099 = vpop.f32.mrb[0].mxu0
    %v6100 = vadd.f32 %v5395, %v6099
    %v6101 = vpop.f32.mrb[0].mxu0
    %6102 = vdwg.mxu0
    %s6103 = scalar_lea.vmem %s3, 256
    %v6104 = vld [vmem:[%s6103] sm:$0xff]
    %v6105 = vld [vmem:[%s6103 + $0x8] sm:$0xff]
    %v6106 = vld [vmem:[%s6103 + $0x10] sm:$0xff]
    %v6107 = vld [vmem:[%s6103 + $0x18] sm:$0xff]
    %v6108 = vld [vmem:[%s6103 + $0x20] sm:$0xff]
    %v6109 = vld [vmem:[%s6103 + $0x28] sm:$0xff]
    %v6110 = vld [vmem:[%s6103 + $0x30] sm:$0xff]
    %v6111 = vld [vmem:[%s6103 + $0x38] sm:$0xff]
    %v6112 = vld [vmem:[%s6103 + $0x40] sm:$0xff]
    %v6113 = vld [vmem:[%s6103 + $0x48] sm:$0xff]
    %v6114 = vld [vmem:[%s6103 + $0x50] sm:$0xff]
    %v6115 = vld [vmem:[%s6103 + $0x58] sm:$0xff]
    %v6116 = vld [vmem:[%s6103 + $0x60] sm:$0xff]
    %v6117 = vld [vmem:[%s6103 + $0x68] sm:$0xff]
    %v6118 = vld [vmem:[%s6103 + $0x70] sm:$0xff]
    %v6119 = vld [vmem:[%s6103 + $0x78] sm:$0xff]
    %6120 = vmatprep.subr.mxu0 0.0
    %6121 = vmatpush1.msra.mxu0 %v6104
    %6122 = vmatprep.subr.mxu0 0.0
    %6123 = vmatpush1.msra.mxu0 %v6105
    %6124 = vmatprep.subr.mxu0 0.0
    %6125 = vmatpush1.msra.mxu0 %v6106
    %6126 = vmatprep.subr.mxu0 0.0
    %6127 = vmatpush1.msra.mxu0 %v6107
    %6128 = vmatprep.subr.mxu0 0.0
    %6129 = vmatpush1.msra.mxu0 %v6108
    %6130 = vmatprep.subr.mxu0 0.0
    %6131 = vmatpush1.msra.mxu0 %v6109
    %6132 = vmatprep.subr.mxu0 0.0
    %6133 = vmatpush1.msra.mxu0 %v6110
    %6134 = vmatprep.subr.mxu0 0.0
    %6135 = vmatpush1.msra.mxu0 %v6111
    %6136 = vmatprep.subr.mxu0 0.0
    %6137 = vmatpush1.msra.mxu0 %v6112
    %6138 = vmatprep.subr.mxu0 0.0
    %6139 = vmatpush1.msra.mxu0 %v6113
    %6140 = vmatprep.subr.mxu0 0.0
    %6141 = vmatpush1.msra.mxu0 %v6114
    %6142 = vmatprep.subr.mxu0 0.0
    %6143 = vmatpush1.msra.mxu0 %v6115
    %6144 = vmatprep.subr.mxu0 0.0
    %6145 = vmatpush1.msra.mxu0 %v6116
    %6146 = vmatprep.subr.mxu0 0.0
    %6147 = vmatpush1.msra.mxu0 %v6117
    %6148 = vmatprep.subr.mxu0 0.0
    %6149 = vmatpush1.msra.mxu0 %v6118
    %6150 = vmatprep.subr.mxu0 0.0
    %6151 = vmatpush1.msra.mxu0 %v6119
    %6152 = vmatprep.subr.mxu0 0.0
    %6153 = vmatpush1.msra.mxu0 0.0
    %6154 = vmatprep.subr.mxu0 0.0
    %6155 = vmatpush1.msra.mxu0 0.0
    %6156 = vmatprep.subr.mxu0 0.0
    %6157 = vmatpush1.msra.mxu0 0.0
    %6158 = vmatprep.subr.mxu0 0.0
    %6159 = vmatpush1.msra.mxu0 0.0
    %6160 = vmatprep.subr.mxu0 0.0
    %6161 = vmatpush1.msra.mxu0 0.0
    %6162 = vmatprep.subr.mxu0 0.0
    %6163 = vmatpush1.msra.mxu0 0.0
    %6164 = vmatprep.subr.mxu0 0.0
    %6165 = vmatpush1.msra.mxu0 0.0
    %6166 = vmatprep.subr.mxu0 0.0
    %6167 = vmatpush1.msra.mxu0 0.0
    %6168 = vmatprep.subr.mxu0 0.0
    %6169 = vmatpush1.msra.mxu0 0.0
    %6170 = vmatprep.subr.mxu0 0.0
    %6171 = vmatpush1.msra.mxu0 0.0
    %6172 = vmatprep.subr.mxu0 0.0
    %6173 = vmatpush1.msra.mxu0 0.0
    %6174 = vmatprep.subr.mxu0 0.0
    %6175 = vmatpush1.msra.mxu0 0.0
    %6176 = vmatprep.subr.mxu0 0.0
    %6177 = vmatpush1.msra.mxu0 0.0
    %6178 = vmatprep.subr.mxu0 0.0
    %6179 = vmatpush1.msra.mxu0 0.0
    %6180 = vmatprep.subr.mxu0 0.0
    %6181 = vmatpush1.msra.mxu0 0.0
    %6182 = vmatprep.subr.mxu0 0.0
    %6183 = vmatpush1.msra.mxu0 0.0
    %6184 = vmatprep.mubr.f32.mxu0 0.0
    %6185 = vmatmul.mubr.f32.gmra.mrb[0].mxu0 %v4532
    %v6186 = vpop.f32.mrb[0].mxu0
    %v6187 = vadd.f32 0.0, %v6186
    %v6188 = vpop.f32.mrb[0].mxu0
    %6189 = vmatprep.mubr.f32.mxu0 0.0
    %6190 = vmatmul.mubr.f32.gmra.mrb[0].mxu0 %v4533
    %v6191 = vpop.f32.mrb[0].mxu0
    %v6192 = vadd.f32 0.0, %v6191
    %v6193 = vpop.f32.mrb[0].mxu0
    %6194 = vmatprep.mubr.f32.mxu0 0.0
    %6195 = vmatmul.mubr.f32.gmra.mrb[0].mxu0 %v4534
    %v6196 = vpop.f32.mrb[0].mxu0
    %v6197 = vadd.f32 0.0, %v6196
    %v6198 = vpop.f32.mrb[0].mxu0
    %6199 = vmatprep.mubr.f32.mxu0 0.0
    %6200 = vmatmul.mubr.f32.gmra.mrb[0].mxu0 %v4535
    %v6201 = vpop.f32.mrb[0].mxu0
    %v6202 = vadd.f32 0.0, %v6201
    %v6203 = vpop.f32.mrb[0].mxu0
    %6204 = vmatprep.mubr.f32.mxu0 0.0
    %6205 = vmatmul.mubr.f32.gmra.mrb[0].mxu0 %v4536
    %v6206 = vpop.f32.mrb[0].mxu0
    %v6207 = vadd.f32 0.0, %v6206
    %v6208 = vpop.f32.mrb[0].mxu0
    %6209 = vmatprep.mubr.f32.mxu0 0.0
    %6210 = vmatmul.mubr.f32.gmra.mrb[0].mxu0 %v4537
    %v6211 = vpop.f32.mrb[0].mxu0
    %v6212 = vadd.f32 0.0, %v6211
    %v6213 = vpop.f32.mrb[0].mxu0
    %6214 = vmatprep.mubr.f32.mxu0 0.0
    %6215 = vmatmul.mubr.f32.gmra.mrb[0].mxu0 %v4538
    %v6216 = vpop.f32.mrb[0].mxu0
    %v6217 = vadd.f32 0.0, %v6216
    %v6218 = vpop.f32.mrb[0].mxu0
    %6219 = vmatprep.mubr.f32.mxu0 0.0
    %6220 = vmatmul.mubr.f32.gmra.mrb[0].mxu0 %v4539
    %v6221 = vpop.f32.mrb[0].mxu0
    %v6222 = vadd.f32 0.0, %v6221
    %v6223 = vpop.f32.mrb[0].mxu0
    %6224 = vmatprep.mubr.f32.mxu0 0.0
    %6225 = vmatmul.mubr.f32.gmra.mrb[0].mxu0 %v4540
    %v6226 = vpop.f32.mrb[0].mxu0
    %v6227 = vadd.f32 0.0, %v6226
    %v6228 = vpop.f32.mrb[0].mxu0
    %6229 = vmatprep.mubr.f32.mxu0 0.0
    %6230 = vmatmul.mubr.f32.gmra.mrb[0].mxu0 %v4541
    %v6231 = vpop.f32.mrb[0].mxu0
    %v6232 = vadd.f32 0.0, %v6231
    %v6233 = vpop.f32.mrb[0].mxu0
    %6234 = vmatprep.mubr.f32.mxu0 0.0
    %6235 = vmatmul.mubr.f32.gmra.mrb[0].mxu0 %v4542
    %v6236 = vpop.f32.mrb[0].mxu0
    %v6237 = vadd.f32 0.0, %v6236
    %v6238 = vpop.f32.mrb[0].mxu0
    %6239 = vmatprep.mubr.f32.mxu0 0.0
    %6240 = vmatmul.mubr.f32.gmra.mrb[0].mxu0 %v4543
    %v6241 = vpop.f32.mrb[0].mxu0
    %v6242 = vadd.f32 0.0, %v6241
    %v6243 = vpop.f32.mrb[0].mxu0
    %6244 = vmatprep.mubr.f32.mxu0 0.0
    %6245 = vmatmul.mubr.f32.gmra.mrb[0].mxu0 %v4544
    %v6246 = vpop.f32.mrb[0].mxu0
    %v6247 = vadd.f32 0.0, %v6246
    %v6248 = vpop.f32.mrb[0].mxu0
    %6249 = vmatprep.mubr.f32.mxu0 0.0
    %6250 = vmatmul.mubr.f32.gmra.mrb[0].mxu0 %v4545
    %v6251 = vpop.f32.mrb[0].mxu0
    %v6252 = vadd.f32 0.0, %v6251
    %v6253 = vpop.f32.mrb[0].mxu0
    %6254 = vmatprep.mubr.f32.mxu0 0.0
    %6255 = vmatmul.mubr.f32.gmra.mrb[0].mxu0 %v4546
    %v6256 = vpop.f32.mrb[0].mxu0
    %v6257 = vadd.f32 0.0, %v6256
    %v6258 = vpop.f32.mrb[0].mxu0
    %6259 = vmatprep.mubr.f32.mxu0 0.0
    %6260 = vmatmul.mubr.f32.gmra.mrb[0].mxu0 %v4547
    %v6261 = vpop.f32.mrb[0].mxu0
    %v6262 = vadd.f32 0.0, %v6261
    %v6263 = vpop.f32.mrb[0].mxu0
    %6264 = vmatprep.mubr.f32.mxu0 0.0
    %6265 = vmatmul.mubr.f32.gmra.mrb[0].mxu0 %v4548
    %v6266 = vpop.f32.mrb[0].mxu0
    %v6267 = vadd.f32 0.0, %v6266
    %v6268 = vpop.f32.mrb[0].mxu0
    %6269 = vmatprep.mubr.f32.mxu0 0.0
    %6270 = vmatmul.mubr.f32.gmra.mrb[0].mxu0 %v4549
    %v6271 = vpop.f32.mrb[0].mxu0
    %v6272 = vadd.f32 0.0, %v6271
    %v6273 = vpop.f32.mrb[0].mxu0
    %6274 = vmatprep.mubr.f32.mxu0 0.0
    %6275 = vmatmul.mubr.f32.gmra.mrb[0].mxu0 %v4550
    %v6276 = vpop.f32.mrb[0].mxu0
    %v6277 = vadd.f32 0.0, %v6276
    %v6278 = vpop.f32.mrb[0].mxu0
    %6279 = vmatprep.mubr.f32.mxu0 0.0
    %6280 = vmatmul.mubr.f32.gmra.mrb[0].mxu0 %v4551
    %v6281 = vpop.f32.mrb[0].mxu0
    %v6282 = vadd.f32 0.0, %v6281
    %v6283 = vpop.f32.mrb[0].mxu0
    %6284 = vmatprep.mubr.f32.mxu0 0.0
    %6285 = vmatmul.mubr.f32.gmra.mrb[0].mxu0 %v4552
    %v6286 = vpop.f32.mrb[0].mxu0
    %v6287 = vadd.f32 0.0, %v6286
    %v6288 = vpop.f32.mrb[0].mxu0
    %6289 = vmatprep.mubr.f32.mxu0 0.0
    %6290 = vmatmul.mubr.f32.gmra.mrb[0].mxu0 %v4553
    %v6291 = vpop.f32.mrb[0].mxu0
    %v6292 = vadd.f32 0.0, %v6291
    %v6293 = vpop.f32.mrb[0].mxu0
    %6294 = vmatprep.mubr.f32.mxu0 0.0
    %6295 = vmatmul.mubr.f32.gmra.mrb[0].mxu0 %v4554
    %v6296 = vpop.f32.mrb[0].mxu0
    %v6297 = vadd.f32 0.0, %v6296
    %v6298 = vpop.f32.mrb[0].mxu0
    %6299 = vmatprep.mubr.f32.mxu0 0.0
    %6300 = vmatmul.mubr.f32.gmra.mrb[0].mxu0 %v4555
    %v6301 = vpop.f32.mrb[0].mxu0
    %v6302 = vadd.f32 0.0, %v6301
    %v6303 = vpop.f32.mrb[0].mxu0
    %6304 = vmatprep.mubr.f32.mxu0 0.0
    %6305 = vmatmul.mubr.f32.gmra.mrb[0].mxu0 %v4556
    %v6306 = vpop.f32.mrb[0].mxu0
    %v6307 = vadd.f32 0.0, %v6306
    %v6308 = vpop.f32.mrb[0].mxu0
    %6309 = vmatprep.mubr.f32.mxu0 0.0
    %6310 = vmatmul.mubr.f32.gmra.mrb[0].mxu0 %v4557
    %v6311 = vpop.f32.mrb[0].mxu0
    %v6312 = vadd.f32 0.0, %v6311
    %v6313 = vpop.f32.mrb[0].mxu0
    %6314 = vmatprep.mubr.f32.mxu0 0.0
    %6315 = vmatmul.mubr.f32.gmra.mrb[0].mxu0 %v4558
    %v6316 = vpop.f32.mrb[0].mxu0
    %v6317 = vadd.f32 0.0, %v6316
    %v6318 = vpop.f32.mrb[0].mxu0
    %6319 = vmatprep.mubr.f32.mxu0 0.0
    %6320 = vmatmul.mubr.f32.gmra.mrb[0].mxu0 %v4559
    %v6321 = vpop.f32.mrb[0].mxu0
    %v6322 = vadd.f32 0.0, %v6321
    %v6323 = vpop.f32.mrb[0].mxu0
    %6324 = vmatprep.mubr.f32.mxu0 0.0
    %6325 = vmatmul.mubr.f32.gmra.mrb[0].mxu0 %v4560
    %v6326 = vpop.f32.mrb[0].mxu0
    %v6327 = vadd.f32 0.0, %v6326
    %v6328 = vpop.f32.mrb[0].mxu0
    %6329 = vmatprep.mubr.f32.mxu0 0.0
    %6330 = vmatmul.mubr.f32.gmra.mrb[0].mxu0 %v4561
    %v6331 = vpop.f32.mrb[0].mxu0
    %v6332 = vadd.f32 0.0, %v6331
    %v6333 = vpop.f32.mrb[0].mxu0
    %6334 = vmatprep.mubr.f32.mxu0 0.0
    %6335 = vmatmul.mubr.f32.gmra.mrb[0].mxu0 %v4562
    %v6336 = vpop.f32.mrb[0].mxu0
    %v6337 = vadd.f32 0.0, %v6336
    %v6338 = vpop.f32.mrb[0].mxu0
    %6339 = vmatprep.mubr.f32.mxu0 0.0
    %6340 = vmatmul.mubr.f32.gmra.mrb[0].mxu0 %v4563
    %v6341 = vpop.f32.mrb[0].mxu0
    %v6342 = vadd.f32 0.0, %v6341
    %v6343 = vpop.f32.mrb[0].mxu0
    %6344 = vmatprep.mubr.f32.mxu0 0.0
    %6345 = vmatmul.mubr.f32.gmra.mrb[0].mxu0 %v4564
    %v6346 = vpop.f32.mrb[0].mxu0
    %v6347 = vadd.f32 0.0, %v6346
    %v6348 = vpop.f32.mrb[0].mxu0
    %6349 = vmatprep.mubr.f32.mxu0 0.0
    %6350 = vmatmul.mubr.f32.gmra.mrb[0].mxu0 %v4565
    %v6351 = vpop.f32.mrb[0].mxu0
    %v6352 = vadd.f32 0.0, %v6351
    %v6353 = vpop.f32.mrb[0].mxu0
    %6354 = vmatprep.mubr.f32.mxu0 0.0
    %6355 = vmatmul.mubr.f32.gmra.mrb[0].mxu0 %v4566
    %v6356 = vpop.f32.mrb[0].mxu0
    %v6357 = vadd.f32 0.0, %v6356
    %v6358 = vpop.f32.mrb[0].mxu0
    %6359 = vmatprep.mubr.f32.mxu0 0.0
    %6360 = vmatmul.mubr.f32.gmra.mrb[0].mxu0 %v4567
    %v6361 = vpop.f32.mrb[0].mxu0
    %v6362 = vadd.f32 0.0, %v6361
    %v6363 = vpop.f32.mrb[0].mxu0
    %6364 = vmatprep.mubr.f32.mxu0 0.0
    %6365 = vmatmul.mubr.f32.gmra.mrb[0].mxu0 %v4568
    %v6366 = vpop.f32.mrb[0].mxu0
    %v6367 = vadd.f32 0.0, %v6366
    %v6368 = vpop.f32.mrb[0].mxu0
    %6369 = vmatprep.mubr.f32.mxu0 0.0
    %6370 = vmatmul.mubr.f32.gmra.mrb[0].mxu0 %v4569
    %v6371 = vpop.f32.mrb[0].mxu0
    %v6372 = vadd.f32 0.0, %v6371
    %v6373 = vpop.f32.mrb[0].mxu0
    %6374 = vmatprep.mubr.f32.mxu0 0.0
    %6375 = vmatmul.mubr.f32.gmra.mrb[0].mxu0 %v4570
    %v6376 = vpop.f32.mrb[0].mxu0
    %v6377 = vadd.f32 0.0, %v6376
    %v6378 = vpop.f32.mrb[0].mxu0
    %6379 = vmatprep.mubr.f32.mxu0 0.0
    %6380 = vmatmul.mubr.f32.gmra.mrb[0].mxu0 %v4571
    %v6381 = vpop.f32.mrb[0].mxu0
    %v6382 = vadd.f32 0.0, %v6381
    %v6383 = vpop.f32.mrb[0].mxu0
    %6384 = vmatprep.mubr.f32.mxu0 0.0
    %6385 = vmatmul.mubr.f32.gmra.mrb[0].mxu0 %v4572
    %v6386 = vpop.f32.mrb[0].mxu0
    %v6387 = vadd.f32 0.0, %v6386
    %v6388 = vpop.f32.mrb[0].mxu0
    %6389 = vmatprep.mubr.f32.mxu0 0.0
    %6390 = vmatmul.mubr.f32.gmra.mrb[0].mxu0 %v4573
    %v6391 = vpop.f32.mrb[0].mxu0
    %v6392 = vadd.f32 0.0, %v6391
    %v6393 = vpop.f32.mrb[0].mxu0
    %6394 = vmatprep.mubr.f32.mxu0 0.0
    %6395 = vmatmul.mubr.f32.gmra.mrb[0].mxu0 %v4574
    %v6396 = vpop.f32.mrb[0].mxu0
    %v6397 = vadd.f32 0.0, %v6396
    %v6398 = vpop.f32.mrb[0].mxu0
    %6399 = vmatprep.mubr.f32.mxu0 0.0
    %6400 = vmatmul.mubr.f32.gmra.mrb[0].mxu0 %v4575
    %v6401 = vpop.f32.mrb[0].mxu0
    %v6402 = vadd.f32 0.0, %v6401
    %v6403 = vpop.f32.mrb[0].mxu0
    %6404 = vmatprep.mubr.f32.mxu0 0.0
    %6405 = vmatmul.mubr.f32.gmra.mrb[0].mxu0 %v4576
    %v6406 = vpop.f32.mrb[0].mxu0
    %v6407 = vadd.f32 0.0, %v6406
    %v6408 = vpop.f32.mrb[0].mxu0
    %6409 = vmatprep.mubr.f32.mxu0 0.0
    %6410 = vmatmul.mubr.f32.gmra.mrb[0].mxu0 %v4577
    %v6411 = vpop.f32.mrb[0].mxu0
    %v6412 = vadd.f32 0.0, %v6411
    %v6413 = vpop.f32.mrb[0].mxu0
    %6414 = vmatprep.mubr.f32.mxu0 0.0
    %6415 = vmatmul.mubr.f32.gmra.mrb[0].mxu0 %v4578
    %v6416 = vpop.f32.mrb[0].mxu0
    %v6417 = vadd.f32 0.0, %v6416
    %v6418 = vpop.f32.mrb[0].mxu0
    %6419 = vmatprep.mubr.f32.mxu0 0.0
    %6420 = vmatmul.mubr.f32.gmra.mrb[0].mxu0 %v4579
    %v6421 = vpop.f32.mrb[0].mxu0
    %v6422 = vadd.f32 0.0, %v6421
    %v6423 = vpop.f32.mrb[0].mxu0
    %6424 = vmatprep.mubr.f32.mxu0 0.0
    %6425 = vmatmul.mubr.f32.gmra.mrb[0].mxu0 %v4580
    %v6426 = vpop.f32.mrb[0].mxu0
    %v6427 = vadd.f32 0.0, %v6426
    %v6428 = vpop.f32.mrb[0].mxu0
    %6429 = vmatprep.mubr.f32.mxu0 0.0
    %6430 = vmatmul.mubr.f32.gmra.mrb[0].mxu0 %v4581
    %v6431 = vpop.f32.mrb[0].mxu0
    %v6432 = vadd.f32 0.0, %v6431
    %v6433 = vpop.f32.mrb[0].mxu0
    %6434 = vmatprep.mubr.f32.mxu0 0.0
    %6435 = vmatmul.mubr.f32.gmra.mrb[0].mxu0 %v4582
    %v6436 = vpop.f32.mrb[0].mxu0
    %v6437 = vadd.f32 0.0, %v6436
    %v6438 = vpop.f32.mrb[0].mxu0
    %6439 = vmatprep.mubr.f32.mxu0 0.0
    %6440 = vmatmul.mubr.f32.gmra.mrb[0].mxu0 %v4583
    %v6441 = vpop.f32.mrb[0].mxu0
    %v6442 = vadd.f32 0.0, %v6441
    %v6443 = vpop.f32.mrb[0].mxu0
    %6444 = vmatprep.mubr.f32.mxu0 0.0
    %6445 = vmatmul.mubr.f32.gmra.mrb[0].mxu0 %v4584
    %v6446 = vpop.f32.mrb[0].mxu0
    %v6447 = vadd.f32 0.0, %v6446
    %v6448 = vpop.f32.mrb[0].mxu0
    %6449 = vmatprep.mubr.f32.mxu0 0.0
    %6450 = vmatmul.mubr.f32.gmra.mrb[0].mxu0 %v4585
    %v6451 = vpop.f32.mrb[0].mxu0
    %v6452 = vadd.f32 0.0, %v6451
    %v6453 = vpop.f32.mrb[0].mxu0
    %6454 = vmatprep.mubr.f32.mxu0 0.0
    %6455 = vmatmul.mubr.f32.gmra.mrb[0].mxu0 %v4586
    %v6456 = vpop.f32.mrb[0].mxu0
    %v6457 = vadd.f32 0.0, %v6456
    %v6458 = vpop.f32.mrb[0].mxu0
    %6459 = vmatprep.mubr.f32.mxu0 0.0
    %6460 = vmatmul.mubr.f32.gmra.mrb[0].mxu0 %v4587
    %v6461 = vpop.f32.mrb[0].mxu0
    %v6462 = vadd.f32 0.0, %v6461
    %v6463 = vpop.f32.mrb[0].mxu0
    %6464 = vmatprep.mubr.f32.mxu0 0.0
    %6465 = vmatmul.mubr.f32.gmra.mrb[0].mxu0 %v4588
    %v6466 = vpop.f32.mrb[0].mxu0
    %v6467 = vadd.f32 0.0, %v6466
    %v6468 = vpop.f32.mrb[0].mxu0
    %6469 = vmatprep.mubr.f32.mxu0 0.0
    %6470 = vmatmul.mubr.f32.gmra.mrb[0].mxu0 %v4589
    %v6471 = vpop.f32.mrb[0].mxu0
    %v6472 = vadd.f32 0.0, %v6471
    %v6473 = vpop.f32.mrb[0].mxu0
    %6474 = vmatprep.mubr.f32.mxu0 0.0
    %6475 = vmatmul.mubr.f32.gmra.mrb[0].mxu0 %v4590
    %v6476 = vpop.f32.mrb[0].mxu0
    %v6477 = vadd.f32 0.0, %v6476
    %v6478 = vpop.f32.mrb[0].mxu0
    %6479 = vmatprep.mubr.f32.mxu0 0.0
    %6480 = vmatmul.mubr.f32.gmra.mrb[0].mxu0 %v4591
    %v6481 = vpop.f32.mrb[0].mxu0
    %v6482 = vadd.f32 0.0, %v6481
    %v6483 = vpop.f32.mrb[0].mxu0
    %6484 = vmatprep.mubr.f32.mxu0 0.0
    %6485 = vmatmul.mubr.f32.gmra.mrb[0].mxu0 %v4592
    %v6486 = vpop.f32.mrb[0].mxu0
    %v6487 = vadd.f32 0.0, %v6486
    %v6488 = vpop.f32.mrb[0].mxu0
    %6489 = vmatprep.mubr.f32.mxu0 0.0
    %6490 = vmatmul.mubr.f32.gmra.mrb[0].mxu0 %v4593
    %v6491 = vpop.f32.mrb[0].mxu0
    %v6492 = vadd.f32 0.0, %v6491
    %v6493 = vpop.f32.mrb[0].mxu0
    %6494 = vmatprep.mubr.f32.mxu0 0.0
    %6495 = vmatmul.mubr.f32.gmra.mrb[0].mxu0 %v4594
    %v6496 = vpop.f32.mrb[0].mxu0
    %v6497 = vadd.f32 0.0, %v6496
    %v6498 = vpop.f32.mrb[0].mxu0
    %6499 = vmatprep.mubr.f32.mxu0 0.0
    %6500 = vmatmul.mubr.f32.gmra.mrb[0].mxu0 %v4595
    %v6501 = vpop.f32.mrb[0].mxu0
    %v6502 = vadd.f32 0.0, %v6501
    %v6503 = vpop.f32.mrb[0].mxu0
    %6504 = vmatprep.mubr.f32.mxu0 0.0
    %6505 = vmatmul.mubr.f32.gmra.mrb[0].mxu0 %v4596
    %v6506 = vpop.f32.mrb[0].mxu0
    %v6507 = vadd.f32 0.0, %v6506
    %v6508 = vpop.f32.mrb[0].mxu0
    %6509 = vmatprep.mubr.f32.mxu0 0.0
    %6510 = vmatmul.mubr.f32.gmra.mrb[0].mxu0 %v4597
    %v6511 = vpop.f32.mrb[0].mxu0
    %v6512 = vadd.f32 0.0, %v6511
    %v6513 = vpop.f32.mrb[0].mxu0
    %6514 = vmatprep.mubr.f32.mxu0 0.0
    %6515 = vmatmul.mubr.f32.gmra.mrb[0].mxu0 %v4598
    %v6516 = vpop.f32.mrb[0].mxu0
    %v6517 = vadd.f32 0.0, %v6516
    %v6518 = vpop.f32.mrb[0].mxu0
    %6519 = vmatprep.mubr.f32.mxu0 0.0
    %6520 = vmatmul.mubr.f32.gmra.mrb[0].mxu0 %v4599
    %v6521 = vpop.f32.mrb[0].mxu0
    %v6522 = vadd.f32 0.0, %v6521
    %v6523 = vpop.f32.mrb[0].mxu0
    %6524 = vmatprep.mubr.f32.mxu0 0.0
    %6525 = vmatmul.mubr.f32.gmra.mrb[0].mxu0 %v4600
    %v6526 = vpop.f32.mrb[0].mxu0
    %v6527 = vadd.f32 0.0, %v6526
    %v6528 = vpop.f32.mrb[0].mxu0
    %6529 = vmatprep.mubr.f32.mxu0 0.0
    %6530 = vmatmul.mubr.f32.gmra.mrb[0].mxu0 %v4601
    %v6531 = vpop.f32.mrb[0].mxu0
    %v6532 = vadd.f32 0.0, %v6531
    %v6533 = vpop.f32.mrb[0].mxu0
    %6534 = vmatprep.mubr.f32.mxu0 0.0
    %6535 = vmatmul.mubr.f32.gmra.mrb[0].mxu0 %v4602
    %v6536 = vpop.f32.mrb[0].mxu0
    %v6537 = vadd.f32 0.0, %v6536
    %v6538 = vpop.f32.mrb[0].mxu0
    %6539 = vmatprep.mubr.f32.mxu0 0.0
    %6540 = vmatmul.mubr.f32.gmra.mrb[0].mxu0 %v4603
    %v6541 = vpop.f32.mrb[0].mxu0
    %v6542 = vadd.f32 0.0, %v6541
    %v6543 = vpop.f32.mrb[0].mxu0
    %6544 = vmatprep.mubr.f32.mxu0 0.0
    %6545 = vmatmul.mubr.f32.gmra.mrb[0].mxu0 %v4604
    %v6546 = vpop.f32.mrb[0].mxu0
    %v6547 = vadd.f32 0.0, %v6546
    %v6548 = vpop.f32.mrb[0].mxu0
    %6549 = vmatprep.mubr.f32.mxu0 0.0
    %6550 = vmatmul.mubr.f32.gmra.mrb[0].mxu0 %v4605
    %v6551 = vpop.f32.mrb[0].mxu0
    %v6552 = vadd.f32 0.0, %v6551
    %v6553 = vpop.f32.mrb[0].mxu0
    %6554 = vmatprep.mubr.f32.mxu0 0.0
    %6555 = vmatmul.mubr.f32.gmra.mrb[0].mxu0 %v4606
    %v6556 = vpop.f32.mrb[0].mxu0
    %v6557 = vadd.f32 0.0, %v6556
    %v6558 = vpop.f32.mrb[0].mxu0
    %6559 = vmatprep.mubr.f32.mxu0 0.0
    %6560 = vmatmul.mubr.f32.gmra.mrb[0].mxu0 %v4607
    %v6561 = vpop.f32.mrb[0].mxu0
    %v6562 = vadd.f32 0.0, %v6561
    %v6563 = vpop.f32.mrb[0].mxu0
    %6564 = vmatprep.mubr.f32.mxu0 0.0
    %6565 = vmatmul.mubr.f32.gmra.mrb[0].mxu0 %v4608
    %v6566 = vpop.f32.mrb[0].mxu0
    %v6567 = vadd.f32 0.0, %v6566
    %v6568 = vpop.f32.mrb[0].mxu0
    %6569 = vmatprep.mubr.f32.mxu0 0.0
    %6570 = vmatmul.mubr.f32.gmra.mrb[0].mxu0 %v4609
    %v6571 = vpop.f32.mrb[0].mxu0
    %v6572 = vadd.f32 0.0, %v6571
    %v6573 = vpop.f32.mrb[0].mxu0
    %6574 = vmatprep.mubr.f32.mxu0 0.0
    %6575 = vmatmul.mubr.f32.gmra.mrb[0].mxu0 %v4610
    %v6576 = vpop.f32.mrb[0].mxu0
    %v6577 = vadd.f32 0.0, %v6576
    %v6578 = vpop.f32.mrb[0].mxu0
    %6579 = vmatprep.mubr.f32.mxu0 0.0
    %6580 = vmatmul.mubr.f32.gmra.mrb[0].mxu0 %v4611
    %v6581 = vpop.f32.mrb[0].mxu0
    %v6582 = vadd.f32 0.0, %v6581
    %v6583 = vpop.f32.mrb[0].mxu0
    %6584 = vmatprep.mubr.f32.mxu0 0.0
    %6585 = vmatmul.mubr.f32.gmra.mrb[0].mxu0 %v4612
    %v6586 = vpop.f32.mrb[0].mxu0
    %v6587 = vadd.f32 0.0, %v6586
    %v6588 = vpop.f32.mrb[0].mxu0
    %6589 = vmatprep.mubr.f32.mxu0 0.0
    %6590 = vmatmul.mubr.f32.gmra.mrb[0].mxu0 %v4613
    %v6591 = vpop.f32.mrb[0].mxu0
    %v6592 = vadd.f32 0.0, %v6591
    %v6593 = vpop.f32.mrb[0].mxu0
    %6594 = vmatprep.mubr.f32.mxu0 0.0
    %6595 = vmatmul.mubr.f32.gmra.mrb[0].mxu0 %v4614
    %v6596 = vpop.f32.mrb[0].mxu0
    %v6597 = vadd.f32 0.0, %v6596
    %v6598 = vpop.f32.mrb[0].mxu0
    %6599 = vmatprep.mubr.f32.mxu0 0.0
    %6600 = vmatmul.mubr.f32.gmra.mrb[0].mxu0 %v4615
    %v6601 = vpop.f32.mrb[0].mxu0
    %v6602 = vadd.f32 0.0, %v6601
    %v6603 = vpop.f32.mrb[0].mxu0
    %6604 = vmatprep.mubr.f32.mxu0 0.0
    %6605 = vmatmul.mubr.f32.gmra.mrb[0].mxu0 %v4616
    %v6606 = vpop.f32.mrb[0].mxu0
    %v6607 = vadd.f32 0.0, %v6606
    %v6608 = vpop.f32.mrb[0].mxu0
    %6609 = vmatprep.mubr.f32.mxu0 0.0
    %6610 = vmatmul.mubr.f32.gmra.mrb[0].mxu0 %v4617
    %v6611 = vpop.f32.mrb[0].mxu0
    %v6612 = vadd.f32 0.0, %v6611
    %v6613 = vpop.f32.mrb[0].mxu0
    %6614 = vmatprep.mubr.f32.mxu0 0.0
    %6615 = vmatmul.mubr.f32.gmra.mrb[0].mxu0 %v4618
    %v6616 = vpop.f32.mrb[0].mxu0
    %v6617 = vadd.f32 0.0, %v6616
    %v6618 = vpop.f32.mrb[0].mxu0
    %6619 = vmatprep.mubr.f32.mxu0 0.0
    %6620 = vmatmul.mubr.f32.gmra.mrb[0].mxu0 %v4619
    %v6621 = vpop.f32.mrb[0].mxu0
    %v6622 = vadd.f32 0.0, %v6621
    %v6623 = vpop.f32.mrb[0].mxu0
    %6624 = vmatprep.mubr.f32.mxu0 0.0
    %6625 = vmatmul.mubr.f32.gmra.mrb[0].mxu0 %v4620
    %v6626 = vpop.f32.mrb[0].mxu0
    %v6627 = vadd.f32 0.0, %v6626
    %v6628 = vpop.f32.mrb[0].mxu0
    %6629 = vmatprep.mubr.f32.mxu0 0.0
    %6630 = vmatmul.mubr.f32.gmra.mrb[0].mxu0 %v4621
    %v6631 = vpop.f32.mrb[0].mxu0
    %v6632 = vadd.f32 0.0, %v6631
    %v6633 = vpop.f32.mrb[0].mxu0
    %6634 = vmatprep.mubr.f32.mxu0 0.0
    %6635 = vmatmul.mubr.f32.gmra.mrb[0].mxu0 %v4622
    %v6636 = vpop.f32.mrb[0].mxu0
    %v6637 = vadd.f32 0.0, %v6636
    %v6638 = vpop.f32.mrb[0].mxu0
    %6639 = vmatprep.mubr.f32.mxu0 0.0
    %6640 = vmatmul.mubr.f32.gmra.mrb[0].mxu0 %v4623
    %v6641 = vpop.f32.mrb[0].mxu0
    %v6642 = vadd.f32 0.0, %v6641
    %v6643 = vpop.f32.mrb[0].mxu0
    %6644 = vmatprep.mubr.f32.mxu0 0.0
    %6645 = vmatmul.mubr.f32.gmra.mrb[0].mxu0 %v4624
    %v6646 = vpop.f32.mrb[0].mxu0
    %v6647 = vadd.f32 0.0, %v6646
    %v6648 = vpop.f32.mrb[0].mxu0
    %6649 = vmatprep.mubr.f32.mxu0 0.0
    %6650 = vmatmul.mubr.f32.gmra.mrb[0].mxu0 %v4625
    %v6651 = vpop.f32.mrb[0].mxu0
    %v6652 = vadd.f32 0.0, %v6651
    %v6653 = vpop.f32.mrb[0].mxu0
    %6654 = vmatprep.mubr.f32.mxu0 0.0
    %6655 = vmatmul.mubr.f32.gmra.mrb[0].mxu0 %v4626
    %v6656 = vpop.f32.mrb[0].mxu0
    %v6657 = vadd.f32 0.0, %v6656
    %v6658 = vpop.f32.mrb[0].mxu0
    %6659 = vmatprep.mubr.f32.mxu0 0.0
    %6660 = vmatmul.mubr.f32.gmra.mrb[0].mxu0 %v4627
    %v6661 = vpop.f32.mrb[0].mxu0
    %v6662 = vadd.f32 0.0, %v6661
    %v6663 = vpop.f32.mrb[0].mxu0
    %6664 = vmatprep.mubr.f32.mxu0 0.0
    %6665 = vmatmul.mubr.f32.gmra.mrb[0].mxu0 %v4628
    %v6666 = vpop.f32.mrb[0].mxu0
    %v6667 = vadd.f32 0.0, %v6666
    %v6668 = vpop.f32.mrb[0].mxu0
    %6669 = vmatprep.mubr.f32.mxu0 0.0
    %6670 = vmatmul.mubr.f32.gmra.mrb[0].mxu0 %v4629
    %v6671 = vpop.f32.mrb[0].mxu0
    %v6672 = vadd.f32 0.0, %v6671
    %v6673 = vpop.f32.mrb[0].mxu0
    %6674 = vmatprep.mubr.f32.mxu0 0.0
    %6675 = vmatmul.mubr.f32.gmra.mrb[0].mxu0 %v4630
    %v6676 = vpop.f32.mrb[0].mxu0
    %v6677 = vadd.f32 0.0, %v6676
    %v6678 = vpop.f32.mrb[0].mxu0
    %6679 = vmatprep.mubr.f32.mxu0 0.0
    %6680 = vmatmul.mubr.f32.gmra.mrb[0].mxu0 %v4631
    %v6681 = vpop.f32.mrb[0].mxu0
    %v6682 = vadd.f32 0.0, %v6681
    %v6683 = vpop.f32.mrb[0].mxu0
    %6684 = vmatprep.mubr.f32.mxu0 0.0
    %6685 = vmatmul.mubr.f32.gmra.mrb[0].mxu0 %v4632
    %v6686 = vpop.f32.mrb[0].mxu0
    %v6687 = vadd.f32 0.0, %v6686
    %v6688 = vpop.f32.mrb[0].mxu0
    %6689 = vmatprep.mubr.f32.mxu0 0.0
    %6690 = vmatmul.mubr.f32.gmra.mrb[0].mxu0 %v4633
    %v6691 = vpop.f32.mrb[0].mxu0
    %v6692 = vadd.f32 0.0, %v6691
    %v6693 = vpop.f32.mrb[0].mxu0
    %6694 = vmatprep.mubr.f32.mxu0 0.0
    %6695 = vmatmul.mubr.f32.gmra.mrb[0].mxu0 %v4634
    %v6696 = vpop.f32.mrb[0].mxu0
    %v6697 = vadd.f32 0.0, %v6696
    %v6698 = vpop.f32.mrb[0].mxu0
    %6699 = vmatprep.mubr.f32.mxu0 0.0
    %6700 = vmatmul.mubr.f32.gmra.mrb[0].mxu0 %v4635
    %v6701 = vpop.f32.mrb[0].mxu0
    %v6702 = vadd.f32 0.0, %v6701
    %v6703 = vpop.f32.mrb[0].mxu0
    %6704 = vmatprep.mubr.f32.mxu0 0.0
    %6705 = vmatmul.mubr.f32.gmra.mrb[0].mxu0 %v4636
    %v6706 = vpop.f32.mrb[0].mxu0
    %v6707 = vadd.f32 0.0, %v6706
    %v6708 = vpop.f32.mrb[0].mxu0
    %6709 = vmatprep.mubr.f32.mxu0 0.0
    %6710 = vmatmul.mubr.f32.gmra.mrb[0].mxu0 %v4637
    %v6711 = vpop.f32.mrb[0].mxu0
    %v6712 = vadd.f32 0.0, %v6711
    %v6713 = vpop.f32.mrb[0].mxu0
    %6714 = vmatprep.mubr.f32.mxu0 0.0
    %6715 = vmatmul.mubr.f32.gmra.mrb[0].mxu0 %v4638
    %v6716 = vpop.f32.mrb[0].mxu0
    %v6717 = vadd.f32 0.0, %v6716
    %v6718 = vpop.f32.mrb[0].mxu0
    %6719 = vmatprep.mubr.f32.mxu0 0.0
    %6720 = vmatmul.mubr.f32.gmra.mrb[0].mxu0 %v4639
    %v6721 = vpop.f32.mrb[0].mxu0
    %v6722 = vadd.f32 0.0, %v6721
    %v6723 = vpop.f32.mrb[0].mxu0
    %6724 = vmatprep.mubr.f32.mxu0 0.0
    %6725 = vmatmul.mubr.f32.gmra.mrb[0].mxu0 %v4640
    %v6726 = vpop.f32.mrb[0].mxu0
    %v6727 = vadd.f32 0.0, %v6726
    %v6728 = vpop.f32.mrb[0].mxu0
    %6729 = vmatprep.mubr.f32.mxu0 0.0
    %6730 = vmatmul.mubr.f32.gmra.mrb[0].mxu0 %v4641
    %v6731 = vpop.f32.mrb[0].mxu0
    %v6732 = vadd.f32 0.0, %v6731
    %v6733 = vpop.f32.mrb[0].mxu0
    %6734 = vmatprep.mubr.f32.mxu0 0.0
    %6735 = vmatmul.mubr.f32.gmra.mrb[0].mxu0 %v4642
    %v6736 = vpop.f32.mrb[0].mxu0
    %v6737 = vadd.f32 0.0, %v6736
    %v6738 = vpop.f32.mrb[0].mxu0
    %6739 = vmatprep.mubr.f32.mxu0 0.0
    %6740 = vmatmul.mubr.f32.gmra.mrb[0].mxu0 %v4643
    %v6741 = vpop.f32.mrb[0].mxu0
    %v6742 = vadd.f32 0.0, %v6741
    %v6743 = vpop.f32.mrb[0].mxu0
    %6744 = vmatprep.mubr.f32.mxu0 0.0
    %6745 = vmatmul.mubr.f32.gmra.mrb[0].mxu0 %v4644
    %v6746 = vpop.f32.mrb[0].mxu0
    %v6747 = vadd.f32 0.0, %v6746
    %v6748 = vpop.f32.mrb[0].mxu0
    %6749 = vmatprep.mubr.f32.mxu0 0.0
    %6750 = vmatmul.mubr.f32.gmra.mrb[0].mxu0 %v4645
    %v6751 = vpop.f32.mrb[0].mxu0
    %v6752 = vadd.f32 0.0, %v6751
    %v6753 = vpop.f32.mrb[0].mxu0
    %6754 = vmatprep.mubr.f32.mxu0 0.0
    %6755 = vmatmul.mubr.f32.gmra.mrb[0].mxu0 %v4646
    %v6756 = vpop.f32.mrb[0].mxu0
    %v6757 = vadd.f32 0.0, %v6756
    %v6758 = vpop.f32.mrb[0].mxu0
    %6759 = vmatprep.mubr.f32.mxu0 0.0
    %6760 = vmatmul.mubr.f32.gmra.mrb[0].mxu0 %v4647
    %v6761 = vpop.f32.mrb[0].mxu0
    %v6762 = vadd.f32 0.0, %v6761
    %v6763 = vpop.f32.mrb[0].mxu0
    %6764 = vmatprep.mubr.f32.mxu0 0.0
    %6765 = vmatmul.mubr.f32.gmra.mrb[0].mxu0 %v4648
    %v6766 = vpop.f32.mrb[0].mxu0
    %v6767 = vadd.f32 0.0, %v6766
    %v6768 = vpop.f32.mrb[0].mxu0
    %6769 = vmatprep.mubr.f32.mxu0 0.0
    %6770 = vmatmul.mubr.f32.gmra.mrb[0].mxu0 %v4649
    %v6771 = vpop.f32.mrb[0].mxu0
    %v6772 = vadd.f32 0.0, %v6771
    %v6773 = vpop.f32.mrb[0].mxu0
    %6774 = vmatprep.mubr.f32.mxu0 0.0
    %6775 = vmatmul.mubr.f32.gmra.mrb[0].mxu0 %v4650
    %v6776 = vpop.f32.mrb[0].mxu0
    %v6777 = vadd.f32 0.0, %v6776
    %v6778 = vpop.f32.mrb[0].mxu0
    %6779 = vmatprep.mubr.f32.mxu0 0.0
    %6780 = vmatmul.mubr.f32.gmra.mrb[0].mxu0 %v4651
    %v6781 = vpop.f32.mrb[0].mxu0
    %v6782 = vadd.f32 0.0, %v6781
    %v6783 = vpop.f32.mrb[0].mxu0
    %6784 = vmatprep.mubr.f32.mxu0 0.0
    %6785 = vmatmul.mubr.f32.gmra.mrb[0].mxu0 %v4652
    %v6786 = vpop.f32.mrb[0].mxu0
    %v6787 = vadd.f32 0.0, %v6786
    %v6788 = vpop.f32.mrb[0].mxu0
    %6789 = vmatprep.mubr.f32.mxu0 0.0
    %6790 = vmatmul.mubr.f32.gmra.mrb[0].mxu0 %v4653
    %v6791 = vpop.f32.mrb[0].mxu0
    %v6792 = vadd.f32 0.0, %v6791
    %v6793 = vpop.f32.mrb[0].mxu0
    %6794 = vmatprep.mubr.f32.mxu0 0.0
    %6795 = vmatmul.mubr.f32.gmra.mrb[0].mxu0 %v4654
    %v6796 = vpop.f32.mrb[0].mxu0
    %v6797 = vadd.f32 0.0, %v6796
    %v6798 = vpop.f32.mrb[0].mxu0
    %6799 = vmatprep.mubr.f32.mxu0 0.0
    %6800 = vmatmul.mubr.f32.gmra.mrb[0].mxu0 %v4655
    %v6801 = vpop.f32.mrb[0].mxu0
    %v6802 = vadd.f32 0.0, %v6801
    %v6803 = vpop.f32.mrb[0].mxu0
    %6804 = vmatprep.mubr.f32.mxu0 0.0
    %6805 = vmatmul.mubr.f32.gmra.mrb[0].mxu0 %v4656
    %v6806 = vpop.f32.mrb[0].mxu0
    %v6807 = vadd.f32 0.0, %v6806
    %v6808 = vpop.f32.mrb[0].mxu0
    %6809 = vmatprep.mubr.f32.mxu0 0.0
    %6810 = vmatmul.mubr.f32.gmra.mrb[0].mxu0 %v4657
    %v6811 = vpop.f32.mrb[0].mxu0
    %v6812 = vadd.f32 0.0, %v6811
    %v6813 = vpop.f32.mrb[0].mxu0
    %6814 = vmatprep.mubr.f32.mxu0 0.0
    %6815 = vmatmul.mubr.f32.gmra.mrb[0].mxu0 %v4658
    %v6816 = vpop.f32.mrb[0].mxu0
    %v6817 = vadd.f32 0.0, %v6816
    %v6818 = vpop.f32.mrb[0].mxu0
    %6819 = vmatprep.mubr.f32.mxu0 0.0
    %6820 = vmatmul.mubr.f32.gmra.mrb[0].mxu0 %v4659
    %v6821 = vpop.f32.mrb[0].mxu0
    %v6822 = vadd.f32 0.0, %v6821
    %v6823 = vpop.f32.mrb[0].mxu0
    %6824 = vdwg.mxu0
    %v6825 = vadd.f32 %v5465, %v6187
    %v6826 = vadd.f32 %v5470, %v6192
    %v6827 = vadd.f32 %v5475, %v6197
    %v6828 = vadd.f32 %v5480, %v6202
    %v6829 = vadd.f32 %v5485, %v6207
    %v6830 = vadd.f32 %v5490, %v6212
    %v6831 = vadd.f32 %v5495, %v6217
    %v6832 = vadd.f32 %v5500, %v6222
    %v6833 = vadd.f32 %v5505, %v6227
    %v6834 = vadd.f32 %v5510, %v6232
    %v6835 = vadd.f32 %v5515, %v6237
    %v6836 = vadd.f32 %v5520, %v6242
    %v6837 = vadd.f32 %v5525, %v6247
    %v6838 = vadd.f32 %v5530, %v6252
    %v6839 = vadd.f32 %v5535, %v6257
    %v6840 = vadd.f32 %v5540, %v6262
    %v6841 = vadd.f32 %v5545, %v6267
    %v6842 = vadd.f32 %v5550, %v6272
    %v6843 = vadd.f32 %v5555, %v6277
    %v6844 = vadd.f32 %v5560, %v6282
    %v6845 = vadd.f32 %v5565, %v6287
    %v6846 = vadd.f32 %v5570, %v6292
    %v6847 = vadd.f32 %v5575, %v6297
    %v6848 = vadd.f32 %v5580, %v6302
    %v6849 = vadd.f32 %v5585, %v6307
    %v6850 = vadd.f32 %v5590, %v6312
    %v6851 = vadd.f32 %v5595, %v6317
    %v6852 = vadd.f32 %v5600, %v6322
    %v6853 = vadd.f32 %v5605, %v6327
    %v6854 = vadd.f32 %v5610, %v6332
    %v6855 = vadd.f32 %v5615, %v6337
    %v6856 = vadd.f32 %v5620, %v6342
    %v6857 = vadd.f32 %v5625, %v6347
    %v6858 = vadd.f32 %v5630, %v6352
    %v6859 = vadd.f32 %v5635, %v6357
    %v6860 = vadd.f32 %v5640, %v6362
    %v6861 = vadd.f32 %v5645, %v6367
    %v6862 = vadd.f32 %v5650, %v6372
    %v6863 = vadd.f32 %v5655, %v6377
    %v6864 = vadd.f32 %v5660, %v6382
    %v6865 = vadd.f32 %v5665, %v6387
    %v6866 = vadd.f32 %v5670, %v6392
    %v6867 = vadd.f32 %v5675, %v6397
    %v6868 = vadd.f32 %v5680, %v6402
    %v6869 = vadd.f32 %v5685, %v6407
    %v6870 = vadd.f32 %v5690, %v6412
    %v6871 = vadd.f32 %v5695, %v6417
    %v6872 = vadd.f32 %v5700, %v6422
    %v6873 = vadd.f32 %v5705, %v6427
    %v6874 = vadd.f32 %v5710, %v6432
    %v6875 = vadd.f32 %v5715, %v6437
    %v6876 = vadd.f32 %v5720, %v6442
    %v6877 = vadd.f32 %v5725, %v6447
    %v6878 = vadd.f32 %v5730, %v6452
    %v6879 = vadd.f32 %v5735, %v6457
    %v6880 = vadd.f32 %v5740, %v6462
    %v6881 = vadd.f32 %v5745, %v6467
    %v6882 = vadd.f32 %v5750, %v6472
    %v6883 = vadd.f32 %v5755, %v6477
    %v6884 = vadd.f32 %v5760, %v6482
    %v6885 = vadd.f32 %v5765, %v6487
    %v6886 = vadd.f32 %v5770, %v6492
    %v6887 = vadd.f32 %v5775, %v6497
    %v6888 = vadd.f32 %v5780, %v6502
    %v6889 = vadd.f32 %v5785, %v6507
    %v6890 = vadd.f32 %v5790, %v6512
    %v6891 = vadd.f32 %v5795, %v6517
    %v6892 = vadd.f32 %v5800, %v6522
    %v6893 = vadd.f32 %v5805, %v6527
    %v6894 = vadd.f32 %v5810, %v6532
    %v6895 = vadd.f32 %v5815, %v6537
    %v6896 = vadd.f32 %v5820, %v6542
    %v6897 = vadd.f32 %v5825, %v6547
    %v6898 = vadd.f32 %v5830, %v6552
    %v6899 = vadd.f32 %v5835, %v6557
    %v6900 = vadd.f32 %v5840, %v6562
    %v6901 = vadd.f32 %v5845, %v6567
    %v6902 = vadd.f32 %v5850, %v6572
    %v6903 = vadd.f32 %v5855, %v6577
    %v6904 = vadd.f32 %v5860, %v6582
    %v6905 = vadd.f32 %v5865, %v6587
    %v6906 = vadd.f32 %v5870, %v6592
    %v6907 = vadd.f32 %v5875, %v6597
    %v6908 = vadd.f32 %v5880, %v6602
    %v6909 = vadd.f32 %v5885, %v6607
    %v6910 = vadd.f32 %v5890, %v6612
    %v6911 = vadd.f32 %v5895, %v6617
    %v6912 = vadd.f32 %v5900, %v6622
    %v6913 = vadd.f32 %v5905, %v6627
    %v6914 = vadd.f32 %v5910, %v6632
    %v6915 = vadd.f32 %v5915, %v6637
    %v6916 = vadd.f32 %v5920, %v6642
    %v6917 = vadd.f32 %v5925, %v6647
    %v6918 = vadd.f32 %v5930, %v6652
    %v6919 = vadd.f32 %v5935, %v6657
    %v6920 = vadd.f32 %v5940, %v6662
    %v6921 = vadd.f32 %v5945, %v6667
    %v6922 = vadd.f32 %v5950, %v6672
    %v6923 = vadd.f32 %v5955, %v6677
    %v6924 = vadd.f32 %v5960, %v6682
    %v6925 = vadd.f32 %v5965, %v6687
    %v6926 = vadd.f32 %v5970, %v6692
    %v6927 = vadd.f32 %v5975, %v6697
    %v6928 = vadd.f32 %v5980, %v6702
    %v6929 = vadd.f32 %v5985, %v6707
    %v6930 = vadd.f32 %v5990, %v6712
    %v6931 = vadd.f32 %v5995, %v6717
    %v6932 = vadd.f32 %v6000, %v6722
    %v6933 = vadd.f32 %v6005, %v6727
    %v6934 = vadd.f32 %v6010, %v6732
    %v6935 = vadd.f32 %v6015, %v6737
    %v6936 = vadd.f32 %v6020, %v6742
    %v6937 = vadd.f32 %v6025, %v6747
    %v6938 = vadd.f32 %v6030, %v6752
    %v6939 = vadd.f32 %v6035, %v6757
    %v6940 = vadd.f32 %v6040, %v6762
    %v6941 = vadd.f32 %v6045, %v6767
    %v6942 = vadd.f32 %v6050, %v6772
    %v6943 = vadd.f32 %v6055, %v6777
    %v6944 = vadd.f32 %v6060, %v6782
    %v6945 = vadd.f32 %v6065, %v6787
    %v6946 = vadd.f32 %v6070, %v6792
    %v6947 = vadd.f32 %v6075, %v6797
    %v6948 = vadd.f32 %v6080, %v6802
    %v6949 = vadd.f32 %v6085, %v6807
    %v6950 = vadd.f32 %v6090, %v6812
    %v6951 = vadd.f32 %v6095, %v6817
    %v6952 = vadd.f32 %v6100, %v6822
    %v6953 = vadd.f32 %v6825, %v6826
    %v6954 = vadd.f32 %v6953, %v6827
    %v6955 = vadd.f32 %v6954, %v6828
    %v6956 = vadd.f32 %v6955, %v6829
    %v6957 = vadd.f32 %v6956, %v6830
    %v6958 = vadd.f32 %v6957, %v6831
    %v6959 = vadd.f32 %v6958, %v6832
    %v6960 = vadd.f32 %v6959, %v6833
    %v6961 = vadd.f32 %v6960, %v6834
    %v6962 = vadd.f32 %v6961, %v6835
    %v6963 = vadd.f32 %v6962, %v6836
    %v6964 = vadd.f32 %v6963, %v6837
    %v6965 = vadd.f32 %v6964, %v6838
    %v6966 = vadd.f32 %v6965, %v6839
    %v6967 = vadd.f32 %v6966, %v6840
    %v6968 = vadd.f32 %v6967, %v6841
    %v6969 = vadd.f32 %v6968, %v6842
    %v6970 = vadd.f32 %v6969, %v6843
    %v6971 = vadd.f32 %v6970, %v6844
    %v6972 = vadd.f32 %v6971, %v6845
    %v6973 = vadd.f32 %v6972, %v6846
    %v6974 = vadd.f32 %v6973, %v6847
    %v6975 = vadd.f32 %v6974, %v6848
    %v6976 = vadd.f32 %v6975, %v6849
    %v6977 = vadd.f32 %v6976, %v6850
    %v6978 = vadd.f32 %v6977, %v6851
    %v6979 = vadd.f32 %v6978, %v6852
    %v6980 = vadd.f32 %v6979, %v6853
    %v6981 = vadd.f32 %v6980, %v6854
    %v6982 = vadd.f32 %v6981, %v6855
    %v6983 = vadd.f32 %v6982, %v6856
    %v6984 = vadd.f32 %v6983, %v6857
    %v6985 = vadd.f32 %v6984, %v6858
    %v6986 = vadd.f32 %v6985, %v6859
    %v6987 = vadd.f32 %v6986, %v6860
    %v6988 = vadd.f32 %v6987, %v6861
    %v6989 = vadd.f32 %v6988, %v6862
    %v6990 = vadd.f32 %v6989, %v6863
    %v6991 = vadd.f32 %v6990, %v6864
    %v6992 = vadd.f32 %v6991, %v6865
    %v6993 = vadd.f32 %v6992, %v6866
    %v6994 = vadd.f32 %v6993, %v6867
    %v6995 = vadd.f32 %v6994, %v6868
    %v6996 = vadd.f32 %v6995, %v6869
    %v6997 = vadd.f32 %v6996, %v6870
    %v6998 = vadd.f32 %v6997, %v6871
    %v6999 = vadd.f32 %v6998, %v6872
    %v7000 = vadd.f32 %v6999, %v6873
    %v7001 = vadd.f32 %v7000, %v6874
    %v7002 = vadd.f32 %v7001, %v6875
    %v7003 = vadd.f32 %v7002, %v6876
    %v7004 = vadd.f32 %v7003, %v6877
    %v7005 = vadd.f32 %v7004, %v6878
    %v7006 = vadd.f32 %v7005, %v6879
    %v7007 = vadd.f32 %v7006, %v6880
    %v7008 = vadd.f32 %v7007, %v6881
    %v7009 = vadd.f32 %v7008, %v6882
    %v7010 = vadd.f32 %v7009, %v6883
    %v7011 = vadd.f32 %v7010, %v6884
    %v7012 = vadd.f32 %v7011, %v6885
    %v7013 = vadd.f32 %v7012, %v6886
    %v7014 = vadd.f32 %v7013, %v6887
    %v7015 = vadd.f32 %v7014, %v6888
    %v7016 = vadd.f32 %v7015, %v6889
    %v7017 = vadd.f32 %v7016, %v6890
    %v7018 = vadd.f32 %v7017, %v6891
    %v7019 = vadd.f32 %v7018, %v6892
    %v7020 = vadd.f32 %v7019, %v6893
    %v7021 = vadd.f32 %v7020, %v6894
    %v7022 = vadd.f32 %v7021, %v6895
    %v7023 = vadd.f32 %v7022, %v6896
    %v7024 = vadd.f32 %v7023, %v6897
    %v7025 = vadd.f32 %v7024, %v6898
    %v7026 = vadd.f32 %v7025, %v6899
    %v7027 = vadd.f32 %v7026, %v6900
    %v7028 = vadd.f32 %v7027, %v6901
    %v7029 = vadd.f32 %v7028, %v6902
    %v7030 = vadd.f32 %v7029, %v6903
    %v7031 = vadd.f32 %v7030, %v6904
    %v7032 = vadd.f32 %v7031, %v6905
    %v7033 = vadd.f32 %v7032, %v6906
    %v7034 = vadd.f32 %v7033, %v6907
    %v7035 = vadd.f32 %v7034, %v6908
    %v7036 = vadd.f32 %v7035, %v6909
    %v7037 = vadd.f32 %v7036, %v6910
    %v7038 = vadd.f32 %v7037, %v6911
    %v7039 = vadd.f32 %v7038, %v6912
    %v7040 = vadd.f32 %v7039, %v6913
    %v7041 = vadd.f32 %v7040, %v6914
    %v7042 = vadd.f32 %v7041, %v6915
    %v7043 = vadd.f32 %v7042, %v6916
    %v7044 = vadd.f32 %v7043, %v6917
    %v7045 = vadd.f32 %v7044, %v6918
    %v7046 = vadd.f32 %v7045, %v6919
    %v7047 = vadd.f32 %v7046, %v6920
    %v7048 = vadd.f32 %v7047, %v6921
    %v7049 = vadd.f32 %v7048, %v6922
    %v7050 = vadd.f32 %v7049, %v6923
    %v7051 = vadd.f32 %v7050, %v6924
    %v7052 = vadd.f32 %v7051, %v6925
    %v7053 = vadd.f32 %v7052, %v6926
    %v7054 = vadd.f32 %v7053, %v6927
    %v7055 = vadd.f32 %v7054, %v6928
    %v7056 = vadd.f32 %v7055, %v6929
    %v7057 = vadd.f32 %v7056, %v6930
    %v7058 = vadd.f32 %v7057, %v6931
    %v7059 = vadd.f32 %v7058, %v6932
    %v7060 = vadd.f32 %v7059, %v6933
    %v7061 = vadd.f32 %v7060, %v6934
    %v7062 = vadd.f32 %v7061, %v6935
    %v7063 = vadd.f32 %v7062, %v6936
    %v7064 = vadd.f32 %v7063, %v6937
    %v7065 = vadd.f32 %v7064, %v6938
    %v7066 = vadd.f32 %v7065, %v6939
    %v7067 = vadd.f32 %v7066, %v6940
    %v7068 = vadd.f32 %v7067, %v6941
    %v7069 = vadd.f32 %v7068, %v6942
    %v7070 = vadd.f32 %v7069, %v6943
    %v7071 = vadd.f32 %v7070, %v6944
    %v7072 = vadd.f32 %v7071, %v6945
    %v7073 = vadd.f32 %v7072, %v6946
    %v7074 = vadd.f32 %v7073, %v6947
    %v7075 = vadd.f32 %v7074, %v6948
    %v7076 = vadd.f32 %v7075, %v6949
    %v7077 = vadd.f32 %v7076, %v6950
    %v7078 = vadd.f32 %v7077, %v6951
    %v7079 = vadd.f32 %v7078, %v6952
    %v7080 = vrot.slane %v7079, 4
    %v7081 = vadd.f32 %v7079, %v7080
    %v7082 = vrot.slane %v7081, 2
    %v7083 = vadd.f32 %v7081, %v7082
    %v7084 = vrot.slane %v7083, 1
    %v7085 = vadd.f32 %v7083, %v7084
    %v7086 = vmul.f32 %v7085, 0.0009765625
    %v7087 = vmul.f32 %v6825, %v6825
    %v7088 = vmul.f32 %v6826, %v6826
    %v7089 = vmul.f32 %v6827, %v6827
    %v7090 = vmul.f32 %v6828, %v6828
    %v7091 = vmul.f32 %v6829, %v6829
    %v7092 = vmul.f32 %v6830, %v6830
    %v7093 = vmul.f32 %v6831, %v6831
    %v7094 = vmul.f32 %v6832, %v6832
    %v7095 = vmul.f32 %v6833, %v6833
    %v7096 = vmul.f32 %v6834, %v6834
    %v7097 = vmul.f32 %v6835, %v6835
    %v7098 = vmul.f32 %v6836, %v6836
    %v7099 = vmul.f32 %v6837, %v6837
    %v7100 = vmul.f32 %v6838, %v6838
    %v7101 = vmul.f32 %v6839, %v6839
    %v7102 = vmul.f32 %v6840, %v6840
    %v7103 = vmul.f32 %v6841, %v6841
    %v7104 = vmul.f32 %v6842, %v6842
    %v7105 = vmul.f32 %v6843, %v6843
    %v7106 = vmul.f32 %v6844, %v6844
    %v7107 = vmul.f32 %v6845, %v6845
    %v7108 = vmul.f32 %v6846, %v6846
    %v7109 = vmul.f32 %v6847, %v6847
    %v7110 = vmul.f32 %v6848, %v6848
    %v7111 = vmul.f32 %v6849, %v6849
    %v7112 = vmul.f32 %v6850, %v6850
    %v7113 = vmul.f32 %v6851, %v6851
    %v7114 = vmul.f32 %v6852, %v6852
    %v7115 = vmul.f32 %v6853, %v6853
    %v7116 = vmul.f32 %v6854, %v6854
    %v7117 = vmul.f32 %v6855, %v6855
    %v7118 = vmul.f32 %v6856, %v6856
    %v7119 = vmul.f32 %v6857, %v6857
    %v7120 = vmul.f32 %v6858, %v6858
    %v7121 = vmul.f32 %v6859, %v6859
    %v7122 = vmul.f32 %v6860, %v6860
    %v7123 = vmul.f32 %v6861, %v6861
    %v7124 = vmul.f32 %v6862, %v6862
    %v7125 = vmul.f32 %v6863, %v6863
    %v7126 = vmul.f32 %v6864, %v6864
    %v7127 = vmul.f32 %v6865, %v6865
    %v7128 = vmul.f32 %v6866, %v6866
    %v7129 = vmul.f32 %v6867, %v6867
    %v7130 = vmul.f32 %v6868, %v6868
    %v7131 = vmul.f32 %v6869, %v6869
    %v7132 = vmul.f32 %v6870, %v6870
    %v7133 = vmul.f32 %v6871, %v6871
    %v7134 = vmul.f32 %v6872, %v6872
    %v7135 = vmul.f32 %v6873, %v6873
    %v7136 = vmul.f32 %v6874, %v6874
    %v7137 = vmul.f32 %v6875, %v6875
    %v7138 = vmul.f32 %v6876, %v6876
    %v7139 = vmul.f32 %v6877, %v6877
    %v7140 = vmul.f32 %v6878, %v6878
    %v7141 = vmul.f32 %v6879, %v6879
    %v7142 = vmul.f32 %v6880, %v6880
    %v7143 = vmul.f32 %v6881, %v6881
    %v7144 = vmul.f32 %v6882, %v6882
    %v7145 = vmul.f32 %v6883, %v6883
    %v7146 = vmul.f32 %v6884, %v6884
    %v7147 = vmul.f32 %v6885, %v6885
    %v7148 = vmul.f32 %v6886, %v6886
    %v7149 = vmul.f32 %v6887, %v6887
    %v7150 = vmul.f32 %v6888, %v6888
    %v7151 = vmul.f32 %v6889, %v6889
    %v7152 = vmul.f32 %v6890, %v6890
    %v7153 = vmul.f32 %v6891, %v6891
    %v7154 = vmul.f32 %v6892, %v6892
    %v7155 = vmul.f32 %v6893, %v6893
    %v7156 = vmul.f32 %v6894, %v6894
    %v7157 = vmul.f32 %v6895, %v6895
    %v7158 = vmul.f32 %v6896, %v6896
    %v7159 = vmul.f32 %v6897, %v6897
    %v7160 = vmul.f32 %v6898, %v6898
    %v7161 = vmul.f32 %v6899, %v6899
    %v7162 = vmul.f32 %v6900, %v6900
    %v7163 = vmul.f32 %v6901, %v6901
    %v7164 = vmul.f32 %v6902, %v6902
    %v7165 = vmul.f32 %v6903, %v6903
    %v7166 = vmul.f32 %v6904, %v6904
    %v7167 = vmul.f32 %v6905, %v6905
    %v7168 = vmul.f32 %v6906, %v6906
    %v7169 = vmul.f32 %v6907, %v6907
    %v7170 = vmul.f32 %v6908, %v6908
    %v7171 = vmul.f32 %v6909, %v6909
    %v7172 = vmul.f32 %v6910, %v6910
    %v7173 = vmul.f32 %v6911, %v6911
    %v7174 = vmul.f32 %v6912, %v6912
    %v7175 = vmul.f32 %v6913, %v6913
    %v7176 = vmul.f32 %v6914, %v6914
    %v7177 = vmul.f32 %v6915, %v6915
    %v7178 = vmul.f32 %v6916, %v6916
    %v7179 = vmul.f32 %v6917, %v6917
    %v7180 = vmul.f32 %v6918, %v6918
    %v7181 = vmul.f32 %v6919, %v6919
    %v7182 = vmul.f32 %v6920, %v6920
    %v7183 = vmul.f32 %v6921, %v6921
    %v7184 = vmul.f32 %v6922, %v6922
    %v7185 = vmul.f32 %v6923, %v6923
    %v7186 = vmul.f32 %v6924, %v6924
    %v7187 = vmul.f32 %v6925, %v6925
    %v7188 = vmul.f32 %v6926, %v6926
    %v7189 = vmul.f32 %v6927, %v6927
    %v7190 = vmul.f32 %v6928, %v6928
    %v7191 = vmul.f32 %v6929, %v6929
    %v7192 = vmul.f32 %v6930, %v6930
    %v7193 = vmul.f32 %v6931, %v6931
    %v7194 = vmul.f32 %v6932, %v6932
    %v7195 = vmul.f32 %v6933, %v6933
    %v7196 = vmul.f32 %v6934, %v6934
    %v7197 = vmul.f32 %v6935, %v6935
    %v7198 = vmul.f32 %v6936, %v6936
    %v7199 = vmul.f32 %v6937, %v6937
    %v7200 = vmul.f32 %v6938, %v6938
    %v7201 = vmul.f32 %v6939, %v6939
    %v7202 = vmul.f32 %v6940, %v6940
    %v7203 = vmul.f32 %v6941, %v6941
    %v7204 = vmul.f32 %v6942, %v6942
    %v7205 = vmul.f32 %v6943, %v6943
    %v7206 = vmul.f32 %v6944, %v6944
    %v7207 = vmul.f32 %v6945, %v6945
    %v7208 = vmul.f32 %v6946, %v6946
    %v7209 = vmul.f32 %v6947, %v6947
    %v7210 = vmul.f32 %v6948, %v6948
    %v7211 = vmul.f32 %v6949, %v6949
    %v7212 = vmul.f32 %v6950, %v6950
    %v7213 = vmul.f32 %v6951, %v6951
    %v7214 = vmul.f32 %v6952, %v6952
    %v7215 = vadd.f32 %v7087, %v7088
    %v7216 = vadd.f32 %v7215, %v7089
    %v7217 = vadd.f32 %v7216, %v7090
    %v7218 = vadd.f32 %v7217, %v7091
    %v7219 = vadd.f32 %v7218, %v7092
    %v7220 = vadd.f32 %v7219, %v7093
    %v7221 = vadd.f32 %v7220, %v7094
    %v7222 = vadd.f32 %v7221, %v7095
    %v7223 = vadd.f32 %v7222, %v7096
    %v7224 = vadd.f32 %v7223, %v7097
    %v7225 = vadd.f32 %v7224, %v7098
    %v7226 = vadd.f32 %v7225, %v7099
    %v7227 = vadd.f32 %v7226, %v7100
    %v7228 = vadd.f32 %v7227, %v7101
    %v7229 = vadd.f32 %v7228, %v7102
    %v7230 = vadd.f32 %v7229, %v7103
    %v7231 = vadd.f32 %v7230, %v7104
    %v7232 = vadd.f32 %v7231, %v7105
    %v7233 = vadd.f32 %v7232, %v7106
    %v7234 = vadd.f32 %v7233, %v7107
    %v7235 = vadd.f32 %v7234, %v7108
    %v7236 = vadd.f32 %v7235, %v7109
    %v7237 = vadd.f32 %v7236, %v7110
    %v7238 = vadd.f32 %v7237, %v7111
    %v7239 = vadd.f32 %v7238, %v7112
    %v7240 = vadd.f32 %v7239, %v7113
    %v7241 = vadd.f32 %v7240, %v7114
    %v7242 = vadd.f32 %v7241, %v7115
    %v7243 = vadd.f32 %v7242, %v7116
    %v7244 = vadd.f32 %v7243, %v7117
    %v7245 = vadd.f32 %v7244, %v7118
    %v7246 = vadd.f32 %v7245, %v7119
    %v7247 = vadd.f32 %v7246, %v7120
    %v7248 = vadd.f32 %v7247, %v7121
    %v7249 = vadd.f32 %v7248, %v7122
    %v7250 = vadd.f32 %v7249, %v7123
    %v7251 = vadd.f32 %v7250, %v7124
    %v7252 = vadd.f32 %v7251, %v7125
    %v7253 = vadd.f32 %v7252, %v7126
    %v7254 = vadd.f32 %v7253, %v7127
    %v7255 = vadd.f32 %v7254, %v7128
    %v7256 = vadd.f32 %v7255, %v7129
    %v7257 = vadd.f32 %v7256, %v7130
    %v7258 = vadd.f32 %v7257, %v7131
    %v7259 = vadd.f32 %v7258, %v7132
    %v7260 = vadd.f32 %v7259, %v7133
    %v7261 = vadd.f32 %v7260, %v7134
    %v7262 = vadd.f32 %v7261, %v7135
    %v7263 = vadd.f32 %v7262, %v7136
    %v7264 = vadd.f32 %v7263, %v7137
    %v7265 = vadd.f32 %v7264, %v7138
    %v7266 = vadd.f32 %v7265, %v7139
    %v7267 = vadd.f32 %v7266, %v7140
    %v7268 = vadd.f32 %v7267, %v7141
    %v7269 = vadd.f32 %v7268, %v7142
    %v7270 = vadd.f32 %v7269, %v7143
    %v7271 = vadd.f32 %v7270, %v7144
    %v7272 = vadd.f32 %v7271, %v7145
    %v7273 = vadd.f32 %v7272, %v7146
    %v7274 = vadd.f32 %v7273, %v7147
    %v7275 = vadd.f32 %v7274, %v7148
    %v7276 = vadd.f32 %v7275, %v7149
    %v7277 = vadd.f32 %v7276, %v7150
    %v7278 = vadd.f32 %v7277, %v7151
    %v7279 = vadd.f32 %v7278, %v7152
    %v7280 = vadd.f32 %v7279, %v7153
    %v7281 = vadd.f32 %v7280, %v7154
    %v7282 = vadd.f32 %v7281, %v7155
    %v7283 = vadd.f32 %v7282, %v7156
    %v7284 = vadd.f32 %v7283, %v7157
    %v7285 = vadd.f32 %v7284, %v7158
    %v7286 = vadd.f32 %v7285, %v7159
    %v7287 = vadd.f32 %v7286, %v7160
    %v7288 = vadd.f32 %v7287, %v7161
    %v7289 = vadd.f32 %v7288, %v7162
    %v7290 = vadd.f32 %v7289, %v7163
    %v7291 = vadd.f32 %v7290, %v7164
    %v7292 = vadd.f32 %v7291, %v7165
    %v7293 = vadd.f32 %v7292, %v7166
    %v7294 = vadd.f32 %v7293, %v7167
    %v7295 = vadd.f32 %v7294, %v7168
    %v7296 = vadd.f32 %v7295, %v7169
    %v7297 = vadd.f32 %v7296, %v7170
    %v7298 = vadd.f32 %v7297, %v7171
    %v7299 = vadd.f32 %v7298, %v7172
    %v7300 = vadd.f32 %v7299, %v7173
    %v7301 = vadd.f32 %v7300, %v7174
    %v7302 = vadd.f32 %v7301, %v7175
    %v7303 = vadd.f32 %v7302, %v7176
    %v7304 = vadd.f32 %v7303, %v7177
    %v7305 = vadd.f32 %v7304, %v7178
    %v7306 = vadd.f32 %v7305, %v7179
    %v7307 = vadd.f32 %v7306, %v7180
    %v7308 = vadd.f32 %v7307, %v7181
    %v7309 = vadd.f32 %v7308, %v7182
    %v7310 = vadd.f32 %v7309, %v7183
    %v7311 = vadd.f32 %v7310, %v7184
    %v7312 = vadd.f32 %v7311, %v7185
    %v7313 = vadd.f32 %v7312, %v7186
    %v7314 = vadd.f32 %v7313, %v7187
    %v7315 = vadd.f32 %v7314, %v7188
    %v7316 = vadd.f32 %v7315, %v7189
    %v7317 = vadd.f32 %v7316, %v7190
    %v7318 = vadd.f32 %v7317, %v7191
    %v7319 = vadd.f32 %v7318, %v7192
    %v7320 = vadd.f32 %v7319, %v7193
    %v7321 = vadd.f32 %v7320, %v7194
    %v7322 = vadd.f32 %v7321, %v7195
    %v7323 = vadd.f32 %v7322, %v7196
    %v7324 = vadd.f32 %v7323, %v7197
    %v7325 = vadd.f32 %v7324, %v7198
    %v7326 = vadd.f32 %v7325, %v7199
    %v7327 = vadd.f32 %v7326, %v7200
    %v7328 = vadd.f32 %v7327, %v7201
    %v7329 = vadd.f32 %v7328, %v7202
    %v7330 = vadd.f32 %v7329, %v7203
    %v7331 = vadd.f32 %v7330, %v7204
    %v7332 = vadd.f32 %v7331, %v7205
    %v7333 = vadd.f32 %v7332, %v7206
    %v7334 = vadd.f32 %v7333, %v7207
    %v7335 = vadd.f32 %v7334, %v7208
    %v7336 = vadd.f32 %v7335, %v7209
    %v7337 = vadd.f32 %v7336, %v7210
    %v7338 = vadd.f32 %v7337, %v7211
    %v7339 = vadd.f32 %v7338, %v7212
    %v7340 = vadd.f32 %v7339, %v7213
    %v7341 = vadd.f32 %v7340, %v7214
    %v7342 = vrot.slane %v7341, 4
    %v7343 = vadd.f32 %v7341, %v7342
    %v7344 = vrot.slane %v7343, 2
    %v7345 = vadd.f32 %v7343, %v7344
    %v7346 = vrot.slane %v7345, 1
    %v7347 = vadd.f32 %v7345, %v7346
    %v7348 = vmul.f32 %v7347, 0.0009765625
    %v7349 = vmul.f32 %v7086, %v7086
    %v7350 = vsub.f32 %v7348, %v7349
    %v7351 = vmax.f32 %v7350, 0.0
    %v7352 = vld [vmem:[%s7] sm:$0x1]
    %v7353 = vadd.f32 %v7351, 1e-05
    %v7354 = vrsqrt.pop %v7353
    %v7355 = vmul.f32 %v7352, %v7354
    %v7356 = vld [vmem:[%s8] sm:$0x1]
    %v7357 = vmul.f32 %v7086, %v7355
    %v7358 = vsub.f32 %v7356, %v7357
    %v7360 = vlaneseq
    %v7361 = vshrl.u32 %v7360, 7
    %v7362 = vsub.s32 0, %v7361
    %v7363 = vrot.slane %v7355, %v7362
    %v7365 = vmul.f32 %v6825, %v7363
    %v7366 = vmul.f32 %v6826, %v7363
    %v7367 = vmul.f32 %v6827, %v7363
    %v7368 = vmul.f32 %v6828, %v7363
    %v7369 = vmul.f32 %v6829, %v7363
    %v7370 = vmul.f32 %v6830, %v7363
    %v7371 = vmul.f32 %v6831, %v7363
    %v7372 = vmul.f32 %v6832, %v7363
    %v7373 = vmul.f32 %v6833, %v7363
    %v7374 = vmul.f32 %v6834, %v7363
    %v7375 = vmul.f32 %v6835, %v7363
    %v7376 = vmul.f32 %v6836, %v7363
    %v7377 = vmul.f32 %v6837, %v7363
    %v7378 = vmul.f32 %v6838, %v7363
    %v7379 = vmul.f32 %v6839, %v7363
    %v7380 = vmul.f32 %v6840, %v7363
    %v7381 = vmul.f32 %v6841, %v7363
    %v7382 = vmul.f32 %v6842, %v7363
    %v7383 = vmul.f32 %v6843, %v7363
    %v7384 = vmul.f32 %v6844, %v7363
    %v7385 = vmul.f32 %v6845, %v7363
    %v7386 = vmul.f32 %v6846, %v7363
    %v7387 = vmul.f32 %v6847, %v7363
    %v7388 = vmul.f32 %v6848, %v7363
    %v7389 = vmul.f32 %v6849, %v7363
    %v7390 = vmul.f32 %v6850, %v7363
    %v7391 = vmul.f32 %v6851, %v7363
    %v7392 = vmul.f32 %v6852, %v7363
    %v7393 = vmul.f32 %v6853, %v7363
    %v7394 = vmul.f32 %v6854, %v7363
    %v7395 = vmul.f32 %v6855, %v7363
    %v7396 = vmul.f32 %v6856, %v7363
    %v7397 = vmul.f32 %v6857, %v7363
    %v7398 = vmul.f32 %v6858, %v7363
    %v7399 = vmul.f32 %v6859, %v7363
    %v7400 = vmul.f32 %v6860, %v7363
    %v7401 = vmul.f32 %v6861, %v7363
    %v7402 = vmul.f32 %v6862, %v7363
    %v7403 = vmul.f32 %v6863, %v7363
    %v7404 = vmul.f32 %v6864, %v7363
    %v7405 = vmul.f32 %v6865, %v7363
    %v7406 = vmul.f32 %v6866, %v7363
    %v7407 = vmul.f32 %v6867, %v7363
    %v7408 = vmul.f32 %v6868, %v7363
    %v7409 = vmul.f32 %v6869, %v7363
    %v7410 = vmul.f32 %v6870, %v7363
    %v7411 = vmul.f32 %v6871, %v7363
    %v7412 = vmul.f32 %v6872, %v7363
    %v7413 = vmul.f32 %v6873, %v7363
    %v7414 = vmul.f32 %v6874, %v7363
    %v7415 = vmul.f32 %v6875, %v7363
    %v7416 = vmul.f32 %v6876, %v7363
    %v7417 = vmul.f32 %v6877, %v7363
    %v7418 = vmul.f32 %v6878, %v7363
    %v7419 = vmul.f32 %v6879, %v7363
    %v7420 = vmul.f32 %v6880, %v7363
    %v7421 = vmul.f32 %v6881, %v7363
    %v7422 = vmul.f32 %v6882, %v7363
    %v7423 = vmul.f32 %v6883, %v7363
    %v7424 = vmul.f32 %v6884, %v7363
    %v7425 = vmul.f32 %v6885, %v7363
    %v7426 = vmul.f32 %v6886, %v7363
    %v7427 = vmul.f32 %v6887, %v7363
    %v7428 = vmul.f32 %v6888, %v7363
    %v7429 = vmul.f32 %v6889, %v7363
    %v7430 = vmul.f32 %v6890, %v7363
    %v7431 = vmul.f32 %v6891, %v7363
    %v7432 = vmul.f32 %v6892, %v7363
    %v7433 = vmul.f32 %v6893, %v7363
    %v7434 = vmul.f32 %v6894, %v7363
    %v7435 = vmul.f32 %v6895, %v7363
    %v7436 = vmul.f32 %v6896, %v7363
    %v7437 = vmul.f32 %v6897, %v7363
    %v7438 = vmul.f32 %v6898, %v7363
    %v7439 = vmul.f32 %v6899, %v7363
    %v7440 = vmul.f32 %v6900, %v7363
    %v7441 = vmul.f32 %v6901, %v7363
    %v7442 = vmul.f32 %v6902, %v7363
    %v7443 = vmul.f32 %v6903, %v7363
    %v7444 = vmul.f32 %v6904, %v7363
    %v7445 = vmul.f32 %v6905, %v7363
    %v7446 = vmul.f32 %v6906, %v7363
    %v7447 = vmul.f32 %v6907, %v7363
    %v7448 = vmul.f32 %v6908, %v7363
    %v7449 = vmul.f32 %v6909, %v7363
    %v7450 = vmul.f32 %v6910, %v7363
    %v7451 = vmul.f32 %v6911, %v7363
    %v7452 = vmul.f32 %v6912, %v7363
    %v7453 = vmul.f32 %v6913, %v7363
    %v7454 = vmul.f32 %v6914, %v7363
    %v7455 = vmul.f32 %v6915, %v7363
    %v7456 = vmul.f32 %v6916, %v7363
    %v7457 = vmul.f32 %v6917, %v7363
    %v7458 = vmul.f32 %v6918, %v7363
    %v7459 = vmul.f32 %v6919, %v7363
    %v7460 = vmul.f32 %v6920, %v7363
    %v7461 = vmul.f32 %v6921, %v7363
    %v7462 = vmul.f32 %v6922, %v7363
    %v7463 = vmul.f32 %v6923, %v7363
    %v7464 = vmul.f32 %v6924, %v7363
    %v7465 = vmul.f32 %v6925, %v7363
    %v7466 = vmul.f32 %v6926, %v7363
    %v7467 = vmul.f32 %v6927, %v7363
    %v7468 = vmul.f32 %v6928, %v7363
    %v7469 = vmul.f32 %v6929, %v7363
    %v7470 = vmul.f32 %v6930, %v7363
    %v7471 = vmul.f32 %v6931, %v7363
    %v7472 = vmul.f32 %v6932, %v7363
    %v7473 = vmul.f32 %v6933, %v7363
    %v7474 = vmul.f32 %v6934, %v7363
    %v7475 = vmul.f32 %v6935, %v7363
    %v7476 = vmul.f32 %v6936, %v7363
    %v7477 = vmul.f32 %v6937, %v7363
    %v7478 = vmul.f32 %v6938, %v7363
    %v7479 = vmul.f32 %v6939, %v7363
    %v7480 = vmul.f32 %v6940, %v7363
    %v7481 = vmul.f32 %v6941, %v7363
    %v7482 = vmul.f32 %v6942, %v7363
    %v7483 = vmul.f32 %v6943, %v7363
    %v7484 = vmul.f32 %v6944, %v7363
    %v7485 = vmul.f32 %v6945, %v7363
    %v7486 = vmul.f32 %v6946, %v7363
    %v7487 = vmul.f32 %v6947, %v7363
    %v7488 = vmul.f32 %v6948, %v7363
    %v7489 = vmul.f32 %v6949, %v7363
    %v7490 = vmul.f32 %v6950, %v7363
    %v7491 = vmul.f32 %v6951, %v7363
    %v7492 = vmul.f32 %v6952, %v7363
    %v7494 = vlaneseq
    %v7495 = vshrl.u32 %v7494, 7
    %v7496 = vsub.s32 0, %v7495
    %v7497 = vrot.slane %v7358, %v7496
    %v7499 = vadd.f32 %v7365, %v7497
    %v7500 = vadd.f32 %v7366, %v7497
    %v7501 = vadd.f32 %v7367, %v7497
    %v7502 = vadd.f32 %v7368, %v7497
    %v7503 = vadd.f32 %v7369, %v7497
    %v7504 = vadd.f32 %v7370, %v7497
    %v7505 = vadd.f32 %v7371, %v7497
    %v7506 = vadd.f32 %v7372, %v7497
    %v7507 = vadd.f32 %v7373, %v7497
    %v7508 = vadd.f32 %v7374, %v7497
    %v7509 = vadd.f32 %v7375, %v7497
    %v7510 = vadd.f32 %v7376, %v7497
    %v7511 = vadd.f32 %v7377, %v7497
    %v7512 = vadd.f32 %v7378, %v7497
    %v7513 = vadd.f32 %v7379, %v7497
    %v7514 = vadd.f32 %v7380, %v7497
    %v7515 = vadd.f32 %v7381, %v7497
    %v7516 = vadd.f32 %v7382, %v7497
    %v7517 = vadd.f32 %v7383, %v7497
    %v7518 = vadd.f32 %v7384, %v7497
    %v7519 = vadd.f32 %v7385, %v7497
    %v7520 = vadd.f32 %v7386, %v7497
    %v7521 = vadd.f32 %v7387, %v7497
    %v7522 = vadd.f32 %v7388, %v7497
    %v7523 = vadd.f32 %v7389, %v7497
    %v7524 = vadd.f32 %v7390, %v7497
    %v7525 = vadd.f32 %v7391, %v7497
    %v7526 = vadd.f32 %v7392, %v7497
    %v7527 = vadd.f32 %v7393, %v7497
    %v7528 = vadd.f32 %v7394, %v7497
    %v7529 = vadd.f32 %v7395, %v7497
    %v7530 = vadd.f32 %v7396, %v7497
    %v7531 = vadd.f32 %v7397, %v7497
    %v7532 = vadd.f32 %v7398, %v7497
    %v7533 = vadd.f32 %v7399, %v7497
    %v7534 = vadd.f32 %v7400, %v7497
    %v7535 = vadd.f32 %v7401, %v7497
    %v7536 = vadd.f32 %v7402, %v7497
    %v7537 = vadd.f32 %v7403, %v7497
    %v7538 = vadd.f32 %v7404, %v7497
    %v7539 = vadd.f32 %v7405, %v7497
    %v7540 = vadd.f32 %v7406, %v7497
    %v7541 = vadd.f32 %v7407, %v7497
    %v7542 = vadd.f32 %v7408, %v7497
    %v7543 = vadd.f32 %v7409, %v7497
    %v7544 = vadd.f32 %v7410, %v7497
    %v7545 = vadd.f32 %v7411, %v7497
    %v7546 = vadd.f32 %v7412, %v7497
    %v7547 = vadd.f32 %v7413, %v7497
    %v7548 = vadd.f32 %v7414, %v7497
    %v7549 = vadd.f32 %v7415, %v7497
    %v7550 = vadd.f32 %v7416, %v7497
    %v7551 = vadd.f32 %v7417, %v7497
    %v7552 = vadd.f32 %v7418, %v7497
    %v7553 = vadd.f32 %v7419, %v7497
    %v7554 = vadd.f32 %v7420, %v7497
    %v7555 = vadd.f32 %v7421, %v7497
    %v7556 = vadd.f32 %v7422, %v7497
    %v7557 = vadd.f32 %v7423, %v7497
    %v7558 = vadd.f32 %v7424, %v7497
    %v7559 = vadd.f32 %v7425, %v7497
    %v7560 = vadd.f32 %v7426, %v7497
    %v7561 = vadd.f32 %v7427, %v7497
    %v7562 = vadd.f32 %v7428, %v7497
    %v7563 = vadd.f32 %v7429, %v7497
    %v7564 = vadd.f32 %v7430, %v7497
    %v7565 = vadd.f32 %v7431, %v7497
    %v7566 = vadd.f32 %v7432, %v7497
    %v7567 = vadd.f32 %v7433, %v7497
    %v7568 = vadd.f32 %v7434, %v7497
    %v7569 = vadd.f32 %v7435, %v7497
    %v7570 = vadd.f32 %v7436, %v7497
    %v7571 = vadd.f32 %v7437, %v7497
    %v7572 = vadd.f32 %v7438, %v7497
    %v7573 = vadd.f32 %v7439, %v7497
    %v7574 = vadd.f32 %v7440, %v7497
    %v7575 = vadd.f32 %v7441, %v7497
    %v7576 = vadd.f32 %v7442, %v7497
    %v7577 = vadd.f32 %v7443, %v7497
    %v7578 = vadd.f32 %v7444, %v7497
    %v7579 = vadd.f32 %v7445, %v7497
    %v7580 = vadd.f32 %v7446, %v7497
    %v7581 = vadd.f32 %v7447, %v7497
    %v7582 = vadd.f32 %v7448, %v7497
    %v7583 = vadd.f32 %v7449, %v7497
    %v7584 = vadd.f32 %v7450, %v7497
    %v7585 = vadd.f32 %v7451, %v7497
    %v7586 = vadd.f32 %v7452, %v7497
    %v7587 = vadd.f32 %v7453, %v7497
    %v7588 = vadd.f32 %v7454, %v7497
    %v7589 = vadd.f32 %v7455, %v7497
    %v7590 = vadd.f32 %v7456, %v7497
    %v7591 = vadd.f32 %v7457, %v7497
    %v7592 = vadd.f32 %v7458, %v7497
    %v7593 = vadd.f32 %v7459, %v7497
    %v7594 = vadd.f32 %v7460, %v7497
    %v7595 = vadd.f32 %v7461, %v7497
    %v7596 = vadd.f32 %v7462, %v7497
    %v7597 = vadd.f32 %v7463, %v7497
    %v7598 = vadd.f32 %v7464, %v7497
    %v7599 = vadd.f32 %v7465, %v7497
    %v7600 = vadd.f32 %v7466, %v7497
    %v7601 = vadd.f32 %v7467, %v7497
    %v7602 = vadd.f32 %v7468, %v7497
    %v7603 = vadd.f32 %v7469, %v7497
    %v7604 = vadd.f32 %v7470, %v7497
    %v7605 = vadd.f32 %v7471, %v7497
    %v7606 = vadd.f32 %v7472, %v7497
    %v7607 = vadd.f32 %v7473, %v7497
    %v7608 = vadd.f32 %v7474, %v7497
    %v7609 = vadd.f32 %v7475, %v7497
    %v7610 = vadd.f32 %v7476, %v7497
    %v7611 = vadd.f32 %v7477, %v7497
    %v7612 = vadd.f32 %v7478, %v7497
    %v7613 = vadd.f32 %v7479, %v7497
    %v7614 = vadd.f32 %v7480, %v7497
    %v7615 = vadd.f32 %v7481, %v7497
    %v7616 = vadd.f32 %v7482, %v7497
    %v7617 = vadd.f32 %v7483, %v7497
    %v7618 = vadd.f32 %v7484, %v7497
    %v7619 = vadd.f32 %v7485, %v7497
    %v7620 = vadd.f32 %v7486, %v7497
    %v7621 = vadd.f32 %v7487, %v7497
    %v7622 = vadd.f32 %v7488, %v7497
    %v7623 = vadd.f32 %v7489, %v7497
    %v7624 = vadd.f32 %v7490, %v7497
    %v7625 = vadd.f32 %v7491, %v7497
    %v7626 = vadd.f32 %v7492, %v7497
    %v7627 = vmax.f32 %v7499, 0.0
    %v7628 = vmax.f32 %v7500, 0.0
    %v7629 = vmax.f32 %v7501, 0.0
    %v7630 = vmax.f32 %v7502, 0.0
    %v7631 = vmax.f32 %v7503, 0.0
    %v7632 = vmax.f32 %v7504, 0.0
    %v7633 = vmax.f32 %v7505, 0.0
    %v7634 = vmax.f32 %v7506, 0.0
    %v7635 = vmax.f32 %v7507, 0.0
    %v7636 = vmax.f32 %v7508, 0.0
    %v7637 = vmax.f32 %v7509, 0.0
    %v7638 = vmax.f32 %v7510, 0.0
    %v7639 = vmax.f32 %v7511, 0.0
    %v7640 = vmax.f32 %v7512, 0.0
    %v7641 = vmax.f32 %v7513, 0.0
    %v7642 = vmax.f32 %v7514, 0.0
    %v7643 = vmax.f32 %v7515, 0.0
    %v7644 = vmax.f32 %v7516, 0.0
    %v7645 = vmax.f32 %v7517, 0.0
    %v7646 = vmax.f32 %v7518, 0.0
    %v7647 = vmax.f32 %v7519, 0.0
    %v7648 = vmax.f32 %v7520, 0.0
    %v7649 = vmax.f32 %v7521, 0.0
    %v7650 = vmax.f32 %v7522, 0.0
    %v7651 = vmax.f32 %v7523, 0.0
    %v7652 = vmax.f32 %v7524, 0.0
    %v7653 = vmax.f32 %v7525, 0.0
    %v7654 = vmax.f32 %v7526, 0.0
    %v7655 = vmax.f32 %v7527, 0.0
    %v7656 = vmax.f32 %v7528, 0.0
    %v7657 = vmax.f32 %v7529, 0.0
    %v7658 = vmax.f32 %v7530, 0.0
    %v7659 = vmax.f32 %v7531, 0.0
    %v7660 = vmax.f32 %v7532, 0.0
    %v7661 = vmax.f32 %v7533, 0.0
    %v7662 = vmax.f32 %v7534, 0.0
    %v7663 = vmax.f32 %v7535, 0.0
    %v7664 = vmax.f32 %v7536, 0.0
    %v7665 = vmax.f32 %v7537, 0.0
    %v7666 = vmax.f32 %v7538, 0.0
    %v7667 = vmax.f32 %v7539, 0.0
    %v7668 = vmax.f32 %v7540, 0.0
    %v7669 = vmax.f32 %v7541, 0.0
    %v7670 = vmax.f32 %v7542, 0.0
    %v7671 = vmax.f32 %v7543, 0.0
    %v7672 = vmax.f32 %v7544, 0.0
    %v7673 = vmax.f32 %v7545, 0.0
    %v7674 = vmax.f32 %v7546, 0.0
    %v7675 = vmax.f32 %v7547, 0.0
    %v7676 = vmax.f32 %v7548, 0.0
    %v7677 = vmax.f32 %v7549, 0.0
    %v7678 = vmax.f32 %v7550, 0.0
    %v7679 = vmax.f32 %v7551, 0.0
    %v7680 = vmax.f32 %v7552, 0.0
    %v7681 = vmax.f32 %v7553, 0.0
    %v7682 = vmax.f32 %v7554, 0.0
    %v7683 = vmax.f32 %v7555, 0.0
    %v7684 = vmax.f32 %v7556, 0.0
    %v7685 = vmax.f32 %v7557, 0.0
    %v7686 = vmax.f32 %v7558, 0.0
    %v7687 = vmax.f32 %v7559, 0.0
    %v7688 = vmax.f32 %v7560, 0.0
    %v7689 = vmax.f32 %v7561, 0.0
    %v7690 = vmax.f32 %v7562, 0.0
    %v7691 = vmax.f32 %v7563, 0.0
    %v7692 = vmax.f32 %v7564, 0.0
    %v7693 = vmax.f32 %v7565, 0.0
    %v7694 = vmax.f32 %v7566, 0.0
    %v7695 = vmax.f32 %v7567, 0.0
    %v7696 = vmax.f32 %v7568, 0.0
    %v7697 = vmax.f32 %v7569, 0.0
    %v7698 = vmax.f32 %v7570, 0.0
    %v7699 = vmax.f32 %v7571, 0.0
    %v7700 = vmax.f32 %v7572, 0.0
    %v7701 = vmax.f32 %v7573, 0.0
    %v7702 = vmax.f32 %v7574, 0.0
    %v7703 = vmax.f32 %v7575, 0.0
    %v7704 = vmax.f32 %v7576, 0.0
    %v7705 = vmax.f32 %v7577, 0.0
    %v7706 = vmax.f32 %v7578, 0.0
    %v7707 = vmax.f32 %v7579, 0.0
    %v7708 = vmax.f32 %v7580, 0.0
    %v7709 = vmax.f32 %v7581, 0.0
    %v7710 = vmax.f32 %v7582, 0.0
    %v7711 = vmax.f32 %v7583, 0.0
    %v7712 = vmax.f32 %v7584, 0.0
    %v7713 = vmax.f32 %v7585, 0.0
    %v7714 = vmax.f32 %v7586, 0.0
    %v7715 = vmax.f32 %v7587, 0.0
    %v7716 = vmax.f32 %v7588, 0.0
    %v7717 = vmax.f32 %v7589, 0.0
    %v7718 = vmax.f32 %v7590, 0.0
    %v7719 = vmax.f32 %v7591, 0.0
    %v7720 = vmax.f32 %v7592, 0.0
    %v7721 = vmax.f32 %v7593, 0.0
    %v7722 = vmax.f32 %v7594, 0.0
    %v7723 = vmax.f32 %v7595, 0.0
    %v7724 = vmax.f32 %v7596, 0.0
    %v7725 = vmax.f32 %v7597, 0.0
    %v7726 = vmax.f32 %v7598, 0.0
    %v7727 = vmax.f32 %v7599, 0.0
    %v7728 = vmax.f32 %v7600, 0.0
    %v7729 = vmax.f32 %v7601, 0.0
    %v7730 = vmax.f32 %v7602, 0.0
    %v7731 = vmax.f32 %v7603, 0.0
    %v7732 = vmax.f32 %v7604, 0.0
    %v7733 = vmax.f32 %v7605, 0.0
    %v7734 = vmax.f32 %v7606, 0.0
    %v7735 = vmax.f32 %v7607, 0.0
    %v7736 = vmax.f32 %v7608, 0.0
    %v7737 = vmax.f32 %v7609, 0.0
    %v7738 = vmax.f32 %v7610, 0.0
    %v7739 = vmax.f32 %v7611, 0.0
    %v7740 = vmax.f32 %v7612, 0.0
    %v7741 = vmax.f32 %v7613, 0.0
    %v7742 = vmax.f32 %v7614, 0.0
    %v7743 = vmax.f32 %v7615, 0.0
    %v7744 = vmax.f32 %v7616, 0.0
    %v7745 = vmax.f32 %v7617, 0.0
    %v7746 = vmax.f32 %v7618, 0.0
    %v7747 = vmax.f32 %v7619, 0.0
    %v7748 = vmax.f32 %v7620, 0.0
    %v7749 = vmax.f32 %v7621, 0.0
    %v7750 = vmax.f32 %v7622, 0.0
    %v7751 = vmax.f32 %v7623, 0.0
    %v7752 = vmax.f32 %v7624, 0.0
    %v7753 = vmax.f32 %v7625, 0.0
    %v7754 = vmax.f32 %v7626, 0.0
    %v7755 = vld [vmem:[%s4] sm:$0xff]
    %v7756 = vld [vmem:[%s4 + $0x8] sm:$0xff]
    %v7757 = vld [vmem:[%s4 + $0x10] sm:$0xff]
    %v7758 = vld [vmem:[%s4 + $0x18] sm:$0xff]
    %v7759 = vld [vmem:[%s4 + $0x20] sm:$0xff]
    %v7760 = vld [vmem:[%s4 + $0x28] sm:$0xff]
    %v7761 = vld [vmem:[%s4 + $0x30] sm:$0xff]
    %v7762 = vld [vmem:[%s4 + $0x38] sm:$0xff]
    %v7763 = vld [vmem:[%s4 + $0x40] sm:$0xff]
    %v7764 = vld [vmem:[%s4 + $0x48] sm:$0xff]
    %v7765 = vld [vmem:[%s4 + $0x50] sm:$0xff]
    %v7766 = vld [vmem:[%s4 + $0x58] sm:$0xff]
    %v7767 = vld [vmem:[%s4 + $0x60] sm:$0xff]
    %v7768 = vld [vmem:[%s4 + $0x68] sm:$0xff]
    %v7769 = vld [vmem:[%s4 + $0x70] sm:$0xff]
    %v7770 = vld [vmem:[%s4 + $0x78] sm:$0xff]
    %7771 = vmatprep.subr.mxu0 0.0
    %7772 = vmatpush1.msra.mxu0 %v7755
    %7773 = vmatprep.subr.mxu0 0.0
    %7774 = vmatpush1.msra.mxu0 %v7756
    %7775 = vmatprep.subr.mxu0 0.0
    %7776 = vmatpush1.msra.mxu0 %v7757
    %7777 = vmatprep.subr.mxu0 0.0
    %7778 = vmatpush1.msra.mxu0 %v7758
    %7779 = vmatprep.subr.mxu0 0.0
    %7780 = vmatpush1.msra.mxu0 %v7759
    %7781 = vmatprep.subr.mxu0 0.0
    %7782 = vmatpush1.msra.mxu0 %v7760
    %7783 = vmatprep.subr.mxu0 0.0
    %7784 = vmatpush1.msra.mxu0 %v7761
    %7785 = vmatprep.subr.mxu0 0.0
    %7786 = vmatpush1.msra.mxu0 %v7762
    %7787 = vmatprep.subr.mxu0 0.0
    %7788 = vmatpush1.msra.mxu0 %v7763
    %7789 = vmatprep.subr.mxu0 0.0
    %7790 = vmatpush1.msra.mxu0 %v7764
    %7791 = vmatprep.subr.mxu0 0.0
    %7792 = vmatpush1.msra.mxu0 %v7765
    %7793 = vmatprep.subr.mxu0 0.0
    %7794 = vmatpush1.msra.mxu0 %v7766
    %7795 = vmatprep.subr.mxu0 0.0
    %7796 = vmatpush1.msra.mxu0 %v7767
    %7797 = vmatprep.subr.mxu0 0.0
    %7798 = vmatpush1.msra.mxu0 %v7768
    %7799 = vmatprep.subr.mxu0 0.0
    %7800 = vmatpush1.msra.mxu0 %v7769
    %7801 = vmatprep.subr.mxu0 0.0
    %7802 = vmatpush1.msra.mxu0 %v7770
    %7803 = vmatprep.subr.mxu0 0.0
    %7804 = vmatpush1.msra.mxu0 0.0
    %7805 = vmatprep.subr.mxu0 0.0
    %7806 = vmatpush1.msra.mxu0 0.0
    %7807 = vmatprep.subr.mxu0 0.0
    %7808 = vmatpush1.msra.mxu0 0.0
    %7809 = vmatprep.subr.mxu0 0.0
    %7810 = vmatpush1.msra.mxu0 0.0
    %7811 = vmatprep.subr.mxu0 0.0
    %7812 = vmatpush1.msra.mxu0 0.0
    %7813 = vmatprep.subr.mxu0 0.0
    %7814 = vmatpush1.msra.mxu0 0.0
    %7815 = vmatprep.subr.mxu0 0.0
    %7816 = vmatpush1.msra.mxu0 0.0
    %7817 = vmatprep.subr.mxu0 0.0
    %7818 = vmatpush1.msra.mxu0 0.0
    %7819 = vmatprep.subr.mxu0 0.0
    %7820 = vmatpush1.msra.mxu0 0.0
    %7821 = vmatprep.subr.mxu0 0.0
    %7822 = vmatpush1.msra.mxu0 0.0
    %7823 = vmatprep.subr.mxu0 0.0
    %7824 = vmatpush1.msra.mxu0 0.0
    %7825 = vmatprep.subr.mxu0 0.0
    %7826 = vmatpush1.msra.mxu0 0.0
    %7827 = vmatprep.subr.mxu0 0.0
    %7828 = vmatpush1.msra.mxu0 0.0
    %7829 = vmatprep.subr.mxu0 0.0
    %7830 = vmatpush1.msra.mxu0 0.0
    %7831 = vmatprep.subr.mxu0 0.0
    %7832 = vmatpush1.msra.mxu0 0.0
    %7833 = vmatprep.subr.mxu0 0.0
    %7834 = vmatpush1.msra.mxu0 0.0
    %7835 = vmatprep.mubr.f32.mxu0 0.0
    %7836 = vmatmul.mubr.f32.gmra.mrb[0].mxu0 %v7627
    %v7837 = vpop.f32.mrb[0].mxu0
    %v7838 = vadd.f32 0.0, %v7837
    %v7839 = vpop.f32.mrb[0].mxu0
    %7840 = vmatprep.mubr.f32.mxu0 0.0
    %7841 = vmatmul.mubr.f32.gmra.mrb[0].mxu0 %v7628
    %v7842 = vpop.f32.mrb[0].mxu0
    %v7843 = vadd.f32 0.0, %v7842
    %v7844 = vpop.f32.mrb[0].mxu0
    %7845 = vmatprep.mubr.f32.mxu0 0.0
    %7846 = vmatmul.mubr.f32.gmra.mrb[0].mxu0 %v7629
    %v7847 = vpop.f32.mrb[0].mxu0
    %v7848 = vadd.f32 0.0, %v7847
    %v7849 = vpop.f32.mrb[0].mxu0
    %7850 = vmatprep.mubr.f32.mxu0 0.0
    %7851 = vmatmul.mubr.f32.gmra.mrb[0].mxu0 %v7630
    %v7852 = vpop.f32.mrb[0].mxu0
    %v7853 = vadd.f32 0.0, %v7852
    %v7854 = vpop.f32.mrb[0].mxu0
    %7855 = vmatprep.mubr.f32.mxu0 0.0
    %7856 = vmatmul.mubr.f32.gmra.mrb[0].mxu0 %v7631
    %v7857 = vpop.f32.mrb[0].mxu0
    %v7858 = vadd.f32 0.0, %v7857
    %v7859 = vpop.f32.mrb[0].mxu0
    %7860 = vmatprep.mubr.f32.mxu0 0.0
    %7861 = vmatmul.mubr.f32.gmra.mrb[0].mxu0 %v7632
    %v7862 = vpop.f32.mrb[0].mxu0
    %v7863 = vadd.f32 0.0, %v7862
    %v7864 = vpop.f32.mrb[0].mxu0
    %7865 = vmatprep.mubr.f32.mxu0 0.0
    %7866 = vmatmul.mubr.f32.gmra.mrb[0].mxu0 %v7633
    %v7867 = vpop.f32.mrb[0].mxu0
    %v7868 = vadd.f32 0.0, %v7867
    %v7869 = vpop.f32.mrb[0].mxu0
    %7870 = vmatprep.mubr.f32.mxu0 0.0
    %7871 = vmatmul.mubr.f32.gmra.mrb[0].mxu0 %v7634
    %v7872 = vpop.f32.mrb[0].mxu0
    %v7873 = vadd.f32 0.0, %v7872
    %v7874 = vpop.f32.mrb[0].mxu0
    %7875 = vmatprep.mubr.f32.mxu0 0.0
    %7876 = vmatmul.mubr.f32.gmra.mrb[0].mxu0 %v7635
    %v7877 = vpop.f32.mrb[0].mxu0
    %v7878 = vadd.f32 0.0, %v7877
    %v7879 = vpop.f32.mrb[0].mxu0
    %7880 = vmatprep.mubr.f32.mxu0 0.0
    %7881 = vmatmul.mubr.f32.gmra.mrb[0].mxu0 %v7636
    %v7882 = vpop.f32.mrb[0].mxu0
    %v7883 = vadd.f32 0.0, %v7882
    %v7884 = vpop.f32.mrb[0].mxu0
    %7885 = vmatprep.mubr.f32.mxu0 0.0
    %7886 = vmatmul.mubr.f32.gmra.mrb[0].mxu0 %v7637
    %v7887 = vpop.f32.mrb[0].mxu0
    %v7888 = vadd.f32 0.0, %v7887
    %v7889 = vpop.f32.mrb[0].mxu0
    %7890 = vmatprep.mubr.f32.mxu0 0.0
    %7891 = vmatmul.mubr.f32.gmra.mrb[0].mxu0 %v7638
    %v7892 = vpop.f32.mrb[0].mxu0
    %v7893 = vadd.f32 0.0, %v7892
    %v7894 = vpop.f32.mrb[0].mxu0
    %7895 = vmatprep.mubr.f32.mxu0 0.0
    %7896 = vmatmul.mubr.f32.gmra.mrb[0].mxu0 %v7639
    %v7897 = vpop.f32.mrb[0].mxu0
    %v7898 = vadd.f32 0.0, %v7897
    %v7899 = vpop.f32.mrb[0].mxu0
    %7900 = vmatprep.mubr.f32.mxu0 0.0
    %7901 = vmatmul.mubr.f32.gmra.mrb[0].mxu0 %v7640
    %v7902 = vpop.f32.mrb[0].mxu0
    %v7903 = vadd.f32 0.0, %v7902
    %v7904 = vpop.f32.mrb[0].mxu0
    %7905 = vmatprep.mubr.f32.mxu0 0.0
    %7906 = vmatmul.mubr.f32.gmra.mrb[0].mxu0 %v7641
    %v7907 = vpop.f32.mrb[0].mxu0
    %v7908 = vadd.f32 0.0, %v7907
    %v7909 = vpop.f32.mrb[0].mxu0
    %7910 = vmatprep.mubr.f32.mxu0 0.0
    %7911 = vmatmul.mubr.f32.gmra.mrb[0].mxu0 %v7642
    %v7912 = vpop.f32.mrb[0].mxu0
    %v7913 = vadd.f32 0.0, %v7912
    %v7914 = vpop.f32.mrb[0].mxu0
    %7915 = vmatprep.mubr.f32.mxu0 0.0
    %7916 = vmatmul.mubr.f32.gmra.mrb[0].mxu0 %v7643
    %v7917 = vpop.f32.mrb[0].mxu0
    %v7918 = vadd.f32 0.0, %v7917
    %v7919 = vpop.f32.mrb[0].mxu0
    %7920 = vmatprep.mubr.f32.mxu0 0.0
    %7921 = vmatmul.mubr.f32.gmra.mrb[0].mxu0 %v7644
    %v7922 = vpop.f32.mrb[0].mxu0
    %v7923 = vadd.f32 0.0, %v7922
    %v7924 = vpop.f32.mrb[0].mxu0
    %7925 = vmatprep.mubr.f32.mxu0 0.0
    %7926 = vmatmul.mubr.f32.gmra.mrb[0].mxu0 %v7645
    %v7927 = vpop.f32.mrb[0].mxu0
    %v7928 = vadd.f32 0.0, %v7927
    %v7929 = vpop.f32.mrb[0].mxu0
    %7930 = vmatprep.mubr.f32.mxu0 0.0
    %7931 = vmatmul.mubr.f32.gmra.mrb[0].mxu0 %v7646
    %v7932 = vpop.f32.mrb[0].mxu0
    %v7933 = vadd.f32 0.0, %v7932
    %v7934 = vpop.f32.mrb[0].mxu0
    %7935 = vmatprep.mubr.f32.mxu0 0.0
    %7936 = vmatmul.mubr.f32.gmra.mrb[0].mxu0 %v7647
    %v7937 = vpop.f32.mrb[0].mxu0
    %v7938 = vadd.f32 0.0, %v7937
    %v7939 = vpop.f32.mrb[0].mxu0
    %7940 = vmatprep.mubr.f32.mxu0 0.0
    %7941 = vmatmul.mubr.f32.gmra.mrb[0].mxu0 %v7648
    %v7942 = vpop.f32.mrb[0].mxu0
    %v7943 = vadd.f32 0.0, %v7942
    %v7944 = vpop.f32.mrb[0].mxu0
    %7945 = vmatprep.mubr.f32.mxu0 0.0
    %7946 = vmatmul.mubr.f32.gmra.mrb[0].mxu0 %v7649
    %v7947 = vpop.f32.mrb[0].mxu0
    %v7948 = vadd.f32 0.0, %v7947
    %v7949 = vpop.f32.mrb[0].mxu0
    %7950 = vmatprep.mubr.f32.mxu0 0.0
    %7951 = vmatmul.mubr.f32.gmra.mrb[0].mxu0 %v7650
    %v7952 = vpop.f32.mrb[0].mxu0
    %v7953 = vadd.f32 0.0, %v7952
    %v7954 = vpop.f32.mrb[0].mxu0
    %7955 = vmatprep.mubr.f32.mxu0 0.0
    %7956 = vmatmul.mubr.f32.gmra.mrb[0].mxu0 %v7651
    %v7957 = vpop.f32.mrb[0].mxu0
    %v7958 = vadd.f32 0.0, %v7957
    %v7959 = vpop.f32.mrb[0].mxu0
    %7960 = vmatprep.mubr.f32.mxu0 0.0
    %7961 = vmatmul.mubr.f32.gmra.mrb[0].mxu0 %v7652
    %v7962 = vpop.f32.mrb[0].mxu0
    %v7963 = vadd.f32 0.0, %v7962
    %v7964 = vpop.f32.mrb[0].mxu0
    %7965 = vmatprep.mubr.f32.mxu0 0.0
    %7966 = vmatmul.mubr.f32.gmra.mrb[0].mxu0 %v7653
    %v7967 = vpop.f32.mrb[0].mxu0
    %v7968 = vadd.f32 0.0, %v7967
    %v7969 = vpop.f32.mrb[0].mxu0
    %7970 = vmatprep.mubr.f32.mxu0 0.0
    %7971 = vmatmul.mubr.f32.gmra.mrb[0].mxu0 %v7654
    %v7972 = vpop.f32.mrb[0].mxu0
    %v7973 = vadd.f32 0.0, %v7972
    %v7974 = vpop.f32.mrb[0].mxu0
    %7975 = vmatprep.mubr.f32.mxu0 0.0
    %7976 = vmatmul.mubr.f32.gmra.mrb[0].mxu0 %v7655
    %v7977 = vpop.f32.mrb[0].mxu0
    %v7978 = vadd.f32 0.0, %v7977
    %v7979 = vpop.f32.mrb[0].mxu0
    %7980 = vmatprep.mubr.f32.mxu0 0.0
    %7981 = vmatmul.mubr.f32.gmra.mrb[0].mxu0 %v7656
    %v7982 = vpop.f32.mrb[0].mxu0
    %v7983 = vadd.f32 0.0, %v7982
    %v7984 = vpop.f32.mrb[0].mxu0
    %7985 = vmatprep.mubr.f32.mxu0 0.0
    %7986 = vmatmul.mubr.f32.gmra.mrb[0].mxu0 %v7657
    %v7987 = vpop.f32.mrb[0].mxu0
    %v7988 = vadd.f32 0.0, %v7987
    %v7989 = vpop.f32.mrb[0].mxu0
    %7990 = vmatprep.mubr.f32.mxu0 0.0
    %7991 = vmatmul.mubr.f32.gmra.mrb[0].mxu0 %v7658
    %v7992 = vpop.f32.mrb[0].mxu0
    %v7993 = vadd.f32 0.0, %v7992
    %v7994 = vpop.f32.mrb[0].mxu0
    %7995 = vmatprep.mubr.f32.mxu0 0.0
    %7996 = vmatmul.mubr.f32.gmra.mrb[0].mxu0 %v7659
    %v7997 = vpop.f32.mrb[0].mxu0
    %v7998 = vadd.f32 0.0, %v7997
    %v7999 = vpop.f32.mrb[0].mxu0
    %8000 = vmatprep.mubr.f32.mxu0 0.0
    %8001 = vmatmul.mubr.f32.gmra.mrb[0].mxu0 %v7660
    %v8002 = vpop.f32.mrb[0].mxu0
    %v8003 = vadd.f32 0.0, %v8002
    %v8004 = vpop.f32.mrb[0].mxu0
    %8005 = vmatprep.mubr.f32.mxu0 0.0
    %8006 = vmatmul.mubr.f32.gmra.mrb[0].mxu0 %v7661
    %v8007 = vpop.f32.mrb[0].mxu0
    %v8008 = vadd.f32 0.0, %v8007
    %v8009 = vpop.f32.mrb[0].mxu0
    %8010 = vmatprep.mubr.f32.mxu0 0.0
    %8011 = vmatmul.mubr.f32.gmra.mrb[0].mxu0 %v7662
    %v8012 = vpop.f32.mrb[0].mxu0
    %v8013 = vadd.f32 0.0, %v8012
    %v8014 = vpop.f32.mrb[0].mxu0
    %8015 = vmatprep.mubr.f32.mxu0 0.0
    %8016 = vmatmul.mubr.f32.gmra.mrb[0].mxu0 %v7663
    %v8017 = vpop.f32.mrb[0].mxu0
    %v8018 = vadd.f32 0.0, %v8017
    %v8019 = vpop.f32.mrb[0].mxu0
    %8020 = vmatprep.mubr.f32.mxu0 0.0
    %8021 = vmatmul.mubr.f32.gmra.mrb[0].mxu0 %v7664
    %v8022 = vpop.f32.mrb[0].mxu0
    %v8023 = vadd.f32 0.0, %v8022
    %v8024 = vpop.f32.mrb[0].mxu0
    %8025 = vmatprep.mubr.f32.mxu0 0.0
    %8026 = vmatmul.mubr.f32.gmra.mrb[0].mxu0 %v7665
    %v8027 = vpop.f32.mrb[0].mxu0
    %v8028 = vadd.f32 0.0, %v8027
    %v8029 = vpop.f32.mrb[0].mxu0
    %8030 = vmatprep.mubr.f32.mxu0 0.0
    %8031 = vmatmul.mubr.f32.gmra.mrb[0].mxu0 %v7666
    %v8032 = vpop.f32.mrb[0].mxu0
    %v8033 = vadd.f32 0.0, %v8032
    %v8034 = vpop.f32.mrb[0].mxu0
    %8035 = vmatprep.mubr.f32.mxu0 0.0
    %8036 = vmatmul.mubr.f32.gmra.mrb[0].mxu0 %v7667
    %v8037 = vpop.f32.mrb[0].mxu0
    %v8038 = vadd.f32 0.0, %v8037
    %v8039 = vpop.f32.mrb[0].mxu0
    %8040 = vmatprep.mubr.f32.mxu0 0.0
    %8041 = vmatmul.mubr.f32.gmra.mrb[0].mxu0 %v7668
    %v8042 = vpop.f32.mrb[0].mxu0
    %v8043 = vadd.f32 0.0, %v8042
    %v8044 = vpop.f32.mrb[0].mxu0
    %8045 = vmatprep.mubr.f32.mxu0 0.0
    %8046 = vmatmul.mubr.f32.gmra.mrb[0].mxu0 %v7669
    %v8047 = vpop.f32.mrb[0].mxu0
    %v8048 = vadd.f32 0.0, %v8047
    %v8049 = vpop.f32.mrb[0].mxu0
    %8050 = vmatprep.mubr.f32.mxu0 0.0
    %8051 = vmatmul.mubr.f32.gmra.mrb[0].mxu0 %v7670
    %v8052 = vpop.f32.mrb[0].mxu0
    %v8053 = vadd.f32 0.0, %v8052
    %v8054 = vpop.f32.mrb[0].mxu0
    %8055 = vmatprep.mubr.f32.mxu0 0.0
    %8056 = vmatmul.mubr.f32.gmra.mrb[0].mxu0 %v7671
    %v8057 = vpop.f32.mrb[0].mxu0
    %v8058 = vadd.f32 0.0, %v8057
    %v8059 = vpop.f32.mrb[0].mxu0
    %8060 = vmatprep.mubr.f32.mxu0 0.0
    %8061 = vmatmul.mubr.f32.gmra.mrb[0].mxu0 %v7672
    %v8062 = vpop.f32.mrb[0].mxu0
    %v8063 = vadd.f32 0.0, %v8062
    %v8064 = vpop.f32.mrb[0].mxu0
    %8065 = vmatprep.mubr.f32.mxu0 0.0
    %8066 = vmatmul.mubr.f32.gmra.mrb[0].mxu0 %v7673
    %v8067 = vpop.f32.mrb[0].mxu0
    %v8068 = vadd.f32 0.0, %v8067
    %v8069 = vpop.f32.mrb[0].mxu0
    %8070 = vmatprep.mubr.f32.mxu0 0.0
    %8071 = vmatmul.mubr.f32.gmra.mrb[0].mxu0 %v7674
    %v8072 = vpop.f32.mrb[0].mxu0
    %v8073 = vadd.f32 0.0, %v8072
    %v8074 = vpop.f32.mrb[0].mxu0
    %8075 = vmatprep.mubr.f32.mxu0 0.0
    %8076 = vmatmul.mubr.f32.gmra.mrb[0].mxu0 %v7675
    %v8077 = vpop.f32.mrb[0].mxu0
    %v8078 = vadd.f32 0.0, %v8077
    %v8079 = vpop.f32.mrb[0].mxu0
    %8080 = vmatprep.mubr.f32.mxu0 0.0
    %8081 = vmatmul.mubr.f32.gmra.mrb[0].mxu0 %v7676
    %v8082 = vpop.f32.mrb[0].mxu0
    %v8083 = vadd.f32 0.0, %v8082
    %v8084 = vpop.f32.mrb[0].mxu0
    %8085 = vmatprep.mubr.f32.mxu0 0.0
    %8086 = vmatmul.mubr.f32.gmra.mrb[0].mxu0 %v7677
    %v8087 = vpop.f32.mrb[0].mxu0
    %v8088 = vadd.f32 0.0, %v8087
    %v8089 = vpop.f32.mrb[0].mxu0
    %8090 = vmatprep.mubr.f32.mxu0 0.0
    %8091 = vmatmul.mubr.f32.gmra.mrb[0].mxu0 %v7678
    %v8092 = vpop.f32.mrb[0].mxu0
    %v8093 = vadd.f32 0.0, %v8092
    %v8094 = vpop.f32.mrb[0].mxu0
    %8095 = vmatprep.mubr.f32.mxu0 0.0
    %8096 = vmatmul.mubr.f32.gmra.mrb[0].mxu0 %v7679
    %v8097 = vpop.f32.mrb[0].mxu0
    %v8098 = vadd.f32 0.0, %v8097
    %v8099 = vpop.f32.mrb[0].mxu0
    %8100 = vmatprep.mubr.f32.mxu0 0.0
    %8101 = vmatmul.mubr.f32.gmra.mrb[0].mxu0 %v7680
    %v8102 = vpop.f32.mrb[0].mxu0
    %v8103 = vadd.f32 0.0, %v8102
    %v8104 = vpop.f32.mrb[0].mxu0
    %8105 = vmatprep.mubr.f32.mxu0 0.0
    %8106 = vmatmul.mubr.f32.gmra.mrb[0].mxu0 %v7681
    %v8107 = vpop.f32.mrb[0].mxu0
    %v8108 = vadd.f32 0.0, %v8107
    %v8109 = vpop.f32.mrb[0].mxu0
    %8110 = vmatprep.mubr.f32.mxu0 0.0
    %8111 = vmatmul.mubr.f32.gmra.mrb[0].mxu0 %v7682
    %v8112 = vpop.f32.mrb[0].mxu0
    %v8113 = vadd.f32 0.0, %v8112
    %v8114 = vpop.f32.mrb[0].mxu0
    %8115 = vmatprep.mubr.f32.mxu0 0.0
    %8116 = vmatmul.mubr.f32.gmra.mrb[0].mxu0 %v7683
    %v8117 = vpop.f32.mrb[0].mxu0
    %v8118 = vadd.f32 0.0, %v8117
    %v8119 = vpop.f32.mrb[0].mxu0
    %8120 = vmatprep.mubr.f32.mxu0 0.0
    %8121 = vmatmul.mubr.f32.gmra.mrb[0].mxu0 %v7684
    %v8122 = vpop.f32.mrb[0].mxu0
    %v8123 = vadd.f32 0.0, %v8122
    %v8124 = vpop.f32.mrb[0].mxu0
    %8125 = vmatprep.mubr.f32.mxu0 0.0
    %8126 = vmatmul.mubr.f32.gmra.mrb[0].mxu0 %v7685
    %v8127 = vpop.f32.mrb[0].mxu0
    %v8128 = vadd.f32 0.0, %v8127
    %v8129 = vpop.f32.mrb[0].mxu0
    %8130 = vmatprep.mubr.f32.mxu0 0.0
    %8131 = vmatmul.mubr.f32.gmra.mrb[0].mxu0 %v7686
    %v8132 = vpop.f32.mrb[0].mxu0
    %v8133 = vadd.f32 0.0, %v8132
    %v8134 = vpop.f32.mrb[0].mxu0
    %8135 = vmatprep.mubr.f32.mxu0 0.0
    %8136 = vmatmul.mubr.f32.gmra.mrb[0].mxu0 %v7687
    %v8137 = vpop.f32.mrb[0].mxu0
    %v8138 = vadd.f32 0.0, %v8137
    %v8139 = vpop.f32.mrb[0].mxu0
    %8140 = vmatprep.mubr.f32.mxu0 0.0
    %8141 = vmatmul.mubr.f32.gmra.mrb[0].mxu0 %v7688
    %v8142 = vpop.f32.mrb[0].mxu0
    %v8143 = vadd.f32 0.0, %v8142
    %v8144 = vpop.f32.mrb[0].mxu0
    %8145 = vmatprep.mubr.f32.mxu0 0.0
    %8146 = vmatmul.mubr.f32.gmra.mrb[0].mxu0 %v7689
    %v8147 = vpop.f32.mrb[0].mxu0
    %v8148 = vadd.f32 0.0, %v8147
    %v8149 = vpop.f32.mrb[0].mxu0
    %8150 = vmatprep.mubr.f32.mxu0 0.0
    %8151 = vmatmul.mubr.f32.gmra.mrb[0].mxu0 %v7690
    %v8152 = vpop.f32.mrb[0].mxu0
    %v8153 = vadd.f32 0.0, %v8152
    %v8154 = vpop.f32.mrb[0].mxu0
    %8155 = vmatprep.mubr.f32.mxu0 0.0
    %8156 = vmatmul.mubr.f32.gmra.mrb[0].mxu0 %v7691
    %v8157 = vpop.f32.mrb[0].mxu0
    %v8158 = vadd.f32 0.0, %v8157
    %v8159 = vpop.f32.mrb[0].mxu0
    %8160 = vmatprep.mubr.f32.mxu0 0.0
    %8161 = vmatmul.mubr.f32.gmra.mrb[0].mxu0 %v7692
    %v8162 = vpop.f32.mrb[0].mxu0
    %v8163 = vadd.f32 0.0, %v8162
    %v8164 = vpop.f32.mrb[0].mxu0
    %8165 = vmatprep.mubr.f32.mxu0 0.0
    %8166 = vmatmul.mubr.f32.gmra.mrb[0].mxu0 %v7693
    %v8167 = vpop.f32.mrb[0].mxu0
    %v8168 = vadd.f32 0.0, %v8167
    %v8169 = vpop.f32.mrb[0].mxu0
    %8170 = vmatprep.mubr.f32.mxu0 0.0
    %8171 = vmatmul.mubr.f32.gmra.mrb[0].mxu0 %v7694
    %v8172 = vpop.f32.mrb[0].mxu0
    %v8173 = vadd.f32 0.0, %v8172
    %v8174 = vpop.f32.mrb[0].mxu0
    %8175 = vmatprep.mubr.f32.mxu0 0.0
    %8176 = vmatmul.mubr.f32.gmra.mrb[0].mxu0 %v7695
    %v8177 = vpop.f32.mrb[0].mxu0
    %v8178 = vadd.f32 0.0, %v8177
    %v8179 = vpop.f32.mrb[0].mxu0
    %8180 = vmatprep.mubr.f32.mxu0 0.0
    %8181 = vmatmul.mubr.f32.gmra.mrb[0].mxu0 %v7696
    %v8182 = vpop.f32.mrb[0].mxu0
    %v8183 = vadd.f32 0.0, %v8182
    %v8184 = vpop.f32.mrb[0].mxu0
    %8185 = vmatprep.mubr.f32.mxu0 0.0
    %8186 = vmatmul.mubr.f32.gmra.mrb[0].mxu0 %v7697
    %v8187 = vpop.f32.mrb[0].mxu0
    %v8188 = vadd.f32 0.0, %v8187
    %v8189 = vpop.f32.mrb[0].mxu0
    %8190 = vmatprep.mubr.f32.mxu0 0.0
    %8191 = vmatmul.mubr.f32.gmra.mrb[0].mxu0 %v7698
    %v8192 = vpop.f32.mrb[0].mxu0
    %v8193 = vadd.f32 0.0, %v8192
    %v8194 = vpop.f32.mrb[0].mxu0
    %8195 = vmatprep.mubr.f32.mxu0 0.0
    %8196 = vmatmul.mubr.f32.gmra.mrb[0].mxu0 %v7699
    %v8197 = vpop.f32.mrb[0].mxu0
    %v8198 = vadd.f32 0.0, %v8197
    %v8199 = vpop.f32.mrb[0].mxu0
    %8200 = vmatprep.mubr.f32.mxu0 0.0
    %8201 = vmatmul.mubr.f32.gmra.mrb[0].mxu0 %v7700
    %v8202 = vpop.f32.mrb[0].mxu0
    %v8203 = vadd.f32 0.0, %v8202
    %v8204 = vpop.f32.mrb[0].mxu0
    %8205 = vmatprep.mubr.f32.mxu0 0.0
    %8206 = vmatmul.mubr.f32.gmra.mrb[0].mxu0 %v7701
    %v8207 = vpop.f32.mrb[0].mxu0
    %v8208 = vadd.f32 0.0, %v8207
    %v8209 = vpop.f32.mrb[0].mxu0
    %8210 = vmatprep.mubr.f32.mxu0 0.0
    %8211 = vmatmul.mubr.f32.gmra.mrb[0].mxu0 %v7702
    %v8212 = vpop.f32.mrb[0].mxu0
    %v8213 = vadd.f32 0.0, %v8212
    %v8214 = vpop.f32.mrb[0].mxu0
    %8215 = vmatprep.mubr.f32.mxu0 0.0
    %8216 = vmatmul.mubr.f32.gmra.mrb[0].mxu0 %v7703
    %v8217 = vpop.f32.mrb[0].mxu0
    %v8218 = vadd.f32 0.0, %v8217
    %v8219 = vpop.f32.mrb[0].mxu0
    %8220 = vmatprep.mubr.f32.mxu0 0.0
    %8221 = vmatmul.mubr.f32.gmra.mrb[0].mxu0 %v7704
    %v8222 = vpop.f32.mrb[0].mxu0
    %v8223 = vadd.f32 0.0, %v8222
    %v8224 = vpop.f32.mrb[0].mxu0
    %8225 = vmatprep.mubr.f32.mxu0 0.0
    %8226 = vmatmul.mubr.f32.gmra.mrb[0].mxu0 %v7705
    %v8227 = vpop.f32.mrb[0].mxu0
    %v8228 = vadd.f32 0.0, %v8227
    %v8229 = vpop.f32.mrb[0].mxu0
    %8230 = vmatprep.mubr.f32.mxu0 0.0
    %8231 = vmatmul.mubr.f32.gmra.mrb[0].mxu0 %v7706
    %v8232 = vpop.f32.mrb[0].mxu0
    %v8233 = vadd.f32 0.0, %v8232
    %v8234 = vpop.f32.mrb[0].mxu0
    %8235 = vmatprep.mubr.f32.mxu0 0.0
    %8236 = vmatmul.mubr.f32.gmra.mrb[0].mxu0 %v7707
    %v8237 = vpop.f32.mrb[0].mxu0
    %v8238 = vadd.f32 0.0, %v8237
    %v8239 = vpop.f32.mrb[0].mxu0
    %8240 = vmatprep.mubr.f32.mxu0 0.0
    %8241 = vmatmul.mubr.f32.gmra.mrb[0].mxu0 %v7708
    %v8242 = vpop.f32.mrb[0].mxu0
    %v8243 = vadd.f32 0.0, %v8242
    %v8244 = vpop.f32.mrb[0].mxu0
    %8245 = vmatprep.mubr.f32.mxu0 0.0
    %8246 = vmatmul.mubr.f32.gmra.mrb[0].mxu0 %v7709
    %v8247 = vpop.f32.mrb[0].mxu0
    %v8248 = vadd.f32 0.0, %v8247
    %v8249 = vpop.f32.mrb[0].mxu0
    %8250 = vmatprep.mubr.f32.mxu0 0.0
    %8251 = vmatmul.mubr.f32.gmra.mrb[0].mxu0 %v7710
    %v8252 = vpop.f32.mrb[0].mxu0
    %v8253 = vadd.f32 0.0, %v8252
    %v8254 = vpop.f32.mrb[0].mxu0
    %8255 = vmatprep.mubr.f32.mxu0 0.0
    %8256 = vmatmul.mubr.f32.gmra.mrb[0].mxu0 %v7711
    %v8257 = vpop.f32.mrb[0].mxu0
    %v8258 = vadd.f32 0.0, %v8257
    %v8259 = vpop.f32.mrb[0].mxu0
    %8260 = vmatprep.mubr.f32.mxu0 0.0
    %8261 = vmatmul.mubr.f32.gmra.mrb[0].mxu0 %v7712
    %v8262 = vpop.f32.mrb[0].mxu0
    %v8263 = vadd.f32 0.0, %v8262
    %v8264 = vpop.f32.mrb[0].mxu0
    %8265 = vmatprep.mubr.f32.mxu0 0.0
    %8266 = vmatmul.mubr.f32.gmra.mrb[0].mxu0 %v7713
    %v8267 = vpop.f32.mrb[0].mxu0
    %v8268 = vadd.f32 0.0, %v8267
    %v8269 = vpop.f32.mrb[0].mxu0
    %8270 = vmatprep.mubr.f32.mxu0 0.0
    %8271 = vmatmul.mubr.f32.gmra.mrb[0].mxu0 %v7714
    %v8272 = vpop.f32.mrb[0].mxu0
    %v8273 = vadd.f32 0.0, %v8272
    %v8274 = vpop.f32.mrb[0].mxu0
    %8275 = vmatprep.mubr.f32.mxu0 0.0
    %8276 = vmatmul.mubr.f32.gmra.mrb[0].mxu0 %v7715
    %v8277 = vpop.f32.mrb[0].mxu0
    %v8278 = vadd.f32 0.0, %v8277
    %v8279 = vpop.f32.mrb[0].mxu0
    %8280 = vmatprep.mubr.f32.mxu0 0.0
    %8281 = vmatmul.mubr.f32.gmra.mrb[0].mxu0 %v7716
    %v8282 = vpop.f32.mrb[0].mxu0
    %v8283 = vadd.f32 0.0, %v8282
    %v8284 = vpop.f32.mrb[0].mxu0
    %8285 = vmatprep.mubr.f32.mxu0 0.0
    %8286 = vmatmul.mubr.f32.gmra.mrb[0].mxu0 %v7717
    %v8287 = vpop.f32.mrb[0].mxu0
    %v8288 = vadd.f32 0.0, %v8287
    %v8289 = vpop.f32.mrb[0].mxu0
    %8290 = vmatprep.mubr.f32.mxu0 0.0
    %8291 = vmatmul.mubr.f32.gmra.mrb[0].mxu0 %v7718
    %v8292 = vpop.f32.mrb[0].mxu0
    %v8293 = vadd.f32 0.0, %v8292
    %v8294 = vpop.f32.mrb[0].mxu0
    %8295 = vmatprep.mubr.f32.mxu0 0.0
    %8296 = vmatmul.mubr.f32.gmra.mrb[0].mxu0 %v7719
    %v8297 = vpop.f32.mrb[0].mxu0
    %v8298 = vadd.f32 0.0, %v8297
    %v8299 = vpop.f32.mrb[0].mxu0
    %8300 = vmatprep.mubr.f32.mxu0 0.0
    %8301 = vmatmul.mubr.f32.gmra.mrb[0].mxu0 %v7720
    %v8302 = vpop.f32.mrb[0].mxu0
    %v8303 = vadd.f32 0.0, %v8302
    %v8304 = vpop.f32.mrb[0].mxu0
    %8305 = vmatprep.mubr.f32.mxu0 0.0
    %8306 = vmatmul.mubr.f32.gmra.mrb[0].mxu0 %v7721
    %v8307 = vpop.f32.mrb[0].mxu0
    %v8308 = vadd.f32 0.0, %v8307
    %v8309 = vpop.f32.mrb[0].mxu0
    %8310 = vmatprep.mubr.f32.mxu0 0.0
    %8311 = vmatmul.mubr.f32.gmra.mrb[0].mxu0 %v7722
    %v8312 = vpop.f32.mrb[0].mxu0
    %v8313 = vadd.f32 0.0, %v8312
    %v8314 = vpop.f32.mrb[0].mxu0
    %8315 = vmatprep.mubr.f32.mxu0 0.0
    %8316 = vmatmul.mubr.f32.gmra.mrb[0].mxu0 %v7723
    %v8317 = vpop.f32.mrb[0].mxu0
    %v8318 = vadd.f32 0.0, %v8317
    %v8319 = vpop.f32.mrb[0].mxu0
    %8320 = vmatprep.mubr.f32.mxu0 0.0
    %8321 = vmatmul.mubr.f32.gmra.mrb[0].mxu0 %v7724
    %v8322 = vpop.f32.mrb[0].mxu0
    %v8323 = vadd.f32 0.0, %v8322
    %v8324 = vpop.f32.mrb[0].mxu0
    %8325 = vmatprep.mubr.f32.mxu0 0.0
    %8326 = vmatmul.mubr.f32.gmra.mrb[0].mxu0 %v7725
    %v8327 = vpop.f32.mrb[0].mxu0
    %v8328 = vadd.f32 0.0, %v8327
    %v8329 = vpop.f32.mrb[0].mxu0
    %8330 = vmatprep.mubr.f32.mxu0 0.0
    %8331 = vmatmul.mubr.f32.gmra.mrb[0].mxu0 %v7726
    %v8332 = vpop.f32.mrb[0].mxu0
    %v8333 = vadd.f32 0.0, %v8332
    %v8334 = vpop.f32.mrb[0].mxu0
    %8335 = vmatprep.mubr.f32.mxu0 0.0
    %8336 = vmatmul.mubr.f32.gmra.mrb[0].mxu0 %v7727
    %v8337 = vpop.f32.mrb[0].mxu0
    %v8338 = vadd.f32 0.0, %v8337
    %v8339 = vpop.f32.mrb[0].mxu0
    %8340 = vmatprep.mubr.f32.mxu0 0.0
    %8341 = vmatmul.mubr.f32.gmra.mrb[0].mxu0 %v7728
    %v8342 = vpop.f32.mrb[0].mxu0
    %v8343 = vadd.f32 0.0, %v8342
    %v8344 = vpop.f32.mrb[0].mxu0
    %8345 = vmatprep.mubr.f32.mxu0 0.0
    %8346 = vmatmul.mubr.f32.gmra.mrb[0].mxu0 %v7729
    %v8347 = vpop.f32.mrb[0].mxu0
    %v8348 = vadd.f32 0.0, %v8347
    %v8349 = vpop.f32.mrb[0].mxu0
    %8350 = vmatprep.mubr.f32.mxu0 0.0
    %8351 = vmatmul.mubr.f32.gmra.mrb[0].mxu0 %v7730
    %v8352 = vpop.f32.mrb[0].mxu0
    %v8353 = vadd.f32 0.0, %v8352
    %v8354 = vpop.f32.mrb[0].mxu0
    %8355 = vmatprep.mubr.f32.mxu0 0.0
    %8356 = vmatmul.mubr.f32.gmra.mrb[0].mxu0 %v7731
    %v8357 = vpop.f32.mrb[0].mxu0
    %v8358 = vadd.f32 0.0, %v8357
    %v8359 = vpop.f32.mrb[0].mxu0
    %8360 = vmatprep.mubr.f32.mxu0 0.0
    %8361 = vmatmul.mubr.f32.gmra.mrb[0].mxu0 %v7732
    %v8362 = vpop.f32.mrb[0].mxu0
    %v8363 = vadd.f32 0.0, %v8362
    %v8364 = vpop.f32.mrb[0].mxu0
    %8365 = vmatprep.mubr.f32.mxu0 0.0
    %8366 = vmatmul.mubr.f32.gmra.mrb[0].mxu0 %v7733
    %v8367 = vpop.f32.mrb[0].mxu0
    %v8368 = vadd.f32 0.0, %v8367
    %v8369 = vpop.f32.mrb[0].mxu0
    %8370 = vmatprep.mubr.f32.mxu0 0.0
    %8371 = vmatmul.mubr.f32.gmra.mrb[0].mxu0 %v7734
    %v8372 = vpop.f32.mrb[0].mxu0
    %v8373 = vadd.f32 0.0, %v8372
    %v8374 = vpop.f32.mrb[0].mxu0
    %8375 = vmatprep.mubr.f32.mxu0 0.0
    %8376 = vmatmul.mubr.f32.gmra.mrb[0].mxu0 %v7735
    %v8377 = vpop.f32.mrb[0].mxu0
    %v8378 = vadd.f32 0.0, %v8377
    %v8379 = vpop.f32.mrb[0].mxu0
    %8380 = vmatprep.mubr.f32.mxu0 0.0
    %8381 = vmatmul.mubr.f32.gmra.mrb[0].mxu0 %v7736
    %v8382 = vpop.f32.mrb[0].mxu0
    %v8383 = vadd.f32 0.0, %v8382
    %v8384 = vpop.f32.mrb[0].mxu0
    %8385 = vmatprep.mubr.f32.mxu0 0.0
    %8386 = vmatmul.mubr.f32.gmra.mrb[0].mxu0 %v7737
    %v8387 = vpop.f32.mrb[0].mxu0
    %v8388 = vadd.f32 0.0, %v8387
    %v8389 = vpop.f32.mrb[0].mxu0
    %8390 = vmatprep.mubr.f32.mxu0 0.0
    %8391 = vmatmul.mubr.f32.gmra.mrb[0].mxu0 %v7738
    %v8392 = vpop.f32.mrb[0].mxu0
    %v8393 = vadd.f32 0.0, %v8392
    %v8394 = vpop.f32.mrb[0].mxu0
    %8395 = vmatprep.mubr.f32.mxu0 0.0
    %8396 = vmatmul.mubr.f32.gmra.mrb[0].mxu0 %v7739
    %v8397 = vpop.f32.mrb[0].mxu0
    %v8398 = vadd.f32 0.0, %v8397
    %v8399 = vpop.f32.mrb[0].mxu0
    %8400 = vmatprep.mubr.f32.mxu0 0.0
    %8401 = vmatmul.mubr.f32.gmra.mrb[0].mxu0 %v7740
    %v8402 = vpop.f32.mrb[0].mxu0
    %v8403 = vadd.f32 0.0, %v8402
    %v8404 = vpop.f32.mrb[0].mxu0
    %8405 = vmatprep.mubr.f32.mxu0 0.0
    %8406 = vmatmul.mubr.f32.gmra.mrb[0].mxu0 %v7741
    %v8407 = vpop.f32.mrb[0].mxu0
    %v8408 = vadd.f32 0.0, %v8407
    %v8409 = vpop.f32.mrb[0].mxu0
    %8410 = vmatprep.mubr.f32.mxu0 0.0
    %8411 = vmatmul.mubr.f32.gmra.mrb[0].mxu0 %v7742
    %v8412 = vpop.f32.mrb[0].mxu0
    %v8413 = vadd.f32 0.0, %v8412
    %v8414 = vpop.f32.mrb[0].mxu0
    %8415 = vmatprep.mubr.f32.mxu0 0.0
    %8416 = vmatmul.mubr.f32.gmra.mrb[0].mxu0 %v7743
    %v8417 = vpop.f32.mrb[0].mxu0
    %v8418 = vadd.f32 0.0, %v8417
    %v8419 = vpop.f32.mrb[0].mxu0
    %8420 = vmatprep.mubr.f32.mxu0 0.0
    %8421 = vmatmul.mubr.f32.gmra.mrb[0].mxu0 %v7744
    %v8422 = vpop.f32.mrb[0].mxu0
    %v8423 = vadd.f32 0.0, %v8422
    %v8424 = vpop.f32.mrb[0].mxu0
    %8425 = vmatprep.mubr.f32.mxu0 0.0
    %8426 = vmatmul.mubr.f32.gmra.mrb[0].mxu0 %v7745
    %v8427 = vpop.f32.mrb[0].mxu0
    %v8428 = vadd.f32 0.0, %v8427
    %v8429 = vpop.f32.mrb[0].mxu0
    %8430 = vmatprep.mubr.f32.mxu0 0.0
    %8431 = vmatmul.mubr.f32.gmra.mrb[0].mxu0 %v7746
    %v8432 = vpop.f32.mrb[0].mxu0
    %v8433 = vadd.f32 0.0, %v8432
    %v8434 = vpop.f32.mrb[0].mxu0
    %8435 = vmatprep.mubr.f32.mxu0 0.0
    %8436 = vmatmul.mubr.f32.gmra.mrb[0].mxu0 %v7747
    %v8437 = vpop.f32.mrb[0].mxu0
    %v8438 = vadd.f32 0.0, %v8437
    %v8439 = vpop.f32.mrb[0].mxu0
    %8440 = vmatprep.mubr.f32.mxu0 0.0
    %8441 = vmatmul.mubr.f32.gmra.mrb[0].mxu0 %v7748
    %v8442 = vpop.f32.mrb[0].mxu0
    %v8443 = vadd.f32 0.0, %v8442
    %v8444 = vpop.f32.mrb[0].mxu0
    %8445 = vmatprep.mubr.f32.mxu0 0.0
    %8446 = vmatmul.mubr.f32.gmra.mrb[0].mxu0 %v7749
    %v8447 = vpop.f32.mrb[0].mxu0
    %v8448 = vadd.f32 0.0, %v8447
    %v8449 = vpop.f32.mrb[0].mxu0
    %8450 = vmatprep.mubr.f32.mxu0 0.0
    %8451 = vmatmul.mubr.f32.gmra.mrb[0].mxu0 %v7750
    %v8452 = vpop.f32.mrb[0].mxu0
    %v8453 = vadd.f32 0.0, %v8452
    %v8454 = vpop.f32.mrb[0].mxu0
    %8455 = vmatprep.mubr.f32.mxu0 0.0
    %8456 = vmatmul.mubr.f32.gmra.mrb[0].mxu0 %v7751
    %v8457 = vpop.f32.mrb[0].mxu0
    %v8458 = vadd.f32 0.0, %v8457
    %v8459 = vpop.f32.mrb[0].mxu0
    %8460 = vmatprep.mubr.f32.mxu0 0.0
    %8461 = vmatmul.mubr.f32.gmra.mrb[0].mxu0 %v7752
    %v8462 = vpop.f32.mrb[0].mxu0
    %v8463 = vadd.f32 0.0, %v8462
    %v8464 = vpop.f32.mrb[0].mxu0
    %8465 = vmatprep.mubr.f32.mxu0 0.0
    %8466 = vmatmul.mubr.f32.gmra.mrb[0].mxu0 %v7753
    %v8467 = vpop.f32.mrb[0].mxu0
    %v8468 = vadd.f32 0.0, %v8467
    %v8469 = vpop.f32.mrb[0].mxu0
    %8470 = vmatprep.mubr.f32.mxu0 0.0
    %8471 = vmatmul.mubr.f32.gmra.mrb[0].mxu0 %v7754
    %v8472 = vpop.f32.mrb[0].mxu0
    %v8473 = vadd.f32 0.0, %v8472
    %v8474 = vpop.f32.mrb[0].mxu0
    %8475 = vdwg.mxu0
    %v8476 = vadd.f32 %v7838, %v7843
    %v8477 = vadd.f32 %v8476, %v7848
    %v8478 = vadd.f32 %v8477, %v7853
    %v8479 = vadd.f32 %v8478, %v7858
    %v8480 = vadd.f32 %v8479, %v7863
    %v8481 = vadd.f32 %v8480, %v7868
    %v8482 = vadd.f32 %v8481, %v7873
    %v8483 = vadd.f32 %v8482, %v7878
    %v8484 = vadd.f32 %v8483, %v7883
    %v8485 = vadd.f32 %v8484, %v7888
    %v8486 = vadd.f32 %v8485, %v7893
    %v8487 = vadd.f32 %v8486, %v7898
    %v8488 = vadd.f32 %v8487, %v7903
    %v8489 = vadd.f32 %v8488, %v7908
    %v8490 = vadd.f32 %v8489, %v7913
    %v8491 = vadd.f32 %v8490, %v7918
    %v8492 = vadd.f32 %v8491, %v7923
    %v8493 = vadd.f32 %v8492, %v7928
    %v8494 = vadd.f32 %v8493, %v7933
    %v8495 = vadd.f32 %v8494, %v7938
    %v8496 = vadd.f32 %v8495, %v7943
    %v8497 = vadd.f32 %v8496, %v7948
    %v8498 = vadd.f32 %v8497, %v7953
    %v8499 = vadd.f32 %v8498, %v7958
    %v8500 = vadd.f32 %v8499, %v7963
    %v8501 = vadd.f32 %v8500, %v7968
    %v8502 = vadd.f32 %v8501, %v7973
    %v8503 = vadd.f32 %v8502, %v7978
    %v8504 = vadd.f32 %v8503, %v7983
    %v8505 = vadd.f32 %v8504, %v7988
    %v8506 = vadd.f32 %v8505, %v7993
    %v8507 = vadd.f32 %v8506, %v7998
    %v8508 = vadd.f32 %v8507, %v8003
    %v8509 = vadd.f32 %v8508, %v8008
    %v8510 = vadd.f32 %v8509, %v8013
    %v8511 = vadd.f32 %v8510, %v8018
    %v8512 = vadd.f32 %v8511, %v8023
    %v8513 = vadd.f32 %v8512, %v8028
    %v8514 = vadd.f32 %v8513, %v8033
    %v8515 = vadd.f32 %v8514, %v8038
    %v8516 = vadd.f32 %v8515, %v8043
    %v8517 = vadd.f32 %v8516, %v8048
    %v8518 = vadd.f32 %v8517, %v8053
    %v8519 = vadd.f32 %v8518, %v8058
    %v8520 = vadd.f32 %v8519, %v8063
    %v8521 = vadd.f32 %v8520, %v8068
    %v8522 = vadd.f32 %v8521, %v8073
    %v8523 = vadd.f32 %v8522, %v8078
    %v8524 = vadd.f32 %v8523, %v8083
    %v8525 = vadd.f32 %v8524, %v8088
    %v8526 = vadd.f32 %v8525, %v8093
    %v8527 = vadd.f32 %v8526, %v8098
    %v8528 = vadd.f32 %v8527, %v8103
    %v8529 = vadd.f32 %v8528, %v8108
    %v8530 = vadd.f32 %v8529, %v8113
    %v8531 = vadd.f32 %v8530, %v8118
    %v8532 = vadd.f32 %v8531, %v8123
    %v8533 = vadd.f32 %v8532, %v8128
    %v8534 = vadd.f32 %v8533, %v8133
    %v8535 = vadd.f32 %v8534, %v8138
    %v8536 = vadd.f32 %v8535, %v8143
    %v8537 = vadd.f32 %v8536, %v8148
    %v8538 = vadd.f32 %v8537, %v8153
    %v8539 = vadd.f32 %v8538, %v8158
    %v8540 = vadd.f32 %v8539, %v8163
    %v8541 = vadd.f32 %v8540, %v8168
    %v8542 = vadd.f32 %v8541, %v8173
    %v8543 = vadd.f32 %v8542, %v8178
    %v8544 = vadd.f32 %v8543, %v8183
    %v8545 = vadd.f32 %v8544, %v8188
    %v8546 = vadd.f32 %v8545, %v8193
    %v8547 = vadd.f32 %v8546, %v8198
    %v8548 = vadd.f32 %v8547, %v8203
    %v8549 = vadd.f32 %v8548, %v8208
    %v8550 = vadd.f32 %v8549, %v8213
    %v8551 = vadd.f32 %v8550, %v8218
    %v8552 = vadd.f32 %v8551, %v8223
    %v8553 = vadd.f32 %v8552, %v8228
    %v8554 = vadd.f32 %v8553, %v8233
    %v8555 = vadd.f32 %v8554, %v8238
    %v8556 = vadd.f32 %v8555, %v8243
    %v8557 = vadd.f32 %v8556, %v8248
    %v8558 = vadd.f32 %v8557, %v8253
    %v8559 = vadd.f32 %v8558, %v8258
    %v8560 = vadd.f32 %v8559, %v8263
    %v8561 = vadd.f32 %v8560, %v8268
    %v8562 = vadd.f32 %v8561, %v8273
    %v8563 = vadd.f32 %v8562, %v8278
    %v8564 = vadd.f32 %v8563, %v8283
    %v8565 = vadd.f32 %v8564, %v8288
    %v8566 = vadd.f32 %v8565, %v8293
    %v8567 = vadd.f32 %v8566, %v8298
    %v8568 = vadd.f32 %v8567, %v8303
    %v8569 = vadd.f32 %v8568, %v8308
    %v8570 = vadd.f32 %v8569, %v8313
    %v8571 = vadd.f32 %v8570, %v8318
    %v8572 = vadd.f32 %v8571, %v8323
    %v8573 = vadd.f32 %v8572, %v8328
    %v8574 = vadd.f32 %v8573, %v8333
    %v8575 = vadd.f32 %v8574, %v8338
    %v8576 = vadd.f32 %v8575, %v8343
    %v8577 = vadd.f32 %v8576, %v8348
    %v8578 = vadd.f32 %v8577, %v8353
    %v8579 = vadd.f32 %v8578, %v8358
    %v8580 = vadd.f32 %v8579, %v8363
    %v8581 = vadd.f32 %v8580, %v8368
    %v8582 = vadd.f32 %v8581, %v8373
    %v8583 = vadd.f32 %v8582, %v8378
    %v8584 = vadd.f32 %v8583, %v8383
    %v8585 = vadd.f32 %v8584, %v8388
    %v8586 = vadd.f32 %v8585, %v8393
    %v8587 = vadd.f32 %v8586, %v8398
    %v8588 = vadd.f32 %v8587, %v8403
    %v8589 = vadd.f32 %v8588, %v8408
    %v8590 = vadd.f32 %v8589, %v8413
    %v8591 = vadd.f32 %v8590, %v8418
    %v8592 = vadd.f32 %v8591, %v8423
    %v8593 = vadd.f32 %v8592, %v8428
    %v8594 = vadd.f32 %v8593, %v8433
    %v8595 = vadd.f32 %v8594, %v8438
    %v8596 = vadd.f32 %v8595, %v8443
    %v8597 = vadd.f32 %v8596, %v8448
    %v8598 = vadd.f32 %v8597, %v8453
    %v8599 = vadd.f32 %v8598, %v8458
    %v8600 = vadd.f32 %v8599, %v8463
    %v8601 = vadd.f32 %v8600, %v8468
    %v8602 = vadd.f32 %v8601, %v8473
    %v8603 = vrot.slane %v8602, 4
    %v8604 = vadd.f32 %v8602, %v8603
    %v8605 = vrot.slane %v8604, 2
    %v8606 = vadd.f32 %v8604, %v8605
    %v8607 = vrot.slane %v8606, 1
    %v8608 = vadd.f32 %v8606, %v8607
    %v8609 = vmul.f32 %v8608, 0.0009765625
    %v8610 = vmul.f32 %v7838, %v7838
    %v8611 = vmul.f32 %v7843, %v7843
    %v8612 = vmul.f32 %v7848, %v7848
    %v8613 = vmul.f32 %v7853, %v7853
    %v8614 = vmul.f32 %v7858, %v7858
    %v8615 = vmul.f32 %v7863, %v7863
    %v8616 = vmul.f32 %v7868, %v7868
    %v8617 = vmul.f32 %v7873, %v7873
    %v8618 = vmul.f32 %v7878, %v7878
    %v8619 = vmul.f32 %v7883, %v7883
    %v8620 = vmul.f32 %v7888, %v7888
    %v8621 = vmul.f32 %v7893, %v7893
    %v8622 = vmul.f32 %v7898, %v7898
    %v8623 = vmul.f32 %v7903, %v7903
    %v8624 = vmul.f32 %v7908, %v7908
    %v8625 = vmul.f32 %v7913, %v7913
    %v8626 = vmul.f32 %v7918, %v7918
    %v8627 = vmul.f32 %v7923, %v7923
    %v8628 = vmul.f32 %v7928, %v7928
    %v8629 = vmul.f32 %v7933, %v7933
    %v8630 = vmul.f32 %v7938, %v7938
    %v8631 = vmul.f32 %v7943, %v7943
    %v8632 = vmul.f32 %v7948, %v7948
    %v8633 = vmul.f32 %v7953, %v7953
    %v8634 = vmul.f32 %v7958, %v7958
    %v8635 = vmul.f32 %v7963, %v7963
    %v8636 = vmul.f32 %v7968, %v7968
    %v8637 = vmul.f32 %v7973, %v7973
    %v8638 = vmul.f32 %v7978, %v7978
    %v8639 = vmul.f32 %v7983, %v7983
    %v8640 = vmul.f32 %v7988, %v7988
    %v8641 = vmul.f32 %v7993, %v7993
    %v8642 = vmul.f32 %v7998, %v7998
    %v8643 = vmul.f32 %v8003, %v8003
    %v8644 = vmul.f32 %v8008, %v8008
    %v8645 = vmul.f32 %v8013, %v8013
    %v8646 = vmul.f32 %v8018, %v8018
    %v8647 = vmul.f32 %v8023, %v8023
    %v8648 = vmul.f32 %v8028, %v8028
    %v8649 = vmul.f32 %v8033, %v8033
    %v8650 = vmul.f32 %v8038, %v8038
    %v8651 = vmul.f32 %v8043, %v8043
    %v8652 = vmul.f32 %v8048, %v8048
    %v8653 = vmul.f32 %v8053, %v8053
    %v8654 = vmul.f32 %v8058, %v8058
    %v8655 = vmul.f32 %v8063, %v8063
    %v8656 = vmul.f32 %v8068, %v8068
    %v8657 = vmul.f32 %v8073, %v8073
    %v8658 = vmul.f32 %v8078, %v8078
    %v8659 = vmul.f32 %v8083, %v8083
    %v8660 = vmul.f32 %v8088, %v8088
    %v8661 = vmul.f32 %v8093, %v8093
    %v8662 = vmul.f32 %v8098, %v8098
    %v8663 = vmul.f32 %v8103, %v8103
    %v8664 = vmul.f32 %v8108, %v8108
    %v8665 = vmul.f32 %v8113, %v8113
    %v8666 = vmul.f32 %v8118, %v8118
    %v8667 = vmul.f32 %v8123, %v8123
    %v8668 = vmul.f32 %v8128, %v8128
    %v8669 = vmul.f32 %v8133, %v8133
    %v8670 = vmul.f32 %v8138, %v8138
    %v8671 = vmul.f32 %v8143, %v8143
    %v8672 = vmul.f32 %v8148, %v8148
    %v8673 = vmul.f32 %v8153, %v8153
    %v8674 = vmul.f32 %v8158, %v8158
    %v8675 = vmul.f32 %v8163, %v8163
    %v8676 = vmul.f32 %v8168, %v8168
    %v8677 = vmul.f32 %v8173, %v8173
    %v8678 = vmul.f32 %v8178, %v8178
    %v8679 = vmul.f32 %v8183, %v8183
    %v8680 = vmul.f32 %v8188, %v8188
    %v8681 = vmul.f32 %v8193, %v8193
    %v8682 = vmul.f32 %v8198, %v8198
    %v8683 = vmul.f32 %v8203, %v8203
    %v8684 = vmul.f32 %v8208, %v8208
    %v8685 = vmul.f32 %v8213, %v8213
    %v8686 = vmul.f32 %v8218, %v8218
    %v8687 = vmul.f32 %v8223, %v8223
    %v8688 = vmul.f32 %v8228, %v8228
    %v8689 = vmul.f32 %v8233, %v8233
    %v8690 = vmul.f32 %v8238, %v8238
    %v8691 = vmul.f32 %v8243, %v8243
    %v8692 = vmul.f32 %v8248, %v8248
    %v8693 = vmul.f32 %v8253, %v8253
    %v8694 = vmul.f32 %v8258, %v8258
    %v8695 = vmul.f32 %v8263, %v8263
    %v8696 = vmul.f32 %v8268, %v8268
    %v8697 = vmul.f32 %v8273, %v8273
    %v8698 = vmul.f32 %v8278, %v8278
    %v8699 = vmul.f32 %v8283, %v8283
    %v8700 = vmul.f32 %v8288, %v8288
    %v8701 = vmul.f32 %v8293, %v8293
    %v8702 = vmul.f32 %v8298, %v8298
    %v8703 = vmul.f32 %v8303, %v8303
    %v8704 = vmul.f32 %v8308, %v8308
    %v8705 = vmul.f32 %v8313, %v8313
    %v8706 = vmul.f32 %v8318, %v8318
    %v8707 = vmul.f32 %v8323, %v8323
    %v8708 = vmul.f32 %v8328, %v8328
    %v8709 = vmul.f32 %v8333, %v8333
    %v8710 = vmul.f32 %v8338, %v8338
    %v8711 = vmul.f32 %v8343, %v8343
    %v8712 = vmul.f32 %v8348, %v8348
    %v8713 = vmul.f32 %v8353, %v8353
    %v8714 = vmul.f32 %v8358, %v8358
    %v8715 = vmul.f32 %v8363, %v8363
    %v8716 = vmul.f32 %v8368, %v8368
    %v8717 = vmul.f32 %v8373, %v8373
    %v8718 = vmul.f32 %v8378, %v8378
    %v8719 = vmul.f32 %v8383, %v8383
    %v8720 = vmul.f32 %v8388, %v8388
    %v8721 = vmul.f32 %v8393, %v8393
    %v8722 = vmul.f32 %v8398, %v8398
    %v8723 = vmul.f32 %v8403, %v8403
    %v8724 = vmul.f32 %v8408, %v8408
    %v8725 = vmul.f32 %v8413, %v8413
    %v8726 = vmul.f32 %v8418, %v8418
    %v8727 = vmul.f32 %v8423, %v8423
    %v8728 = vmul.f32 %v8428, %v8428
    %v8729 = vmul.f32 %v8433, %v8433
    %v8730 = vmul.f32 %v8438, %v8438
    %v8731 = vmul.f32 %v8443, %v8443
    %v8732 = vmul.f32 %v8448, %v8448
    %v8733 = vmul.f32 %v8453, %v8453
    %v8734 = vmul.f32 %v8458, %v8458
    %v8735 = vmul.f32 %v8463, %v8463
    %v8736 = vmul.f32 %v8468, %v8468
    %v8737 = vmul.f32 %v8473, %v8473
    %v8738 = vadd.f32 %v8610, %v8611
    %v8739 = vadd.f32 %v8738, %v8612
    %v8740 = vadd.f32 %v8739, %v8613
    %v8741 = vadd.f32 %v8740, %v8614
    %v8742 = vadd.f32 %v8741, %v8615
    %v8743 = vadd.f32 %v8742, %v8616
    %v8744 = vadd.f32 %v8743, %v8617
    %v8745 = vadd.f32 %v8744, %v8618
    %v8746 = vadd.f32 %v8745, %v8619
    %v8747 = vadd.f32 %v8746, %v8620
    %v8748 = vadd.f32 %v8747, %v8621
    %v8749 = vadd.f32 %v8748, %v8622
    %v8750 = vadd.f32 %v8749, %v8623
    %v8751 = vadd.f32 %v8750, %v8624
    %v8752 = vadd.f32 %v8751, %v8625
    %v8753 = vadd.f32 %v8752, %v8626
    %v8754 = vadd.f32 %v8753, %v8627
    %v8755 = vadd.f32 %v8754, %v8628
    %v8756 = vadd.f32 %v8755, %v8629
    %v8757 = vadd.f32 %v8756, %v8630
    %v8758 = vadd.f32 %v8757, %v8631
    %v8759 = vadd.f32 %v8758, %v8632
    %v8760 = vadd.f32 %v8759, %v8633
    %v8761 = vadd.f32 %v8760, %v8634
    %v8762 = vadd.f32 %v8761, %v8635
    %v8763 = vadd.f32 %v8762, %v8636
    %v8764 = vadd.f32 %v8763, %v8637
    %v8765 = vadd.f32 %v8764, %v8638
    %v8766 = vadd.f32 %v8765, %v8639
    %v8767 = vadd.f32 %v8766, %v8640
    %v8768 = vadd.f32 %v8767, %v8641
    %v8769 = vadd.f32 %v8768, %v8642
    %v8770 = vadd.f32 %v8769, %v8643
    %v8771 = vadd.f32 %v8770, %v8644
    %v8772 = vadd.f32 %v8771, %v8645
    %v8773 = vadd.f32 %v8772, %v8646
    %v8774 = vadd.f32 %v8773, %v8647
    %v8775 = vadd.f32 %v8774, %v8648
    %v8776 = vadd.f32 %v8775, %v8649
    %v8777 = vadd.f32 %v8776, %v8650
    %v8778 = vadd.f32 %v8777, %v8651
    %v8779 = vadd.f32 %v8778, %v8652
    %v8780 = vadd.f32 %v8779, %v8653
    %v8781 = vadd.f32 %v8780, %v8654
    %v8782 = vadd.f32 %v8781, %v8655
    %v8783 = vadd.f32 %v8782, %v8656
    %v8784 = vadd.f32 %v8783, %v8657
    %v8785 = vadd.f32 %v8784, %v8658
    %v8786 = vadd.f32 %v8785, %v8659
    %v8787 = vadd.f32 %v8786, %v8660
    %v8788 = vadd.f32 %v8787, %v8661
    %v8789 = vadd.f32 %v8788, %v8662
    %v8790 = vadd.f32 %v8789, %v8663
    %v8791 = vadd.f32 %v8790, %v8664
    %v8792 = vadd.f32 %v8791, %v8665
    %v8793 = vadd.f32 %v8792, %v8666
    %v8794 = vadd.f32 %v8793, %v8667
    %v8795 = vadd.f32 %v8794, %v8668
    %v8796 = vadd.f32 %v8795, %v8669
    %v8797 = vadd.f32 %v8796, %v8670
    %v8798 = vadd.f32 %v8797, %v8671
    %v8799 = vadd.f32 %v8798, %v8672
    %v8800 = vadd.f32 %v8799, %v8673
    %v8801 = vadd.f32 %v8800, %v8674
    %v8802 = vadd.f32 %v8801, %v8675
    %v8803 = vadd.f32 %v8802, %v8676
    %v8804 = vadd.f32 %v8803, %v8677
    %v8805 = vadd.f32 %v8804, %v8678
    %v8806 = vadd.f32 %v8805, %v8679
    %v8807 = vadd.f32 %v8806, %v8680
    %v8808 = vadd.f32 %v8807, %v8681
    %v8809 = vadd.f32 %v8808, %v8682
    %v8810 = vadd.f32 %v8809, %v8683
    %v8811 = vadd.f32 %v8810, %v8684
    %v8812 = vadd.f32 %v8811, %v8685
    %v8813 = vadd.f32 %v8812, %v8686
    %v8814 = vadd.f32 %v8813, %v8687
    %v8815 = vadd.f32 %v8814, %v8688
    %v8816 = vadd.f32 %v8815, %v8689
    %v8817 = vadd.f32 %v8816, %v8690
    %v8818 = vadd.f32 %v8817, %v8691
    %v8819 = vadd.f32 %v8818, %v8692
    %v8820 = vadd.f32 %v8819, %v8693
    %v8821 = vadd.f32 %v8820, %v8694
    %v8822 = vadd.f32 %v8821, %v8695
    %v8823 = vadd.f32 %v8822, %v8696
    %v8824 = vadd.f32 %v8823, %v8697
    %v8825 = vadd.f32 %v8824, %v8698
    %v8826 = vadd.f32 %v8825, %v8699
    %v8827 = vadd.f32 %v8826, %v8700
    %v8828 = vadd.f32 %v8827, %v8701
    %v8829 = vadd.f32 %v8828, %v8702
    %v8830 = vadd.f32 %v8829, %v8703
    %v8831 = vadd.f32 %v8830, %v8704
    %v8832 = vadd.f32 %v8831, %v8705
    %v8833 = vadd.f32 %v8832, %v8706
    %v8834 = vadd.f32 %v8833, %v8707
    %v8835 = vadd.f32 %v8834, %v8708
    %v8836 = vadd.f32 %v8835, %v8709
    %v8837 = vadd.f32 %v8836, %v8710
    %v8838 = vadd.f32 %v8837, %v8711
    %v8839 = vadd.f32 %v8838, %v8712
    %v8840 = vadd.f32 %v8839, %v8713
    %v8841 = vadd.f32 %v8840, %v8714
    %v8842 = vadd.f32 %v8841, %v8715
    %v8843 = vadd.f32 %v8842, %v8716
    %v8844 = vadd.f32 %v8843, %v8717
    %v8845 = vadd.f32 %v8844, %v8718
    %v8846 = vadd.f32 %v8845, %v8719
    %v8847 = vadd.f32 %v8846, %v8720
    %v8848 = vadd.f32 %v8847, %v8721
    %v8849 = vadd.f32 %v8848, %v8722
    %v8850 = vadd.f32 %v8849, %v8723
    %v8851 = vadd.f32 %v8850, %v8724
    %v8852 = vadd.f32 %v8851, %v8725
    %v8853 = vadd.f32 %v8852, %v8726
    %v8854 = vadd.f32 %v8853, %v8727
    %v8855 = vadd.f32 %v8854, %v8728
    %v8856 = vadd.f32 %v8855, %v8729
    %v8857 = vadd.f32 %v8856, %v8730
    %v8858 = vadd.f32 %v8857, %v8731
    %v8859 = vadd.f32 %v8858, %v8732
    %v8860 = vadd.f32 %v8859, %v8733
    %v8861 = vadd.f32 %v8860, %v8734
    %v8862 = vadd.f32 %v8861, %v8735
    %v8863 = vadd.f32 %v8862, %v8736
    %v8864 = vadd.f32 %v8863, %v8737
    %v8865 = vrot.slane %v8864, 4
    %v8866 = vadd.f32 %v8864, %v8865
    %v8867 = vrot.slane %v8866, 2
    %v8868 = vadd.f32 %v8866, %v8867
    %v8869 = vrot.slane %v8868, 1
    %v8870 = vadd.f32 %v8868, %v8869
    %v8871 = vmul.f32 %v8870, 0.0009765625
    %v8872 = vmul.f32 %v8609, %v8609
    %v8873 = vsub.f32 %v8871, %v8872
    %v8874 = vmax.f32 %v8873, 0.0
    %v8875 = vld [vmem:[%s9] sm:$0x1]
    %v8876 = vadd.f32 %v8874, 1e-05
    %v8877 = vrsqrt.pop %v8876
    %v8878 = vmul.f32 %v8875, %v8877
    %v8879 = vld [vmem:[%s10] sm:$0x1]
    %v8880 = vmul.f32 %v8609, %v8878
    %v8881 = vsub.f32 %v8879, %v8880
    %v8883 = vlaneseq
    %v8884 = vshrl.u32 %v8883, 7
    %v8885 = vsub.s32 0, %v8884
    %v8886 = vrot.slane %v8878, %v8885
    %v8888 = vmul.f32 %v7838, %v8886
    %v8889 = vmul.f32 %v7843, %v8886
    %v8890 = vmul.f32 %v7848, %v8886
    %v8891 = vmul.f32 %v7853, %v8886
    %v8892 = vmul.f32 %v7858, %v8886
    %v8893 = vmul.f32 %v7863, %v8886
    %v8894 = vmul.f32 %v7868, %v8886
    %v8895 = vmul.f32 %v7873, %v8886
    %v8896 = vmul.f32 %v7878, %v8886
    %v8897 = vmul.f32 %v7883, %v8886
    %v8898 = vmul.f32 %v7888, %v8886
    %v8899 = vmul.f32 %v7893, %v8886
    %v8900 = vmul.f32 %v7898, %v8886
    %v8901 = vmul.f32 %v7903, %v8886
    %v8902 = vmul.f32 %v7908, %v8886
    %v8903 = vmul.f32 %v7913, %v8886
    %v8904 = vmul.f32 %v7918, %v8886
    %v8905 = vmul.f32 %v7923, %v8886
    %v8906 = vmul.f32 %v7928, %v8886
    %v8907 = vmul.f32 %v7933, %v8886
    %v8908 = vmul.f32 %v7938, %v8886
    %v8909 = vmul.f32 %v7943, %v8886
    %v8910 = vmul.f32 %v7948, %v8886
    %v8911 = vmul.f32 %v7953, %v8886
    %v8912 = vmul.f32 %v7958, %v8886
    %v8913 = vmul.f32 %v7963, %v8886
    %v8914 = vmul.f32 %v7968, %v8886
    %v8915 = vmul.f32 %v7973, %v8886
    %v8916 = vmul.f32 %v7978, %v8886
    %v8917 = vmul.f32 %v7983, %v8886
    %v8918 = vmul.f32 %v7988, %v8886
    %v8919 = vmul.f32 %v7993, %v8886
    %v8920 = vmul.f32 %v7998, %v8886
    %v8921 = vmul.f32 %v8003, %v8886
    %v8922 = vmul.f32 %v8008, %v8886
    %v8923 = vmul.f32 %v8013, %v8886
    %v8924 = vmul.f32 %v8018, %v8886
    %v8925 = vmul.f32 %v8023, %v8886
    %v8926 = vmul.f32 %v8028, %v8886
    %v8927 = vmul.f32 %v8033, %v8886
    %v8928 = vmul.f32 %v8038, %v8886
    %v8929 = vmul.f32 %v8043, %v8886
    %v8930 = vmul.f32 %v8048, %v8886
    %v8931 = vmul.f32 %v8053, %v8886
    %v8932 = vmul.f32 %v8058, %v8886
    %v8933 = vmul.f32 %v8063, %v8886
    %v8934 = vmul.f32 %v8068, %v8886
    %v8935 = vmul.f32 %v8073, %v8886
    %v8936 = vmul.f32 %v8078, %v8886
    %v8937 = vmul.f32 %v8083, %v8886
    %v8938 = vmul.f32 %v8088, %v8886
    %v8939 = vmul.f32 %v8093, %v8886
    %v8940 = vmul.f32 %v8098, %v8886
    %v8941 = vmul.f32 %v8103, %v8886
    %v8942 = vmul.f32 %v8108, %v8886
    %v8943 = vmul.f32 %v8113, %v8886
    %v8944 = vmul.f32 %v8118, %v8886
    %v8945 = vmul.f32 %v8123, %v8886
    %v8946 = vmul.f32 %v8128, %v8886
    %v8947 = vmul.f32 %v8133, %v8886
    %v8948 = vmul.f32 %v8138, %v8886
    %v8949 = vmul.f32 %v8143, %v8886
    %v8950 = vmul.f32 %v8148, %v8886
    %v8951 = vmul.f32 %v8153, %v8886
    %v8952 = vmul.f32 %v8158, %v8886
    %v8953 = vmul.f32 %v8163, %v8886
    %v8954 = vmul.f32 %v8168, %v8886
    %v8955 = vmul.f32 %v8173, %v8886
    %v8956 = vmul.f32 %v8178, %v8886
    %v8957 = vmul.f32 %v8183, %v8886
    %v8958 = vmul.f32 %v8188, %v8886
    %v8959 = vmul.f32 %v8193, %v8886
    %v8960 = vmul.f32 %v8198, %v8886
    %v8961 = vmul.f32 %v8203, %v8886
    %v8962 = vmul.f32 %v8208, %v8886
    %v8963 = vmul.f32 %v8213, %v8886
    %v8964 = vmul.f32 %v8218, %v8886
    %v8965 = vmul.f32 %v8223, %v8886
    %v8966 = vmul.f32 %v8228, %v8886
    %v8967 = vmul.f32 %v8233, %v8886
    %v8968 = vmul.f32 %v8238, %v8886
    %v8969 = vmul.f32 %v8243, %v8886
    %v8970 = vmul.f32 %v8248, %v8886
    %v8971 = vmul.f32 %v8253, %v8886
    %v8972 = vmul.f32 %v8258, %v8886
    %v8973 = vmul.f32 %v8263, %v8886
    %v8974 = vmul.f32 %v8268, %v8886
    %v8975 = vmul.f32 %v8273, %v8886
    %v8976 = vmul.f32 %v8278, %v8886
    %v8977 = vmul.f32 %v8283, %v8886
    %v8978 = vmul.f32 %v8288, %v8886
    %v8979 = vmul.f32 %v8293, %v8886
    %v8980 = vmul.f32 %v8298, %v8886
    %v8981 = vmul.f32 %v8303, %v8886
    %v8982 = vmul.f32 %v8308, %v8886
    %v8983 = vmul.f32 %v8313, %v8886
    %v8984 = vmul.f32 %v8318, %v8886
    %v8985 = vmul.f32 %v8323, %v8886
    %v8986 = vmul.f32 %v8328, %v8886
    %v8987 = vmul.f32 %v8333, %v8886
    %v8988 = vmul.f32 %v8338, %v8886
    %v8989 = vmul.f32 %v8343, %v8886
    %v8990 = vmul.f32 %v8348, %v8886
    %v8991 = vmul.f32 %v8353, %v8886
    %v8992 = vmul.f32 %v8358, %v8886
    %v8993 = vmul.f32 %v8363, %v8886
    %v8994 = vmul.f32 %v8368, %v8886
    %v8995 = vmul.f32 %v8373, %v8886
    %v8996 = vmul.f32 %v8378, %v8886
    %v8997 = vmul.f32 %v8383, %v8886
    %v8998 = vmul.f32 %v8388, %v8886
    %v8999 = vmul.f32 %v8393, %v8886
    %v9000 = vmul.f32 %v8398, %v8886
    %v9001 = vmul.f32 %v8403, %v8886
    %v9002 = vmul.f32 %v8408, %v8886
    %v9003 = vmul.f32 %v8413, %v8886
    %v9004 = vmul.f32 %v8418, %v8886
    %v9005 = vmul.f32 %v8423, %v8886
    %v9006 = vmul.f32 %v8428, %v8886
    %v9007 = vmul.f32 %v8433, %v8886
    %v9008 = vmul.f32 %v8438, %v8886
    %v9009 = vmul.f32 %v8443, %v8886
    %v9010 = vmul.f32 %v8448, %v8886
    %v9011 = vmul.f32 %v8453, %v8886
    %v9012 = vmul.f32 %v8458, %v8886
    %v9013 = vmul.f32 %v8463, %v8886
    %v9014 = vmul.f32 %v8468, %v8886
    %v9015 = vmul.f32 %v8473, %v8886
    %v9017 = vlaneseq
    %v9018 = vshrl.u32 %v9017, 7
    %v9019 = vsub.s32 0, %v9018
    %v9020 = vrot.slane %v8881, %v9019
    %v9022 = vadd.f32 %v8888, %v9020
    %v9023 = vadd.f32 %v8889, %v9020
    %v9024 = vadd.f32 %v8890, %v9020
    %v9025 = vadd.f32 %v8891, %v9020
    %v9026 = vadd.f32 %v8892, %v9020
    %v9027 = vadd.f32 %v8893, %v9020
    %v9028 = vadd.f32 %v8894, %v9020
    %v9029 = vadd.f32 %v8895, %v9020
    %v9030 = vadd.f32 %v8896, %v9020
    %v9031 = vadd.f32 %v8897, %v9020
    %v9032 = vadd.f32 %v8898, %v9020
    %v9033 = vadd.f32 %v8899, %v9020
    %v9034 = vadd.f32 %v8900, %v9020
    %v9035 = vadd.f32 %v8901, %v9020
    %v9036 = vadd.f32 %v8902, %v9020
    %v9037 = vadd.f32 %v8903, %v9020
    %v9038 = vadd.f32 %v8904, %v9020
    %v9039 = vadd.f32 %v8905, %v9020
    %v9040 = vadd.f32 %v8906, %v9020
    %v9041 = vadd.f32 %v8907, %v9020
    %v9042 = vadd.f32 %v8908, %v9020
    %v9043 = vadd.f32 %v8909, %v9020
    %v9044 = vadd.f32 %v8910, %v9020
    %v9045 = vadd.f32 %v8911, %v9020
    %v9046 = vadd.f32 %v8912, %v9020
    %v9047 = vadd.f32 %v8913, %v9020
    %v9048 = vadd.f32 %v8914, %v9020
    %v9049 = vadd.f32 %v8915, %v9020
    %v9050 = vadd.f32 %v8916, %v9020
    %v9051 = vadd.f32 %v8917, %v9020
    %v9052 = vadd.f32 %v8918, %v9020
    %v9053 = vadd.f32 %v8919, %v9020
    %v9054 = vadd.f32 %v8920, %v9020
    %v9055 = vadd.f32 %v8921, %v9020
    %v9056 = vadd.f32 %v8922, %v9020
    %v9057 = vadd.f32 %v8923, %v9020
    %v9058 = vadd.f32 %v8924, %v9020
    %v9059 = vadd.f32 %v8925, %v9020
    %v9060 = vadd.f32 %v8926, %v9020
    %v9061 = vadd.f32 %v8927, %v9020
    %v9062 = vadd.f32 %v8928, %v9020
    %v9063 = vadd.f32 %v8929, %v9020
    %v9064 = vadd.f32 %v8930, %v9020
    %v9065 = vadd.f32 %v8931, %v9020
    %v9066 = vadd.f32 %v8932, %v9020
    %v9067 = vadd.f32 %v8933, %v9020
    %v9068 = vadd.f32 %v8934, %v9020
    %v9069 = vadd.f32 %v8935, %v9020
    %v9070 = vadd.f32 %v8936, %v9020
    %v9071 = vadd.f32 %v8937, %v9020
    %v9072 = vadd.f32 %v8938, %v9020
    %v9073 = vadd.f32 %v8939, %v9020
    %v9074 = vadd.f32 %v8940, %v9020
    %v9075 = vadd.f32 %v8941, %v9020
    %v9076 = vadd.f32 %v8942, %v9020
    %v9077 = vadd.f32 %v8943, %v9020
    %v9078 = vadd.f32 %v8944, %v9020
    %v9079 = vadd.f32 %v8945, %v9020
    %v9080 = vadd.f32 %v8946, %v9020
    %v9081 = vadd.f32 %v8947, %v9020
    %v9082 = vadd.f32 %v8948, %v9020
    %v9083 = vadd.f32 %v8949, %v9020
    %v9084 = vadd.f32 %v8950, %v9020
    %v9085 = vadd.f32 %v8951, %v9020
    %v9086 = vadd.f32 %v8952, %v9020
    %v9087 = vadd.f32 %v8953, %v9020
    %v9088 = vadd.f32 %v8954, %v9020
    %v9089 = vadd.f32 %v8955, %v9020
    %v9090 = vadd.f32 %v8956, %v9020
    %v9091 = vadd.f32 %v8957, %v9020
    %v9092 = vadd.f32 %v8958, %v9020
    %v9093 = vadd.f32 %v8959, %v9020
    %v9094 = vadd.f32 %v8960, %v9020
    %v9095 = vadd.f32 %v8961, %v9020
    %v9096 = vadd.f32 %v8962, %v9020
    %v9097 = vadd.f32 %v8963, %v9020
    %v9098 = vadd.f32 %v8964, %v9020
    %v9099 = vadd.f32 %v8965, %v9020
    %v9100 = vadd.f32 %v8966, %v9020
    %v9101 = vadd.f32 %v8967, %v9020
    %v9102 = vadd.f32 %v8968, %v9020
    %v9103 = vadd.f32 %v8969, %v9020
    %v9104 = vadd.f32 %v8970, %v9020
    %v9105 = vadd.f32 %v8971, %v9020
    %v9106 = vadd.f32 %v8972, %v9020
    %v9107 = vadd.f32 %v8973, %v9020
    %v9108 = vadd.f32 %v8974, %v9020
    %v9109 = vadd.f32 %v8975, %v9020
    %v9110 = vadd.f32 %v8976, %v9020
    %v9111 = vadd.f32 %v8977, %v9020
    %v9112 = vadd.f32 %v8978, %v9020
    %v9113 = vadd.f32 %v8979, %v9020
    %v9114 = vadd.f32 %v8980, %v9020
    %v9115 = vadd.f32 %v8981, %v9020
    %v9116 = vadd.f32 %v8982, %v9020
    %v9117 = vadd.f32 %v8983, %v9020
    %v9118 = vadd.f32 %v8984, %v9020
    %v9119 = vadd.f32 %v8985, %v9020
    %v9120 = vadd.f32 %v8986, %v9020
    %v9121 = vadd.f32 %v8987, %v9020
    %v9122 = vadd.f32 %v8988, %v9020
    %v9123 = vadd.f32 %v8989, %v9020
    %v9124 = vadd.f32 %v8990, %v9020
    %v9125 = vadd.f32 %v8991, %v9020
    %v9126 = vadd.f32 %v8992, %v9020
    %v9127 = vadd.f32 %v8993, %v9020
    %v9128 = vadd.f32 %v8994, %v9020
    %v9129 = vadd.f32 %v8995, %v9020
    %v9130 = vadd.f32 %v8996, %v9020
    %v9131 = vadd.f32 %v8997, %v9020
    %v9132 = vadd.f32 %v8998, %v9020
    %v9133 = vadd.f32 %v8999, %v9020
    %v9134 = vadd.f32 %v9000, %v9020
    %v9135 = vadd.f32 %v9001, %v9020
    %v9136 = vadd.f32 %v9002, %v9020
    %v9137 = vadd.f32 %v9003, %v9020
    %v9138 = vadd.f32 %v9004, %v9020
    %v9139 = vadd.f32 %v9005, %v9020
    %v9140 = vadd.f32 %v9006, %v9020
    %v9141 = vadd.f32 %v9007, %v9020
    %v9142 = vadd.f32 %v9008, %v9020
    %v9143 = vadd.f32 %v9009, %v9020
    %v9144 = vadd.f32 %v9010, %v9020
    %v9145 = vadd.f32 %v9011, %v9020
    %v9146 = vadd.f32 %v9012, %v9020
    %v9147 = vadd.f32 %v9013, %v9020
    %v9148 = vadd.f32 %v9014, %v9020
    %v9149 = vadd.f32 %v9015, %v9020
    %v9150 = vmax.f32 %v9022, 0.0
    %v9151 = vmax.f32 %v9023, 0.0
    %v9152 = vmax.f32 %v9024, 0.0
    %v9153 = vmax.f32 %v9025, 0.0
    %v9154 = vmax.f32 %v9026, 0.0
    %v9155 = vmax.f32 %v9027, 0.0
    %v9156 = vmax.f32 %v9028, 0.0
    %v9157 = vmax.f32 %v9029, 0.0
    %v9158 = vmax.f32 %v9030, 0.0
    %v9159 = vmax.f32 %v9031, 0.0
    %v9160 = vmax.f32 %v9032, 0.0
    %v9161 = vmax.f32 %v9033, 0.0
    %v9162 = vmax.f32 %v9034, 0.0
    %v9163 = vmax.f32 %v9035, 0.0
    %v9164 = vmax.f32 %v9036, 0.0
    %v9165 = vmax.f32 %v9037, 0.0
    %v9166 = vmax.f32 %v9038, 0.0
    %v9167 = vmax.f32 %v9039, 0.0
    %v9168 = vmax.f32 %v9040, 0.0
    %v9169 = vmax.f32 %v9041, 0.0
    %v9170 = vmax.f32 %v9042, 0.0
    %v9171 = vmax.f32 %v9043, 0.0
    %v9172 = vmax.f32 %v9044, 0.0
    %v9173 = vmax.f32 %v9045, 0.0
    %v9174 = vmax.f32 %v9046, 0.0
    %v9175 = vmax.f32 %v9047, 0.0
    %v9176 = vmax.f32 %v9048, 0.0
    %v9177 = vmax.f32 %v9049, 0.0
    %v9178 = vmax.f32 %v9050, 0.0
    %v9179 = vmax.f32 %v9051, 0.0
    %v9180 = vmax.f32 %v9052, 0.0
    %v9181 = vmax.f32 %v9053, 0.0
    %v9182 = vmax.f32 %v9054, 0.0
    %v9183 = vmax.f32 %v9055, 0.0
    %v9184 = vmax.f32 %v9056, 0.0
    %v9185 = vmax.f32 %v9057, 0.0
    %v9186 = vmax.f32 %v9058, 0.0
    %v9187 = vmax.f32 %v9059, 0.0
    %v9188 = vmax.f32 %v9060, 0.0
    %v9189 = vmax.f32 %v9061, 0.0
    %v9190 = vmax.f32 %v9062, 0.0
    %v9191 = vmax.f32 %v9063, 0.0
    %v9192 = vmax.f32 %v9064, 0.0
    %v9193 = vmax.f32 %v9065, 0.0
    %v9194 = vmax.f32 %v9066, 0.0
    %v9195 = vmax.f32 %v9067, 0.0
    %v9196 = vmax.f32 %v9068, 0.0
    %v9197 = vmax.f32 %v9069, 0.0
    %v9198 = vmax.f32 %v9070, 0.0
    %v9199 = vmax.f32 %v9071, 0.0
    %v9200 = vmax.f32 %v9072, 0.0
    %v9201 = vmax.f32 %v9073, 0.0
    %v9202 = vmax.f32 %v9074, 0.0
    %v9203 = vmax.f32 %v9075, 0.0
    %v9204 = vmax.f32 %v9076, 0.0
    %v9205 = vmax.f32 %v9077, 0.0
    %v9206 = vmax.f32 %v9078, 0.0
    %v9207 = vmax.f32 %v9079, 0.0
    %v9208 = vmax.f32 %v9080, 0.0
    %v9209 = vmax.f32 %v9081, 0.0
    %v9210 = vmax.f32 %v9082, 0.0
    %v9211 = vmax.f32 %v9083, 0.0
    %v9212 = vmax.f32 %v9084, 0.0
    %v9213 = vmax.f32 %v9085, 0.0
    %v9214 = vmax.f32 %v9086, 0.0
    %v9215 = vmax.f32 %v9087, 0.0
    %v9216 = vmax.f32 %v9088, 0.0
    %v9217 = vmax.f32 %v9089, 0.0
    %v9218 = vmax.f32 %v9090, 0.0
    %v9219 = vmax.f32 %v9091, 0.0
    %v9220 = vmax.f32 %v9092, 0.0
    %v9221 = vmax.f32 %v9093, 0.0
    %v9222 = vmax.f32 %v9094, 0.0
    %v9223 = vmax.f32 %v9095, 0.0
    %v9224 = vmax.f32 %v9096, 0.0
    %v9225 = vmax.f32 %v9097, 0.0
    %v9226 = vmax.f32 %v9098, 0.0
    %v9227 = vmax.f32 %v9099, 0.0
    %v9228 = vmax.f32 %v9100, 0.0
    %v9229 = vmax.f32 %v9101, 0.0
    %v9230 = vmax.f32 %v9102, 0.0
    %v9231 = vmax.f32 %v9103, 0.0
    %v9232 = vmax.f32 %v9104, 0.0
    %v9233 = vmax.f32 %v9105, 0.0
    %v9234 = vmax.f32 %v9106, 0.0
    %v9235 = vmax.f32 %v9107, 0.0
    %v9236 = vmax.f32 %v9108, 0.0
    %v9237 = vmax.f32 %v9109, 0.0
    %v9238 = vmax.f32 %v9110, 0.0
    %v9239 = vmax.f32 %v9111, 0.0
    %v9240 = vmax.f32 %v9112, 0.0
    %v9241 = vmax.f32 %v9113, 0.0
    %v9242 = vmax.f32 %v9114, 0.0
    %v9243 = vmax.f32 %v9115, 0.0
    %v9244 = vmax.f32 %v9116, 0.0
    %v9245 = vmax.f32 %v9117, 0.0
    %v9246 = vmax.f32 %v9118, 0.0
    %v9247 = vmax.f32 %v9119, 0.0
    %v9248 = vmax.f32 %v9120, 0.0
    %v9249 = vmax.f32 %v9121, 0.0
    %v9250 = vmax.f32 %v9122, 0.0
    %v9251 = vmax.f32 %v9123, 0.0
    %v9252 = vmax.f32 %v9124, 0.0
    %v9253 = vmax.f32 %v9125, 0.0
    %v9254 = vmax.f32 %v9126, 0.0
    %v9255 = vmax.f32 %v9127, 0.0
    %v9256 = vmax.f32 %v9128, 0.0
    %v9257 = vmax.f32 %v9129, 0.0
    %v9258 = vmax.f32 %v9130, 0.0
    %v9259 = vmax.f32 %v9131, 0.0
    %v9260 = vmax.f32 %v9132, 0.0
    %v9261 = vmax.f32 %v9133, 0.0
    %v9262 = vmax.f32 %v9134, 0.0
    %v9263 = vmax.f32 %v9135, 0.0
    %v9264 = vmax.f32 %v9136, 0.0
    %v9265 = vmax.f32 %v9137, 0.0
    %v9266 = vmax.f32 %v9138, 0.0
    %v9267 = vmax.f32 %v9139, 0.0
    %v9268 = vmax.f32 %v9140, 0.0
    %v9269 = vmax.f32 %v9141, 0.0
    %v9270 = vmax.f32 %v9142, 0.0
    %v9271 = vmax.f32 %v9143, 0.0
    %v9272 = vmax.f32 %v9144, 0.0
    %v9273 = vmax.f32 %v9145, 0.0
    %v9274 = vmax.f32 %v9146, 0.0
    %v9275 = vmax.f32 %v9147, 0.0
    %v9276 = vmax.f32 %v9148, 0.0
    %v9277 = vmax.f32 %v9149, 0.0
    %v9278 = vadd.f32 %v9150, %v1039
    %v9279 = vadd.f32 %v9151, %v1040
    %v9280 = vadd.f32 %v9152, %v1041
    %v9281 = vadd.f32 %v9153, %v1042
    %v9282 = vadd.f32 %v9154, %v1043
    %v9283 = vadd.f32 %v9155, %v1044
    %v9284 = vadd.f32 %v9156, %v1045
    %v9285 = vadd.f32 %v9157, %v1046
    %v9286 = vadd.f32 %v9158, %v1047
    %v9287 = vadd.f32 %v9159, %v1048
    %v9288 = vadd.f32 %v9160, %v1049
    %v9289 = vadd.f32 %v9161, %v1050
    %v9290 = vadd.f32 %v9162, %v1051
    %v9291 = vadd.f32 %v9163, %v1052
    %v9292 = vadd.f32 %v9164, %v1053
    %v9293 = vadd.f32 %v9165, %v1054
    %v9294 = vadd.f32 %v9166, %v1055
    %v9295 = vadd.f32 %v9167, %v1056
    %v9296 = vadd.f32 %v9168, %v1057
    %v9297 = vadd.f32 %v9169, %v1058
    %v9298 = vadd.f32 %v9170, %v1059
    %v9299 = vadd.f32 %v9171, %v1060
    %v9300 = vadd.f32 %v9172, %v1061
    %v9301 = vadd.f32 %v9173, %v1062
    %v9302 = vadd.f32 %v9174, %v1063
    %v9303 = vadd.f32 %v9175, %v1064
    %v9304 = vadd.f32 %v9176, %v1065
    %v9305 = vadd.f32 %v9177, %v1066
    %v9306 = vadd.f32 %v9178, %v1067
    %v9307 = vadd.f32 %v9179, %v1068
    %v9308 = vadd.f32 %v9180, %v1069
    %v9309 = vadd.f32 %v9181, %v1070
    %v9310 = vadd.f32 %v9182, %v1071
    %v9311 = vadd.f32 %v9183, %v1072
    %v9312 = vadd.f32 %v9184, %v1073
    %v9313 = vadd.f32 %v9185, %v1074
    %v9314 = vadd.f32 %v9186, %v1075
    %v9315 = vadd.f32 %v9187, %v1076
    %v9316 = vadd.f32 %v9188, %v1077
    %v9317 = vadd.f32 %v9189, %v1078
    %v9318 = vadd.f32 %v9190, %v1079
    %v9319 = vadd.f32 %v9191, %v1080
    %v9320 = vadd.f32 %v9192, %v1081
    %v9321 = vadd.f32 %v9193, %v1082
    %v9322 = vadd.f32 %v9194, %v1083
    %v9323 = vadd.f32 %v9195, %v1084
    %v9324 = vadd.f32 %v9196, %v1085
    %v9325 = vadd.f32 %v9197, %v1086
    %v9326 = vadd.f32 %v9198, %v1087
    %v9327 = vadd.f32 %v9199, %v1088
    %v9328 = vadd.f32 %v9200, %v1089
    %v9329 = vadd.f32 %v9201, %v1090
    %v9330 = vadd.f32 %v9202, %v1091
    %v9331 = vadd.f32 %v9203, %v1092
    %v9332 = vadd.f32 %v9204, %v1093
    %v9333 = vadd.f32 %v9205, %v1094
    %v9334 = vadd.f32 %v9206, %v1095
    %v9335 = vadd.f32 %v9207, %v1096
    %v9336 = vadd.f32 %v9208, %v1097
    %v9337 = vadd.f32 %v9209, %v1098
    %v9338 = vadd.f32 %v9210, %v1099
    %v9339 = vadd.f32 %v9211, %v1100
    %v9340 = vadd.f32 %v9212, %v1101
    %v9341 = vadd.f32 %v9213, %v1102
    %v9342 = vadd.f32 %v9214, %v1103
    %v9343 = vadd.f32 %v9215, %v1104
    %v9344 = vadd.f32 %v9216, %v1105
    %v9345 = vadd.f32 %v9217, %v1106
    %v9346 = vadd.f32 %v9218, %v1107
    %v9347 = vadd.f32 %v9219, %v1108
    %v9348 = vadd.f32 %v9220, %v1109
    %v9349 = vadd.f32 %v9221, %v1110
    %v9350 = vadd.f32 %v9222, %v1111
    %v9351 = vadd.f32 %v9223, %v1112
    %v9352 = vadd.f32 %v9224, %v1113
    %v9353 = vadd.f32 %v9225, %v1114
    %v9354 = vadd.f32 %v9226, %v1115
    %v9355 = vadd.f32 %v9227, %v1116
    %v9356 = vadd.f32 %v9228, %v1117
    %v9357 = vadd.f32 %v9229, %v1118
    %v9358 = vadd.f32 %v9230, %v1119
    %v9359 = vadd.f32 %v9231, %v1120
    %v9360 = vadd.f32 %v9232, %v1121
    %v9361 = vadd.f32 %v9233, %v1122
    %v9362 = vadd.f32 %v9234, %v1123
    %v9363 = vadd.f32 %v9235, %v1124
    %v9364 = vadd.f32 %v9236, %v1125
    %v9365 = vadd.f32 %v9237, %v1126
    %v9366 = vadd.f32 %v9238, %v1127
    %v9367 = vadd.f32 %v9239, %v1128
    %v9368 = vadd.f32 %v9240, %v1129
    %v9369 = vadd.f32 %v9241, %v1130
    %v9370 = vadd.f32 %v9242, %v1131
    %v9371 = vadd.f32 %v9243, %v1132
    %v9372 = vadd.f32 %v9244, %v1133
    %v9373 = vadd.f32 %v9245, %v1134
    %v9374 = vadd.f32 %v9246, %v1135
    %v9375 = vadd.f32 %v9247, %v1136
    %v9376 = vadd.f32 %v9248, %v1137
    %v9377 = vadd.f32 %v9249, %v1138
    %v9378 = vadd.f32 %v9250, %v1139
    %v9379 = vadd.f32 %v9251, %v1140
    %v9380 = vadd.f32 %v9252, %v1141
    %v9381 = vadd.f32 %v9253, %v1142
    %v9382 = vadd.f32 %v9254, %v1143
    %v9383 = vadd.f32 %v9255, %v1144
    %v9384 = vadd.f32 %v9256, %v1145
    %v9385 = vadd.f32 %v9257, %v1146
    %v9386 = vadd.f32 %v9258, %v1147
    %v9387 = vadd.f32 %v9259, %v1148
    %v9388 = vadd.f32 %v9260, %v1149
    %v9389 = vadd.f32 %v9261, %v1150
    %v9390 = vadd.f32 %v9262, %v1151
    %v9391 = vadd.f32 %v9263, %v1152
    %v9392 = vadd.f32 %v9264, %v1153
    %v9393 = vadd.f32 %v9265, %v1154
    %v9394 = vadd.f32 %v9266, %v1155
    %v9395 = vadd.f32 %v9267, %v1156
    %v9396 = vadd.f32 %v9268, %v1157
    %v9397 = vadd.f32 %v9269, %v1158
    %v9398 = vadd.f32 %v9270, %v1159
    %v9399 = vadd.f32 %v9271, %v1160
    %v9400 = vadd.f32 %v9272, %v1161
    %v9401 = vadd.f32 %v9273, %v1162
    %v9402 = vadd.f32 %v9274, %v1163
    %v9403 = vadd.f32 %v9275, %v1164
    %v9404 = vadd.f32 %v9276, %v1165
    %v9405 = vadd.f32 %v9277, %v1166
    %9406 = vxpose.xlu0.b32.start [1/16] %v9278, 128
    %9407 = vxpose.xlu0.b32.cont [2/16] %v9279, 128
    %9408 = vxpose.xlu0.b32.cont [3/16] %v9280, 128
    %9409 = vxpose.xlu0.b32.cont [4/16] %v9281, 128
    %9410 = vxpose.xlu0.b32.cont [5/16] %v9282, 128
    %9411 = vxpose.xlu0.b32.cont [6/16] %v9283, 128
    %9412 = vxpose.xlu0.b32.cont [7/16] %v9284, 128
    %9413 = vxpose.xlu0.b32.cont [8/16] %v9285, 128
    %9414 = vxpose.xlu0.b32.cont [9/16] %v9286, 128
    %9415 = vxpose.xlu0.b32.cont [10/16] %v9287, 128
    %9416 = vxpose.xlu0.b32.cont [11/16] %v9288, 128
    %9417 = vxpose.xlu0.b32.cont [12/16] %v9289, 128
    %9418 = vxpose.xlu0.b32.cont [13/16] %v9290, 128
    %9419 = vxpose.xlu0.b32.cont [14/16] %v9291, 128
    %9420 = vxpose.xlu0.b32.cont [15/16] %v9292, 128
    %9421 = vxpose.xlu0.b32.end [16/16] %v9293, 128
    %v9422 = vpop.trf.xlu0
    %v9423 = vpop.trf.xlu0
    %v9424 = vpop.trf.xlu0
    %v9425 = vpop.trf.xlu0
    %v9426 = vpop.trf.xlu0
    %v9427 = vpop.trf.xlu0
    %v9428 = vpop.trf.xlu0
    %v9429 = vpop.trf.xlu0
    %v9430 = vpop.trf.xlu0
    %v9431 = vpop.trf.xlu0
    %v9432 = vpop.trf.xlu0
    %v9433 = vpop.trf.xlu0
    %v9434 = vpop.trf.xlu0
    %v9435 = vpop.trf.xlu0
    %v9436 = vpop.trf.xlu0
    %v9437 = vpop.trf.xlu0
    %9438 = vxpose.xlu0.b32.start [1/16] %v9294, 128
    %9439 = vxpose.xlu0.b32.cont [2/16] %v9295, 128
    %9440 = vxpose.xlu0.b32.cont [3/16] %v9296, 128
    %9441 = vxpose.xlu0.b32.cont [4/16] %v9297, 128
    %9442 = vxpose.xlu0.b32.cont [5/16] %v9298, 128
    %9443 = vxpose.xlu0.b32.cont [6/16] %v9299, 128
    %9444 = vxpose.xlu0.b32.cont [7/16] %v9300, 128
    %9445 = vxpose.xlu0.b32.cont [8/16] %v9301, 128
    %9446 = vxpose.xlu0.b32.cont [9/16] %v9302, 128
    %9447 = vxpose.xlu0.b32.cont [10/16] %v9303, 128
    %9448 = vxpose.xlu0.b32.cont [11/16] %v9304, 128
    %9449 = vxpose.xlu0.b32.cont [12/16] %v9305, 128
    %9450 = vxpose.xlu0.b32.cont [13/16] %v9306, 128
    %9451 = vxpose.xlu0.b32.cont [14/16] %v9307, 128
    %9452 = vxpose.xlu0.b32.cont [15/16] %v9308, 128
    %9453 = vxpose.xlu0.b32.end [16/16] %v9309, 128
    %v9454 = vpop.trf.xlu0
    %v9455 = vpop.trf.xlu0
    %v9456 = vpop.trf.xlu0
    %v9457 = vpop.trf.xlu0
    %v9458 = vpop.trf.xlu0
    %v9459 = vpop.trf.xlu0
    %v9460 = vpop.trf.xlu0
    %v9461 = vpop.trf.xlu0
    %v9462 = vpop.trf.xlu0
    %v9463 = vpop.trf.xlu0
    %v9464 = vpop.trf.xlu0
    %v9465 = vpop.trf.xlu0
    %v9466 = vpop.trf.xlu0
    %v9467 = vpop.trf.xlu0
    %v9468 = vpop.trf.xlu0
    %v9469 = vpop.trf.xlu0
    %9470 = vxpose.xlu0.b32.start [1/16] %v9310, 128
    %9471 = vxpose.xlu0.b32.cont [2/16] %v9311, 128
    %9472 = vxpose.xlu0.b32.cont [3/16] %v9312, 128
    %9473 = vxpose.xlu0.b32.cont [4/16] %v9313, 128
    %9474 = vxpose.xlu0.b32.cont [5/16] %v9314, 128
    %9475 = vxpose.xlu0.b32.cont [6/16] %v9315, 128
    %9476 = vxpose.xlu0.b32.cont [7/16] %v9316, 128
    %9477 = vxpose.xlu0.b32.cont [8/16] %v9317, 128
    %9478 = vxpose.xlu0.b32.cont [9/16] %v9318, 128
    %9479 = vxpose.xlu0.b32.cont [10/16] %v9319, 128
    %9480 = vxpose.xlu0.b32.cont [11/16] %v9320, 128
    %9481 = vxpose.xlu0.b32.cont [12/16] %v9321, 128
    %9482 = vxpose.xlu0.b32.cont [13/16] %v9322, 128
    %9483 = vxpose.xlu0.b32.cont [14/16] %v9323, 128
    %9484 = vxpose.xlu0.b32.cont [15/16] %v9324, 128
    %9485 = vxpose.xlu0.b32.end [16/16] %v9325, 128
    %v9486 = vpop.trf.xlu0
    %v9487 = vpop.trf.xlu0
    %v9488 = vpop.trf.xlu0
    %v9489 = vpop.trf.xlu0
    %v9490 = vpop.trf.xlu0
    %v9491 = vpop.trf.xlu0
    %v9492 = vpop.trf.xlu0
    %v9493 = vpop.trf.xlu0
    %v9494 = vpop.trf.xlu0
    %v9495 = vpop.trf.xlu0
    %v9496 = vpop.trf.xlu0
    %v9497 = vpop.trf.xlu0
    %v9498 = vpop.trf.xlu0
    %v9499 = vpop.trf.xlu0
    %v9500 = vpop.trf.xlu0
    %v9501 = vpop.trf.xlu0
    %9502 = vxpose.xlu0.b32.start [1/16] %v9326, 128
    %9503 = vxpose.xlu0.b32.cont [2/16] %v9327, 128
    %9504 = vxpose.xlu0.b32.cont [3/16] %v9328, 128
    %9505 = vxpose.xlu0.b32.cont [4/16] %v9329, 128
    %9506 = vxpose.xlu0.b32.cont [5/16] %v9330, 128
    %9507 = vxpose.xlu0.b32.cont [6/16] %v9331, 128
    %9508 = vxpose.xlu0.b32.cont [7/16] %v9332, 128
    %9509 = vxpose.xlu0.b32.cont [8/16] %v9333, 128
    %9510 = vxpose.xlu0.b32.cont [9/16] %v9334, 128
    %9511 = vxpose.xlu0.b32.cont [10/16] %v9335, 128
    %9512 = vxpose.xlu0.b32.cont [11/16] %v9336, 128
    %9513 = vxpose.xlu0.b32.cont [12/16] %v9337, 128
    %9514 = vxpose.xlu0.b32.cont [13/16] %v9338, 128
    %9515 = vxpose.xlu0.b32.cont [14/16] %v9339, 128
    %9516 = vxpose.xlu0.b32.cont [15/16] %v9340, 128
    %9517 = vxpose.xlu0.b32.end [16/16] %v9341, 128
    %v9518 = vpop.trf.xlu0
    %v9519 = vpop.trf.xlu0
    %v9520 = vpop.trf.xlu0
    %v9521 = vpop.trf.xlu0
    %v9522 = vpop.trf.xlu0
    %v9523 = vpop.trf.xlu0
    %v9524 = vpop.trf.xlu0
    %v9525 = vpop.trf.xlu0
    %v9526 = vpop.trf.xlu0
    %v9527 = vpop.trf.xlu0
    %v9528 = vpop.trf.xlu0
    %v9529 = vpop.trf.xlu0
    %v9530 = vpop.trf.xlu0
    %v9531 = vpop.trf.xlu0
    %v9532 = vpop.trf.xlu0
    %v9533 = vpop.trf.xlu0
    %9534 = vxpose.xlu0.b32.start [1/16] %v9342, 128
    %9535 = vxpose.xlu0.b32.cont [2/16] %v9343, 128
    %9536 = vxpose.xlu0.b32.cont [3/16] %v9344, 128
    %9537 = vxpose.xlu0.b32.cont [4/16] %v9345, 128
    %9538 = vxpose.xlu0.b32.cont [5/16] %v9346, 128
    %9539 = vxpose.xlu0.b32.cont [6/16] %v9347, 128
    %9540 = vxpose.xlu0.b32.cont [7/16] %v9348, 128
    %9541 = vxpose.xlu0.b32.cont [8/16] %v9349, 128
    %9542 = vxpose.xlu0.b32.cont [9/16] %v9350, 128
    %9543 = vxpose.xlu0.b32.cont [10/16] %v9351, 128
    %9544 = vxpose.xlu0.b32.cont [11/16] %v9352, 128
    %9545 = vxpose.xlu0.b32.cont [12/16] %v9353, 128
    %9546 = vxpose.xlu0.b32.cont [13/16] %v9354, 128
    %9547 = vxpose.xlu0.b32.cont [14/16] %v9355, 128
    %9548 = vxpose.xlu0.b32.cont [15/16] %v9356, 128
    %9549 = vxpose.xlu0.b32.end [16/16] %v9357, 128
    %v9550 = vpop.trf.xlu0
    %v9551 = vpop.trf.xlu0
    %v9552 = vpop.trf.xlu0
    %v9553 = vpop.trf.xlu0
    %v9554 = vpop.trf.xlu0
    %v9555 = vpop.trf.xlu0
    %v9556 = vpop.trf.xlu0
    %v9557 = vpop.trf.xlu0
    %v9558 = vpop.trf.xlu0
    %v9559 = vpop.trf.xlu0
    %v9560 = vpop.trf.xlu0
    %v9561 = vpop.trf.xlu0
    %v9562 = vpop.trf.xlu0
    %v9563 = vpop.trf.xlu0
    %v9564 = vpop.trf.xlu0
    %v9565 = vpop.trf.xlu0
    %9566 = vxpose.xlu0.b32.start [1/16] %v9358, 128
    %9567 = vxpose.xlu0.b32.cont [2/16] %v9359, 128
    %9568 = vxpose.xlu0.b32.cont [3/16] %v9360, 128
    %9569 = vxpose.xlu0.b32.cont [4/16] %v9361, 128
    %9570 = vxpose.xlu0.b32.cont [5/16] %v9362, 128
    %9571 = vxpose.xlu0.b32.cont [6/16] %v9363, 128
    %9572 = vxpose.xlu0.b32.cont [7/16] %v9364, 128
    %9573 = vxpose.xlu0.b32.cont [8/16] %v9365, 128
    %9574 = vxpose.xlu0.b32.cont [9/16] %v9366, 128
    %9575 = vxpose.xlu0.b32.cont [10/16] %v9367, 128
    %9576 = vxpose.xlu0.b32.cont [11/16] %v9368, 128
    %9577 = vxpose.xlu0.b32.cont [12/16] %v9369, 128
    %9578 = vxpose.xlu0.b32.cont [13/16] %v9370, 128
    %9579 = vxpose.xlu0.b32.cont [14/16] %v9371, 128
    %9580 = vxpose.xlu0.b32.cont [15/16] %v9372, 128
    %9581 = vxpose.xlu0.b32.end [16/16] %v9373, 128
    %v9582 = vpop.trf.xlu0
    %v9583 = vpop.trf.xlu0
    %v9584 = vpop.trf.xlu0
    %v9585 = vpop.trf.xlu0
    %v9586 = vpop.trf.xlu0
    %v9587 = vpop.trf.xlu0
    %v9588 = vpop.trf.xlu0
    %v9589 = vpop.trf.xlu0
    %v9590 = vpop.trf.xlu0
    %v9591 = vpop.trf.xlu0
    %v9592 = vpop.trf.xlu0
    %v9593 = vpop.trf.xlu0
    %v9594 = vpop.trf.xlu0
    %v9595 = vpop.trf.xlu0
    %v9596 = vpop.trf.xlu0
    %v9597 = vpop.trf.xlu0
    %9598 = vxpose.xlu0.b32.start [1/16] %v9374, 128
    %9599 = vxpose.xlu0.b32.cont [2/16] %v9375, 128
    %9600 = vxpose.xlu0.b32.cont [3/16] %v9376, 128
    %9601 = vxpose.xlu0.b32.cont [4/16] %v9377, 128
    %9602 = vxpose.xlu0.b32.cont [5/16] %v9378, 128
    %9603 = vxpose.xlu0.b32.cont [6/16] %v9379, 128
    %9604 = vxpose.xlu0.b32.cont [7/16] %v9380, 128
    %9605 = vxpose.xlu0.b32.cont [8/16] %v9381, 128
    %9606 = vxpose.xlu0.b32.cont [9/16] %v9382, 128
    %9607 = vxpose.xlu0.b32.cont [10/16] %v9383, 128
    %9608 = vxpose.xlu0.b32.cont [11/16] %v9384, 128
    %9609 = vxpose.xlu0.b32.cont [12/16] %v9385, 128
    %9610 = vxpose.xlu0.b32.cont [13/16] %v9386, 128
    %9611 = vxpose.xlu0.b32.cont [14/16] %v9387, 128
    %9612 = vxpose.xlu0.b32.cont [15/16] %v9388, 128
    %9613 = vxpose.xlu0.b32.end [16/16] %v9389, 128
    %v9614 = vpop.trf.xlu0
    %v9615 = vpop.trf.xlu0
    %v9616 = vpop.trf.xlu0
    %v9617 = vpop.trf.xlu0
    %v9618 = vpop.trf.xlu0
    %v9619 = vpop.trf.xlu0
    %v9620 = vpop.trf.xlu0
    %v9621 = vpop.trf.xlu0
    %v9622 = vpop.trf.xlu0
    %v9623 = vpop.trf.xlu0
    %v9624 = vpop.trf.xlu0
    %v9625 = vpop.trf.xlu0
    %v9626 = vpop.trf.xlu0
    %v9627 = vpop.trf.xlu0
    %v9628 = vpop.trf.xlu0
    %v9629 = vpop.trf.xlu0
    %9630 = vxpose.xlu0.b32.start [1/16] %v9390, 128
    %9631 = vxpose.xlu0.b32.cont [2/16] %v9391, 128
    %9632 = vxpose.xlu0.b32.cont [3/16] %v9392, 128
    %9633 = vxpose.xlu0.b32.cont [4/16] %v9393, 128
    %9634 = vxpose.xlu0.b32.cont [5/16] %v9394, 128
    %9635 = vxpose.xlu0.b32.cont [6/16] %v9395, 128
    %9636 = vxpose.xlu0.b32.cont [7/16] %v9396, 128
    %9637 = vxpose.xlu0.b32.cont [8/16] %v9397, 128
    %9638 = vxpose.xlu0.b32.cont [9/16] %v9398, 128
    %9639 = vxpose.xlu0.b32.cont [10/16] %v9399, 128
    %9640 = vxpose.xlu0.b32.cont [11/16] %v9400, 128
    %9641 = vxpose.xlu0.b32.cont [12/16] %v9401, 128
    %9642 = vxpose.xlu0.b32.cont [13/16] %v9402, 128
    %9643 = vxpose.xlu0.b32.cont [14/16] %v9403, 128
    %9644 = vxpose.xlu0.b32.cont [15/16] %v9404, 128
    %9645 = vxpose.xlu0.b32.end [16/16] %v9405, 128
    %v9646 = vpop.trf.xlu0
    %v9647 = vpop.trf.xlu0
    %v9648 = vpop.trf.xlu0
    %v9649 = vpop.trf.xlu0
    %v9650 = vpop.trf.xlu0
    %v9651 = vpop.trf.xlu0
    %v9652 = vpop.trf.xlu0
    %v9653 = vpop.trf.xlu0
    %v9654 = vpop.trf.xlu0
    %v9655 = vpop.trf.xlu0
    %v9656 = vpop.trf.xlu0
    %v9657 = vpop.trf.xlu0
    %v9658 = vpop.trf.xlu0
    %v9659 = vpop.trf.xlu0
    %v9660 = vpop.trf.xlu0
    %v9661 = vpop.trf.xlu0
    %9662 = vst [vmem:[#allocation2] sm:$0xff] %v9422
    %9663 = vst [vmem:[#allocation2 + $0x8] sm:$0xff] %v9454
    %9664 = vst [vmem:[#allocation2 + $0x10] sm:$0xff] %v9423
    %9665 = vst [vmem:[#allocation2 + $0x18] sm:$0xff] %v9455
    %9666 = vst [vmem:[#allocation2 + $0x20] sm:$0xff] %v9486
    %9667 = vst [vmem:[#allocation2 + $0x28] sm:$0xff] %v9518
    %9668 = vst [vmem:[#allocation2 + $0x30] sm:$0xff] %v9487
    %9669 = vst [vmem:[#allocation2 + $0x38] sm:$0xff] %v9519
    %9670 = vst [vmem:[#allocation2 + $0x40] sm:$0xff] %v9550
    %9671 = vst [vmem:[#allocation2 + $0x48] sm:$0xff] %v9582
    %9672 = vst [vmem:[#allocation2 + $0x50] sm:$0xff] %v9551
    %9673 = vst [vmem:[#allocation2 + $0x58] sm:$0xff] %v9583
    %9674 = vst [vmem:[#allocation2 + $0x60] sm:$0xff] %v9614
    %9675 = vst [vmem:[#allocation2 + $0x68] sm:$0xff] %v9646
    %9676 = vst [vmem:[#allocation2 + $0x70] sm:$0xff] %v9615
    %9677 = vst [vmem:[#allocation2 + $0x78] sm:$0xff] %v9647
    // Predicated region
    $region46: #{bottleneck_forward.1} parent=1 // pred_check
      _
    $region47: #{bottleneck_forward.1} parent=1 // pred_check_branch
      %9679 = sbr.rel (0) target = $region49
    $region48: #{bottleneck_forward.1} parent=1 // pred_region
      %s9681 = ssub.s32 2048, 2048
      %9682 = vsyncadd [#allocation3], %s9681
      %s9683 = sshll.u32 [#allocation2], 4
      %s9684 = int_to_ptr.vmem [resolvable:$true] %s9683
      %9689 = dma.vmem_to_hbm [thread:$0]  %s9684, 2048, %s11, [#allocation3], 256, 256, 16
    $region49: #{bottleneck_forward.1} parent=1 // pred_fallthru
      _
    // Predicated region
    $region50: #{bottleneck_forward.1} parent=1 // pred_check
      _
    $region51: #{bottleneck_forward.1} parent=1 // pred_check_branch
      %9691 = sbr.rel (0) target = $region53
    $region52: #{bottleneck_forward.1} parent=1 // pred_region
      %9692 = dma.done [#allocation3], 2048
    $region53: #{bottleneck_forward.1} parent=1 // pred_fallthru
      _
    %9693 = vsyncpa [#allocation3], 1

</llo_original>
